<compile_context>
chip_gen: v6e
topology: v6e:2x2x1
jax: 0.10.0
libtpu: 0.0.40
codegen_flags: <defaults>
</compile_context>

<pallas_src>
import jax
import jax.numpy as jnp
from jax.experimental import pallas as pl
from jax.experimental.pallas import tpu as pltpu


def _round_up(x, m):
    return (x + m - 1) // m * m


def _gru_cell(gi, gh, h_prev, H):
    # PyTorch gate order: r, z, n
    r = jax.nn.sigmoid(gi[:, 0:H] + gh[:, 0:H])
    z = jax.nn.sigmoid(gi[:, H:2 * H] + gh[:, H:2 * H])
    n = jnp.tanh(gi[:, 2 * H:3 * H] + r * gh[:, 2 * H:3 * H])
    return (1.0 - z) * n + z * h_prev


def decoder_kernel(emb_ref, enc_ref, addmask_ref, h0_ref,
                   wq_ref, wk_ref, wv_ref,
                   wih0x_ref, bih0_ref, wih0c_ref, whh0_ref, bhh0_ref,
                   wih1_ref, bih1_ref, whh1_ref, bhh1_ref,
                   wfc_ref, bfc_ref,
                   out_ref, hout_ref,
                   hseq_ref):
    Bp, Sp, Hp = enc_ref.shape
    T = emb_ref.shape[0] // Bp
    f32 = jnp.float32

    enc = enc_ref[...]                                          # (Bp, Sp, Hp)
    addmask = addmask_ref[...]                                  # (Bp, Sp) 0 / -1e6

    # ---- loop-invariant large-M 2-D matmuls (single MXU launches) ----
    # (Bp,Sp,Hp)->(Bp*Sp,Hp): collapses leading dims only (Sp%8==0, Hp%128==0),
    # so it is layout-preserving (no VMEM relayout).
    k2 = jnp.dot(enc.reshape(Bp * Sp, Hp), wk_ref[...],
                 preferred_element_type=f32).reshape(Bp, Sp, Hp)
    # Layer-0 input-to-hidden projection for all steps: (T*Bp, Ep) @ (Ep, 3Hp)
    gi_x_all = jnp.dot(emb_ref[...], wih0x_ref[...],
                       preferred_element_type=f32) + bih0_ref[...]

    wq = wq_ref[...]
    wv3 = wv_ref[...][None, :, :]                               # (1, 1, Hp)
    wih0c = wih0c_ref[...]
    whh0 = whh0_ref[...]
    wih1 = wih1_ref[...]
    whh1 = whh1_ref[...]
    # hoisted bias broadcasts (JAX doesn't CSE broadcast_in_dim inside loops)
    bhh0 = jnp.broadcast_to(bhh0_ref[...], (Bp, 3 * Hp))
    bih1 = jnp.broadcast_to(bih1_ref[...], (Bp, 3 * Hp))
    bhh1 = jnp.broadcast_to(bhh1_ref[...], (Bp, 3 * Hp))

    h0 = h0_ref[0]                                              # (Bp, Hp)
    h1 = h0_ref[1]                                              # (Bp, Hp)

    # Static unrolled decode loop (T <= 8); hidden state stays in vregs and is
    # written back to hout only once at the end.
    for t in range(T):
        # ---- additive attention, query = top-layer hidden state ----
        q = jnp.dot(h1, wq, preferred_element_type=f32)         # (Bp, Hp)
        feat = jnp.tanh(q[:, None, :] + k2)                     # (Bp, Sp, Hp)
        scores = jnp.sum(feat * wv3, axis=-1) + addmask         # (Bp, Sp)
        m = jnp.max(scores, axis=-1, keepdims=True)
        e = jnp.exp(scores - m)
        attn = e * pl.reciprocal(jnp.sum(e, axis=-1, keepdims=True), approx=True)
        # context via VPU multiply + sublane reduce over Sp (MXU stays free)
        ctx = jnp.sum(attn[:, :, None] * enc, axis=1)           # (Bp, Hp)

        # ---- GRU layer 0: two plain (Bp,Hp)x(Hp,3Hp) matmuls, no concat ----
        gi0 = gi_x_all[t * Bp:(t + 1) * Bp, :] + jnp.dot(
            ctx, wih0c, preferred_element_type=f32)
        gh0 = jnp.dot(h0, whh0, preferred_element_type=f32) + bhh0
        h0 = _gru_cell(gi0, gh0, h0, Hp)

        # ---- GRU layer 1 ----
        gi1 = jnp.dot(h0, wih1, preferred_element_type=f32) + bih1
        gh1 = jnp.dot(h1, whh1, preferred_element_type=f32) + bhh1
        h1 = _gru_cell(gi1, gh1, h1, Hp)

        hseq_ref[t * Bp:(t + 1) * Bp, :] = h1                   # sublane-aligned

    hout_ref[0] = h0
    hout_ref[1] = h1

    # ---- deferred fc: one lane-dense (T*Bp,Hp)@(Hp,Vp) matmul, one store ----
    out_ref[...] = jnp.dot(hseq_ref[...], wfc_ref[...],
                           preferred_element_type=f32) + bfc_ref[...]


def decoder_forward(X, enc_outputs, hidden_state, enc_valid_lens, p):
    B, T = X.shape
    S = enc_outputs.shape[0]
    L, _, H = hidden_state.shape
    E = p['embedding'].shape[1]
    V = p['wfc_T'].shape[1]
    f32 = jnp.float32

    # Pad to MXU/vreg-friendly shapes once, here in the wrapper.
    Bp = _round_up(B, 8)          # f32 sublane
    Sp = _round_up(S, 8)
    Ep = _round_up(E, 8)
    Hp = _round_up(H, 128)        # lane-dense hidden
    Vp = _round_up(V, 128)        # lane-dense logits

    def pad2(x, r, c):
        return jnp.pad(x, ((0, r - x.shape[0]), (0, c - x.shape[1])))

    def pad_gate_w(w, kp):        # (K, 3H) -> (kp, 3Hp), per-gate column pad
        return jnp.concatenate(
            [pad2(w[:, g * H:(g + 1) * H], kp, Hp) for g in range(3)], axis=1)

    def pad_gate_b(b):            # (1, 3H) -> (1, 3Hp)
        return jnp.concatenate(
            [pad2(b[:, g * H:(g + 1) * H], 1, Hp) for g in range(3)], axis=1)

    # Embedding gather + time-major layout (torch `X.t()`), flattened to a
    # (T*Bp, Ep) slab so the hoisted projection is one large-M 2-D matmul.
    embs = p['embedding'][X.T].astype(f32)                      # (T, B, E)
    embs = jnp.pad(embs, ((0, 0), (0, Bp - B), (0, Ep - E)))
    embs2d = embs.reshape(T * Bp, Ep)

    enc = jnp.transpose(enc_outputs, (1, 0, 2)).astype(f32)     # (B, S, H)
    enc = jnp.pad(enc, ((0, Bp - B), (0, Sp - S), (0, Hp - H)))

    # Additive softmax mask built once (0 valid, -1e6 invalid / padded).
    vlen = jnp.pad(enc_valid_lens.astype(jnp.int32), (0, Bp - B))
    valid = jnp.arange(Sp, dtype=jnp.int32)[None, :] < vlen[:, None]
    addmask = jnp.where(valid, 0.0, -1e6).astype(f32)           # (Bp, Sp)

    h_init = jnp.pad(hidden_state.astype(f32),
                     ((0, 0), (0, Bp - B), (0, Hp - H)))        # (L, Bp, Hp)

    inputs = (
        embs2d, enc, addmask, h_init,
        pad2(p['wq_T'], Hp, Hp), pad2(p['wk_T'], Hp, Hp), pad2(p['wv'], 1, Hp),
        pad_gate_w(p['wih0x_T'], Ep), pad_gate_b(p['bih0']),
        pad_gate_w(p['wih0c_T'], Hp),
        pad_gate_w(p['whh0_T'], Hp), pad_gate_b(p['bhh0']),
        pad_gate_w(p['wih1_T'], Hp), pad_gate_b(p['bih1']),
        pad_gate_w(p['whh1_T'], Hp), pad_gate_b(p['bhh1']),
        pad2(p['wfc_T'], Hp, Vp), pad2(p['bfc'], 1, Vp),
    )

    def full(shape):
        n = len(shape)
        return pl.BlockSpec(shape, lambda i, n=n: (0,) * n)

    out2d, hout = pl.pallas_call(
        decoder_kernel,
        out_shape=[jax.ShapeDtypeStruct((T * Bp, Vp), f32),
                   jax.ShapeDtypeStruct((L, Bp, Hp), f32)],
        grid_spec=pltpu.PrefetchScalarGridSpec(
            num_scalar_prefetch=0, grid=(1,),
            in_specs=[full(x.shape) for x in inputs],
            out_specs=[full((T * Bp, Vp)), full((L, Bp, Hp))],
            scratch_shapes=[pltpu.VMEM((T * Bp, Hp), f32)]),
        compiler_params=pltpu.CompilerParams(
            dimension_semantics=("arbitrary",),
            vmem_limit_bytes=32 * 1024 * 1024),
    )(*inputs)

    out = out2d.reshape(T, Bp, Vp)[:, :B, :V]                   # drop padding
    h_final = hout[:, :B, :H]
    return jnp.transpose(out, (1, 0, 2)), h_final               # (B,T,V), (L,B,H)


def decoder_reference(X, enc_outputs, hidden_state, enc_valid_lens, p):
    """Pure-JAX reference of the same math (for correctness check)."""
    B, T = X.shape
    H = hidden_state.shape[2]
    embs = p['embedding'][X.T]
    enc = jnp.transpose(enc_outputs, (1, 0, 2))
    vlen = enc_valid_lens.astype(jnp.int32)
    h = [hidden_state[0], hidden_state[1]]
    outs = []
    for t in range(T):
        q = h[-1] @ p['wq_T']
        k = jnp.einsum('bsh,hk->bsk', enc, p['wk_T'])
        feat = jnp.tanh(q[:, None, :] + k)
        scores = jnp.sum(feat * p['wv'][None, :, :], -1)
        col = jnp.arange(enc.shape[1])[None, :]
        masked = jnp.where(col < vlen[:, None], scores, -1e6)
        attn = jax.nn.softmax(masked, axis=-1)
        ctx = jnp.sum(attn[:, :, None] * enc, axis=1)
        x = embs[t]
        gi = x @ p['wih0x_T'] + ctx @ p['wih0c_T'] + p['bih0']
        gh = h[0] @ p['whh0_T'] + p['bhh0']
        h[0] = _gru_cell(gi, gh, h[0], H)
        gi = h[0] @ p['wih1_T'] + p['bih1']
        gh = h[1] @ p['whh1_T'] + p['bhh1']
        h[1] = _gru_cell(gi, gh, h[1], H)
        outs.append(h[1] @ p['wfc_T'] + p['bfc'])
    return jnp.transpose(jnp.stack(outs), (1, 0, 2)), jnp.stack(h)


def init_params(key, vocab, E, H):
    ks = jax.random.split(key, 15)
    u = lambda k, shape, s=0.1: jax.random.uniform(k, shape, jnp.float32, -s, s)
    return {
        'embedding': u(ks[0], (vocab, E), 1.0),
        # attention (stored pre-transposed so kernel does x @ W directly)
        'wq_T': u(ks[1], (H, H)),
        'wk_T': u(ks[2], (H, H)),
        'wv':   u(ks[3], (1, H)),
        # GRU layer 0: W_ih split into embedding-part and context-part
        'wih0x_T': u(ks[4], (E, 3 * H)),
        'wih0c_T': u(ks[5], (H, 3 * H)),
        'whh0_T':  u(ks[6], (H, 3 * H)),
        'bih0': u(ks[7], (1, 3 * H)),
        'bhh0': u(ks[8], (1, 3 * H)),
        # GRU layer 1
        'wih1_T': u(ks[9], (H, 3 * H)),
        'whh1_T': u(ks[10], (H, 3 * H)),
        'bih1': u(ks[11], (1, 3 * H)),
        'bhh1': u(ks[12], (1, 3 * H)),
        # fc
        'wfc_T': u(ks[13], (H, vocab)),
        'bfc':   u(ks[14], (1, vocab)),
    }


if __name__ == "__main__":
    vocab_size, embed_size, num_hiddens, num_layers = 32, 16, 32, 2
    B, T_dec, S_enc = 2, 6, 8

    key = jax.random.PRNGKey(0)
    kp, kx, ke, kh = jax.random.split(key, 4)
    params = init_params(kp, vocab_size, embed_size, num_hiddens)

    X = jax.random.randint(kx, (B, T_dec), 0, vocab_size)                 # token ids
    enc_outputs = 0.5 * jax.random.normal(ke, (S_enc, B, num_hiddens), jnp.float32)
    hidden_state = 0.5 * jax.random.normal(kh, (num_layers, B, num_hiddens), jnp.float32)
    enc_valid_lens = jnp.array([5, 8], dtype=jnp.int32)

    out, h_final = jax.block_until_ready(
        decoder_forward(X, enc_outputs, hidden_state, enc_valid_lens, params))

    ref_out, ref_h = decoder_reference(X, enc_outputs, hidden_state,
                                       enc_valid_lens, params)

    assert out.shape == (B, T_dec, vocab_size)
    assert h_final.shape == (num_layers, B, num_hiddens)
    # tolerance loosened slightly vs. exact f32: the kernel normalizes the
    # softmax with the EUP approximate reciprocal (pl.reciprocal approx=True).
    assert jnp.allclose(out, ref_out, atol=5e-3, rtol=5e-3)
    assert jnp.allclose(h_final, ref_h, atol=5e-3, rtol=5e-3)
    print("KERNEL_OK")
</pallas_src>

<mosaic_0001>
module attributes {stable_mosaic.version = 11 : i64} {
  func.func @decoder_kernel(%arg0: i32, %arg1: memref<48x16xf32, #tpu.memory_space<vmem>>, %arg2: memref<8x8x128xf32, #tpu.memory_space<vmem>>, %arg3: memref<8x8xf32, #tpu.memory_space<vmem>>, %arg4: memref<2x8x128xf32, #tpu.memory_space<vmem>>, %arg5: memref<128x128xf32, #tpu.memory_space<vmem>>, %arg6: memref<128x128xf32, #tpu.memory_space<vmem>>, %arg7: memref<1x128xf32, #tpu.memory_space<vmem>>, %arg8: memref<16x384xf32, #tpu.memory_space<vmem>>, %arg9: memref<1x384xf32, #tpu.memory_space<vmem>>, %arg10: memref<128x384xf32, #tpu.memory_space<vmem>>, %arg11: memref<128x384xf32, #tpu.memory_space<vmem>>, %arg12: memref<1x384xf32, #tpu.memory_space<vmem>>, %arg13: memref<128x384xf32, #tpu.memory_space<vmem>>, %arg14: memref<1x384xf32, #tpu.memory_space<vmem>>, %arg15: memref<128x384xf32, #tpu.memory_space<vmem>>, %arg16: memref<1x384xf32, #tpu.memory_space<vmem>>, %arg17: memref<128x128xf32, #tpu.memory_space<vmem>>, %arg18: memref<1x128xf32, #tpu.memory_space<vmem>>, %arg19: memref<48x128xf32, #tpu.memory_space<vmem>>, %arg20: memref<2x8x128xf32, #tpu.memory_space<vmem>>, %arg21: memref<48x128xf32, #tpu.memory_space<vmem>>) attributes {dimension_semantics = [#tpu.dimension_semantics<arbitrary>], iteration_bounds = array<i64: 1>, scalar_prefetch = 0 : i64, scratch_operands = 1 : i64, tpu.core_type = #tpu.core_type<tc>, window_params = [{pipeline_mode = #tpu.pipeline_mode<synchronous>, transform_indices = @transform_0, window_bounds = array<i64: 48, 16>}, {pipeline_mode = #tpu.pipeline_mode<synchronous>, transform_indices = @transform_1, window_bounds = array<i64: 8, 8, 128>}, {pipeline_mode = #tpu.pipeline_mode<synchronous>, transform_indices = @transform_2, window_bounds = array<i64: 8, 8>}, {pipeline_mode = #tpu.pipeline_mode<synchronous>, transform_indices = @transform_3, window_bounds = array<i64: 2, 8, 128>}, {pipeline_mode = #tpu.pipeline_mode<synchronous>, transform_indices = @transform_4, window_bounds = array<i64: 128, 128>}, {pipeline_mode = #tpu.pipeline_mode<synchronous>, transform_indices = @transform_5, window_bounds = array<i64: 128, 128>}, {pipeline_mode = #tpu.pipeline_mode<synchronous>, transform_indices = @transform_6, window_bounds = array<i64: 1, 128>}, {pipeline_mode = #tpu.pipeline_mode<synchronous>, transform_indices = @transform_7, window_bounds = array<i64: 16, 384>}, {pipeline_mode = #tpu.pipeline_mode<synchronous>, transform_indices = @transform_8, window_bounds = array<i64: 1, 384>}, {pipeline_mode = #tpu.pipeline_mode<synchronous>, transform_indices = @transform_9, window_bounds = array<i64: 128, 384>}, {pipeline_mode = #tpu.pipeline_mode<synchronous>, transform_indices = @transform_10, window_bounds = array<i64: 128, 384>}, {pipeline_mode = #tpu.pipeline_mode<synchronous>, transform_indices = @transform_11, window_bounds = array<i64: 1, 384>}, {pipeline_mode = #tpu.pipeline_mode<synchronous>, transform_indices = @transform_12, window_bounds = array<i64: 128, 384>}, {pipeline_mode = #tpu.pipeline_mode<synchronous>, transform_indices = @transform_13, window_bounds = array<i64: 1, 384>}, {pipeline_mode = #tpu.pipeline_mode<synchronous>, transform_indices = @transform_14, window_bounds = array<i64: 128, 384>}, {pipeline_mode = #tpu.pipeline_mode<synchronous>, transform_indices = @transform_15, window_bounds = array<i64: 1, 384>}, {pipeline_mode = #tpu.pipeline_mode<synchronous>, transform_indices = @transform_16, window_bounds = array<i64: 128, 128>}, {pipeline_mode = #tpu.pipeline_mode<synchronous>, transform_indices = @transform_17, window_bounds = array<i64: 1, 128>}, {pipeline_mode = #tpu.pipeline_mode<synchronous>, transform_indices = @transform_18, window_bounds = array<i64: 48, 128>}, {pipeline_mode = #tpu.pipeline_mode<synchronous>, transform_indices = @transform_19, window_bounds = array<i64: 2, 8, 128>}]} {
    %c0 = arith.constant 0 : index
    %c0_0 = arith.constant 0 : index
    %c0_1 = arith.constant 0 : index
    %0 = vector.load %arg2[%c0, %c0_0, %c0_1] : memref<8x8x128xf32, #tpu.memory_space<vmem>>, vector<8x8x128xf32>
    %c0_2 = arith.constant 0 : index
    %c0_3 = arith.constant 0 : index
    %1 = vector.load %arg3[%c0_2, %c0_3] : memref<8x8xf32, #tpu.memory_space<vmem>>, vector<8x8xf32>
    %2 = vector.shape_cast %0 : vector<8x8x128xf32> to vector<64x128xf32>
    %c0_4 = arith.constant 0 : index
    %c0_5 = arith.constant 0 : index
    %3 = vector.load %arg6[%c0_4, %c0_5] : memref<128x128xf32, #tpu.memory_space<vmem>>, vector<128x128xf32>
    %cst = arith.constant dense<0.000000e+00> : vector<64x128xf32>
    %4 = tpu.matmul %2, %3, %cst {dimension_numbers = #tpu.dot_dimension_numbers<[1], [0], [0], [1], [0, 0, 1, 1], [], []>} : vector<64x128xf32>, vector<128x128xf32>, vector<64x128xf32> -> vector<64x128xf32>
    %5 = vector.shape_cast %4 : vector<64x128xf32> to vector<8x8x128xf32>
    %c0_6 = arith.constant 0 : index
    %c0_7 = arith.constant 0 : index
    %6 = vector.load %arg1[%c0_6, %c0_7] : memref<48x16xf32, #tpu.memory_space<vmem>>, vector<48x16xf32>
    %c0_8 = arith.constant 0 : index
    %c0_9 = arith.constant 0 : index
    %7 = vector.load %arg8[%c0_8, %c0_9] : memref<16x384xf32, #tpu.memory_space<vmem>>, vector<16x384xf32>
    %cst_10 = arith.constant dense<0.000000e+00> : vector<48x384xf32>
    %8 = tpu.matmul %6, %7, %cst_10 {dimension_numbers = #tpu.dot_dimension_numbers<[1], [0], [0], [1], [0, 0, 1, 1], [], []>} : vector<48x16xf32>, vector<16x384xf32>, vector<48x384xf32> -> vector<48x384xf32>
    %c0_11 = arith.constant 0 : index
    %c0_12 = arith.constant 0 : index
    %9 = vector.load %arg9[%c0_11, %c0_12] : memref<1x384xf32, #tpu.memory_space<vmem>>, vector<1x384xf32>
    %10 = vector.broadcast %9 : vector<1x384xf32> to vector<48x384xf32>
    %11 = arith.addf %8, %10 : vector<48x384xf32>
    %c0_13 = arith.constant 0 : index
    %c0_14 = arith.constant 0 : index
    %12 = vector.load %arg5[%c0_13, %c0_14] : memref<128x128xf32, #tpu.memory_space<vmem>>, vector<128x128xf32>
    %c0_15 = arith.constant 0 : index
    %c0_16 = arith.constant 0 : index
    %13 = vector.load %arg7[%c0_15, %c0_16] : memref<1x128xf32, #tpu.memory_space<vmem>>, vector<1x128xf32>
    %14 = vector.shape_cast %13 : vector<1x128xf32> to vector<1x1x128xf32>
    %c0_17 = arith.constant 0 : index
    %c0_18 = arith.constant 0 : index
    %15 = vector.load %arg10[%c0_17, %c0_18] : memref<128x384xf32, #tpu.memory_space<vmem>>, vector<128x384xf32>
    %c0_19 = arith.constant 0 : index
    %c0_20 = arith.constant 0 : index
    %16 = vector.load %arg11[%c0_19, %c0_20] : memref<128x384xf32, #tpu.memory_space<vmem>>, vector<128x384xf32>
    %c0_21 = arith.constant 0 : index
    %c0_22 = arith.constant 0 : index
    %17 = vector.load %arg13[%c0_21, %c0_22] : memref<128x384xf32, #tpu.memory_space<vmem>>, vector<128x384xf32>
    %c0_23 = arith.constant 0 : index
    %c0_24 = arith.constant 0 : index
    %18 = vector.load %arg15[%c0_23, %c0_24] : memref<128x384xf32, #tpu.memory_space<vmem>>, vector<128x384xf32>
    %c0_25 = arith.constant 0 : index
    %c0_26 = arith.constant 0 : index
    %19 = vector.load %arg12[%c0_25, %c0_26] : memref<1x384xf32, #tpu.memory_space<vmem>>, vector<1x384xf32>
    %20 = vector.shape_cast %19 : vector<1x384xf32> to vector<1x384xf32>
    %21 = vector.broadcast %20 : vector<1x384xf32> to vector<8x384xf32>
    %c0_27 = arith.constant 0 : index
    %c0_28 = arith.constant 0 : index
    %22 = vector.load %arg14[%c0_27, %c0_28] : memref<1x384xf32, #tpu.memory_space<vmem>>, vector<1x384xf32>
    %23 = vector.shape_cast %22 : vector<1x384xf32> to vector<1x384xf32>
    %24 = vector.broadcast %23 : vector<1x384xf32> to vector<8x384xf32>
    %c0_29 = arith.constant 0 : index
    %c0_30 = arith.constant 0 : index
    %25 = vector.load %arg16[%c0_29, %c0_30] : memref<1x384xf32, #tpu.memory_space<vmem>>, vector<1x384xf32>
    %26 = vector.shape_cast %25 : vector<1x384xf32> to vector<1x384xf32>
    %27 = vector.broadcast %26 : vector<1x384xf32> to vector<8x384xf32>
    %c0_31 = arith.constant 0 : index
    %c0_32 = arith.constant 0 : index
    %c0_33 = arith.constant 0 : index
    %28 = vector.load %arg4[%c0_31, %c0_32, %c0_33] : memref<2x8x128xf32, #tpu.memory_space<vmem>>, vector<1x8x128xf32>
    %29 = vector.shape_cast %28 : vector<1x8x128xf32> to vector<8x128xf32>
    %c1 = arith.constant 1 : index
    %c0_34 = arith.constant 0 : index
    %c0_35 = arith.constant 0 : index
    %30 = vector.load %arg4[%c1, %c0_34, %c0_35] : memref<2x8x128xf32, #tpu.memory_space<vmem>>, vector<1x8x128xf32>
    %31 = vector.shape_cast %30 : vector<1x8x128xf32> to vector<8x128xf32>
    %cst_36 = arith.constant dense<0.000000e+00> : vector<8x128xf32>
    %32 = tpu.matmul %31, %12, %cst_36 {dimension_numbers = #tpu.dot_dimension_numbers<[1], [0], [0], [1], [0, 0, 1, 1], [], []>} : vector<8x128xf32>, vector<128x128xf32>, vector<8x128xf32> -> vector<8x128xf32>
    %33 = vector.shape_cast %32 : vector<8x128xf32> to vector<8x1x128xf32>
    %34 = vector.broadcast %33 : vector<8x1x128xf32> to vector<8x8x128xf32>
    %35 = arith.addf %34, %5 : vector<8x8x128xf32>
    %36 = math.tanh %35 : vector<8x8x128xf32>
    %37 = vector.broadcast %14 : vector<1x1x128xf32> to vector<8x8x128xf32>
    %38 = arith.mulf %36, %37 : vector<8x8x128xf32>
    %cst_37 = arith.constant dense<0.000000e+00> : vector<8x8xf32>
    %39 = vector.multi_reduction <add>, %38, %cst_37 [2] : vector<8x8x128xf32> to vector<8x8xf32>
    %40 = arith.addf %39, %1 : vector<8x8xf32>
    %cst_38 = arith.constant dense<0xFF800000> : vector<8xf32>
    %41 = vector.multi_reduction <maximumf>, %40, %cst_38 [1] : vector<8x8xf32> to vector<8xf32>
    %42 = vector.shape_cast %41 : vector<8xf32> to vector<8x1xf32>
    %43 = vector.broadcast %42 : vector<8x1xf32> to vector<8x8xf32>
    %44 = arith.subf %40, %43 : vector<8x8xf32>
    %45 = math.exp %44 : vector<8x8xf32>
    %cst_39 = arith.constant dense<0.000000e+00> : vector<8xf32>
    %46 = vector.multi_reduction <add>, %45, %cst_39 [1] : vector<8x8xf32> to vector<8xf32>
    %47 = vector.shape_cast %46 : vector<8xf32> to vector<8x1xf32>
    %48 = tpu.reciprocal %47 {approx = true} : vector<8x1xf32> -> vector<8x1xf32>
    %49 = vector.broadcast %48 : vector<8x1xf32> to vector<8x8xf32>
    %50 = arith.mulf %45, %49 : vector<8x8xf32>
    %51 = vector.shape_cast %50 : vector<8x8xf32> to vector<8x8x1xf32>
    %52 = vector.broadcast %51 : vector<8x8x1xf32> to vector<8x8x128xf32>
    %53 = arith.mulf %52, %0 : vector<8x8x128xf32>
    %cst_40 = arith.constant dense<0.000000e+00> : vector<8x128xf32>
    %54 = vector.multi_reduction <add>, %53, %cst_40 [1] : vector<8x8x128xf32> to vector<8x128xf32>
    %55 = vector.extract_strided_slice %11 {offsets = [0, 0], sizes = [8, 384], strides = [1, 1]} : vector<48x384xf32> to vector<8x384xf32>
    %cst_41 = arith.constant dense<0.000000e+00> : vector<8x384xf32>
    %56 = tpu.matmul %54, %15, %cst_41 {dimension_numbers = #tpu.dot_dimension_numbers<[1], [0], [0], [1], [0, 0, 1, 1], [], []>} : vector<8x128xf32>, vector<128x384xf32>, vector<8x384xf32> -> vector<8x384xf32>
    %57 = arith.addf %55, %56 : vector<8x384xf32>
    %cst_42 = arith.constant dense<0.000000e+00> : vector<8x384xf32>
    %58 = tpu.matmul %29, %16, %cst_42 {dimension_numbers = #tpu.dot_dimension_numbers<[1], [0], [0], [1], [0, 0, 1, 1], [], []>} : vector<8x128xf32>, vector<128x384xf32>, vector<8x384xf32> -> vector<8x384xf32>
    %59 = arith.addf %58, %21 : vector<8x384xf32>
    %60 = vector.extract_strided_slice %57 {offsets = [0, 0], sizes = [8, 128], strides = [1, 1]} : vector<8x384xf32> to vector<8x128xf32>
    %61 = vector.extract_strided_slice %59 {offsets = [0, 0], sizes = [8, 128], strides = [1, 1]} : vector<8x384xf32> to vector<8x128xf32>
    %62 = arith.addf %60, %61 : vector<8x128xf32>
    %63 = arith.negf %62 : vector<8x128xf32>
    %64 = math.exp %63 : vector<8x128xf32>
    %cst_43 = arith.constant 1.000000e+00 : f32
    %65 = vector.broadcast %cst_43 : f32 to vector<8x128xf32>
    %66 = arith.addf %65, %64 : vector<8x128xf32>
    %67 = arith.divf %65, %66 : vector<8x128xf32>
    %68 = vector.extract_strided_slice %57 {offsets = [0, 128], sizes = [8, 128], strides = [1, 1]} : vector<8x384xf32> to vector<8x128xf32>
    %69 = vector.extract_strided_slice %59 {offsets = [0, 128], sizes = [8, 128], strides = [1, 1]} : vector<8x384xf32> to vector<8x128xf32>
    %70 = arith.addf %68, %69 : vector<8x128xf32>
    %71 = arith.negf %70 : vector<8x128xf32>
    %72 = math.exp %71 : vector<8x128xf32>
    %cst_44 = arith.constant 1.000000e+00 : f32
    %73 = vector.broadcast %cst_44 : f32 to vector<8x128xf32>
    %74 = arith.addf %73, %72 : vector<8x128xf32>
    %75 = arith.divf %73, %74 : vector<8x128xf32>
    %76 = vector.extract_strided_slice %57 {offsets = [0, 256], sizes = [8, 128], strides = [1, 1]} : vector<8x384xf32> to vector<8x128xf32>
    %77 = vector.extract_strided_slice %59 {offsets = [0, 256], sizes = [8, 128], strides = [1, 1]} : vector<8x384xf32> to vector<8x128xf32>
    %78 = arith.mulf %67, %77 : vector<8x128xf32>
    %79 = arith.addf %76, %78 : vector<8x128xf32>
    %80 = math.tanh %79 : vector<8x128xf32>
    %cst_45 = arith.constant 1.000000e+00 : f32
    %81 = vector.broadcast %cst_45 : f32 to vector<8x128xf32>
    %82 = arith.subf %81, %75 : vector<8x128xf32>
    %83 = arith.mulf %82, %80 : vector<8x128xf32>
    %84 = arith.mulf %75, %29 : vector<8x128xf32>
    %85 = arith.addf %83, %84 : vector<8x128xf32>
    %cst_46 = arith.constant dense<0.000000e+00> : vector<8x384xf32>
    %86 = tpu.matmul %85, %17, %cst_46 {dimension_numbers = #tpu.dot_dimension_numbers<[1], [0], [0], [1], [0, 0, 1, 1], [], []>} : vector<8x128xf32>, vector<128x384xf32>, vector<8x384xf32> -> vector<8x384xf32>
    %87 = arith.addf %86, %24 : vector<8x384xf32>
    %cst_47 = arith.constant dense<0.000000e+00> : vector<8x384xf32>
    %88 = tpu.matmul %31, %18, %cst_47 {dimension_numbers = #tpu.dot_dimension_numbers<[1], [0], [0], [1], [0, 0, 1, 1], [], []>} : vector<8x128xf32>, vector<128x384xf32>, vector<8x384xf32> -> vector<8x384xf32>
    %89 = arith.addf %88, %27 : vector<8x384xf32>
    %90 = vector.extract_strided_slice %87 {offsets = [0, 0], sizes = [8, 128], strides = [1, 1]} : vector<8x384xf32> to vector<8x128xf32>
    %91 = vector.extract_strided_slice %89 {offsets = [0, 0], sizes = [8, 128], strides = [1, 1]} : vector<8x384xf32> to vector<8x128xf32>
    %92 = arith.addf %90, %91 : vector<8x128xf32>
    %93 = arith.negf %92 : vector<8x128xf32>
    %94 = math.exp %93 : vector<8x128xf32>
    %cst_48 = arith.constant 1.000000e+00 : f32
    %95 = vector.broadcast %cst_48 : f32 to vector<8x128xf32>
    %96 = arith.addf %95, %94 : vector<8x128xf32>
    %97 = arith.divf %95, %96 : vector<8x128xf32>
    %98 = vector.extract_strided_slice %87 {offsets = [0, 128], sizes = [8, 128], strides = [1, 1]} : vector<8x384xf32> to vector<8x128xf32>
    %99 = vector.extract_strided_slice %89 {offsets = [0, 128], sizes = [8, 128], strides = [1, 1]} : vector<8x384xf32> to vector<8x128xf32>
    %100 = arith.addf %98, %99 : vector<8x128xf32>
    %101 = arith.negf %100 : vector<8x128xf32>
    %102 = math.exp %101 : vector<8x128xf32>
    %cst_49 = arith.constant 1.000000e+00 : f32
    %103 = vector.broadcast %cst_49 : f32 to vector<8x128xf32>
    %104 = arith.addf %103, %102 : vector<8x128xf32>
    %105 = arith.divf %103, %104 : vector<8x128xf32>
    %106 = vector.extract_strided_slice %87 {offsets = [0, 256], sizes = [8, 128], strides = [1, 1]} : vector<8x384xf32> to vector<8x128xf32>
    %107 = vector.extract_strided_slice %89 {offsets = [0, 256], sizes = [8, 128], strides = [1, 1]} : vector<8x384xf32> to vector<8x128xf32>
    %108 = arith.mulf %97, %107 : vector<8x128xf32>
    %109 = arith.addf %106, %108 : vector<8x128xf32>
    %110 = math.tanh %109 : vector<8x128xf32>
    %cst_50 = arith.constant 1.000000e+00 : f32
    %111 = vector.broadcast %cst_50 : f32 to vector<8x128xf32>
    %112 = arith.subf %111, %105 : vector<8x128xf32>
    %113 = arith.mulf %112, %110 : vector<8x128xf32>
    %114 = arith.mulf %105, %31 : vector<8x128xf32>
    %115 = arith.addf %113, %114 : vector<8x128xf32>
    %c0_51 = arith.constant 0 : index
    %c0_52 = arith.constant 0 : index
    %116 = vector.load %arg21[%c0_51, %c0_52] : memref<48x128xf32, #tpu.memory_space<vmem>>, vector<8x128xf32>
    tpu.vector_store %arg21[%c0_51, %c0_52], %115 {strides = array<i32>} : memref<48x128xf32, #tpu.memory_space<vmem>>, vector<8x128xf32>,
    %cst_53 = arith.constant dense<0.000000e+00> : vector<8x128xf32>
    %117 = tpu.matmul %115, %12, %cst_53 {dimension_numbers = #tpu.dot_dimension_numbers<[1], [0], [0], [1], [0, 0, 1, 1], [], []>} : vector<8x128xf32>, vector<128x128xf32>, vector<8x128xf32> -> vector<8x128xf32>
    %118 = vector.shape_cast %117 : vector<8x128xf32> to vector<8x1x128xf32>
    %119 = vector.broadcast %118 : vector<8x1x128xf32> to vector<8x8x128xf32>
    %120 = arith.addf %119, %5 : vector<8x8x128xf32>
    %121 = math.tanh %120 : vector<8x8x128xf32>
    %122 = vector.broadcast %14 : vector<1x1x128xf32> to vector<8x8x128xf32>
    %123 = arith.mulf %121, %122 : vector<8x8x128xf32>
    %cst_54 = arith.constant dense<0.000000e+00> : vector<8x8xf32>
    %124 = vector.multi_reduction <add>, %123, %cst_54 [2] : vector<8x8x128xf32> to vector<8x8xf32>
    %125 = arith.addf %124, %1 : vector<8x8xf32>
    %cst_55 = arith.constant dense<0xFF800000> : vector<8xf32>
    %126 = vector.multi_reduction <maximumf>, %125, %cst_55 [1] : vector<8x8xf32> to vector<8xf32>
    %127 = vector.shape_cast %126 : vector<8xf32> to vector<8x1xf32>
    %128 = vector.broadcast %127 : vector<8x1xf32> to vector<8x8xf32>
    %129 = arith.subf %125, %128 : vector<8x8xf32>
    %130 = math.exp %129 : vector<8x8xf32>
    %cst_56 = arith.constant dense<0.000000e+00> : vector<8xf32>
    %131 = vector.multi_reduction <add>, %130, %cst_56 [1] : vector<8x8xf32> to vector<8xf32>
    %132 = vector.shape_cast %131 : vector<8xf32> to vector<8x1xf32>
    %133 = tpu.reciprocal %132 {approx = true} : vector<8x1xf32> -> vector<8x1xf32>
    %134 = vector.broadcast %133 : vector<8x1xf32> to vector<8x8xf32>
    %135 = arith.mulf %130, %134 : vector<8x8xf32>
    %136 = vector.shape_cast %135 : vector<8x8xf32> to vector<8x8x1xf32>
    %137 = vector.broadcast %136 : vector<8x8x1xf32> to vector<8x8x128xf32>
    %138 = arith.mulf %137, %0 : vector<8x8x128xf32>
    %cst_57 = arith.constant dense<0.000000e+00> : vector<8x128xf32>
    %139 = vector.multi_reduction <add>, %138, %cst_57 [1] : vector<8x8x128xf32> to vector<8x128xf32>
    %140 = vector.extract_strided_slice %11 {offsets = [8, 0], sizes = [8, 384], strides = [1, 1]} : vector<48x384xf32> to vector<8x384xf32>
    %cst_58 = arith.constant dense<0.000000e+00> : vector<8x384xf32>
    %141 = tpu.matmul %139, %15, %cst_58 {dimension_numbers = #tpu.dot_dimension_numbers<[1], [0], [0], [1], [0, 0, 1, 1], [], []>} : vector<8x128xf32>, vector<128x384xf32>, vector<8x384xf32> -> vector<8x384xf32>
    %142 = arith.addf %140, %141 : vector<8x384xf32>
    %cst_59 = arith.constant dense<0.000000e+00> : vector<8x384xf32>
    %143 = tpu.matmul %85, %16, %cst_59 {dimension_numbers = #tpu.dot_dimension_numbers<[1], [0], [0], [1], [0, 0, 1, 1], [], []>} : vector<8x128xf32>, vector<128x384xf32>, vector<8x384xf32> -> vector<8x384xf32>
    %144 = arith.addf %143, %21 : vector<8x384xf32>
    %145 = vector.extract_strided_slice %142 {offsets = [0, 0], sizes = [8, 128], strides = [1, 1]} : vector<8x384xf32> to vector<8x128xf32>
    %146 = vector.extract_strided_slice %144 {offsets = [0, 0], sizes = [8, 128], strides = [1, 1]} : vector<8x384xf32> to vector<8x128xf32>
    %147 = arith.addf %145, %146 : vector<8x128xf32>
    %148 = arith.negf %147 : vector<8x128xf32>
    %149 = math.exp %148 : vector<8x128xf32>
    %cst_60 = arith.constant 1.000000e+00 : f32
    %150 = vector.broadcast %cst_60 : f32 to vector<8x128xf32>
    %151 = arith.addf %150, %149 : vector<8x128xf32>
    %152 = arith.divf %150, %151 : vector<8x128xf32>
    %153 = vector.extract_strided_slice %142 {offsets = [0, 128], sizes = [8, 128], strides = [1, 1]} : vector<8x384xf32> to vector<8x128xf32>
    %154 = vector.extract_strided_slice %144 {offsets = [0, 128], sizes = [8, 128], strides = [1, 1]} : vector<8x384xf32> to vector<8x128xf32>
    %155 = arith.addf %153, %154 : vector<8x128xf32>
    %156 = arith.negf %155 : vector<8x128xf32>
    %157 = math.exp %156 : vector<8x128xf32>
    %cst_61 = arith.constant 1.000000e+00 : f32
    %158 = vector.broadcast %cst_61 : f32 to vector<8x128xf32>
    %159 = arith.addf %158, %157 : vector<8x128xf32>
    %160 = arith.divf %158, %159 : vector<8x128xf32>
    %161 = vector.extract_strided_slice %142 {offsets = [0, 256], sizes = [8, 128], strides = [1, 1]} : vector<8x384xf32> to vector<8x128xf32>
    %162 = vector.extract_strided_slice %144 {offsets = [0, 256], sizes = [8, 128], strides = [1, 1]} : vector<8x384xf32> to vector<8x128xf32>
    %163 = arith.mulf %152, %162 : vector<8x128xf32>
    %164 = arith.addf %161, %163 : vector<8x128xf32>
    %165 = math.tanh %164 : vector<8x128xf32>
    %cst_62 = arith.constant 1.000000e+00 : f32
    %166 = vector.broadcast %cst_62 : f32 to vector<8x128xf32>
    %167 = arith.subf %166, %160 : vector<8x128xf32>
    %168 = arith.mulf %167, %165 : vector<8x128xf32>
    %169 = arith.mulf %160, %85 : vector<8x128xf32>
    %170 = arith.addf %168, %169 : vector<8x128xf32>
    %cst_63 = arith.constant dense<0.000000e+00> : vector<8x384xf32>
    %171 = tpu.matmul %170, %17, %cst_63 {dimension_numbers = #tpu.dot_dimension_numbers<[1], [0], [0], [1], [0, 0, 1, 1], [], []>} : vector<8x128xf32>, vector<128x384xf32>, vector<8x384xf32> -> vector<8x384xf32>
    %172 = arith.addf %171, %24 : vector<8x384xf32>
    %cst_64 = arith.constant dense<0.000000e+00> : vector<8x384xf32>
    %173 = tpu.matmul %115, %18, %cst_64 {dimension_numbers = #tpu.dot_dimension_numbers<[1], [0], [0], [1], [0, 0, 1, 1], [], []>} : vector<8x128xf32>, vector<128x384xf32>, vector<8x384xf32> -> vector<8x384xf32>
    %174 = arith.addf %173, %27 : vector<8x384xf32>
    %175 = vector.extract_strided_slice %172 {offsets = [0, 0], sizes = [8, 128], strides = [1, 1]} : vector<8x384xf32> to vector<8x128xf32>
    %176 = vector.extract_strided_slice %174 {offsets = [0, 0], sizes = [8, 128], strides = [1, 1]} : vector<8x384xf32> to vector<8x128xf32>
    %177 = arith.addf %175, %176 : vector<8x128xf32>
    %178 = arith.negf %177 : vector<8x128xf32>
    %179 = math.exp %178 : vector<8x128xf32>
    %cst_65 = arith.constant 1.000000e+00 : f32
    %180 = vector.broadcast %cst_65 : f32 to vector<8x128xf32>
    %181 = arith.addf %180, %179 : vector<8x128xf32>
    %182 = arith.divf %180, %181 : vector<8x128xf32>
    %183 = vector.extract_strided_slice %172 {offsets = [0, 128], sizes = [8, 128], strides = [1, 1]} : vector<8x384xf32> to vector<8x128xf32>
    %184 = vector.extract_strided_slice %174 {offsets = [0, 128], sizes = [8, 128], strides = [1, 1]} : vector<8x384xf32> to vector<8x128xf32>
    %185 = arith.addf %183, %184 : vector<8x128xf32>
    %186 = arith.negf %185 : vector<8x128xf32>
    %187 = math.exp %186 : vector<8x128xf32>
    %cst_66 = arith.constant 1.000000e+00 : f32
    %188 = vector.broadcast %cst_66 : f32 to vector<8x128xf32>
    %189 = arith.addf %188, %187 : vector<8x128xf32>
    %190 = arith.divf %188, %189 : vector<8x128xf32>
    %191 = vector.extract_strided_slice %172 {offsets = [0, 256], sizes = [8, 128], strides = [1, 1]} : vector<8x384xf32> to vector<8x128xf32>
    %192 = vector.extract_strided_slice %174 {offsets = [0, 256], sizes = [8, 128], strides = [1, 1]} : vector<8x384xf32> to vector<8x128xf32>
    %193 = arith.mulf %182, %192 : vector<8x128xf32>
    %194 = arith.addf %191, %193 : vector<8x128xf32>
    %195 = math.tanh %194 : vector<8x128xf32>
    %cst_67 = arith.constant 1.000000e+00 : f32
    %196 = vector.broadcast %cst_67 : f32 to vector<8x128xf32>
    %197 = arith.subf %196, %190 : vector<8x128xf32>
    %198 = arith.mulf %197, %195 : vector<8x128xf32>
    %199 = arith.mulf %190, %115 : vector<8x128xf32>
    %200 = arith.addf %198, %199 : vector<8x128xf32>
    %c8 = arith.constant 8 : index
    %c0_68 = arith.constant 0 : index
    %201 = vector.load %arg21[%c8, %c0_68] : memref<48x128xf32, #tpu.memory_space<vmem>>, vector<8x128xf32>
    tpu.vector_store %arg21[%c8, %c0_68], %200 {strides = array<i32>} : memref<48x128xf32, #tpu.memory_space<vmem>>, vector<8x128xf32>,
    %cst_69 = arith.constant dense<0.000000e+00> : vector<8x128xf32>
    %202 = tpu.matmul %200, %12, %cst_69 {dimension_numbers = #tpu.dot_dimension_numbers<[1], [0], [0], [1], [0, 0, 1, 1], [], []>} : vector<8x128xf32>, vector<128x128xf32>, vector<8x128xf32> -> vector<8x128xf32>
    %203 = vector.shape_cast %202 : vector<8x128xf32> to vector<8x1x128xf32>
    %204 = vector.broadcast %203 : vector<8x1x128xf32> to vector<8x8x128xf32>
    %205 = arith.addf %204, %5 : vector<8x8x128xf32>
    %206 = math.tanh %205 : vector<8x8x128xf32>
    %207 = vector.broadcast %14 : vector<1x1x128xf32> to vector<8x8x128xf32>
    %208 = arith.mulf %206, %207 : vector<8x8x128xf32>
    %cst_70 = arith.constant dense<0.000000e+00> : vector<8x8xf32>
    %209 = vector.multi_reduction <add>, %208, %cst_70 [2] : vector<8x8x128xf32> to vector<8x8xf32>
    %210 = arith.addf %209, %1 : vector<8x8xf32>
    %cst_71 = arith.constant dense<0xFF800000> : vector<8xf32>
    %211 = vector.multi_reduction <maximumf>, %210, %cst_71 [1] : vector<8x8xf32> to vector<8xf32>
    %212 = vector.shape_cast %211 : vector<8xf32> to vector<8x1xf32>
    %213 = vector.broadcast %212 : vector<8x1xf32> to vector<8x8xf32>
    %214 = arith.subf %210, %213 : vector<8x8xf32>
    %215 = math.exp %214 : vector<8x8xf32>
    %cst_72 = arith.constant dense<0.000000e+00> : vector<8xf32>
    %216 = vector.multi_reduction <add>, %215, %cst_72 [1] : vector<8x8xf32> to vector<8xf32>
    %217 = vector.shape_cast %216 : vector<8xf32> to vector<8x1xf32>
    %218 = tpu.reciprocal %217 {approx = true} : vector<8x1xf32> -> vector<8x1xf32>
    %219 = vector.broadcast %218 : vector<8x1xf32> to vector<8x8xf32>
    %220 = arith.mulf %215, %219 : vector<8x8xf32>
    %221 = vector.shape_cast %220 : vector<8x8xf32> to vector<8x8x1xf32>
    %222 = vector.broadcast %221 : vector<8x8x1xf32> to vector<8x8x128xf32>
    %223 = arith.mulf %222, %0 : vector<8x8x128xf32>
    %cst_73 = arith.constant dense<0.000000e+00> : vector<8x128xf32>
    %224 = vector.multi_reduction <add>, %223, %cst_73 [1] : vector<8x8x128xf32> to vector<8x128xf32>
    %225 = vector.extract_strided_slice %11 {offsets = [16, 0], sizes = [8, 384], strides = [1, 1]} : vector<48x384xf32> to vector<8x384xf32>
    %cst_74 = arith.constant dense<0.000000e+00> : vector<8x384xf32>
    %226 = tpu.matmul %224, %15, %cst_74 {dimension_numbers = #tpu.dot_dimension_numbers<[1], [0], [0], [1], [0, 0, 1, 1], [], []>} : vector<8x128xf32>, vector<128x384xf32>, vector<8x384xf32> -> vector<8x384xf32>
    %227 = arith.addf %225, %226 : vector<8x384xf32>
    %cst_75 = arith.constant dense<0.000000e+00> : vector<8x384xf32>
    %228 = tpu.matmul %170, %16, %cst_75 {dimension_numbers = #tpu.dot_dimension_numbers<[1], [0], [0], [1], [0, 0, 1, 1], [], []>} : vector<8x128xf32>, vector<128x384xf32>, vector<8x384xf32> -> vector<8x384xf32>
    %229 = arith.addf %228, %21 : vector<8x384xf32>
    %230 = vector.extract_strided_slice %227 {offsets = [0, 0], sizes = [8, 128], strides = [1, 1]} : vector<8x384xf32> to vector<8x128xf32>
    %231 = vector.extract_strided_slice %229 {offsets = [0, 0], sizes = [8, 128], strides = [1, 1]} : vector<8x384xf32> to vector<8x128xf32>
    %232 = arith.addf %230, %231 : vector<8x128xf32>
    %233 = arith.negf %232 : vector<8x128xf32>
    %234 = math.exp %233 : vector<8x128xf32>
    %cst_76 = arith.constant 1.000000e+00 : f32
    %235 = vector.broadcast %cst_76 : f32 to vector<8x128xf32>
    %236 = arith.addf %235, %234 : vector<8x128xf32>
    %237 = arith.divf %235, %236 : vector<8x128xf32>
    %238 = vector.extract_strided_slice %227 {offsets = [0, 128], sizes = [8, 128], strides = [1, 1]} : vector<8x384xf32> to vector<8x128xf32>
    %239 = vector.extract_strided_slice %229 {offsets = [0, 128], sizes = [8, 128], strides = [1, 1]} : vector<8x384xf32> to vector<8x128xf32>
    %240 = arith.addf %238, %239 : vector<8x128xf32>
    %241 = arith.negf %240 : vector<8x128xf32>
    %242 = math.exp %241 : vector<8x128xf32>
    %cst_77 = arith.constant 1.000000e+00 : f32
    %243 = vector.broadcast %cst_77 : f32 to vector<8x128xf32>
    %244 = arith.addf %243, %242 : vector<8x128xf32>
    %245 = arith.divf %243, %244 : vector<8x128xf32>
    %246 = vector.extract_strided_slice %227 {offsets = [0, 256], sizes = [8, 128], strides = [1, 1]} : vector<8x384xf32> to vector<8x128xf32>
    %247 = vector.extract_strided_slice %229 {offsets = [0, 256], sizes = [8, 128], strides = [1, 1]} : vector<8x384xf32> to vector<8x128xf32>
    %248 = arith.mulf %237, %247 : vector<8x128xf32>
    %249 = arith.addf %246, %248 : vector<8x128xf32>
    %250 = math.tanh %249 : vector<8x128xf32>
    %cst_78 = arith.constant 1.000000e+00 : f32
    %251 = vector.broadcast %cst_78 : f32 to vector<8x128xf32>
    %252 = arith.subf %251, %245 : vector<8x128xf32>
    %253 = arith.mulf %252, %250 : vector<8x128xf32>
    %254 = arith.mulf %245, %170 : vector<8x128xf32>
    %255 = arith.addf %253, %254 : vector<8x128xf32>
    %cst_79 = arith.constant dense<0.000000e+00> : vector<8x384xf32>
    %256 = tpu.matmul %255, %17, %cst_79 {dimension_numbers = #tpu.dot_dimension_numbers<[1], [0], [0], [1], [0, 0, 1, 1], [], []>} : vector<8x128xf32>, vector<128x384xf32>, vector<8x384xf32> -> vector<8x384xf32>
    %257 = arith.addf %256, %24 : vector<8x384xf32>
    %cst_80 = arith.constant dense<0.000000e+00> : vector<8x384xf32>
    %258 = tpu.matmul %200, %18, %cst_80 {dimension_numbers = #tpu.dot_dimension_numbers<[1], [0], [0], [1], [0, 0, 1, 1], [], []>} : vector<8x128xf32>, vector<128x384xf32>, vector<8x384xf32> -> vector<8x384xf32>
    %259 = arith.addf %258, %27 : vector<8x384xf32>
    %260 = vector.extract_strided_slice %257 {offsets = [0, 0], sizes = [8, 128], strides = [1, 1]} : vector<8x384xf32> to vector<8x128xf32>
    %261 = vector.extract_strided_slice %259 {offsets = [0, 0], sizes = [8, 128], strides = [1, 1]} : vector<8x384xf32> to vector<8x128xf32>
    %262 = arith.addf %260, %261 : vector<8x128xf32>
    %263 = arith.negf %262 : vector<8x128xf32>
    %264 = math.exp %263 : vector<8x128xf32>
    %cst_81 = arith.constant 1.000000e+00 : f32
    %265 = vector.broadcast %cst_81 : f32 to vector<8x128xf32>
    %266 = arith.addf %265, %264 : vector<8x128xf32>
    %267 = arith.divf %265, %266 : vector<8x128xf32>
    %268 = vector.extract_strided_slice %257 {offsets = [0, 128], sizes = [8, 128], strides = [1, 1]} : vector<8x384xf32> to vector<8x128xf32>
    %269 = vector.extract_strided_slice %259 {offsets = [0, 128], sizes = [8, 128], strides = [1, 1]} : vector<8x384xf32> to vector<8x128xf32>
    %270 = arith.addf %268, %269 : vector<8x128xf32>
    %271 = arith.negf %270 : vector<8x128xf32>
    %272 = math.exp %271 : vector<8x128xf32>
    %cst_82 = arith.constant 1.000000e+00 : f32
    %273 = vector.broadcast %cst_82 : f32 to vector<8x128xf32>
    %274 = arith.addf %273, %272 : vector<8x128xf32>
    %275 = arith.divf %273, %274 : vector<8x128xf32>
    %276 = vector.extract_strided_slice %257 {offsets = [0, 256], sizes = [8, 128], strides = [1, 1]} : vector<8x384xf32> to vector<8x128xf32>
    %277 = vector.extract_strided_slice %259 {offsets = [0, 256], sizes = [8, 128], strides = [1, 1]} : vector<8x384xf32> to vector<8x128xf32>
    %278 = arith.mulf %267, %277 : vector<8x128xf32>
    %279 = arith.addf %276, %278 : vector<8x128xf32>
    %280 = math.tanh %279 : vector<8x128xf32>
    %cst_83 = arith.constant 1.000000e+00 : f32
    %281 = vector.broadcast %cst_83 : f32 to vector<8x128xf32>
    %282 = arith.subf %281, %275 : vector<8x128xf32>
    %283 = arith.mulf %282, %280 : vector<8x128xf32>
    %284 = arith.mulf %275, %200 : vector<8x128xf32>
    %285 = arith.addf %283, %284 : vector<8x128xf32>
    %c16 = arith.constant 16 : index
    %c0_84 = arith.constant 0 : index
    %286 = vector.load %arg21[%c16, %c0_84] : memref<48x128xf32, #tpu.memory_space<vmem>>, vector<8x128xf32>
    tpu.vector_store %arg21[%c16, %c0_84], %285 {strides = array<i32>} : memref<48x128xf32, #tpu.memory_space<vmem>>, vector<8x128xf32>,
    %cst_85 = arith.constant dense<0.000000e+00> : vector<8x128xf32>
    %287 = tpu.matmul %285, %12, %cst_85 {dimension_numbers = #tpu.dot_dimension_numbers<[1], [0], [0], [1], [0, 0, 1, 1], [], []>} : vector<8x128xf32>, vector<128x128xf32>, vector<8x128xf32> -> vector<8x128xf32>
    %288 = vector.shape_cast %287 : vector<8x128xf32> to vector<8x1x128xf32>
    %289 = vector.broadcast %288 : vector<8x1x128xf32> to vector<8x8x128xf32>
    %290 = arith.addf %289, %5 : vector<8x8x128xf32>
    %291 = math.tanh %290 : vector<8x8x128xf32>
    %292 = vector.broadcast %14 : vector<1x1x128xf32> to vector<8x8x128xf32>
    %293 = arith.mulf %291, %292 : vector<8x8x128xf32>
    %cst_86 = arith.constant dense<0.000000e+00> : vector<8x8xf32>
    %294 = vector.multi_reduction <add>, %293, %cst_86 [2] : vector<8x8x128xf32> to vector<8x8xf32>
    %295 = arith.addf %294, %1 : vector<8x8xf32>
    %cst_87 = arith.constant dense<0xFF800000> : vector<8xf32>
    %296 = vector.multi_reduction <maximumf>, %295, %cst_87 [1] : vector<8x8xf32> to vector<8xf32>
    %297 = vector.shape_cast %296 : vector<8xf32> to vector<8x1xf32>
    %298 = vector.broadcast %297 : vector<8x1xf32> to vector<8x8xf32>
    %299 = arith.subf %295, %298 : vector<8x8xf32>
    %300 = math.exp %299 : vector<8x8xf32>
    %cst_88 = arith.constant dense<0.000000e+00> : vector<8xf32>
    %301 = vector.multi_reduction <add>, %300, %cst_88 [1] : vector<8x8xf32> to vector<8xf32>
    %302 = vector.shape_cast %301 : vector<8xf32> to vector<8x1xf32>
    %303 = tpu.reciprocal %302 {approx = true} : vector<8x1xf32> -> vector<8x1xf32>
    %304 = vector.broadcast %303 : vector<8x1xf32> to vector<8x8xf32>
    %305 = arith.mulf %300, %304 : vector<8x8xf32>
    %306 = vector.shape_cast %305 : vector<8x8xf32> to vector<8x8x1xf32>
    %307 = vector.broadcast %306 : vector<8x8x1xf32> to vector<8x8x128xf32>
    %308 = arith.mulf %307, %0 : vector<8x8x128xf32>
    %cst_89 = arith.constant dense<0.000000e+00> : vector<8x128xf32>
    %309 = vector.multi_reduction <add>, %308, %cst_89 [1] : vector<8x8x128xf32> to vector<8x128xf32>
    %310 = vector.extract_strided_slice %11 {offsets = [24, 0], sizes = [8, 384], strides = [1, 1]} : vector<48x384xf32> to vector<8x384xf32>
    %cst_90 = arith.constant dense<0.000000e+00> : vector<8x384xf32>
    %311 = tpu.matmul %309, %15, %cst_90 {dimension_numbers = #tpu.dot_dimension_numbers<[1], [0], [0], [1], [0, 0, 1, 1], [], []>} : vector<8x128xf32>, vector<128x384xf32>, vector<8x384xf32> -> vector<8x384xf32>
    %312 = arith.addf %310, %311 : vector<8x384xf32>
    %cst_91 = arith.constant dense<0.000000e+00> : vector<8x384xf32>
    %313 = tpu.matmul %255, %16, %cst_91 {dimension_numbers = #tpu.dot_dimension_numbers<[1], [0], [0], [1], [0, 0, 1, 1], [], []>} : vector<8x128xf32>, vector<128x384xf32>, vector<8x384xf32> -> vector<8x384xf32>
    %314 = arith.addf %313, %21 : vector<8x384xf32>
    %315 = vector.extract_strided_slice %312 {offsets = [0, 0], sizes = [8, 128], strides = [1, 1]} : vector<8x384xf32> to vector<8x128xf32>
    %316 = vector.extract_strided_slice %314 {offsets = [0, 0], sizes = [8, 128], strides = [1, 1]} : vector<8x384xf32> to vector<8x128xf32>
    %317 = arith.addf %315, %316 : vector<8x128xf32>
    %318 = arith.negf %317 : vector<8x128xf32>
    %319 = math.exp %318 : vector<8x128xf32>
    %cst_92 = arith.constant 1.000000e+00 : f32
    %320 = vector.broadcast %cst_92 : f32 to vector<8x128xf32>
    %321 = arith.addf %320, %319 : vector<8x128xf32>
    %322 = arith.divf %320, %321 : vector<8x128xf32>
    %323 = vector.extract_strided_slice %312 {offsets = [0, 128], sizes = [8, 128], strides = [1, 1]} : vector<8x384xf32> to vector<8x128xf32>
    %324 = vector.extract_strided_slice %314 {offsets = [0, 128], sizes = [8, 128], strides = [1, 1]} : vector<8x384xf32> to vector<8x128xf32>
    %325 = arith.addf %323, %324 : vector<8x128xf32>
    %326 = arith.negf %325 : vector<8x128xf32>
    %327 = math.exp %326 : vector<8x128xf32>
    %cst_93 = arith.constant 1.000000e+00 : f32
    %328 = vector.broadcast %cst_93 : f32 to vector<8x128xf32>
    %329 = arith.addf %328, %327 : vector<8x128xf32>
    %330 = arith.divf %328, %329 : vector<8x128xf32>
    %331 = vector.extract_strided_slice %312 {offsets = [0, 256], sizes = [8, 128], strides = [1, 1]} : vector<8x384xf32> to vector<8x128xf32>
    %332 = vector.extract_strided_slice %314 {offsets = [0, 256], sizes = [8, 128], strides = [1, 1]} : vector<8x384xf32> to vector<8x128xf32>
    %333 = arith.mulf %322, %332 : vector<8x128xf32>
    %334 = arith.addf %331, %333 : vector<8x128xf32>
    %335 = math.tanh %334 : vector<8x128xf32>
    %cst_94 = arith.constant 1.000000e+00 : f32
    %336 = vector.broadcast %cst_94 : f32 to vector<8x128xf32>
    %337 = arith.subf %336, %330 : vector<8x128xf32>
    %338 = arith.mulf %337, %335 : vector<8x128xf32>
    %339 = arith.mulf %330, %255 : vector<8x128xf32>
    %340 = arith.addf %338, %339 : vector<8x128xf32>
    %cst_95 = arith.constant dense<0.000000e+00> : vector<8x384xf32>
    %341 = tpu.matmul %340, %17, %cst_95 {dimension_numbers = #tpu.dot_dimension_numbers<[1], [0], [0], [1], [0, 0, 1, 1], [], []>} : vector<8x128xf32>, vector<128x384xf32>, vector<8x384xf32> -> vector<8x384xf32>
    %342 = arith.addf %341, %24 : vector<8x384xf32>
    %cst_96 = arith.constant dense<0.000000e+00> : vector<8x384xf32>
    %343 = tpu.matmul %285, %18, %cst_96 {dimension_numbers = #tpu.dot_dimension_numbers<[1], [0], [0], [1], [0, 0, 1, 1], [], []>} : vector<8x128xf32>, vector<128x384xf32>, vector<8x384xf32> -> vector<8x384xf32>
    %344 = arith.addf %343, %27 : vector<8x384xf32>
    %345 = vector.extract_strided_slice %342 {offsets = [0, 0], sizes = [8, 128], strides = [1, 1]} : vector<8x384xf32> to vector<8x128xf32>
    %346 = vector.extract_strided_slice %344 {offsets = [0, 0], sizes = [8, 128], strides = [1, 1]} : vector<8x384xf32> to vector<8x128xf32>
    %347 = arith.addf %345, %346 : vector<8x128xf32>
    %348 = arith.negf %347 : vector<8x128xf32>
    %349 = math.exp %348 : vector<8x128xf32>
    %cst_97 = arith.constant 1.000000e+00 : f32
    %350 = vector.broadcast %cst_97 : f32 to vector<8x128xf32>
    %351 = arith.addf %350, %349 : vector<8x128xf32>
    %352 = arith.divf %350, %351 : vector<8x128xf32>
    %353 = vector.extract_strided_slice %342 {offsets = [0, 128], sizes = [8, 128], strides = [1, 1]} : vector<8x384xf32> to vector<8x128xf32>
    %354 = vector.extract_strided_slice %344 {offsets = [0, 128], sizes = [8, 128], strides = [1, 1]} : vector<8x384xf32> to vector<8x128xf32>
    %355 = arith.addf %353, %354 : vector<8x128xf32>
    %356 = arith.negf %355 : vector<8x128xf32>
    %357 = math.exp %356 : vector<8x128xf32>
    %cst_98 = arith.constant 1.000000e+00 : f32
    %358 = vector.broadcast %cst_98 : f32 to vector<8x128xf32>
    %359 = arith.addf %358, %357 : vector<8x128xf32>
    %360 = arith.divf %358, %359 : vector<8x128xf32>
    %361 = vector.extract_strided_slice %342 {offsets = [0, 256], sizes = [8, 128], strides = [1, 1]} : vector<8x384xf32> to vector<8x128xf32>
    %362 = vector.extract_strided_slice %344 {offsets = [0, 256], sizes = [8, 128], strides = [1, 1]} : vector<8x384xf32> to vector<8x128xf32>
    %363 = arith.mulf %352, %362 : vector<8x128xf32>
    %364 = arith.addf %361, %363 : vector<8x128xf32>
    %365 = math.tanh %364 : vector<8x128xf32>
    %cst_99 = arith.constant 1.000000e+00 : f32
    %366 = vector.broadcast %cst_99 : f32 to vector<8x128xf32>
    %367 = arith.subf %366, %360 : vector<8x128xf32>
    %368 = arith.mulf %367, %365 : vector<8x128xf32>
    %369 = arith.mulf %360, %285 : vector<8x128xf32>
    %370 = arith.addf %368, %369 : vector<8x128xf32>
    %c24 = arith.constant 24 : index
    %c0_100 = arith.constant 0 : index
    %371 = vector.load %arg21[%c24, %c0_100] : memref<48x128xf32, #tpu.memory_space<vmem>>, vector<8x128xf32>
    tpu.vector_store %arg21[%c24, %c0_100], %370 {strides = array<i32>} : memref<48x128xf32, #tpu.memory_space<vmem>>, vector<8x128xf32>,
    %cst_101 = arith.constant dense<0.000000e+00> : vector<8x128xf32>
    %372 = tpu.matmul %370, %12, %cst_101 {dimension_numbers = #tpu.dot_dimension_numbers<[1], [0], [0], [1], [0, 0, 1, 1], [], []>} : vector<8x128xf32>, vector<128x128xf32>, vector<8x128xf32> -> vector<8x128xf32>
    %373 = vector.shape_cast %372 : vector<8x128xf32> to vector<8x1x128xf32>
    %374 = vector.broadcast %373 : vector<8x1x128xf32> to vector<8x8x128xf32>
    %375 = arith.addf %374, %5 : vector<8x8x128xf32>
    %376 = math.tanh %375 : vector<8x8x128xf32>
    %377 = vector.broadcast %14 : vector<1x1x128xf32> to vector<8x8x128xf32>
    %378 = arith.mulf %376, %377 : vector<8x8x128xf32>
    %cst_102 = arith.constant dense<0.000000e+00> : vector<8x8xf32>
    %379 = vector.multi_reduction <add>, %378, %cst_102 [2] : vector<8x8x128xf32> to vector<8x8xf32>
    %380 = arith.addf %379, %1 : vector<8x8xf32>
    %cst_103 = arith.constant dense<0xFF800000> : vector<8xf32>
    %381 = vector.multi_reduction <maximumf>, %380, %cst_103 [1] : vector<8x8xf32> to vector<8xf32>
    %382 = vector.shape_cast %381 : vector<8xf32> to vector<8x1xf32>
    %383 = vector.broadcast %382 : vector<8x1xf32> to vector<8x8xf32>
    %384 = arith.subf %380, %383 : vector<8x8xf32>
    %385 = math.exp %384 : vector<8x8xf32>
    %cst_104 = arith.constant dense<0.000000e+00> : vector<8xf32>
    %386 = vector.multi_reduction <add>, %385, %cst_104 [1] : vector<8x8xf32> to vector<8xf32>
    %387 = vector.shape_cast %386 : vector<8xf32> to vector<8x1xf32>
    %388 = tpu.reciprocal %387 {approx = true} : vector<8x1xf32> -> vector<8x1xf32>
    %389 = vector.broadcast %388 : vector<8x1xf32> to vector<8x8xf32>
    %390 = arith.mulf %385, %389 : vector<8x8xf32>
    %391 = vector.shape_cast %390 : vector<8x8xf32> to vector<8x8x1xf32>
    %392 = vector.broadcast %391 : vector<8x8x1xf32> to vector<8x8x128xf32>
    %393 = arith.mulf %392, %0 : vector<8x8x128xf32>
    %cst_105 = arith.constant dense<0.000000e+00> : vector<8x128xf32>
    %394 = vector.multi_reduction <add>, %393, %cst_105 [1] : vector<8x8x128xf32> to vector<8x128xf32>
    %395 = vector.extract_strided_slice %11 {offsets = [32, 0], sizes = [8, 384], strides = [1, 1]} : vector<48x384xf32> to vector<8x384xf32>
    %cst_106 = arith.constant dense<0.000000e+00> : vector<8x384xf32>
    %396 = tpu.matmul %394, %15, %cst_106 {dimension_numbers = #tpu.dot_dimension_numbers<[1], [0], [0], [1], [0, 0, 1, 1], [], []>} : vector<8x128xf32>, vector<128x384xf32>, vector<8x384xf32> -> vector<8x384xf32>
    %397 = arith.addf %395, %396 : vector<8x384xf32>
    %cst_107 = arith.constant dense<0.000000e+00> : vector<8x384xf32>
    %398 = tpu.matmul %340, %16, %cst_107 {dimension_numbers = #tpu.dot_dimension_numbers<[1], [0], [0], [1], [0, 0, 1, 1], [], []>} : vector<8x128xf32>, vector<128x384xf32>, vector<8x384xf32> -> vector<8x384xf32>
    %399 = arith.addf %398, %21 : vector<8x384xf32>
    %400 = vector.extract_strided_slice %397 {offsets = [0, 0], sizes = [8, 128], strides = [1, 1]} : vector<8x384xf32> to vector<8x128xf32>
    %401 = vector.extract_strided_slice %399 {offsets = [0, 0], sizes = [8, 128], strides = [1, 1]} : vector<8x384xf32> to vector<8x128xf32>
    %402 = arith.addf %400, %401 : vector<8x128xf32>
    %403 = arith.negf %402 : vector<8x128xf32>
    %404 = math.exp %403 : vector<8x128xf32>
    %cst_108 = arith.constant 1.000000e+00 : f32
    %405 = vector.broadcast %cst_108 : f32 to vector<8x128xf32>
    %406 = arith.addf %405, %404 : vector<8x128xf32>
    %407 = arith.divf %405, %406 : vector<8x128xf32>
    %408 = vector.extract_strided_slice %397 {offsets = [0, 128], sizes = [8, 128], strides = [1, 1]} : vector<8x384xf32> to vector<8x128xf32>
    %409 = vector.extract_strided_slice %399 {offsets = [0, 128], sizes = [8, 128], strides = [1, 1]} : vector<8x384xf32> to vector<8x128xf32>
    %410 = arith.addf %408, %409 : vector<8x128xf32>
    %411 = arith.negf %410 : vector<8x128xf32>
    %412 = math.exp %411 : vector<8x128xf32>
    %cst_109 = arith.constant 1.000000e+00 : f32
    %413 = vector.broadcast %cst_109 : f32 to vector<8x128xf32>
    %414 = arith.addf %413, %412 : vector<8x128xf32>
    %415 = arith.divf %413, %414 : vector<8x128xf32>
    %416 = vector.extract_strided_slice %397 {offsets = [0, 256], sizes = [8, 128], strides = [1, 1]} : vector<8x384xf32> to vector<8x128xf32>
    %417 = vector.extract_strided_slice %399 {offsets = [0, 256], sizes = [8, 128], strides = [1, 1]} : vector<8x384xf32> to vector<8x128xf32>
    %418 = arith.mulf %407, %417 : vector<8x128xf32>
    %419 = arith.addf %416, %418 : vector<8x128xf32>
    %420 = math.tanh %419 : vector<8x128xf32>
    %cst_110 = arith.constant 1.000000e+00 : f32
    %421 = vector.broadcast %cst_110 : f32 to vector<8x128xf32>
    %422 = arith.subf %421, %415 : vector<8x128xf32>
    %423 = arith.mulf %422, %420 : vector<8x128xf32>
    %424 = arith.mulf %415, %340 : vector<8x128xf32>
    %425 = arith.addf %423, %424 : vector<8x128xf32>
    %cst_111 = arith.constant dense<0.000000e+00> : vector<8x384xf32>
    %426 = tpu.matmul %425, %17, %cst_111 {dimension_numbers = #tpu.dot_dimension_numbers<[1], [0], [0], [1], [0, 0, 1, 1], [], []>} : vector<8x128xf32>, vector<128x384xf32>, vector<8x384xf32> -> vector<8x384xf32>
    %427 = arith.addf %426, %24 : vector<8x384xf32>
    %cst_112 = arith.constant dense<0.000000e+00> : vector<8x384xf32>
    %428 = tpu.matmul %370, %18, %cst_112 {dimension_numbers = #tpu.dot_dimension_numbers<[1], [0], [0], [1], [0, 0, 1, 1], [], []>} : vector<8x128xf32>, vector<128x384xf32>, vector<8x384xf32> -> vector<8x384xf32>
    %429 = arith.addf %428, %27 : vector<8x384xf32>
    %430 = vector.extract_strided_slice %427 {offsets = [0, 0], sizes = [8, 128], strides = [1, 1]} : vector<8x384xf32> to vector<8x128xf32>
    %431 = vector.extract_strided_slice %429 {offsets = [0, 0], sizes = [8, 128], strides = [1, 1]} : vector<8x384xf32> to vector<8x128xf32>
    %432 = arith.addf %430, %431 : vector<8x128xf32>
    %433 = arith.negf %432 : vector<8x128xf32>
    %434 = math.exp %433 : vector<8x128xf32>
    %cst_113 = arith.constant 1.000000e+00 : f32
    %435 = vector.broadcast %cst_113 : f32 to vector<8x128xf32>
    %436 = arith.addf %435, %434 : vector<8x128xf32>
    %437 = arith.divf %435, %436 : vector<8x128xf32>
    %438 = vector.extract_strided_slice %427 {offsets = [0, 128], sizes = [8, 128], strides = [1, 1]} : vector<8x384xf32> to vector<8x128xf32>
    %439 = vector.extract_strided_slice %429 {offsets = [0, 128], sizes = [8, 128], strides = [1, 1]} : vector<8x384xf32> to vector<8x128xf32>
    %440 = arith.addf %438, %439 : vector<8x128xf32>
    %441 = arith.negf %440 : vector<8x128xf32>
    %442 = math.exp %441 : vector<8x128xf32>
    %cst_114 = arith.constant 1.000000e+00 : f32
    %443 = vector.broadcast %cst_114 : f32 to vector<8x128xf32>
    %444 = arith.addf %443, %442 : vector<8x128xf32>
    %445 = arith.divf %443, %444 : vector<8x128xf32>
    %446 = vector.extract_strided_slice %427 {offsets = [0, 256], sizes = [8, 128], strides = [1, 1]} : vector<8x384xf32> to vector<8x128xf32>
    %447 = vector.extract_strided_slice %429 {offsets = [0, 256], sizes = [8, 128], strides = [1, 1]} : vector<8x384xf32> to vector<8x128xf32>
    %448 = arith.mulf %437, %447 : vector<8x128xf32>
    %449 = arith.addf %446, %448 : vector<8x128xf32>
    %450 = math.tanh %449 : vector<8x128xf32>
    %cst_115 = arith.constant 1.000000e+00 : f32
    %451 = vector.broadcast %cst_115 : f32 to vector<8x128xf32>
    %452 = arith.subf %451, %445 : vector<8x128xf32>
    %453 = arith.mulf %452, %450 : vector<8x128xf32>
    %454 = arith.mulf %445, %370 : vector<8x128xf32>
    %455 = arith.addf %453, %454 : vector<8x128xf32>
    %c32 = arith.constant 32 : index
    %c0_116 = arith.constant 0 : index
    %456 = vector.load %arg21[%c32, %c0_116] : memref<48x128xf32, #tpu.memory_space<vmem>>, vector<8x128xf32>
    tpu.vector_store %arg21[%c32, %c0_116], %455 {strides = array<i32>} : memref<48x128xf32, #tpu.memory_space<vmem>>, vector<8x128xf32>,
    %cst_117 = arith.constant dense<0.000000e+00> : vector<8x128xf32>
    %457 = tpu.matmul %455, %12, %cst_117 {dimension_numbers = #tpu.dot_dimension_numbers<[1], [0], [0], [1], [0, 0, 1, 1], [], []>} : vector<8x128xf32>, vector<128x128xf32>, vector<8x128xf32> -> vector<8x128xf32>
    %458 = vector.shape_cast %457 : vector<8x128xf32> to vector<8x1x128xf32>
    %459 = vector.broadcast %458 : vector<8x1x128xf32> to vector<8x8x128xf32>
    %460 = arith.addf %459, %5 : vector<8x8x128xf32>
    %461 = math.tanh %460 : vector<8x8x128xf32>
    %462 = vector.broadcast %14 : vector<1x1x128xf32> to vector<8x8x128xf32>
    %463 = arith.mulf %461, %462 : vector<8x8x128xf32>
    %cst_118 = arith.constant dense<0.000000e+00> : vector<8x8xf32>
    %464 = vector.multi_reduction <add>, %463, %cst_118 [2] : vector<8x8x128xf32> to vector<8x8xf32>
    %465 = arith.addf %464, %1 : vector<8x8xf32>
    %cst_119 = arith.constant dense<0xFF800000> : vector<8xf32>
    %466 = vector.multi_reduction <maximumf>, %465, %cst_119 [1] : vector<8x8xf32> to vector<8xf32>
    %467 = vector.shape_cast %466 : vector<8xf32> to vector<8x1xf32>
    %468 = vector.broadcast %467 : vector<8x1xf32> to vector<8x8xf32>
    %469 = arith.subf %465, %468 : vector<8x8xf32>
    %470 = math.exp %469 : vector<8x8xf32>
    %cst_120 = arith.constant dense<0.000000e+00> : vector<8xf32>
    %471 = vector.multi_reduction <add>, %470, %cst_120 [1] : vector<8x8xf32> to vector<8xf32>
    %472 = vector.shape_cast %471 : vector<8xf32> to vector<8x1xf32>
    %473 = tpu.reciprocal %472 {approx = true} : vector<8x1xf32> -> vector<8x1xf32>
    %474 = vector.broadcast %473 : vector<8x1xf32> to vector<8x8xf32>
    %475 = arith.mulf %470, %474 : vector<8x8xf32>
    %476 = vector.shape_cast %475 : vector<8x8xf32> to vector<8x8x1xf32>
    %477 = vector.broadcast %476 : vector<8x8x1xf32> to vector<8x8x128xf32>
    %478 = arith.mulf %477, %0 : vector<8x8x128xf32>
    %cst_121 = arith.constant dense<0.000000e+00> : vector<8x128xf32>
    %479 = vector.multi_reduction <add>, %478, %cst_121 [1] : vector<8x8x128xf32> to vector<8x128xf32>
    %480 = vector.extract_strided_slice %11 {offsets = [40, 0], sizes = [8, 384], strides = [1, 1]} : vector<48x384xf32> to vector<8x384xf32>
    %cst_122 = arith.constant dense<0.000000e+00> : vector<8x384xf32>
    %481 = tpu.matmul %479, %15, %cst_122 {dimension_numbers = #tpu.dot_dimension_numbers<[1], [0], [0], [1], [0, 0, 1, 1], [], []>} : vector<8x128xf32>, vector<128x384xf32>, vector<8x384xf32> -> vector<8x384xf32>
    %482 = arith.addf %480, %481 : vector<8x384xf32>
    %cst_123 = arith.constant dense<0.000000e+00> : vector<8x384xf32>
    %483 = tpu.matmul %425, %16, %cst_123 {dimension_numbers = #tpu.dot_dimension_numbers<[1], [0], [0], [1], [0, 0, 1, 1], [], []>} : vector<8x128xf32>, vector<128x384xf32>, vector<8x384xf32> -> vector<8x384xf32>
    %484 = arith.addf %483, %21 : vector<8x384xf32>
    %485 = vector.extract_strided_slice %482 {offsets = [0, 0], sizes = [8, 128], strides = [1, 1]} : vector<8x384xf32> to vector<8x128xf32>
    %486 = vector.extract_strided_slice %484 {offsets = [0, 0], sizes = [8, 128], strides = [1, 1]} : vector<8x384xf32> to vector<8x128xf32>
    %487 = arith.addf %485, %486 : vector<8x128xf32>
    %488 = arith.negf %487 : vector<8x128xf32>
    %489 = math.exp %488 : vector<8x128xf32>
    %cst_124 = arith.constant 1.000000e+00 : f32
    %490 = vector.broadcast %cst_124 : f32 to vector<8x128xf32>
    %491 = arith.addf %490, %489 : vector<8x128xf32>
    %492 = arith.divf %490, %491 : vector<8x128xf32>
    %493 = vector.extract_strided_slice %482 {offsets = [0, 128], sizes = [8, 128], strides = [1, 1]} : vector<8x384xf32> to vector<8x128xf32>
    %494 = vector.extract_strided_slice %484 {offsets = [0, 128], sizes = [8, 128], strides = [1, 1]} : vector<8x384xf32> to vector<8x128xf32>
    %495 = arith.addf %493, %494 : vector<8x128xf32>
    %496 = arith.negf %495 : vector<8x128xf32>
    %497 = math.exp %496 : vector<8x128xf32>
    %cst_125 = arith.constant 1.000000e+00 : f32
    %498 = vector.broadcast %cst_125 : f32 to vector<8x128xf32>
    %499 = arith.addf %498, %497 : vector<8x128xf32>
    %500 = arith.divf %498, %499 : vector<8x128xf32>
    %501 = vector.extract_strided_slice %482 {offsets = [0, 256], sizes = [8, 128], strides = [1, 1]} : vector<8x384xf32> to vector<8x128xf32>
    %502 = vector.extract_strided_slice %484 {offsets = [0, 256], sizes = [8, 128], strides = [1, 1]} : vector<8x384xf32> to vector<8x128xf32>
    %503 = arith.mulf %492, %502 : vector<8x128xf32>
    %504 = arith.addf %501, %503 : vector<8x128xf32>
    %505 = math.tanh %504 : vector<8x128xf32>
    %cst_126 = arith.constant 1.000000e+00 : f32
    %506 = vector.broadcast %cst_126 : f32 to vector<8x128xf32>
    %507 = arith.subf %506, %500 : vector<8x128xf32>
    %508 = arith.mulf %507, %505 : vector<8x128xf32>
    %509 = arith.mulf %500, %425 : vector<8x128xf32>
    %510 = arith.addf %508, %509 : vector<8x128xf32>
    %cst_127 = arith.constant dense<0.000000e+00> : vector<8x384xf32>
    %511 = tpu.matmul %510, %17, %cst_127 {dimension_numbers = #tpu.dot_dimension_numbers<[1], [0], [0], [1], [0, 0, 1, 1], [], []>} : vector<8x128xf32>, vector<128x384xf32>, vector<8x384xf32> -> vector<8x384xf32>
    %512 = arith.addf %511, %24 : vector<8x384xf32>
    %cst_128 = arith.constant dense<0.000000e+00> : vector<8x384xf32>
    %513 = tpu.matmul %455, %18, %cst_128 {dimension_numbers = #tpu.dot_dimension_numbers<[1], [0], [0], [1], [0, 0, 1, 1], [], []>} : vector<8x128xf32>, vector<128x384xf32>, vector<8x384xf32> -> vector<8x384xf32>
    %514 = arith.addf %513, %27 : vector<8x384xf32>
    %515 = vector.extract_strided_slice %512 {offsets = [0, 0], sizes = [8, 128], strides = [1, 1]} : vector<8x384xf32> to vector<8x128xf32>
    %516 = vector.extract_strided_slice %514 {offsets = [0, 0], sizes = [8, 128], strides = [1, 1]} : vector<8x384xf32> to vector<8x128xf32>
    %517 = arith.addf %515, %516 : vector<8x128xf32>
    %518 = arith.negf %517 : vector<8x128xf32>
    %519 = math.exp %518 : vector<8x128xf32>
    %cst_129 = arith.constant 1.000000e+00 : f32
    %520 = vector.broadcast %cst_129 : f32 to vector<8x128xf32>
    %521 = arith.addf %520, %519 : vector<8x128xf32>
    %522 = arith.divf %520, %521 : vector<8x128xf32>
    %523 = vector.extract_strided_slice %512 {offsets = [0, 128], sizes = [8, 128], strides = [1, 1]} : vector<8x384xf32> to vector<8x128xf32>
    %524 = vector.extract_strided_slice %514 {offsets = [0, 128], sizes = [8, 128], strides = [1, 1]} : vector<8x384xf32> to vector<8x128xf32>
    %525 = arith.addf %523, %524 : vector<8x128xf32>
    %526 = arith.negf %525 : vector<8x128xf32>
    %527 = math.exp %526 : vector<8x128xf32>
    %cst_130 = arith.constant 1.000000e+00 : f32
    %528 = vector.broadcast %cst_130 : f32 to vector<8x128xf32>
    %529 = arith.addf %528, %527 : vector<8x128xf32>
    %530 = arith.divf %528, %529 : vector<8x128xf32>
    %531 = vector.extract_strided_slice %512 {offsets = [0, 256], sizes = [8, 128], strides = [1, 1]} : vector<8x384xf32> to vector<8x128xf32>
    %532 = vector.extract_strided_slice %514 {offsets = [0, 256], sizes = [8, 128], strides = [1, 1]} : vector<8x384xf32> to vector<8x128xf32>
    %533 = arith.mulf %522, %532 : vector<8x128xf32>
    %534 = arith.addf %531, %533 : vector<8x128xf32>
    %535 = math.tanh %534 : vector<8x128xf32>
    %cst_131 = arith.constant 1.000000e+00 : f32
    %536 = vector.broadcast %cst_131 : f32 to vector<8x128xf32>
    %537 = arith.subf %536, %530 : vector<8x128xf32>
    %538 = arith.mulf %537, %535 : vector<8x128xf32>
    %539 = arith.mulf %530, %455 : vector<8x128xf32>
    %540 = arith.addf %538, %539 : vector<8x128xf32>
    %c40 = arith.constant 40 : index
    %c0_132 = arith.constant 0 : index
    %541 = vector.load %arg21[%c40, %c0_132] : memref<48x128xf32, #tpu.memory_space<vmem>>, vector<8x128xf32>
    tpu.vector_store %arg21[%c40, %c0_132], %540 {strides = array<i32>} : memref<48x128xf32, #tpu.memory_space<vmem>>, vector<8x128xf32>,
    %c0_133 = arith.constant 0 : index
    %c0_134 = arith.constant 0 : index
    %c0_135 = arith.constant 0 : index
    %542 = vector.load %arg20[%c0_133, %c0_134, %c0_135] : memref<2x8x128xf32, #tpu.memory_space<vmem>>, vector<1x8x128xf32>
    %543 = vector.shape_cast %542 : vector<1x8x128xf32> to vector<8x128xf32>
    %544 = vector.shape_cast %510 : vector<8x128xf32> to vector<1x8x128xf32>
    tpu.vector_store %arg20[%c0_133, %c0_134, %c0_135], %544 {strides = array<i32>} : memref<2x8x128xf32, #tpu.memory_space<vmem>>, vector<1x8x128xf32>,
    %c1_136 = arith.constant 1 : index
    %c0_137 = arith.constant 0 : index
    %c0_138 = arith.constant 0 : index
    %545 = vector.load %arg20[%c1_136, %c0_137, %c0_138] : memref<2x8x128xf32, #tpu.memory_space<vmem>>, vector<1x8x128xf32>
    %546 = vector.shape_cast %545 : vector<1x8x128xf32> to vector<8x128xf32>
    %547 = vector.shape_cast %540 : vector<8x128xf32> to vector<1x8x128xf32>
    tpu.vector_store %arg20[%c1_136, %c0_137, %c0_138], %547 {strides = array<i32>} : memref<2x8x128xf32, #tpu.memory_space<vmem>>, vector<1x8x128xf32>,
    %c0_139 = arith.constant 0 : index
    %c0_140 = arith.constant 0 : index
    %548 = vector.load %arg21[%c0_139, %c0_140] : memref<48x128xf32, #tpu.memory_space<vmem>>, vector<48x128xf32>
    %c0_141 = arith.constant 0 : index
    %c0_142 = arith.constant 0 : index
    %549 = vector.load %arg17[%c0_141, %c0_142] : memref<128x128xf32, #tpu.memory_space<vmem>>, vector<128x128xf32>
    %cst_143 = arith.constant dense<0.000000e+00> : vector<48x128xf32>
    %550 = tpu.matmul %548, %549, %cst_143 {dimension_numbers = #tpu.dot_dimension_numbers<[1], [0], [0], [1], [0, 0, 1, 1], [], []>} : vector<48x128xf32>, vector<128x128xf32>, vector<48x128xf32> -> vector<48x128xf32>
    %c0_144 = arith.constant 0 : index
    %c0_145 = arith.constant 0 : index
    %551 = vector.load %arg18[%c0_144, %c0_145] : memref<1x128xf32, #tpu.memory_space<vmem>>, vector<1x128xf32>
    %552 = vector.broadcast %551 : vector<1x128xf32> to vector<48x128xf32>
    %553 = arith.addf %550, %552 : vector<48x128xf32>
    %c0_146 = arith.constant 0 : index
    %c0_147 = arith.constant 0 : index
    %554 = vector.load %arg19[%c0_146, %c0_147] : memref<48x128xf32, #tpu.memory_space<vmem>>, vector<48x128xf32>
    tpu.vector_store %arg19[%c0_146, %c0_147], %553 {strides = array<i32>} : memref<48x128xf32, #tpu.memory_space<vmem>>, vector<48x128xf32>,
    return
  }
  func.func @transform_0(%arg0: i32) -> (i32, i32) {
    %c0_i32 = arith.constant 0 : i32
    %c0_i32_0 = arith.constant 0 : i32
    %c0_i32_1 = arith.constant 0 : i32
    return %c0_i32, %c0_i32_0 : i32, i32
  }
  func.func @transform_1(%arg0: i32) -> (i32, i32, i32) {
    %c0_i32 = arith.constant 0 : i32
    %c0_i32_0 = arith.constant 0 : i32
    %c0_i32_1 = arith.constant 0 : i32
    %c0_i32_2 = arith.constant 0 : i32
    return %c0_i32, %c0_i32_0, %c0_i32_1 : i32, i32, i32
  }
  func.func @transform_2(%arg0: i32) -> (i32, i32) {
    %c0_i32 = arith.constant 0 : i32
    %c0_i32_0 = arith.constant 0 : i32
    %c0_i32_1 = arith.constant 0 : i32
    return %c0_i32, %c0_i32_0 : i32, i32
  }
  func.func @transform_3(%arg0: i32) -> (i32, i32, i32) {
    %c0_i32 = arith.constant 0 : i32
    %c0_i32_0 = arith.constant 0 : i32
    %c0_i32_1 = arith.constant 0 : i32
    %c0_i32_2 = arith.constant 0 : i32
    return %c0_i32, %c0_i32_0, %c0_i32_1 : i32, i32, i32
  }
  func.func @transform_4(%arg0: i32) -> (i32, i32) {
    %c0_i32 = arith.constant 0 : i32
    %c0_i32_0 = arith.constant 0 : i32
    %c0_i32_1 = arith.constant 0 : i32
    return %c0_i32, %c0_i32_0 : i32, i32
  }
  func.func @transform_5(%arg0: i32) -> (i32, i32) {
    %c0_i32 = arith.constant 0 : i32
    %c0_i32_0 = arith.constant 0 : i32
    %c0_i32_1 = arith.constant 0 : i32
    return %c0_i32, %c0_i32_0 : i32, i32
  }
  func.func @transform_6(%arg0: i32) -> (i32, i32) {
    %c0_i32 = arith.constant 0 : i32
    %c0_i32_0 = arith.constant 0 : i32
    %c0_i32_1 = arith.constant 0 : i32
    return %c0_i32, %c0_i32_0 : i32, i32
  }
  func.func @transform_7(%arg0: i32) -> (i32, i32) {
    %c0_i32 = arith.constant 0 : i32
    %c0_i32_0 = arith.constant 0 : i32
    %c0_i32_1 = arith.constant 0 : i32
    return %c0_i32, %c0_i32_0 : i32, i32
  }
  func.func @transform_8(%arg0: i32) -> (i32, i32) {
    %c0_i32 = arith.constant 0 : i32
    %c0_i32_0 = arith.constant 0 : i32
    %c0_i32_1 = arith.constant 0 : i32
    return %c0_i32, %c0_i32_0 : i32, i32
  }
  func.func @transform_9(%arg0: i32) -> (i32, i32) {
    %c0_i32 = arith.constant 0 : i32
    %c0_i32_0 = arith.constant 0 : i32
    %c0_i32_1 = arith.constant 0 : i32
    return %c0_i32, %c0_i32_0 : i32, i32
  }
  func.func @transform_10(%arg0: i32) -> (i32, i32) {
    %c0_i32 = arith.constant 0 : i32
    %c0_i32_0 = arith.constant 0 : i32
    %c0_i32_1 = arith.constant 0 : i32
    return %c0_i32, %c0_i32_0 : i32, i32
  }
  func.func @transform_11(%arg0: i32) -> (i32, i32) {
    %c0_i32 = arith.constant 0 : i32
    %c0_i32_0 = arith.constant 0 : i32
    %c0_i32_1 = arith.constant 0 : i32
    return %c0_i32, %c0_i32_0 : i32, i32
  }
  func.func @transform_12(%arg0: i32) -> (i32, i32) {
    %c0_i32 = arith.constant 0 : i32
    %c0_i32_0 = arith.constant 0 : i32
    %c0_i32_1 = arith.constant 0 : i32
    return %c0_i32, %c0_i32_0 : i32, i32
  }
  func.func @transform_13(%arg0: i32) -> (i32, i32) {
    %c0_i32 = arith.constant 0 : i32
    %c0_i32_0 = arith.constant 0 : i32
    %c0_i32_1 = arith.constant 0 : i32
    return %c0_i32, %c0_i32_0 : i32, i32
  }
  func.func @transform_14(%arg0: i32) -> (i32, i32) {
    %c0_i32 = arith.constant 0 : i32
    %c0_i32_0 = arith.constant 0 : i32
    %c0_i32_1 = arith.constant 0 : i32
    return %c0_i32, %c0_i32_0 : i32, i32
  }
  func.func @transform_15(%arg0: i32) -> (i32, i32) {
    %c0_i32 = arith.constant 0 : i32
    %c0_i32_0 = arith.constant 0 : i32
    %c0_i32_1 = arith.constant 0 : i32
    return %c0_i32, %c0_i32_0 : i32, i32
  }
  func.func @transform_16(%arg0: i32) -> (i32, i32) {
    %c0_i32 = arith.constant 0 : i32
    %c0_i32_0 = arith.constant 0 : i32
    %c0_i32_1 = arith.constant 0 : i32
    return %c0_i32, %c0_i32_0 : i32, i32
  }
  func.func @transform_17(%arg0: i32) -> (i32, i32) {
    %c0_i32 = arith.constant 0 : i32
    %c0_i32_0 = arith.constant 0 : i32
    %c0_i32_1 = arith.constant 0 : i32
    return %c0_i32, %c0_i32_0 : i32, i32
  }
  func.func @transform_18(%arg0: i32) -> (i32, i32) {
    %c0_i32 = arith.constant 0 : i32
    %c0_i32_0 = arith.constant 0 : i32
    %c0_i32_1 = arith.constant 0 : i32
    return %c0_i32, %c0_i32_0 : i32, i32
  }
  func.func @transform_19(%arg0: i32) -> (i32, i32, i32) {
    %c0_i32 = arith.constant 0 : i32
    %c0_i32_0 = arith.constant 0 : i32
    %c0_i32_1 = arith.constant 0 : i32
    %c0_i32_2 = arith.constant 0 : i32
    return %c0_i32, %c0_i32_0, %c0_i32_1 : i32, i32, i32
  }
}

</mosaic_0001>

<llo_original>
// kernel: tpu_custom_call.1
$region0: #{tpu_custom_call.1}
  #allocation0 [shape = 'u32[]', space=smem, size = 0x4, offset = 0x4, fixed_abs, tag = 'smem constant byte address 0x4 - core index']
  #allocation1 [shape = 'u32[144,128]{1,0:T(1,128)}', space=vmem, size = 0x12000, scoped, tag = 'internal scratch']
  #allocation2 [shape = 'f32[48,128]{1,0:T(8,128)}', space=vmem, size = 0x6000, scoped, tag = 'scratch operand']
  %s0 = inlined_call_operand.vmem [shape: f32[48,16], index: 0, kind: input, shape index: {}]
  %s1 = inlined_call_operand.vmem [shape: f32[8,8,128], index: 1, kind: input, shape index: {}]
  %s2 = inlined_call_operand.hbm [shape: f32[8,8], index: 2, kind: input, shape index: {}]
  %s3 = inlined_call_operand.hbm [shape: f32[2,8,128], index: 3, kind: input, shape index: {}]
  %s4 = inlined_call_operand.hbm [shape: f32[128,128], index: 4, kind: input, shape index: {}]
  %s5 = inlined_call_operand.hbm [shape: f32[128,128], index: 5, kind: input, shape index: {}]
  %s6 = inlined_call_operand.hbm [shape: f32[1,128], index: 6, kind: input, shape index: {}]
  %s7 = inlined_call_operand.hbm [shape: f32[16,384], index: 7, kind: input, shape index: {}]
  %s8 = inlined_call_operand.vmem [shape: f32[1,384], index: 8, kind: input, shape index: {}]
  %s9 = inlined_call_operand.hbm [shape: f32[128,384], index: 9, kind: input, shape index: {}]
  %s10 = inlined_call_operand.hbm [shape: f32[128,384], index: 10, kind: input, shape index: {}]
  %s11 = inlined_call_operand.vmem [shape: f32[1,384], index: 11, kind: input, shape index: {}]
  %s12 = inlined_call_operand.hbm [shape: f32[128,384], index: 12, kind: input, shape index: {}]
  %s13 = inlined_call_operand.vmem [shape: f32[1,384], index: 13, kind: input, shape index: {}]
  %s14 = inlined_call_operand.hbm [shape: f32[128,384], index: 14, kind: input, shape index: {}]
  %s15 = inlined_call_operand.vmem [shape: f32[1,384], index: 15, kind: input, shape index: {}]
  %s16 = inlined_call_operand.hbm [shape: f32[128,128], index: 16, kind: input, shape index: {}]
  %s17 = inlined_call_operand.vmem [shape: f32[1,128], index: 17, kind: input, shape index: {}]
  %s18 = inlined_call_operand.hbm [shape: f32[48,128], index: 18, kind: output, shape index: {0}]
  %s19 = inlined_call_operand.hbm [shape: f32[2,8,128], index: 19, kind: output, shape index: {1}]
  %20 = xla_tuple %s18, %s19
  %s21 = sld [smem:[#allocation0]]
  $region134: #{tpu_custom_call.1} parent=0
    _
  %s23 = ssub.s32 1, %s21
  %s24 = scalar_select 0, %s23, %s21
  $region1: #{tpu_custom_call.1} parent=0
    #allocation3 [shape = 'u8[4096]{0}', space=vmem, size = 0x1000, scoped, tag = 'input window, operand 2, single buffered']
    #allocation4 [shape = 's32[1]{0}', space=sflag, size = 0x4, scoped, tag = 'scoped memory for tpu_custom_call.1']
    #allocation5 [shape = 's32[1]{0}', space=sflag, size = 0x4, scoped, tag = 'scoped memory for tpu_custom_call.1']
    #allocation6 [shape = 'u8[8192]{0}', space=vmem, size = 0x2000, scoped, tag = 'input window, operand 3, single buffered']
    #allocation7 [shape = 's32[1]{0}', space=sflag, size = 0x4, scoped, tag = 'scoped memory for tpu_custom_call.1']
    #allocation8 [shape = 'u8[65536]{0}', space=vmem, size = 0x10000, scoped, tag = 'input window, operand 4, single buffered']
    #allocation9 [shape = 'u8[65536]{0}', space=vmem, size = 0x10000, scoped, tag = 'input window, operand 5, single buffered']
    #allocation10 [shape = 's32[1]{0}', space=sflag, size = 0x4, scoped, tag = 'scoped memory for tpu_custom_call.1']
    #allocation11 [shape = 'u8[512]{0}', space=vmem, size = 0x400, scoped, tag = 'input window, operand 6, single buffered']
    #allocation12 [shape = 'u8[24576]{0}', space=vmem, size = 0x6000, scoped, tag = 'input window, operand 7, single buffered']
    #allocation13 [shape = 's32[1]{0}', space=sflag, size = 0x4, scoped, tag = 'scoped memory for tpu_custom_call.1']
    #allocation14 [shape = 'u8[196608]{0}', space=vmem, size = 0x30000, scoped, tag = 'input window, operand 9, single buffered']
    #allocation15 [shape = 'u8[196608]{0}', space=vmem, size = 0x30000, scoped, tag = 'input window, operand 10, single buffered']
    #allocation16 [shape = 's32[1]{0}', space=sflag, size = 0x4, scoped, tag = 'scoped memory for tpu_custom_call.1']
    #allocation17 [shape = 'u8[196608]{0}', space=vmem, size = 0x30000, scoped, tag = 'input window, operand 12, single buffered']
    #allocation18 [shape = 'u8[196608]{0}', space=vmem, size = 0x30000, scoped, tag = 'input window, operand 14, single buffered']
    #allocation19 [shape = 's32[1]{0}', space=sflag, size = 0x4, scoped, tag = 'scoped memory for tpu_custom_call.1']
    #allocation20 [shape = 'u8[65536]{0}', space=vmem, size = 0x10000, scoped, tag = 'input window, operand 16, single buffered']
    #allocation21 [shape = 'u8[24576]{0}', space=vmem, size = 0x6000, scoped, tag = 'output window, operand 0, single buffered']
    #allocation22 [shape = 'u8[8192]{0}', space=vmem, size = 0x2000, scoped, tag = 'output window, operand 1, single buffered']
    #allocation23 [shape = 's32[1]{0}', space=sflag, size = 0x4, scoped, tag = 'scoped memory for tpu_custom_call.1']
    %25 = vsyncpa [#allocation4], 0
    %26 = vsyncpa [#allocation7], 0
    %27 = vsyncpa [#allocation10], 0
    %28 = vsyncpa [#allocation13], 0
    %29 = vsyncpa [#allocation16], 0
    %30 = vsyncpa [#allocation19], 0
    %31 = vsyncpa [#allocation5], 0
    %32 = vsyncpa [#allocation23], 0
    // Predicated region
    $region2: #{tpu_custom_call.1} parent=1 // pred_check
      _
    $region3: #{tpu_custom_call.1} parent=1 // pred_check_branch
      %34 = sbr.rel (0) target = $region5
    $region4: #{tpu_custom_call.1} parent=1 // pred_region
      _
    $region5: #{tpu_custom_call.1} parent=1 // pred_fallthru
      _
    // Predicated region
    $region6: #{tpu_custom_call.1} parent=1 // pred_check
      _
    $region7: #{tpu_custom_call.1} parent=1 // pred_check_branch
      %36 = sbr.rel (0) target = $region9
    $region8: #{tpu_custom_call.1} parent=1 // pred_region
      _
    $region9: #{tpu_custom_call.1} parent=1 // pred_fallthru
      _
    // Predicated region
    $region10: #{tpu_custom_call.1} parent=1 // pred_check
      _
    $region11: #{tpu_custom_call.1} parent=1 // pred_check_branch
      %38 = sbr.rel (0) target = $region13
    $region12: #{tpu_custom_call.1} parent=1 // pred_region
      %s40 = ssub.s32 128, 128
      %41 = vsyncadd [#allocation4], %s40
      %s43 = sshll.u32 [#allocation3], 4
      %s44 = int_to_ptr.vmem [resolvable:$true] %s43
      %46 = dma.hbm_to_vmem [thread:$0]  %s2, 128, %s44, [#allocation4]
    $region13: #{tpu_custom_call.1} parent=1 // pred_fallthru
      _
    // Predicated region
    $region14: #{tpu_custom_call.1} parent=1 // pred_check
      _
    $region15: #{tpu_custom_call.1} parent=1 // pred_check_branch
      %48 = sbr.rel (0) target = $region17
    $region16: #{tpu_custom_call.1} parent=1 // pred_region
      %s50 = ssub.s32 256, 256
      %51 = vsyncadd [#allocation7], %s50
      %s52 = sshll.u32 [#allocation6], 4
      %s53 = int_to_ptr.vmem [resolvable:$true] %s52
      %58 = dma.hbm_to_vmem [thread:$0]  %s3, 256, %s53, [#allocation7], 128, 128, 8
    $region17: #{tpu_custom_call.1} parent=1 // pred_fallthru
      _
    // Predicated region
    $region18: #{tpu_custom_call.1} parent=1 // pred_check
      _
    $region19: #{tpu_custom_call.1} parent=1 // pred_check_branch
      %60 = sbr.rel (0) target = $region21
    $region20: #{tpu_custom_call.1} parent=1 // pred_region
      %s62 = ssub.s32 2048, 2048
      %63 = vsyncadd [#allocation7], %s62
      %s64 = sshll.u32 [#allocation8], 4
      %s65 = int_to_ptr.vmem [resolvable:$true] %s64
      %70 = dma.hbm_to_vmem [thread:$0]  %s4, 2048, %s65, [#allocation7], 128, 128, 8
    $region21: #{tpu_custom_call.1} parent=1 // pred_fallthru
      _
    // Predicated region
    $region22: #{tpu_custom_call.1} parent=1 // pred_check
      _
    $region23: #{tpu_custom_call.1} parent=1 // pred_check_branch
      %72 = sbr.rel (0) target = $region25
    $region24: #{tpu_custom_call.1} parent=1 // pred_region
      %s74 = ssub.s32 2048, 2048
      %75 = vsyncadd [#allocation10], %s74
      %s76 = sshll.u32 [#allocation9], 4
      %s77 = int_to_ptr.vmem [resolvable:$true] %s76
      %82 = dma.hbm_to_vmem [thread:$0]  %s5, 2048, %s77, [#allocation10], 128, 128, 8
    $region25: #{tpu_custom_call.1} parent=1 // pred_fallthru
      _
    // Predicated region
    $region26: #{tpu_custom_call.1} parent=1 // pred_check
      _
    $region27: #{tpu_custom_call.1} parent=1 // pred_check_branch
      %84 = sbr.rel (0) target = $region29
    $region28: #{tpu_custom_call.1} parent=1 // pred_region
      %s86 = ssub.s32 16, 16
      %87 = vsyncadd [#allocation10], %s86
      %s89 = sshll.u32 [#allocation11], 4
      %s90 = int_to_ptr.vmem [resolvable:$true] %s89
      %92 = dma.hbm_to_vmem [thread:$0]  %s6, 16, %s90, [#allocation10]
    $region29: #{tpu_custom_call.1} parent=1 // pred_fallthru
      _
    // Predicated region
    $region30: #{tpu_custom_call.1} parent=1 // pred_check
      _
    $region31: #{tpu_custom_call.1} parent=1 // pred_check_branch
      %94 = sbr.rel (0) target = $region33
    $region32: #{tpu_custom_call.1} parent=1 // pred_region
      %s96 = ssub.s32 768, 768
      %97 = vsyncadd [#allocation13], %s96
      %s98 = sshll.u32 [#allocation12], 4
      %s99 = int_to_ptr.vmem [resolvable:$true] %s98
      %104 = dma.hbm_to_vmem [thread:$0]  %s7, 768, %s99, [#allocation13], 384, 384, 24
    $region33: #{tpu_custom_call.1} parent=1 // pred_fallthru
      _
    // Predicated region
    $region34: #{tpu_custom_call.1} parent=1 // pred_check
      _
    $region35: #{tpu_custom_call.1} parent=1 // pred_check_branch
      %106 = sbr.rel (0) target = $region37
    $region36: #{tpu_custom_call.1} parent=1 // pred_region
      _
    $region37: #{tpu_custom_call.1} parent=1 // pred_fallthru
      _
    // Predicated region
    $region38: #{tpu_custom_call.1} parent=1 // pred_check
      _
    $region39: #{tpu_custom_call.1} parent=1 // pred_check_branch
      %108 = sbr.rel (0) target = $region41
    $region40: #{tpu_custom_call.1} parent=1 // pred_region
      %s110 = ssub.s32 6144, 6144
      %111 = vsyncadd [#allocation13], %s110
      %s112 = sshll.u32 [#allocation14], 4
      %s113 = int_to_ptr.vmem [resolvable:$true] %s112
      %118 = dma.hbm_to_vmem [thread:$0]  %s9, 6144, %s113, [#allocation13], 384, 384, 24
    $region41: #{tpu_custom_call.1} parent=1 // pred_fallthru
      _
    // Predicated region
    $region42: #{tpu_custom_call.1} parent=1 // pred_check
      _
    $region43: #{tpu_custom_call.1} parent=1 // pred_check_branch
      %120 = sbr.rel (0) target = $region45
    $region44: #{tpu_custom_call.1} parent=1 // pred_region
      %s122 = ssub.s32 6144, 6144
      %123 = vsyncadd [#allocation16], %s122
      %s124 = sshll.u32 [#allocation15], 4
      %s125 = int_to_ptr.vmem [resolvable:$true] %s124
      %130 = dma.hbm_to_vmem [thread:$0]  %s10, 6144, %s125, [#allocation16], 384, 384, 24
    $region45: #{tpu_custom_call.1} parent=1 // pred_fallthru
      _
    // Predicated region
    $region46: #{tpu_custom_call.1} parent=1 // pred_check
      _
    $region47: #{tpu_custom_call.1} parent=1 // pred_check_branch
      %132 = sbr.rel (0) target = $region49
    $region48: #{tpu_custom_call.1} parent=1 // pred_region
      _
    $region49: #{tpu_custom_call.1} parent=1 // pred_fallthru
      _
    // Predicated region
    $region50: #{tpu_custom_call.1} parent=1 // pred_check
      _
    $region51: #{tpu_custom_call.1} parent=1 // pred_check_branch
      %134 = sbr.rel (0) target = $region53
    $region52: #{tpu_custom_call.1} parent=1 // pred_region
      %s136 = ssub.s32 6144, 6144
      %137 = vsyncadd [#allocation16], %s136
      %s138 = sshll.u32 [#allocation17], 4
      %s139 = int_to_ptr.vmem [resolvable:$true] %s138
      %144 = dma.hbm_to_vmem [thread:$0]  %s12, 6144, %s139, [#allocation16], 384, 384, 24
    $region53: #{tpu_custom_call.1} parent=1 // pred_fallthru
      _
    // Predicated region
    $region54: #{tpu_custom_call.1} parent=1 // pred_check
      _
    $region55: #{tpu_custom_call.1} parent=1 // pred_check_branch
      %146 = sbr.rel (0) target = $region57
    $region56: #{tpu_custom_call.1} parent=1 // pred_region
      _
    $region57: #{tpu_custom_call.1} parent=1 // pred_fallthru
      _
    // Predicated region
    $region58: #{tpu_custom_call.1} parent=1 // pred_check
      _
    $region59: #{tpu_custom_call.1} parent=1 // pred_check_branch
      %148 = sbr.rel (0) target = $region61
    $region60: #{tpu_custom_call.1} parent=1 // pred_region
      %s150 = ssub.s32 6144, 6144
      %151 = vsyncadd [#allocation19], %s150
      %s152 = sshll.u32 [#allocation18], 4
      %s153 = int_to_ptr.vmem [resolvable:$true] %s152
      %158 = dma.hbm_to_vmem [thread:$0]  %s14, 6144, %s153, [#allocation19], 384, 384, 24
    $region61: #{tpu_custom_call.1} parent=1 // pred_fallthru
      _
    // Predicated region
    $region62: #{tpu_custom_call.1} parent=1 // pred_check
      _
    $region63: #{tpu_custom_call.1} parent=1 // pred_check_branch
      %160 = sbr.rel (0) target = $region65
    $region64: #{tpu_custom_call.1} parent=1 // pred_region
      _
    $region65: #{tpu_custom_call.1} parent=1 // pred_fallthru
      _
    // Predicated region
    $region66: #{tpu_custom_call.1} parent=1 // pred_check
      _
    $region67: #{tpu_custom_call.1} parent=1 // pred_check_branch
      %162 = sbr.rel (0) target = $region69
    $region68: #{tpu_custom_call.1} parent=1 // pred_region
      %s164 = ssub.s32 2048, 2048
      %165 = vsyncadd [#allocation19], %s164
      %s166 = sshll.u32 [#allocation20], 4
      %s167 = int_to_ptr.vmem [resolvable:$true] %s166
      %172 = dma.hbm_to_vmem [thread:$0]  %s16, 2048, %s167, [#allocation19], 128, 128, 8
    $region69: #{tpu_custom_call.1} parent=1 // pred_fallthru
      _
    // Predicated region
    $region70: #{tpu_custom_call.1} parent=1 // pred_check
      _
    $region71: #{tpu_custom_call.1} parent=1 // pred_check_branch
      %174 = sbr.rel (0) target = $region73
    $region72: #{tpu_custom_call.1} parent=1 // pred_region
      _
    $region73: #{tpu_custom_call.1} parent=1 // pred_fallthru
      _
    // Predicated region
    $region74: #{tpu_custom_call.1} parent=1 // pred_check
      _
    $region75: #{tpu_custom_call.1} parent=1 // pred_check_branch
      %176 = sbr.rel (0) target = $region77
    $region76: #{tpu_custom_call.1} parent=1 // pred_region
      %177 = dma.done [#allocation4], 128
    $region77: #{tpu_custom_call.1} parent=1 // pred_fallthru
      _
    // Predicated region
    $region78: #{tpu_custom_call.1} parent=1 // pred_check
      _
    $region79: #{tpu_custom_call.1} parent=1 // pred_check_branch
      %179 = sbr.rel (0) target = $region81
    $region80: #{tpu_custom_call.1} parent=1 // pred_region
      %180 = dma.done [#allocation7], 256
    $region81: #{tpu_custom_call.1} parent=1 // pred_fallthru
      _
    // Predicated region
    $region82: #{tpu_custom_call.1} parent=1 // pred_check
      _
    $region83: #{tpu_custom_call.1} parent=1 // pred_check_branch
      %182 = sbr.rel (0) target = $region85
    $region84: #{tpu_custom_call.1} parent=1 // pred_region
      %183 = dma.done [#allocation7], 2048
    $region85: #{tpu_custom_call.1} parent=1 // pred_fallthru
      _
    // Predicated region
    $region86: #{tpu_custom_call.1} parent=1 // pred_check
      _
    $region87: #{tpu_custom_call.1} parent=1 // pred_check_branch
      %185 = sbr.rel (0) target = $region89
    $region88: #{tpu_custom_call.1} parent=1 // pred_region
      %186 = dma.done [#allocation10], 2048
    $region89: #{tpu_custom_call.1} parent=1 // pred_fallthru
      _
    // Predicated region
    $region90: #{tpu_custom_call.1} parent=1 // pred_check
      _
    $region91: #{tpu_custom_call.1} parent=1 // pred_check_branch
      %188 = sbr.rel (0) target = $region93
    $region92: #{tpu_custom_call.1} parent=1 // pred_region
      %189 = dma.done [#allocation10], 16
    $region93: #{tpu_custom_call.1} parent=1 // pred_fallthru
      _
    // Predicated region
    $region94: #{tpu_custom_call.1} parent=1 // pred_check
      _
    $region95: #{tpu_custom_call.1} parent=1 // pred_check_branch
      %191 = sbr.rel (0) target = $region97
    $region96: #{tpu_custom_call.1} parent=1 // pred_region
      %192 = dma.done [#allocation13], 768
    $region97: #{tpu_custom_call.1} parent=1 // pred_fallthru
      _
    // Predicated region
    $region98: #{tpu_custom_call.1} parent=1 // pred_check
      _
    $region99: #{tpu_custom_call.1} parent=1 // pred_check_branch
      %194 = sbr.rel (0) target = $region101
    $region100: #{tpu_custom_call.1} parent=1 // pred_region
      %195 = dma.done [#allocation13], 6144
    $region101: #{tpu_custom_call.1} parent=1 // pred_fallthru
      _
    // Predicated region
    $region102: #{tpu_custom_call.1} parent=1 // pred_check
      _
    $region103: #{tpu_custom_call.1} parent=1 // pred_check_branch
      %197 = sbr.rel (0) target = $region105
    $region104: #{tpu_custom_call.1} parent=1 // pred_region
      %198 = dma.done [#allocation16], 6144
    $region105: #{tpu_custom_call.1} parent=1 // pred_fallthru
      _
    // Predicated region
    $region106: #{tpu_custom_call.1} parent=1 // pred_check
      _
    $region107: #{tpu_custom_call.1} parent=1 // pred_check_branch
      %200 = sbr.rel (0) target = $region109
    $region108: #{tpu_custom_call.1} parent=1 // pred_region
      %201 = dma.done [#allocation16], 6144
    $region109: #{tpu_custom_call.1} parent=1 // pred_fallthru
      _
    // Predicated region
    $region110: #{tpu_custom_call.1} parent=1 // pred_check
      _
    $region111: #{tpu_custom_call.1} parent=1 // pred_check_branch
      %203 = sbr.rel (0) target = $region113
    $region112: #{tpu_custom_call.1} parent=1 // pred_region
      %204 = dma.done [#allocation19], 6144
    $region113: #{tpu_custom_call.1} parent=1 // pred_fallthru
      _
    // Predicated region
    $region114: #{tpu_custom_call.1} parent=1 // pred_check
      _
    $region115: #{tpu_custom_call.1} parent=1 // pred_check_branch
      %206 = sbr.rel (0) target = $region117
    $region116: #{tpu_custom_call.1} parent=1 // pred_region
      %207 = dma.done [#allocation19], 2048
    $region117: #{tpu_custom_call.1} parent=1 // pred_fallthru
      _
    %v208 = vld [vmem:[%s1] sm:$0xff]
    %v209 = vld [vmem:[%s1 + $0x8] sm:$0xff]
    %v210 = vld [vmem:[%s1 + $0x10] sm:$0xff]
    %v211 = vld [vmem:[%s1 + $0x18] sm:$0xff]
    %v212 = vld [vmem:[%s1 + $0x20] sm:$0xff]
    %v213 = vld [vmem:[%s1 + $0x28] sm:$0xff]
    %v214 = vld [vmem:[%s1 + $0x30] sm:$0xff]
    %v215 = vld [vmem:[%s1 + $0x38] sm:$0xff]
    %v216 = vld [vmem:[#allocation3] sm:$0xff]
    %v217 = vld [vmem:[#allocation9] sm:$0xff]
    %v218 = vld [vmem:[#allocation9 + $0x8] sm:$0xff]
    %v219 = vld [vmem:[#allocation9 + $0x10] sm:$0xff]
    %v220 = vld [vmem:[#allocation9 + $0x18] sm:$0xff]
    %v221 = vld [vmem:[#allocation9 + $0x20] sm:$0xff]
    %v222 = vld [vmem:[#allocation9 + $0x28] sm:$0xff]
    %v223 = vld [vmem:[#allocation9 + $0x30] sm:$0xff]
    %v224 = vld [vmem:[#allocation9 + $0x38] sm:$0xff]
    %v225 = vld [vmem:[#allocation9 + $0x40] sm:$0xff]
    %v226 = vld [vmem:[#allocation9 + $0x48] sm:$0xff]
    %v227 = vld [vmem:[#allocation9 + $0x50] sm:$0xff]
    %v228 = vld [vmem:[#allocation9 + $0x58] sm:$0xff]
    %v229 = vld [vmem:[#allocation9 + $0x60] sm:$0xff]
    %v230 = vld [vmem:[#allocation9 + $0x68] sm:$0xff]
    %v231 = vld [vmem:[#allocation9 + $0x70] sm:$0xff]
    %v232 = vld [vmem:[#allocation9 + $0x78] sm:$0xff]
    %233 = vmatprep.subr.mxu0 0.0
    %234 = vmatpush1.msra.mxu0 %v232
    %235 = vmatprep.subr.mxu0 0.0
    %236 = vmatpush1.msra.mxu0 %v231
    %237 = vmatprep.subr.mxu0 0.0
    %238 = vmatpush1.msra.mxu0 %v230
    %239 = vmatprep.subr.mxu0 0.0
    %240 = vmatpush1.msra.mxu0 %v229
    %241 = vmatprep.subr.mxu0 0.0
    %242 = vmatpush1.msra.mxu0 %v228
    %243 = vmatprep.subr.mxu0 0.0
    %244 = vmatpush1.msra.mxu0 %v227
    %245 = vmatprep.subr.mxu0 0.0
    %246 = vmatpush1.msra.mxu0 %v226
    %247 = vmatprep.subr.mxu0 0.0
    %248 = vmatpush1.msra.mxu0 %v225
    %249 = vmatprep.subr.mxu0 0.0
    %250 = vmatpush1.msra.mxu0 %v224
    %251 = vmatprep.subr.mxu0 0.0
    %252 = vmatpush1.msra.mxu0 %v223
    %253 = vmatprep.subr.mxu0 0.0
    %254 = vmatpush1.msra.mxu0 %v222
    %255 = vmatprep.subr.mxu0 0.0
    %256 = vmatpush1.msra.mxu0 %v221
    %257 = vmatprep.subr.mxu0 0.0
    %258 = vmatpush1.msra.mxu0 %v220
    %259 = vmatprep.subr.mxu0 0.0
    %260 = vmatpush1.msra.mxu0 %v219
    %261 = vmatprep.subr.mxu0 0.0
    %262 = vmatpush1.msra.mxu0 %v218
    %263 = vmatprep.subr.mxu0 0.0
    %264 = vmatpush1.msra.mxu0 %v217
    %265 = vmatprep.subr.mxu0 0.0
    %266 = vmatpush2.msra.mxu0 0.0
    %267 = vmatprep.subr.mxu0 0.0
    %268 = vmatpush2.msra.mxu0 0.0
    %269 = vmatprep.subr.mxu0 0.0
    %270 = vmatpush2.msra.mxu0 0.0
    %271 = vmatprep.subr.mxu0 0.0
    %272 = vmatpush2.msra.mxu0 0.0
    %273 = vmatprep.subr.mxu0 0.0
    %274 = vmatpush2.msra.mxu0 0.0
    %275 = vmatprep.subr.mxu0 0.0
    %276 = vmatpush2.msra.mxu0 0.0
    %277 = vmatprep.subr.mxu0 0.0
    %278 = vmatpush2.msra.mxu0 0.0
    %279 = vmatprep.subr.mxu0 0.0
    %280 = vmatpush2.msra.mxu0 0.0
    %281 = vmatprep.subr.mxu0 0.0
    %282 = vmatpush2.msra.mxu0 0.0
    %283 = vmatprep.subr.mxu0 0.0
    %284 = vmatpush2.msra.mxu0 0.0
    %285 = vmatprep.subr.mxu0 0.0
    %286 = vmatpush2.msra.mxu0 0.0
    %287 = vmatprep.subr.mxu0 0.0
    %288 = vmatpush2.msra.mxu0 0.0
    %289 = vmatprep.subr.mxu0 0.0
    %290 = vmatpush2.msra.mxu0 0.0
    %291 = vmatprep.subr.mxu0 0.0
    %292 = vmatpush2.msra.mxu0 0.0
    %293 = vmatprep.subr.mxu0 0.0
    %294 = vmatpush2.msra.mxu0 0.0
    %295 = vmatprep.subr.mxu0 0.0
    %296 = vmatpush2.msra.mxu0 0.0
    %297 = vmatprep.mubr.f32.mxu0 0.0
    %298 = vmatmul.mubr.f32.gmra.mxu0 %v208
    %v299 = vpop.f32.mrf.mxu0
    %v300 = vadd.f32 0.0, %v299
    %v301 = vpop.f32.mrf.mxu0
    %302 = vmatprep.mubr.f32.mxu0 0.0
    %303 = vmatmul.mubr.f32.gmra.mxu0 %v209
    %v304 = vpop.f32.mrf.mxu0
    %v305 = vadd.f32 0.0, %v304
    %v306 = vpop.f32.mrf.mxu0
    %307 = vmatprep.mubr.f32.mxu0 0.0
    %308 = vmatmul.mubr.f32.gmra.mxu0 %v210
    %v309 = vpop.f32.mrf.mxu0
    %v310 = vadd.f32 0.0, %v309
    %v311 = vpop.f32.mrf.mxu0
    %312 = vmatprep.mubr.f32.mxu0 0.0
    %313 = vmatmul.mubr.f32.gmra.mxu0 %v211
    %v314 = vpop.f32.mrf.mxu0
    %v315 = vadd.f32 0.0, %v314
    %v316 = vpop.f32.mrf.mxu0
    %317 = vmatprep.mubr.f32.mxu0 0.0
    %318 = vmatmul.mubr.f32.gmra.mxu0 %v212
    %v319 = vpop.f32.mrf.mxu0
    %v320 = vadd.f32 0.0, %v319
    %v321 = vpop.f32.mrf.mxu0
    %322 = vmatprep.mubr.f32.mxu0 0.0
    %323 = vmatmul.mubr.f32.gmra.mxu0 %v213
    %v324 = vpop.f32.mrf.mxu0
    %v325 = vadd.f32 0.0, %v324
    %v326 = vpop.f32.mrf.mxu0
    %327 = vmatprep.mubr.f32.mxu0 0.0
    %328 = vmatmul.mubr.f32.gmra.mxu0 %v214
    %v329 = vpop.f32.mrf.mxu0
    %v330 = vadd.f32 0.0, %v329
    %v331 = vpop.f32.mrf.mxu0
    %332 = vmatprep.mubr.f32.mxu0 0.0
    %333 = vmatmul.mubr.f32.gmra.mxu0 %v215
    %v334 = vpop.f32.mrf.mxu0
    %v335 = vadd.f32 0.0, %v334
    %v336 = vpop.f32.mrf.mxu0
    %337 = vdwg.mxu0
    %v338 = vld [vmem:[%s0] sm:$0xff]
    %v339 = vld [vmem:[%s0 + $0x8] sm:$0xff]
    %v340 = vld [vmem:[%s0 + $0x10] sm:$0xff]
    %v341 = vld [vmem:[%s0 + $0x18] sm:$0xff]
    %v342 = vld [vmem:[%s0 + $0x20] sm:$0xff]
    %v343 = vld [vmem:[%s0 + $0x28] sm:$0xff]
    %v344 = vld [vmem:[#allocation12] sm:$0xff]
    %v345 = vld [vmem:[#allocation12 + $0x8] sm:$0xff]
    %v346 = vld [vmem:[#allocation12 + $0x10] sm:$0xff]
    %v347 = vld [vmem:[#allocation12 + $0x18] sm:$0xff]
    %v348 = vld [vmem:[#allocation12 + $0x20] sm:$0xff]
    %v349 = vld [vmem:[#allocation12 + $0x28] sm:$0xff]
    %v350 = vld [vmem:[%s8] sm:$0x7]
    %v352 = vlaneseq
    %v353 = vshrl.u32 %v352, 7
    %v354 = vsub.s32 0, %v353
    %v355 = vrot.slane %v350, %v354
    %v356 = vlaneseq
    %v357 = vshrl.u32 %v356, 7
    %v358 = vsub.s32 1, %v357
    %v359 = vrot.slane %v350, %v358
    %v360 = vlaneseq
    %v361 = vshrl.u32 %v360, 7
    %v362 = vsub.s32 2, %v361
    %v363 = vrot.slane %v350, %v362
    %vm367 = vcmask 130048
    %v369 = vsel %vm367, %v338, 0
    %v372 = vsel %vm367, %v339, 0
    %v375 = vsel %vm367, %v340, 0
    %v378 = vsel %vm367, %v341, 0
    %v381 = vsel %vm367, %v342, 0
    %v384 = vsel %vm367, %v343, 0
    %386 = vmatprep.subr.mxu0 0.0
    %387 = vmatpush1.msra.mxu0 0.0
    %388 = vmatprep.subr.mxu0 0.0
    %389 = vmatpush1.msra.mxu0 0.0
    %390 = vmatprep.subr.mxu0 0.0
    %391 = vmatpush1.msra.mxu0 0.0
    %392 = vmatprep.subr.mxu0 0.0
    %393 = vmatpush1.msra.mxu0 0.0
    %394 = vmatprep.subr.mxu0 0.0
    %395 = vmatpush1.msra.mxu0 0.0
    %396 = vmatprep.subr.mxu0 0.0
    %397 = vmatpush1.msra.mxu0 0.0
    %398 = vmatprep.subr.mxu0 0.0
    %399 = vmatpush1.msra.mxu0 0.0
    %400 = vmatprep.subr.mxu0 0.0
    %401 = vmatpush1.msra.mxu0 0.0
    %402 = vmatprep.subr.mxu0 0.0
    %403 = vmatpush1.msra.mxu0 0.0
    %404 = vmatprep.subr.mxu0 0.0
    %405 = vmatpush1.msra.mxu0 0.0
    %406 = vmatprep.subr.mxu0 0.0
    %407 = vmatpush1.msra.mxu0 0.0
    %408 = vmatprep.subr.mxu0 0.0
    %409 = vmatpush1.msra.mxu0 0.0
    %410 = vmatprep.subr.mxu0 0.0
    %411 = vmatpush1.msra.mxu0 0.0
    %412 = vmatprep.subr.mxu0 0.0
    %413 = vmatpush1.msra.mxu0 0.0
    %414 = vmatprep.subr.mxu0 %v348
    %415 = vmatpush1.msra.mxu0 %v347
    %416 = vmatprep.subr.mxu0 %v345
    %417 = vmatpush1.msra.mxu0 %v344
    %418 = vmatprep.subr.mxu0 0.0
    %419 = vmatpush2.msra.mxu0 0.0
    %420 = vmatprep.subr.mxu0 0.0
    %421 = vmatpush2.msra.mxu0 0.0
    %422 = vmatprep.subr.mxu0 0.0
    %423 = vmatpush2.msra.mxu0 0.0
    %424 = vmatprep.subr.mxu0 0.0
    %425 = vmatpush2.msra.mxu0 0.0
    %426 = vmatprep.subr.mxu0 0.0
    %427 = vmatpush2.msra.mxu0 0.0
    %428 = vmatprep.subr.mxu0 0.0
    %429 = vmatpush2.msra.mxu0 0.0
    %430 = vmatprep.subr.mxu0 0.0
    %431 = vmatpush2.msra.mxu0 0.0
    %432 = vmatprep.subr.mxu0 0.0
    %433 = vmatpush2.msra.mxu0 0.0
    %434 = vmatprep.subr.mxu0 0.0
    %435 = vmatpush2.msra.mxu0 0.0
    %436 = vmatprep.subr.mxu0 0.0
    %437 = vmatpush2.msra.mxu0 0.0
    %438 = vmatprep.subr.mxu0 0.0
    %439 = vmatpush2.msra.mxu0 0.0
    %440 = vmatprep.subr.mxu0 0.0
    %441 = vmatpush2.msra.mxu0 0.0
    %442 = vmatprep.subr.mxu0 0.0
    %443 = vmatpush2.msra.mxu0 0.0
    %444 = vmatprep.subr.mxu0 0.0
    %445 = vmatpush2.msra.mxu0 0.0
    %446 = vmatprep.subr.mxu0 0.0
    %447 = vmatpush2.msra.mxu0 0.0
    %448 = vmatprep.subr.mxu0 0.0
    %449 = vmatpush2.msra.mxu0 0.0
    %450 = vmatprep.mubr.f32.mxu0 0.0
    %451 = vmatmul.mubr.f32.gmra.mxu0 %v369
    %v452 = vpop.f32.mrf.mxu0
    %v453 = vadd.f32 %v355, %v452
    %v454 = vpop.f32.mrf.mxu0
    %v455 = vadd.f32 %v359, %v454
    %456 = vmatprep.mubr.f32.mxu0 0.0
    %457 = vmatmul.mubr.f32.gmra.mxu0 %v372
    %v458 = vpop.f32.mrf.mxu0
    %v459 = vadd.f32 %v355, %v458
    %v460 = vpop.f32.mrf.mxu0
    %v461 = vadd.f32 %v359, %v460
    %462 = vmatprep.mubr.f32.mxu0 0.0
    %463 = vmatmul.mubr.f32.gmra.mxu0 %v375
    %v464 = vpop.f32.mrf.mxu0
    %v465 = vadd.f32 %v355, %v464
    %v466 = vpop.f32.mrf.mxu0
    %v467 = vadd.f32 %v359, %v466
    %468 = vmatprep.mubr.f32.mxu0 0.0
    %469 = vmatmul.mubr.f32.gmra.mxu0 %v378
    %v470 = vpop.f32.mrf.mxu0
    %v471 = vadd.f32 %v355, %v470
    %v472 = vpop.f32.mrf.mxu0
    %v473 = vadd.f32 %v359, %v472
    %474 = vmatprep.mubr.f32.mxu0 0.0
    %475 = vmatmul.mubr.f32.gmra.mxu0 %v381
    %v476 = vpop.f32.mrf.mxu0
    %v477 = vadd.f32 %v355, %v476
    %v478 = vpop.f32.mrf.mxu0
    %v479 = vadd.f32 %v359, %v478
    %480 = vmatprep.mubr.f32.mxu0 0.0
    %481 = vmatmul.mubr.f32.gmra.mxu0 %v384
    %v482 = vpop.f32.mrf.mxu0
    %v483 = vadd.f32 %v355, %v482
    %v484 = vpop.f32.mrf.mxu0
    %v485 = vadd.f32 %v359, %v484
    %486 = vdwg.mxu0
    %487 = vmatprep.subr.mxu0 0.0
    %488 = vmatpush1.msra.mxu0 0.0
    %489 = vmatprep.subr.mxu0 0.0
    %490 = vmatpush1.msra.mxu0 0.0
    %491 = vmatprep.subr.mxu0 0.0
    %492 = vmatpush1.msra.mxu0 0.0
    %493 = vmatprep.subr.mxu0 0.0
    %494 = vmatpush1.msra.mxu0 0.0
    %495 = vmatprep.subr.mxu0 0.0
    %496 = vmatpush1.msra.mxu0 0.0
    %497 = vmatprep.subr.mxu0 0.0
    %498 = vmatpush1.msra.mxu0 0.0
    %499 = vmatprep.subr.mxu0 0.0
    %500 = vmatpush1.msra.mxu0 0.0
    %501 = vmatprep.subr.mxu0 0.0
    %502 = vmatpush1.msra.mxu0 0.0
    %503 = vmatprep.subr.mxu0 0.0
    %504 = vmatpush1.msra.mxu0 0.0
    %505 = vmatprep.subr.mxu0 0.0
    %506 = vmatpush1.msra.mxu0 0.0
    %507 = vmatprep.subr.mxu0 0.0
    %508 = vmatpush1.msra.mxu0 0.0
    %509 = vmatprep.subr.mxu0 0.0
    %510 = vmatpush1.msra.mxu0 0.0
    %511 = vmatprep.subr.mxu0 0.0
    %512 = vmatpush1.msra.mxu0 0.0
    %513 = vmatprep.subr.mxu0 0.0
    %514 = vmatpush1.msra.mxu0 0.0
    %515 = vmatprep.subr.mxu0 0.0
    %516 = vmatpush1.msra.mxu0 %v349
    %517 = vmatprep.subr.mxu0 0.0
    %518 = vmatpush1.msra.mxu0 %v346
    %519 = vmatprep.subr.mxu0 0.0
    %520 = vmatpush2.msra.mxu0 0.0
    %521 = vmatprep.subr.mxu0 0.0
    %522 = vmatpush2.msra.mxu0 0.0
    %523 = vmatprep.subr.mxu0 0.0
    %524 = vmatpush2.msra.mxu0 0.0
    %525 = vmatprep.subr.mxu0 0.0
    %526 = vmatpush2.msra.mxu0 0.0
    %527 = vmatprep.subr.mxu0 0.0
    %528 = vmatpush2.msra.mxu0 0.0
    %529 = vmatprep.subr.mxu0 0.0
    %530 = vmatpush2.msra.mxu0 0.0
    %531 = vmatprep.subr.mxu0 0.0
    %532 = vmatpush2.msra.mxu0 0.0
    %533 = vmatprep.subr.mxu0 0.0
    %534 = vmatpush2.msra.mxu0 0.0
    %535 = vmatprep.subr.mxu0 0.0
    %536 = vmatpush2.msra.mxu0 0.0
    %537 = vmatprep.subr.mxu0 0.0
    %538 = vmatpush2.msra.mxu0 0.0
    %539 = vmatprep.subr.mxu0 0.0
    %540 = vmatpush2.msra.mxu0 0.0
    %541 = vmatprep.subr.mxu0 0.0
    %542 = vmatpush2.msra.mxu0 0.0
    %543 = vmatprep.subr.mxu0 0.0
    %544 = vmatpush2.msra.mxu0 0.0
    %545 = vmatprep.subr.mxu0 0.0
    %546 = vmatpush2.msra.mxu0 0.0
    %547 = vmatprep.subr.mxu0 0.0
    %548 = vmatpush2.msra.mxu0 0.0
    %549 = vmatprep.subr.mxu0 0.0
    %550 = vmatpush2.msra.mxu0 0.0
    %551 = vmatprep.mubr.f32.mxu0 0.0
    %552 = vmatmul.mubr.f32.gmra.mxu0 %v369
    %v553 = vpop.f32.mrf.mxu0
    %v554 = vadd.f32 %v363, %v553
    %v555 = vpop.f32.mrf.mxu0
    %556 = vmatprep.mubr.f32.mxu0 0.0
    %557 = vmatmul.mubr.f32.gmra.mxu0 %v372
    %v558 = vpop.f32.mrf.mxu0
    %v559 = vadd.f32 %v363, %v558
    %v560 = vpop.f32.mrf.mxu0
    %561 = vmatprep.mubr.f32.mxu0 0.0
    %562 = vmatmul.mubr.f32.gmra.mxu0 %v375
    %v563 = vpop.f32.mrf.mxu0
    %v564 = vadd.f32 %v363, %v563
    %v565 = vpop.f32.mrf.mxu0
    %566 = vmatprep.mubr.f32.mxu0 0.0
    %567 = vmatmul.mubr.f32.gmra.mxu0 %v378
    %v568 = vpop.f32.mrf.mxu0
    %v569 = vadd.f32 %v363, %v568
    %v570 = vpop.f32.mrf.mxu0
    %571 = vmatprep.mubr.f32.mxu0 0.0
    %572 = vmatmul.mubr.f32.gmra.mxu0 %v381
    %v573 = vpop.f32.mrf.mxu0
    %v574 = vadd.f32 %v363, %v573
    %v575 = vpop.f32.mrf.mxu0
    %576 = vmatprep.mubr.f32.mxu0 0.0
    %577 = vmatmul.mubr.f32.gmra.mxu0 %v384
    %v578 = vpop.f32.mrf.mxu0
    %v579 = vadd.f32 %v363, %v578
    %v580 = vpop.f32.mrf.mxu0
    %581 = vdwg.mxu0
    %v582 = vld [vmem:[#allocation8] sm:$0xff]
    %v583 = vld [vmem:[#allocation8 + $0x8] sm:$0xff]
    %v584 = vld [vmem:[#allocation8 + $0x10] sm:$0xff]
    %v585 = vld [vmem:[#allocation8 + $0x18] sm:$0xff]
    %v586 = vld [vmem:[#allocation8 + $0x20] sm:$0xff]
    %v587 = vld [vmem:[#allocation8 + $0x28] sm:$0xff]
    %v588 = vld [vmem:[#allocation8 + $0x30] sm:$0xff]
    %v589 = vld [vmem:[#allocation8 + $0x38] sm:$0xff]
    %v590 = vld [vmem:[#allocation8 + $0x40] sm:$0xff]
    %v591 = vld [vmem:[#allocation8 + $0x48] sm:$0xff]
    %v592 = vld [vmem:[#allocation8 + $0x50] sm:$0xff]
    %v593 = vld [vmem:[#allocation8 + $0x58] sm:$0xff]
    %v594 = vld [vmem:[#allocation8 + $0x60] sm:$0xff]
    %v595 = vld [vmem:[#allocation8 + $0x68] sm:$0xff]
    %v596 = vld [vmem:[#allocation8 + $0x70] sm:$0xff]
    %v597 = vld [vmem:[#allocation8 + $0x78] sm:$0xff]
    %v598 = vld [vmem:[#allocation11] sm:$0x1]
    %v599 = vld [vmem:[#allocation14] sm:$0xff]
    %v600 = vld [vmem:[#allocation14 + $0x8] sm:$0xff]
    %v601 = vld [vmem:[#allocation14 + $0x10] sm:$0xff]
    %v602 = vld [vmem:[#allocation14 + $0x18] sm:$0xff]
    %v603 = vld [vmem:[#allocation14 + $0x20] sm:$0xff]
    %v604 = vld [vmem:[#allocation14 + $0x28] sm:$0xff]
    %v605 = vld [vmem:[#allocation14 + $0x30] sm:$0xff]
    %v606 = vld [vmem:[#allocation14 + $0x38] sm:$0xff]
    %v607 = vld [vmem:[#allocation14 + $0x40] sm:$0xff]
    %v608 = vld [vmem:[#allocation14 + $0x48] sm:$0xff]
    %v609 = vld [vmem:[#allocation14 + $0x50] sm:$0xff]
    %v610 = vld [vmem:[#allocation14 + $0x58] sm:$0xff]
    %v611 = vld [vmem:[#allocation14 + $0x60] sm:$0xff]
    %v612 = vld [vmem:[#allocation14 + $0x68] sm:$0xff]
    %v613 = vld [vmem:[#allocation14 + $0x70] sm:$0xff]
    %v614 = vld [vmem:[#allocation14 + $0x78] sm:$0xff]
    %v615 = vld [vmem:[#allocation14 + $0x80] sm:$0xff]
    %v616 = vld [vmem:[#allocation14 + $0x88] sm:$0xff]
    %v617 = vld [vmem:[#allocation14 + $0x90] sm:$0xff]
    %v618 = vld [vmem:[#allocation14 + $0x98] sm:$0xff]
    %v619 = vld [vmem:[#allocation14 + $0xa0] sm:$0xff]
    %v620 = vld [vmem:[#allocation14 + $0xa8] sm:$0xff]
    %v621 = vld [vmem:[#allocation14 + $0xb0] sm:$0xff]
    %v622 = vld [vmem:[#allocation14 + $0xb8] sm:$0xff]
    %v623 = vld [vmem:[#allocation14 + $0xc0] sm:$0xff]
    %v624 = vld [vmem:[#allocation14 + $0xc8] sm:$0xff]
    %v625 = vld [vmem:[#allocation14 + $0xd0] sm:$0xff]
    %v626 = vld [vmem:[#allocation14 + $0xd8] sm:$0xff]
    %v627 = vld [vmem:[#allocation14 + $0xe0] sm:$0xff]
    %v628 = vld [vmem:[#allocation14 + $0xe8] sm:$0xff]
    %v629 = vld [vmem:[#allocation14 + $0xf0] sm:$0xff]
    %v630 = vld [vmem:[#allocation14 + $0xf8] sm:$0xff]
    %v631 = vld [vmem:[#allocation14 + $0x100] sm:$0xff]
    %v632 = vld [vmem:[#allocation14 + $0x108] sm:$0xff]
    %v633 = vld [vmem:[#allocation14 + $0x110] sm:$0xff]
    %v634 = vld [vmem:[#allocation14 + $0x118] sm:$0xff]
    %v635 = vld [vmem:[#allocation14 + $0x120] sm:$0xff]
    %v636 = vld [vmem:[#allocation14 + $0x128] sm:$0xff]
    %v637 = vld [vmem:[#allocation14 + $0x130] sm:$0xff]
    %v638 = vld [vmem:[#allocation14 + $0x138] sm:$0xff]
    %v639 = vld [vmem:[#allocation14 + $0x140] sm:$0xff]
    %v640 = vld [vmem:[#allocation14 + $0x148] sm:$0xff]
    %v641 = vld [vmem:[#allocation14 + $0x150] sm:$0xff]
    %v642 = vld [vmem:[#allocation14 + $0x158] sm:$0xff]
    %v643 = vld [vmem:[#allocation14 + $0x160] sm:$0xff]
    %v644 = vld [vmem:[#allocation14 + $0x168] sm:$0xff]
    %v645 = vld [vmem:[#allocation14 + $0x170] sm:$0xff]
    %v646 = vld [vmem:[#allocation14 + $0x178] sm:$0xff]
    %v647 = vld [vmem:[#allocation15] sm:$0xff]
    %v648 = vld [vmem:[#allocation15 + $0x8] sm:$0xff]
    %v649 = vld [vmem:[#allocation15 + $0x10] sm:$0xff]
    %v650 = vld [vmem:[#allocation15 + $0x18] sm:$0xff]
    %v651 = vld [vmem:[#allocation15 + $0x20] sm:$0xff]
    %v652 = vld [vmem:[#allocation15 + $0x28] sm:$0xff]
    %v653 = vld [vmem:[#allocation15 + $0x30] sm:$0xff]
    %v654 = vld [vmem:[#allocation15 + $0x38] sm:$0xff]
    %v655 = vld [vmem:[#allocation15 + $0x40] sm:$0xff]
    %v656 = vld [vmem:[#allocation15 + $0x48] sm:$0xff]
    %v657 = vld [vmem:[#allocation15 + $0x50] sm:$0xff]
    %v658 = vld [vmem:[#allocation15 + $0x58] sm:$0xff]
    %v659 = vld [vmem:[#allocation15 + $0x60] sm:$0xff]
    %v660 = vld [vmem:[#allocation15 + $0x68] sm:$0xff]
    %v661 = vld [vmem:[#allocation15 + $0x70] sm:$0xff]
    %v662 = vld [vmem:[#allocation15 + $0x78] sm:$0xff]
    %v663 = vld [vmem:[#allocation15 + $0x80] sm:$0xff]
    %v664 = vld [vmem:[#allocation15 + $0x88] sm:$0xff]
    %v665 = vld [vmem:[#allocation15 + $0x90] sm:$0xff]
    %v666 = vld [vmem:[#allocation15 + $0x98] sm:$0xff]
    %v667 = vld [vmem:[#allocation15 + $0xa0] sm:$0xff]
    %v668 = vld [vmem:[#allocation15 + $0xa8] sm:$0xff]
    %v669 = vld [vmem:[#allocation15 + $0xb0] sm:$0xff]
    %v670 = vld [vmem:[#allocation15 + $0xb8] sm:$0xff]
    %v671 = vld [vmem:[#allocation15 + $0xc0] sm:$0xff]
    %v672 = vld [vmem:[#allocation15 + $0xc8] sm:$0xff]
    %v673 = vld [vmem:[#allocation15 + $0xd0] sm:$0xff]
    %v674 = vld [vmem:[#allocation15 + $0xd8] sm:$0xff]
    %v675 = vld [vmem:[#allocation15 + $0xe0] sm:$0xff]
    %v676 = vld [vmem:[#allocation15 + $0xe8] sm:$0xff]
    %v677 = vld [vmem:[#allocation15 + $0xf0] sm:$0xff]
    %v678 = vld [vmem:[#allocation15 + $0xf8] sm:$0xff]
    %v679 = vld [vmem:[#allocation15 + $0x100] sm:$0xff]
    %v680 = vld [vmem:[#allocation15 + $0x108] sm:$0xff]
    %v681 = vld [vmem:[#allocation15 + $0x110] sm:$0xff]
    %v682 = vld [vmem:[#allocation15 + $0x118] sm:$0xff]
    %v683 = vld [vmem:[#allocation15 + $0x120] sm:$0xff]
    %v684 = vld [vmem:[#allocation15 + $0x128] sm:$0xff]
    %v685 = vld [vmem:[#allocation15 + $0x130] sm:$0xff]
    %v686 = vld [vmem:[#allocation15 + $0x138] sm:$0xff]
    %v687 = vld [vmem:[#allocation15 + $0x140] sm:$0xff]
    %v688 = vld [vmem:[#allocation15 + $0x148] sm:$0xff]
    %v689 = vld [vmem:[#allocation15 + $0x150] sm:$0xff]
    %v690 = vld [vmem:[#allocation15 + $0x158] sm:$0xff]
    %v691 = vld [vmem:[#allocation15 + $0x160] sm:$0xff]
    %v692 = vld [vmem:[#allocation15 + $0x168] sm:$0xff]
    %v693 = vld [vmem:[#allocation15 + $0x170] sm:$0xff]
    %v694 = vld [vmem:[#allocation15 + $0x178] sm:$0xff]
    %v695 = vld [vmem:[#allocation17] sm:$0xff]
    %v696 = vld [vmem:[#allocation17 + $0x8] sm:$0xff]
    %v697 = vld [vmem:[#allocation17 + $0x10] sm:$0xff]
    %v698 = vld [vmem:[#allocation17 + $0x18] sm:$0xff]
    %v699 = vld [vmem:[#allocation17 + $0x20] sm:$0xff]
    %v700 = vld [vmem:[#allocation17 + $0x28] sm:$0xff]
    %v701 = vld [vmem:[#allocation17 + $0x30] sm:$0xff]
    %v702 = vld [vmem:[#allocation17 + $0x38] sm:$0xff]
    %v703 = vld [vmem:[#allocation17 + $0x40] sm:$0xff]
    %v704 = vld [vmem:[#allocation17 + $0x48] sm:$0xff]
    %v705 = vld [vmem:[#allocation17 + $0x50] sm:$0xff]
    %v706 = vld [vmem:[#allocation17 + $0x58] sm:$0xff]
    %v707 = vld [vmem:[#allocation17 + $0x60] sm:$0xff]
    %v708 = vld [vmem:[#allocation17 + $0x68] sm:$0xff]
    %v709 = vld [vmem:[#allocation17 + $0x70] sm:$0xff]
    %v710 = vld [vmem:[#allocation17 + $0x78] sm:$0xff]
    %v711 = vld [vmem:[#allocation17 + $0x80] sm:$0xff]
    %v712 = vld [vmem:[#allocation17 + $0x88] sm:$0xff]
    %v713 = vld [vmem:[#allocation17 + $0x90] sm:$0xff]
    %v714 = vld [vmem:[#allocation17 + $0x98] sm:$0xff]
    %v715 = vld [vmem:[#allocation17 + $0xa0] sm:$0xff]
    %v716 = vld [vmem:[#allocation17 + $0xa8] sm:$0xff]
    %v717 = vld [vmem:[#allocation17 + $0xb0] sm:$0xff]
    %v718 = vld [vmem:[#allocation17 + $0xb8] sm:$0xff]
    %v719 = vld [vmem:[#allocation17 + $0xc0] sm:$0xff]
    %v720 = vld [vmem:[#allocation17 + $0xc8] sm:$0xff]
    %v721 = vld [vmem:[#allocation17 + $0xd0] sm:$0xff]
    %v722 = vld [vmem:[#allocation17 + $0xd8] sm:$0xff]
    %v723 = vld [vmem:[#allocation17 + $0xe0] sm:$0xff]
    %v724 = vld [vmem:[#allocation17 + $0xe8] sm:$0xff]
    %v725 = vld [vmem:[#allocation17 + $0xf0] sm:$0xff]
    %v726 = vld [vmem:[#allocation17 + $0xf8] sm:$0xff]
    %v727 = vld [vmem:[#allocation17 + $0x100] sm:$0xff]
    %v728 = vld [vmem:[#allocation17 + $0x108] sm:$0xff]
    %v729 = vld [vmem:[#allocation17 + $0x110] sm:$0xff]
    %v730 = vld [vmem:[#allocation17 + $0x118] sm:$0xff]
    %v731 = vld [vmem:[#allocation17 + $0x120] sm:$0xff]
    %v732 = vld [vmem:[#allocation17 + $0x128] sm:$0xff]
    %v733 = vld [vmem:[#allocation17 + $0x130] sm:$0xff]
    %v734 = vld [vmem:[#allocation17 + $0x138] sm:$0xff]
    %v735 = vld [vmem:[#allocation17 + $0x140] sm:$0xff]
    %v736 = vld [vmem:[#allocation17 + $0x148] sm:$0xff]
    %v737 = vld [vmem:[#allocation17 + $0x150] sm:$0xff]
    %v738 = vld [vmem:[#allocation17 + $0x158] sm:$0xff]
    %v739 = vld [vmem:[#allocation17 + $0x160] sm:$0xff]
    %v740 = vld [vmem:[#allocation17 + $0x168] sm:$0xff]
    %v741 = vld [vmem:[#allocation17 + $0x170] sm:$0xff]
    %v742 = vld [vmem:[#allocation17 + $0x178] sm:$0xff]
    %v743 = vld [vmem:[#allocation18] sm:$0xff]
    %v744 = vld [vmem:[#allocation18 + $0x8] sm:$0xff]
    %v745 = vld [vmem:[#allocation18 + $0x10] sm:$0xff]
    %v746 = vld [vmem:[#allocation18 + $0x18] sm:$0xff]
    %v747 = vld [vmem:[#allocation18 + $0x20] sm:$0xff]
    %v748 = vld [vmem:[#allocation18 + $0x28] sm:$0xff]
    %v749 = vld [vmem:[#allocation18 + $0x30] sm:$0xff]
    %v750 = vld [vmem:[#allocation18 + $0x38] sm:$0xff]
    %v751 = vld [vmem:[#allocation18 + $0x40] sm:$0xff]
    %v752 = vld [vmem:[#allocation18 + $0x48] sm:$0xff]
    %v753 = vld [vmem:[#allocation18 + $0x50] sm:$0xff]
    %v754 = vld [vmem:[#allocation18 + $0x58] sm:$0xff]
    %v755 = vld [vmem:[#allocation18 + $0x60] sm:$0xff]
    %v756 = vld [vmem:[#allocation18 + $0x68] sm:$0xff]
    %v757 = vld [vmem:[#allocation18 + $0x70] sm:$0xff]
    %v758 = vld [vmem:[#allocation18 + $0x78] sm:$0xff]
    %v759 = vld [vmem:[#allocation18 + $0x80] sm:$0xff]
    %v760 = vld [vmem:[#allocation18 + $0x88] sm:$0xff]
    %v761 = vld [vmem:[#allocation18 + $0x90] sm:$0xff]
    %v762 = vld [vmem:[#allocation18 + $0x98] sm:$0xff]
    %v763 = vld [vmem:[#allocation18 + $0xa0] sm:$0xff]
    %v764 = vld [vmem:[#allocation18 + $0xa8] sm:$0xff]
    %v765 = vld [vmem:[#allocation18 + $0xb0] sm:$0xff]
    %v766 = vld [vmem:[#allocation18 + $0xb8] sm:$0xff]
    %v767 = vld [vmem:[#allocation18 + $0xc0] sm:$0xff]
    %v768 = vld [vmem:[#allocation18 + $0xc8] sm:$0xff]
    %v769 = vld [vmem:[#allocation18 + $0xd0] sm:$0xff]
    %v770 = vld [vmem:[#allocation18 + $0xd8] sm:$0xff]
    %v771 = vld [vmem:[#allocation18 + $0xe0] sm:$0xff]
    %v772 = vld [vmem:[#allocation18 + $0xe8] sm:$0xff]
    %v773 = vld [vmem:[#allocation18 + $0xf0] sm:$0xff]
    %v774 = vld [vmem:[#allocation18 + $0xf8] sm:$0xff]
    %v775 = vld [vmem:[#allocation18 + $0x100] sm:$0xff]
    %v776 = vld [vmem:[#allocation18 + $0x108] sm:$0xff]
    %v777 = vld [vmem:[#allocation18 + $0x110] sm:$0xff]
    %v778 = vld [vmem:[#allocation18 + $0x118] sm:$0xff]
    %v779 = vld [vmem:[#allocation18 + $0x120] sm:$0xff]
    %v780 = vld [vmem:[#allocation18 + $0x128] sm:$0xff]
    %v781 = vld [vmem:[#allocation18 + $0x130] sm:$0xff]
    %v782 = vld [vmem:[#allocation18 + $0x138] sm:$0xff]
    %v783 = vld [vmem:[#allocation18 + $0x140] sm:$0xff]
    %v784 = vld [vmem:[#allocation18 + $0x148] sm:$0xff]
    %v785 = vld [vmem:[#allocation18 + $0x150] sm:$0xff]
    %v786 = vld [vmem:[#allocation18 + $0x158] sm:$0xff]
    %v787 = vld [vmem:[#allocation18 + $0x160] sm:$0xff]
    %v788 = vld [vmem:[#allocation18 + $0x168] sm:$0xff]
    %v789 = vld [vmem:[#allocation18 + $0x170] sm:$0xff]
    %v790 = vld [vmem:[#allocation18 + $0x178] sm:$0xff]
    %v791 = vld [vmem:[%s11] sm:$0x7]
    %v793 = vlaneseq
    %v794 = vshrl.u32 %v793, 7
    %v795 = vsub.s32 0, %v794
    %v796 = vrot.slane %v791, %v795
    %v797 = vlaneseq
    %v798 = vshrl.u32 %v797, 7
    %v799 = vsub.s32 1, %v798
    %v800 = vrot.slane %v791, %v799
    %v801 = vlaneseq
    %v802 = vshrl.u32 %v801, 7
    %v803 = vsub.s32 2, %v802
    %v804 = vrot.slane %v791, %v803
    %v808 = vld [vmem:[%s13] sm:$0x7]
    %v810 = vlaneseq
    %v811 = vshrl.u32 %v810, 7
    %v812 = vsub.s32 0, %v811
    %v813 = vrot.slane %v808, %v812
    %v814 = vlaneseq
    %v815 = vshrl.u32 %v814, 7
    %v816 = vsub.s32 1, %v815
    %v817 = vrot.slane %v808, %v816
    %v818 = vlaneseq
    %v819 = vshrl.u32 %v818, 7
    %v820 = vsub.s32 2, %v819
    %v821 = vrot.slane %v808, %v820
    %v825 = vld [vmem:[%s15] sm:$0x7]
    %v827 = vlaneseq
    %v828 = vshrl.u32 %v827, 7
    %v829 = vsub.s32 0, %v828
    %v830 = vrot.slane %v825, %v829
    %v831 = vlaneseq
    %v832 = vshrl.u32 %v831, 7
    %v833 = vsub.s32 1, %v832
    %v834 = vrot.slane %v825, %v833
    %v835 = vlaneseq
    %v836 = vshrl.u32 %v835, 7
    %v837 = vsub.s32 2, %v836
    %v838 = vrot.slane %v825, %v837
    %v842 = vld [vmem:[#allocation6] sm:$0xff]
    %s843 = scalar_lea.vmem [#allocation6], 8
    %v844 = vld [vmem:[%s843] sm:$0xff]
    %845 = vmatprep.subr.mxu0 0.0
    %846 = vmatpush1.msra.mxu0 %v597
    %847 = vmatprep.subr.mxu0 0.0
    %848 = vmatpush1.msra.mxu0 %v596
    %849 = vmatprep.subr.mxu0 0.0
    %850 = vmatpush1.msra.mxu0 %v595
    %851 = vmatprep.subr.mxu0 0.0
    %852 = vmatpush1.msra.mxu0 %v594
    %853 = vmatprep.subr.mxu0 0.0
    %854 = vmatpush1.msra.mxu0 %v593
    %855 = vmatprep.subr.mxu0 0.0
    %856 = vmatpush1.msra.mxu0 %v592
    %857 = vmatprep.subr.mxu0 0.0
    %858 = vmatpush1.msra.mxu0 %v591
    %859 = vmatprep.subr.mxu0 0.0
    %860 = vmatpush1.msra.mxu0 %v590
    %861 = vmatprep.subr.mxu0 0.0
    %862 = vmatpush1.msra.mxu0 %v589
    %863 = vmatprep.subr.mxu0 0.0
    %864 = vmatpush1.msra.mxu0 %v588
    %865 = vmatprep.subr.mxu0 0.0
    %866 = vmatpush1.msra.mxu0 %v587
    %867 = vmatprep.subr.mxu0 0.0
    %868 = vmatpush1.msra.mxu0 %v586
    %869 = vmatprep.subr.mxu0 0.0
    %870 = vmatpush1.msra.mxu0 %v585
    %871 = vmatprep.subr.mxu0 0.0
    %872 = vmatpush1.msra.mxu0 %v584
    %873 = vmatprep.subr.mxu0 0.0
    %874 = vmatpush1.msra.mxu0 %v583
    %875 = vmatprep.subr.mxu0 0.0
    %876 = vmatpush1.msra.mxu0 %v582
    %877 = vmatprep.subr.mxu0 0.0
    %878 = vmatpush2.msra.mxu0 0.0
    %879 = vmatprep.subr.mxu0 0.0
    %880 = vmatpush2.msra.mxu0 0.0
    %881 = vmatprep.subr.mxu0 0.0
    %882 = vmatpush2.msra.mxu0 0.0
    %883 = vmatprep.subr.mxu0 0.0
    %884 = vmatpush2.msra.mxu0 0.0
    %885 = vmatprep.subr.mxu0 0.0
    %886 = vmatpush2.msra.mxu0 0.0
    %887 = vmatprep.subr.mxu0 0.0
    %888 = vmatpush2.msra.mxu0 0.0
    %889 = vmatprep.subr.mxu0 0.0
    %890 = vmatpush2.msra.mxu0 0.0
    %891 = vmatprep.subr.mxu0 0.0
    %892 = vmatpush2.msra.mxu0 0.0
    %893 = vmatprep.subr.mxu0 0.0
    %894 = vmatpush2.msra.mxu0 0.0
    %895 = vmatprep.subr.mxu0 0.0
    %896 = vmatpush2.msra.mxu0 0.0
    %897 = vmatprep.subr.mxu0 0.0
    %898 = vmatpush2.msra.mxu0 0.0
    %899 = vmatprep.subr.mxu0 0.0
    %900 = vmatpush2.msra.mxu0 0.0
    %901 = vmatprep.subr.mxu0 0.0
    %902 = vmatpush2.msra.mxu0 0.0
    %903 = vmatprep.subr.mxu0 0.0
    %904 = vmatpush2.msra.mxu0 0.0
    %905 = vmatprep.subr.mxu0 0.0
    %906 = vmatpush2.msra.mxu0 0.0
    %907 = vmatprep.subr.mxu0 0.0
    %908 = vmatpush2.msra.mxu0 0.0
    %909 = vmatprep.mubr.f32.mxu0 0.0
    %910 = vmatmul.mubr.f32.gmra.mxu0 %v844
    %v911 = vpop.f32.mrf.mxu0
    %v912 = vadd.f32 0.0, %v911
    %v913 = vpop.f32.mrf.mxu0
    %914 = vdwg.mxu0
    %v916 = vcombine.high %v912, %v912
    %v918 = vunpack.c.l.s4 1966171168
    %v919 = vunpack.c.0.s8 %v918
    %v920 = vlaneseq
    %v921 = vshrl.u32 %v920, 7
    %v922 = vsub.s32 %v919, %v921
    %v923 = vrot.slane %v912, %v922
    %v925 = vunpack.c.l.s4 1966171168
    %v926 = vunpack.c.0.s8 %v925
    %v927 = vlaneseq
    %v928 = vshrl.u32 %v927, 7
    %v929 = vsub.s32 %v926, %v928
    %v930 = vrot.slane %v916, %v929
    %v931 = vcombine.high %v923, %v923
    %v932 = vcombine.high %v930, %v930
    %v934 = vunpack.c.l.s4 1966171168
    %v935 = vunpack.c.0.s8 %v934
    %v936 = vlaneseq
    %v937 = vshrl.u32 %v936, 7
    %v938 = vsub.s32 %v935, %v937
    %v939 = vrot.slane %v923, %v938
    %v941 = vunpack.c.l.s4 1966171168
    %v942 = vunpack.c.0.s8 %v941
    %v943 = vlaneseq
    %v944 = vshrl.u32 %v943, 7
    %v945 = vsub.s32 %v942, %v944
    %v946 = vrot.slane %v930, %v945
    %v948 = vunpack.c.l.s4 1966171168
    %v949 = vunpack.c.0.s8 %v948
    %v950 = vlaneseq
    %v951 = vshrl.u32 %v950, 7
    %v952 = vsub.s32 %v949, %v951
    %v953 = vrot.slane %v931, %v952
    %v955 = vunpack.c.l.s4 1966171168
    %v956 = vunpack.c.0.s8 %v955
    %v957 = vlaneseq
    %v958 = vshrl.u32 %v957, 7
    %v959 = vsub.s32 %v956, %v958
    %v960 = vrot.slane %v932, %v959
    %v961 = vcombine.high %v939, %v939
    %v962 = vcombine.high %v946, %v946
    %v963 = vcombine.high %v953, %v953
    %v964 = vcombine.high %v960, %v960
    %v965 = vlaneseq
    %v966 = vshrl.u32 %v965, 7
    %v967 = vsub.s32 0, %v966
    %v968 = vrot.slane %v939, %v967
    %v969 = vlaneseq
    %v970 = vshrl.u32 %v969, 7
    %v971 = vsub.s32 0, %v970
    %v972 = vrot.slane %v953, %v971
    %v973 = vlaneseq
    %v974 = vshrl.u32 %v973, 7
    %v975 = vsub.s32 0, %v974
    %v976 = vrot.slane %v961, %v975
    %v977 = vlaneseq
    %v978 = vshrl.u32 %v977, 7
    %v979 = vsub.s32 0, %v978
    %v980 = vrot.slane %v963, %v979
    %v981 = vlaneseq
    %v982 = vshrl.u32 %v981, 7
    %v983 = vsub.s32 0, %v982
    %v984 = vrot.slane %v946, %v983
    %v985 = vlaneseq
    %v986 = vshrl.u32 %v985, 7
    %v987 = vsub.s32 0, %v986
    %v988 = vrot.slane %v960, %v987
    %v989 = vlaneseq
    %v990 = vshrl.u32 %v989, 7
    %v991 = vsub.s32 0, %v990
    %v992 = vrot.slane %v962, %v991
    %v993 = vlaneseq
    %v994 = vshrl.u32 %v993, 7
    %v995 = vsub.s32 0, %v994
    %v996 = vrot.slane %v964, %v995
    %v1005 = vadd.f32 %v968, %v300
    %v1006 = vadd.f32 %v972, %v305
    %v1007 = vadd.f32 %v976, %v310
    %v1008 = vadd.f32 %v980, %v315
    %v1009 = vadd.f32 %v984, %v320
    %v1010 = vadd.f32 %v988, %v325
    %v1011 = vadd.f32 %v992, %v330
    %v1012 = vadd.f32 %v996, %v335
    %v1013 = vtanh.pop %v1005
    %v1014 = vtanh.pop %v1006
    %v1015 = vtanh.pop %v1007
    %v1016 = vtanh.pop %v1008
    %v1017 = vtanh.pop %v1009
    %v1018 = vtanh.pop %v1010
    %v1019 = vtanh.pop %v1011
    %v1020 = vtanh.pop %v1012
    %v1022 = vlaneseq
    %v1023 = vshrl.u32 %v1022, 7
    %v1024 = vsub.s32 0, %v1023
    %v1025 = vrot.slane %v598, %v1024
    %v1027 = vmul.f32 %v1013, %v1025
    %v1028 = vmul.f32 %v1014, %v1025
    %v1029 = vmul.f32 %v1015, %v1025
    %v1030 = vmul.f32 %v1016, %v1025
    %v1031 = vmul.f32 %v1017, %v1025
    %v1032 = vmul.f32 %v1018, %v1025
    %v1033 = vmul.f32 %v1019, %v1025
    %v1034 = vmul.f32 %v1020, %v1025
    %1035 = vadd.xlane.f32.xlu0 %v1027
    %v1036 = vpop.xlane.xlu0 %1035
    %1037 = vadd.xlane.f32.xlu0 %v1028
    %v1038 = vpop.xlane.xlu0 %1037
    %1039 = vadd.xlane.f32.xlu0 %v1029
    %v1040 = vpop.xlane.xlu0 %1039
    %1041 = vadd.xlane.f32.xlu0 %v1030
    %v1042 = vpop.xlane.xlu0 %1041
    %1043 = vadd.xlane.f32.xlu0 %v1031
    %v1044 = vpop.xlane.xlu0 %1043
    %1045 = vadd.xlane.f32.xlu0 %v1032
    %v1046 = vpop.xlane.xlu0 %1045
    %1047 = vadd.xlane.f32.xlu0 %v1033
    %v1048 = vpop.xlane.xlu0 %1047
    %1049 = vadd.xlane.f32.xlu0 %v1034
    %v1050 = vpop.xlane.xlu0 %1049
    %v1052 = vlaneseq
    %v1053 = vshrl.u32 %v1052, 7
    %v1054 = vsub.s32 0, %v1053
    %v1055 = vrot.slane %v216, %v1054
    %1057 = vbcast.lane.b32.xlu0 %v1055, 256
    %v1058 = vpop.permute.xlu0 %1057
    %v1059 = vlaneseq
    %v1060 = vshrl.u32 %v1059, 7
    %v1061 = vsub.s32 1, %v1060
    %v1062 = vrot.slane %v216, %v1061
    %1064 = vbcast.lane.b32.xlu0 %v1062, 256
    %v1065 = vpop.permute.xlu0 %1064
    %v1066 = vlaneseq
    %v1067 = vshrl.u32 %v1066, 7
    %v1068 = vsub.s32 2, %v1067
    %v1069 = vrot.slane %v216, %v1068
    %1071 = vbcast.lane.b32.xlu0 %v1069, 256
    %v1072 = vpop.permute.xlu0 %1071
    %v1073 = vlaneseq
    %v1074 = vshrl.u32 %v1073, 7
    %v1075 = vsub.s32 3, %v1074
    %v1076 = vrot.slane %v216, %v1075
    %1078 = vbcast.lane.b32.xlu0 %v1076, 256
    %v1079 = vpop.permute.xlu0 %1078
    %v1080 = vlaneseq
    %v1081 = vshrl.u32 %v1080, 7
    %v1082 = vsub.s32 4, %v1081
    %v1083 = vrot.slane %v216, %v1082
    %1085 = vbcast.lane.b32.xlu0 %v1083, 256
    %v1086 = vpop.permute.xlu0 %1085
    %v1087 = vlaneseq
    %v1088 = vshrl.u32 %v1087, 7
    %v1089 = vsub.s32 5, %v1088
    %v1090 = vrot.slane %v216, %v1089
    %1092 = vbcast.lane.b32.xlu0 %v1090, 256
    %v1093 = vpop.permute.xlu0 %1092
    %v1094 = vlaneseq
    %v1095 = vshrl.u32 %v1094, 7
    %v1096 = vsub.s32 6, %v1095
    %v1097 = vrot.slane %v216, %v1096
    %1099 = vbcast.lane.b32.xlu0 %v1097, 256
    %v1100 = vpop.permute.xlu0 %1099
    %v1101 = vlaneseq
    %v1102 = vshrl.u32 %v1101, 7
    %v1103 = vsub.s32 7, %v1102
    %v1104 = vrot.slane %v216, %v1103
    %1106 = vbcast.lane.b32.xlu0 %v1104, 256
    %v1107 = vpop.permute.xlu0 %1106
    %v1116 = vadd.f32 %v1036, %v1058
    %v1117 = vadd.f32 %v1038, %v1065
    %v1118 = vadd.f32 %v1040, %v1072
    %v1119 = vadd.f32 %v1042, %v1079
    %v1120 = vadd.f32 %v1044, %v1086
    %v1121 = vadd.f32 %v1046, %v1093
    %v1122 = vadd.f32 %v1048, %v1100
    %v1123 = vadd.f32 %v1050, %v1107
    %1132 = vset.pattern.permute.xlu0 0
    %1133 = vperm.xlu0 %1132, %v1116
    %v1134 = vpop.permute.xlu0 %1133
    %1135 = vset.pattern.permute.xlu0 0
    %1136 = vperm.xlu0 %1135, %v1117
    %v1137 = vpop.permute.xlu0 %1136
    %1138 = vset.pattern.permute.xlu0 0
    %1139 = vperm.xlu0 %1138, %v1118
    %v1140 = vpop.permute.xlu0 %1139
    %1141 = vset.pattern.permute.xlu0 0
    %1142 = vperm.xlu0 %1141, %v1119
    %v1143 = vpop.permute.xlu0 %1142
    %1144 = vset.pattern.permute.xlu0 0
    %1145 = vperm.xlu0 %1144, %v1120
    %v1146 = vpop.permute.xlu0 %1145
    %1147 = vset.pattern.permute.xlu0 0
    %1148 = vperm.xlu0 %1147, %v1121
    %v1149 = vpop.permute.xlu0 %1148
    %1150 = vset.pattern.permute.xlu0 0
    %1151 = vperm.xlu0 %1150, %v1122
    %v1152 = vpop.permute.xlu0 %1151
    %1153 = vset.pattern.permute.xlu0 0
    %1154 = vperm.xlu0 %1153, %v1123
    %v1155 = vpop.permute.xlu0 %1154
    %v1156 = vlaneseq
    %v1157 = vand.u32 %v1156, 127
    %v1158 = vlaneseq
    %v1159 = vshrl.u32 %v1158, 7
    %v1160 = vsub.s32 %v1157, %v1159
    %v1161 = vrot.slane %v1134, %v1160
    %v1162 = vlaneseq
    %v1163 = vshrl.u32 %v1162, 7
    %v1164 = vsub.s32 %v1157, %v1163
    %v1165 = vrot.slane %v1137, %v1164
    %v1166 = vlaneseq
    %v1167 = vshrl.u32 %v1166, 7
    %v1168 = vsub.s32 %v1157, %v1167
    %v1169 = vrot.slane %v1140, %v1168
    %v1170 = vlaneseq
    %v1171 = vshrl.u32 %v1170, 7
    %v1172 = vsub.s32 %v1157, %v1171
    %v1173 = vrot.slane %v1143, %v1172
    %v1174 = vlaneseq
    %v1175 = vshrl.u32 %v1174, 7
    %v1176 = vsub.s32 %v1157, %v1175
    %v1177 = vrot.slane %v1146, %v1176
    %v1178 = vlaneseq
    %v1179 = vshrl.u32 %v1178, 7
    %v1180 = vsub.s32 %v1157, %v1179
    %v1181 = vrot.slane %v1149, %v1180
    %v1182 = vlaneseq
    %v1183 = vshrl.u32 %v1182, 7
    %v1184 = vsub.s32 %v1157, %v1183
    %v1185 = vrot.slane %v1152, %v1184
    %v1186 = vlaneseq
    %v1187 = vshrl.u32 %v1186, 7
    %v1188 = vsub.s32 %v1157, %v1187
    %v1189 = vrot.slane %v1155, %v1188
    %vm1190 = vcmask 1041409
    %v1191 = vsel %vm1190, %v1165, %v1161
    %vm1192 = vcmask 1042434
    %v1193 = vsel %vm1192, %v1169, %v1191
    %vm1194 = vcmask 1043459
    %v1195 = vsel %vm1194, %v1173, %v1193
    %vm1196 = vcmask 1044484
    %v1197 = vsel %vm1196, %v1177, %v1195
    %vm1198 = vcmask 1045509
    %v1199 = vsel %vm1198, %v1181, %v1197
    %vm1200 = vcmask 1046534
    %v1201 = vsel %vm1200, %v1185, %v1199
    %vm1202 = vcmask 1047559
    %v1203 = vsel %vm1202, %v1189, %v1201
    %vm1205 = vcmask 64512
    %v1206 = vsel %vm1205, %v1203, -inf
    %1207 = vmax.xlane.f32.xlu0 %v1206
    %v1208 = vpop.xlane.xlu0 %1207
    %v1210 = vlaneseq
    %v1211 = vshrl.u32 %v1210, 7
    %v1212 = vsub.s32 0, %v1211
    %v1213 = vrot.slane %v1208, %v1212
    %v1214 = vlaneseq
    %v1215 = vshrl.u32 %v1214, 7
    %v1216 = vsub.s32 1, %v1215
    %v1217 = vrot.slane %v1208, %v1216
    %v1218 = vlaneseq
    %v1219 = vshrl.u32 %v1218, 7
    %v1220 = vsub.s32 2, %v1219
    %v1221 = vrot.slane %v1208, %v1220
    %v1222 = vlaneseq
    %v1223 = vshrl.u32 %v1222, 7
    %v1224 = vsub.s32 3, %v1223
    %v1225 = vrot.slane %v1208, %v1224
    %v1226 = vlaneseq
    %v1227 = vshrl.u32 %v1226, 7
    %v1228 = vsub.s32 4, %v1227
    %v1229 = vrot.slane %v1208, %v1228
    %v1230 = vlaneseq
    %v1231 = vshrl.u32 %v1230, 7
    %v1232 = vsub.s32 5, %v1231
    %v1233 = vrot.slane %v1208, %v1232
    %v1234 = vlaneseq
    %v1235 = vshrl.u32 %v1234, 7
    %v1236 = vsub.s32 6, %v1235
    %v1237 = vrot.slane %v1208, %v1236
    %v1238 = vlaneseq
    %v1239 = vshrl.u32 %v1238, 7
    %v1240 = vsub.s32 7, %v1239
    %v1241 = vrot.slane %v1208, %v1240
    %v1250 = vsub.f32 %v1116, %v1213
    %v1251 = vsub.f32 %v1117, %v1217
    %v1252 = vsub.f32 %v1118, %v1221
    %v1253 = vsub.f32 %v1119, %v1225
    %v1254 = vsub.f32 %v1120, %v1229
    %v1255 = vsub.f32 %v1121, %v1233
    %v1256 = vsub.f32 %v1122, %v1237
    %v1257 = vsub.f32 %v1123, %v1241
    %v1258 = vmul.f32 %v1250, 1.442695
    %v1259 = vpow.pop %v1258
    %v1260 = vmul.f32 %v1251, 1.442695
    %v1261 = vpow.pop %v1260
    %v1262 = vmul.f32 %v1252, 1.442695
    %v1263 = vpow.pop %v1262
    %v1264 = vmul.f32 %v1253, 1.442695
    %v1265 = vpow.pop %v1264
    %v1266 = vmul.f32 %v1254, 1.442695
    %v1267 = vpow.pop %v1266
    %v1268 = vmul.f32 %v1255, 1.442695
    %v1269 = vpow.pop %v1268
    %v1270 = vmul.f32 %v1256, 1.442695
    %v1271 = vpow.pop %v1270
    %v1272 = vmul.f32 %v1257, 1.442695
    %v1273 = vpow.pop %v1272
    %1282 = vset.pattern.permute.xlu0 0
    %1283 = vperm.xlu0 %1282, %v1259
    %v1284 = vpop.permute.xlu0 %1283
    %1285 = vset.pattern.permute.xlu0 0
    %1286 = vperm.xlu0 %1285, %v1261
    %v1287 = vpop.permute.xlu0 %1286
    %1288 = vset.pattern.permute.xlu0 0
    %1289 = vperm.xlu0 %1288, %v1263
    %v1290 = vpop.permute.xlu0 %1289
    %1291 = vset.pattern.permute.xlu0 0
    %1292 = vperm.xlu0 %1291, %v1265
    %v1293 = vpop.permute.xlu0 %1292
    %1294 = vset.pattern.permute.xlu0 0
    %1295 = vperm.xlu0 %1294, %v1267
    %v1296 = vpop.permute.xlu0 %1295
    %1297 = vset.pattern.permute.xlu0 0
    %1298 = vperm.xlu0 %1297, %v1269
    %v1299 = vpop.permute.xlu0 %1298
    %1300 = vset.pattern.permute.xlu0 0
    %1301 = vperm.xlu0 %1300, %v1271
    %v1302 = vpop.permute.xlu0 %1301
    %1303 = vset.pattern.permute.xlu0 0
    %1304 = vperm.xlu0 %1303, %v1273
    %v1305 = vpop.permute.xlu0 %1304
    %v1306 = vlaneseq
    %v1307 = vshrl.u32 %v1306, 7
    %v1308 = vsub.s32 %v1157, %v1307
    %v1309 = vrot.slane %v1284, %v1308
    %v1310 = vlaneseq
    %v1311 = vshrl.u32 %v1310, 7
    %v1312 = vsub.s32 %v1157, %v1311
    %v1313 = vrot.slane %v1287, %v1312
    %v1314 = vlaneseq
    %v1315 = vshrl.u32 %v1314, 7
    %v1316 = vsub.s32 %v1157, %v1315
    %v1317 = vrot.slane %v1290, %v1316
    %v1318 = vlaneseq
    %v1319 = vshrl.u32 %v1318, 7
    %v1320 = vsub.s32 %v1157, %v1319
    %v1321 = vrot.slane %v1293, %v1320
    %v1322 = vlaneseq
    %v1323 = vshrl.u32 %v1322, 7
    %v1324 = vsub.s32 %v1157, %v1323
    %v1325 = vrot.slane %v1296, %v1324
    %v1326 = vlaneseq
    %v1327 = vshrl.u32 %v1326, 7
    %v1328 = vsub.s32 %v1157, %v1327
    %v1329 = vrot.slane %v1299, %v1328
    %v1330 = vlaneseq
    %v1331 = vshrl.u32 %v1330, 7
    %v1332 = vsub.s32 %v1157, %v1331
    %v1333 = vrot.slane %v1302, %v1332
    %v1334 = vlaneseq
    %v1335 = vshrl.u32 %v1334, 7
    %v1336 = vsub.s32 %v1157, %v1335
    %v1337 = vrot.slane %v1305, %v1336
    %v1338 = vsel %vm1190, %v1313, %v1309
    %v1339 = vsel %vm1192, %v1317, %v1338
    %v1340 = vsel %vm1194, %v1321, %v1339
    %v1341 = vsel %vm1196, %v1325, %v1340
    %v1342 = vsel %vm1198, %v1329, %v1341
    %v1343 = vsel %vm1200, %v1333, %v1342
    %v1344 = vsel %vm1202, %v1337, %v1343
    %v1346 = vsel %vm1205, %v1344, 0.0
    %1347 = vadd.xlane.f32.xlu0 %v1346
    %v1348 = vpop.xlane.xlu0 %1347
    %v1349 = vrcp.pop %v1348
    %v1351 = vlaneseq
    %v1352 = vshrl.u32 %v1351, 7
    %v1353 = vsub.s32 0, %v1352
    %v1354 = vrot.slane %v1349, %v1353
    %v1355 = vlaneseq
    %v1356 = vshrl.u32 %v1355, 7
    %v1357 = vsub.s32 1, %v1356
    %v1358 = vrot.slane %v1349, %v1357
    %v1359 = vlaneseq
    %v1360 = vshrl.u32 %v1359, 7
    %v1361 = vsub.s32 2, %v1360
    %v1362 = vrot.slane %v1349, %v1361
    %v1363 = vlaneseq
    %v1364 = vshrl.u32 %v1363, 7
    %v1365 = vsub.s32 3, %v1364
    %v1366 = vrot.slane %v1349, %v1365
    %v1367 = vlaneseq
    %v1368 = vshrl.u32 %v1367, 7
    %v1369 = vsub.s32 4, %v1368
    %v1370 = vrot.slane %v1349, %v1369
    %v1371 = vlaneseq
    %v1372 = vshrl.u32 %v1371, 7
    %v1373 = vsub.s32 5, %v1372
    %v1374 = vrot.slane %v1349, %v1373
    %v1375 = vlaneseq
    %v1376 = vshrl.u32 %v1375, 7
    %v1377 = vsub.s32 6, %v1376
    %v1378 = vrot.slane %v1349, %v1377
    %v1379 = vlaneseq
    %v1380 = vshrl.u32 %v1379, 7
    %v1381 = vsub.s32 7, %v1380
    %v1382 = vrot.slane %v1349, %v1381
    %v1391 = vmul.f32 %v1259, %v1354
    %v1392 = vmul.f32 %v1261, %v1358
    %v1393 = vmul.f32 %v1263, %v1362
    %v1394 = vmul.f32 %v1265, %v1366
    %v1395 = vmul.f32 %v1267, %v1370
    %v1396 = vmul.f32 %v1269, %v1374
    %v1397 = vmul.f32 %v1271, %v1378
    %v1398 = vmul.f32 %v1273, %v1382
    %1400 = vset.pattern.permute.xlu0 0
    %1401 = vperm.xlu0 %1400, %v1391
    %v1402 = vpop.permute.xlu0 %1401
    %1405 = vset.pattern.permute.xlu0 0
    %1406 = vperm.xlu0 %1405, %v1392
    %v1407 = vpop.permute.xlu0 %1406
    %1410 = vset.pattern.permute.xlu0 0
    %1411 = vperm.xlu0 %1410, %v1393
    %v1412 = vpop.permute.xlu0 %1411
    %1415 = vset.pattern.permute.xlu0 0
    %1416 = vperm.xlu0 %1415, %v1394
    %v1417 = vpop.permute.xlu0 %1416
    %1420 = vset.pattern.permute.xlu0 0
    %1421 = vperm.xlu0 %1420, %v1395
    %v1422 = vpop.permute.xlu0 %1421
    %1425 = vset.pattern.permute.xlu0 0
    %1426 = vperm.xlu0 %1425, %v1396
    %v1427 = vpop.permute.xlu0 %1426
    %1430 = vset.pattern.permute.xlu0 0
    %1431 = vperm.xlu0 %1430, %v1397
    %v1432 = vpop.permute.xlu0 %1431
    %1435 = vset.pattern.permute.xlu0 0
    %1436 = vperm.xlu0 %1435, %v1398
    %v1437 = vpop.permute.xlu0 %1436
    %v1439 = vmul.f32 %v1402, %v208
    %v1440 = vmul.f32 %v1407, %v209
    %v1441 = vmul.f32 %v1412, %v210
    %v1442 = vmul.f32 %v1417, %v211
    %v1443 = vmul.f32 %v1422, %v212
    %v1444 = vmul.f32 %v1427, %v213
    %v1445 = vmul.f32 %v1432, %v214
    %v1446 = vmul.f32 %v1437, %v215
    %v1447 = vrot.slane %v1439, 4
    %v1448 = vadd.f32 %v1439, %v1447
    %v1449 = vrot.slane %v1448, 2
    %v1450 = vadd.f32 %v1448, %v1449
    %v1451 = vrot.slane %v1450, 1
    %v1452 = vadd.f32 %v1450, %v1451
    %v1453 = vrot.slane %v1440, 4
    %v1454 = vadd.f32 %v1440, %v1453
    %v1455 = vrot.slane %v1454, 2
    %v1456 = vadd.f32 %v1454, %v1455
    %v1457 = vrot.slane %v1456, 1
    %v1458 = vadd.f32 %v1456, %v1457
    %v1459 = vrot.slane %v1441, 4
    %v1460 = vadd.f32 %v1441, %v1459
    %v1461 = vrot.slane %v1460, 2
    %v1462 = vadd.f32 %v1460, %v1461
    %v1463 = vrot.slane %v1462, 1
    %v1464 = vadd.f32 %v1462, %v1463
    %v1465 = vrot.slane %v1442, 4
    %v1466 = vadd.f32 %v1442, %v1465
    %v1467 = vrot.slane %v1466, 2
    %v1468 = vadd.f32 %v1466, %v1467
    %v1469 = vrot.slane %v1468, 1
    %v1470 = vadd.f32 %v1468, %v1469
    %v1471 = vrot.slane %v1443, 4
    %v1472 = vadd.f32 %v1443, %v1471
    %v1473 = vrot.slane %v1472, 2
    %v1474 = vadd.f32 %v1472, %v1473
    %v1475 = vrot.slane %v1474, 1
    %v1476 = vadd.f32 %v1474, %v1475
    %v1477 = vrot.slane %v1444, 4
    %v1478 = vadd.f32 %v1444, %v1477
    %v1479 = vrot.slane %v1478, 2
    %v1480 = vadd.f32 %v1478, %v1479
    %v1481 = vrot.slane %v1480, 1
    %v1482 = vadd.f32 %v1480, %v1481
    %v1483 = vrot.slane %v1445, 4
    %v1484 = vadd.f32 %v1445, %v1483
    %v1485 = vrot.slane %v1484, 2
    %v1486 = vadd.f32 %v1484, %v1485
    %v1487 = vrot.slane %v1486, 1
    %v1488 = vadd.f32 %v1486, %v1487
    %v1489 = vrot.slane %v1446, 4
    %v1490 = vadd.f32 %v1446, %v1489
    %v1491 = vrot.slane %v1490, 2
    %v1492 = vadd.f32 %v1490, %v1491
    %v1493 = vrot.slane %v1492, 1
    %v1494 = vadd.f32 %v1492, %v1493
    %v1503 = vsel %vm1190, %v1458, %v1452
    %v1504 = vsel %vm1192, %v1464, %v1503
    %v1505 = vsel %vm1194, %v1470, %v1504
    %v1506 = vsel %vm1196, %v1476, %v1505
    %v1507 = vsel %vm1198, %v1482, %v1506
    %v1508 = vsel %vm1200, %v1488, %v1507
    %v1509 = vsel %vm1202, %v1494, %v1508
    %1511 = vmatprep.subr.mxu0 %v645
    %1512 = vmatpush1.msra.mxu0 %v644
    %1513 = vmatprep.subr.mxu0 %v642
    %1514 = vmatpush1.msra.mxu0 %v641
    %1515 = vmatprep.subr.mxu0 %v639
    %1516 = vmatpush1.msra.mxu0 %v638
    %1517 = vmatprep.subr.mxu0 %v636
    %1518 = vmatpush1.msra.mxu0 %v635
    %1519 = vmatprep.subr.mxu0 %v633
    %1520 = vmatpush1.msra.mxu0 %v632
    %1521 = vmatprep.subr.mxu0 %v630
    %1522 = vmatpush1.msra.mxu0 %v629
    %1523 = vmatprep.subr.mxu0 %v627
    %1524 = vmatpush1.msra.mxu0 %v626
    %1525 = vmatprep.subr.mxu0 %v624
    %1526 = vmatpush1.msra.mxu0 %v623
    %1527 = vmatprep.subr.mxu0 %v621
    %1528 = vmatpush1.msra.mxu0 %v620
    %1529 = vmatprep.subr.mxu0 %v618
    %1530 = vmatpush1.msra.mxu0 %v617
    %1531 = vmatprep.subr.mxu0 %v615
    %1532 = vmatpush1.msra.mxu0 %v614
    %1533 = vmatprep.subr.mxu0 %v612
    %1534 = vmatpush1.msra.mxu0 %v611
    %1535 = vmatprep.subr.mxu0 %v609
    %1536 = vmatpush1.msra.mxu0 %v608
    %1537 = vmatprep.subr.mxu0 %v606
    %1538 = vmatpush1.msra.mxu0 %v605
    %1539 = vmatprep.subr.mxu0 %v603
    %1540 = vmatpush1.msra.mxu0 %v602
    %1541 = vmatprep.subr.mxu0 %v600
    %1542 = vmatpush1.msra.mxu0 %v599
    %1543 = vmatprep.subr.mxu0 0.0
    %1544 = vmatpush2.msra.mxu0 0.0
    %1545 = vmatprep.subr.mxu0 0.0
    %1546 = vmatpush2.msra.mxu0 0.0
    %1547 = vmatprep.subr.mxu0 0.0
    %1548 = vmatpush2.msra.mxu0 0.0
    %1549 = vmatprep.subr.mxu0 0.0
    %1550 = vmatpush2.msra.mxu0 0.0
    %1551 = vmatprep.subr.mxu0 0.0
    %1552 = vmatpush2.msra.mxu0 0.0
    %1553 = vmatprep.subr.mxu0 0.0
    %1554 = vmatpush2.msra.mxu0 0.0
    %1555 = vmatprep.subr.mxu0 0.0
    %1556 = vmatpush2.msra.mxu0 0.0
    %1557 = vmatprep.subr.mxu0 0.0
    %1558 = vmatpush2.msra.mxu0 0.0
    %1559 = vmatprep.subr.mxu0 0.0
    %1560 = vmatpush2.msra.mxu0 0.0
    %1561 = vmatprep.subr.mxu0 0.0
    %1562 = vmatpush2.msra.mxu0 0.0
    %1563 = vmatprep.subr.mxu0 0.0
    %1564 = vmatpush2.msra.mxu0 0.0
    %1565 = vmatprep.subr.mxu0 0.0
    %1566 = vmatpush2.msra.mxu0 0.0
    %1567 = vmatprep.subr.mxu0 0.0
    %1568 = vmatpush2.msra.mxu0 0.0
    %1569 = vmatprep.subr.mxu0 0.0
    %1570 = vmatpush2.msra.mxu0 0.0
    %1571 = vmatprep.subr.mxu0 0.0
    %1572 = vmatpush2.msra.mxu0 0.0
    %1573 = vmatprep.subr.mxu0 0.0
    %1574 = vmatpush2.msra.mxu0 0.0
    %1575 = vmatprep.mubr.f32.mxu0 0.0
    %1576 = vmatmul.mubr.f32.gmra.mxu0 %v1509
    %v1577 = vpop.f32.mrf.mxu0
    %v1578 = vadd.f32 0.0, %v1577
    %v1579 = vpop.f32.mrf.mxu0
    %v1580 = vadd.f32 0.0, %v1579
    %1581 = vdwg.mxu0
    %1582 = vmatprep.subr.mxu0 0.0
    %1583 = vmatpush1.msra.mxu0 %v646
    %1584 = vmatprep.subr.mxu0 0.0
    %1585 = vmatpush1.msra.mxu0 %v643
    %1586 = vmatprep.subr.mxu0 0.0
    %1587 = vmatpush1.msra.mxu0 %v640
    %1588 = vmatprep.subr.mxu0 0.0
    %1589 = vmatpush1.msra.mxu0 %v637
    %1590 = vmatprep.subr.mxu0 0.0
    %1591 = vmatpush1.msra.mxu0 %v634
    %1592 = vmatprep.subr.mxu0 0.0
    %1593 = vmatpush1.msra.mxu0 %v631
    %1594 = vmatprep.subr.mxu0 0.0
    %1595 = vmatpush1.msra.mxu0 %v628
    %1596 = vmatprep.subr.mxu0 0.0
    %1597 = vmatpush1.msra.mxu0 %v625
    %1598 = vmatprep.subr.mxu0 0.0
    %1599 = vmatpush1.msra.mxu0 %v622
    %1600 = vmatprep.subr.mxu0 0.0
    %1601 = vmatpush1.msra.mxu0 %v619
    %1602 = vmatprep.subr.mxu0 0.0
    %1603 = vmatpush1.msra.mxu0 %v616
    %1604 = vmatprep.subr.mxu0 0.0
    %1605 = vmatpush1.msra.mxu0 %v613
    %1606 = vmatprep.subr.mxu0 0.0
    %1607 = vmatpush1.msra.mxu0 %v610
    %1608 = vmatprep.subr.mxu0 0.0
    %1609 = vmatpush1.msra.mxu0 %v607
    %1610 = vmatprep.subr.mxu0 0.0
    %1611 = vmatpush1.msra.mxu0 %v604
    %1612 = vmatprep.subr.mxu0 0.0
    %1613 = vmatpush1.msra.mxu0 %v601
    %1614 = vmatprep.subr.mxu0 0.0
    %1615 = vmatpush2.msra.mxu0 0.0
    %1616 = vmatprep.subr.mxu0 0.0
    %1617 = vmatpush2.msra.mxu0 0.0
    %1618 = vmatprep.subr.mxu0 0.0
    %1619 = vmatpush2.msra.mxu0 0.0
    %1620 = vmatprep.subr.mxu0 0.0
    %1621 = vmatpush2.msra.mxu0 0.0
    %1622 = vmatprep.subr.mxu0 0.0
    %1623 = vmatpush2.msra.mxu0 0.0
    %1624 = vmatprep.subr.mxu0 0.0
    %1625 = vmatpush2.msra.mxu0 0.0
    %1626 = vmatprep.subr.mxu0 0.0
    %1627 = vmatpush2.msra.mxu0 0.0
    %1628 = vmatprep.subr.mxu0 0.0
    %1629 = vmatpush2.msra.mxu0 0.0
    %1630 = vmatprep.subr.mxu0 0.0
    %1631 = vmatpush2.msra.mxu0 0.0
    %1632 = vmatprep.subr.mxu0 0.0
    %1633 = vmatpush2.msra.mxu0 0.0
    %1634 = vmatprep.subr.mxu0 0.0
    %1635 = vmatpush2.msra.mxu0 0.0
    %1636 = vmatprep.subr.mxu0 0.0
    %1637 = vmatpush2.msra.mxu0 0.0
    %1638 = vmatprep.subr.mxu0 0.0
    %1639 = vmatpush2.msra.mxu0 0.0
    %1640 = vmatprep.subr.mxu0 0.0
    %1641 = vmatpush2.msra.mxu0 0.0
    %1642 = vmatprep.subr.mxu0 0.0
    %1643 = vmatpush2.msra.mxu0 0.0
    %1644 = vmatprep.subr.mxu0 0.0
    %1645 = vmatpush2.msra.mxu0 0.0
    %1646 = vmatprep.mubr.f32.mxu0 0.0
    %1647 = vmatmul.mubr.f32.gmra.mxu0 %v1509
    %v1648 = vpop.f32.mrf.mxu0
    %v1649 = vadd.f32 0.0, %v1648
    %v1650 = vpop.f32.mrf.mxu0
    %1651 = vdwg.mxu0
    %v1652 = vadd.f32 %v453, %v1578
    %v1653 = vadd.f32 %v455, %v1580
    %v1654 = vadd.f32 %v554, %v1649
    %1655 = vmatprep.subr.mxu0 %v693
    %1656 = vmatpush1.msra.mxu0 %v692
    %1657 = vmatprep.subr.mxu0 %v690
    %1658 = vmatpush1.msra.mxu0 %v689
    %1659 = vmatprep.subr.mxu0 %v687
    %1660 = vmatpush1.msra.mxu0 %v686
    %1661 = vmatprep.subr.mxu0 %v684
    %1662 = vmatpush1.msra.mxu0 %v683
    %1663 = vmatprep.subr.mxu0 %v681
    %1664 = vmatpush1.msra.mxu0 %v680
    %1665 = vmatprep.subr.mxu0 %v678
    %1666 = vmatpush1.msra.mxu0 %v677
    %1667 = vmatprep.subr.mxu0 %v675
    %1668 = vmatpush1.msra.mxu0 %v674
    %1669 = vmatprep.subr.mxu0 %v672
    %1670 = vmatpush1.msra.mxu0 %v671
    %1671 = vmatprep.subr.mxu0 %v669
    %1672 = vmatpush1.msra.mxu0 %v668
    %1673 = vmatprep.subr.mxu0 %v666
    %1674 = vmatpush1.msra.mxu0 %v665
    %1675 = vmatprep.subr.mxu0 %v663
    %1676 = vmatpush1.msra.mxu0 %v662
    %1677 = vmatprep.subr.mxu0 %v660
    %1678 = vmatpush1.msra.mxu0 %v659
    %1679 = vmatprep.subr.mxu0 %v657
    %1680 = vmatpush1.msra.mxu0 %v656
    %1681 = vmatprep.subr.mxu0 %v654
    %1682 = vmatpush1.msra.mxu0 %v653
    %1683 = vmatprep.subr.mxu0 %v651
    %1684 = vmatpush1.msra.mxu0 %v650
    %1685 = vmatprep.subr.mxu0 %v648
    %1686 = vmatpush1.msra.mxu0 %v647
    %1687 = vmatprep.subr.mxu0 0.0
    %1688 = vmatpush2.msra.mxu0 0.0
    %1689 = vmatprep.subr.mxu0 0.0
    %1690 = vmatpush2.msra.mxu0 0.0
    %1691 = vmatprep.subr.mxu0 0.0
    %1692 = vmatpush2.msra.mxu0 0.0
    %1693 = vmatprep.subr.mxu0 0.0
    %1694 = vmatpush2.msra.mxu0 0.0
    %1695 = vmatprep.subr.mxu0 0.0
    %1696 = vmatpush2.msra.mxu0 0.0
    %1697 = vmatprep.subr.mxu0 0.0
    %1698 = vmatpush2.msra.mxu0 0.0
    %1699 = vmatprep.subr.mxu0 0.0
    %1700 = vmatpush2.msra.mxu0 0.0
    %1701 = vmatprep.subr.mxu0 0.0
    %1702 = vmatpush2.msra.mxu0 0.0
    %1703 = vmatprep.subr.mxu0 0.0
    %1704 = vmatpush2.msra.mxu0 0.0
    %1705 = vmatprep.subr.mxu0 0.0
    %1706 = vmatpush2.msra.mxu0 0.0
    %1707 = vmatprep.subr.mxu0 0.0
    %1708 = vmatpush2.msra.mxu0 0.0
    %1709 = vmatprep.subr.mxu0 0.0
    %1710 = vmatpush2.msra.mxu0 0.0
    %1711 = vmatprep.subr.mxu0 0.0
    %1712 = vmatpush2.msra.mxu0 0.0
    %1713 = vmatprep.subr.mxu0 0.0
    %1714 = vmatpush2.msra.mxu0 0.0
    %1715 = vmatprep.subr.mxu0 0.0
    %1716 = vmatpush2.msra.mxu0 0.0
    %1717 = vmatprep.subr.mxu0 0.0
    %1718 = vmatpush2.msra.mxu0 0.0
    %1719 = vmatprep.mubr.f32.mxu0 0.0
    %1720 = vmatmul.mubr.f32.gmra.mxu0 %v842
    %v1721 = vpop.f32.mrf.mxu0
    %v1722 = vadd.f32 %v796, %v1721
    %v1723 = vpop.f32.mrf.mxu0
    %v1724 = vadd.f32 %v800, %v1723
    %1725 = vdwg.mxu0
    %1726 = vmatprep.subr.mxu0 0.0
    %1727 = vmatpush1.msra.mxu0 %v694
    %1728 = vmatprep.subr.mxu0 0.0
    %1729 = vmatpush1.msra.mxu0 %v691
    %1730 = vmatprep.subr.mxu0 0.0
    %1731 = vmatpush1.msra.mxu0 %v688
    %1732 = vmatprep.subr.mxu0 0.0
    %1733 = vmatpush1.msra.mxu0 %v685
    %1734 = vmatprep.subr.mxu0 0.0
    %1735 = vmatpush1.msra.mxu0 %v682
    %1736 = vmatprep.subr.mxu0 0.0
    %1737 = vmatpush1.msra.mxu0 %v679
    %1738 = vmatprep.subr.mxu0 0.0
    %1739 = vmatpush1.msra.mxu0 %v676
    %1740 = vmatprep.subr.mxu0 0.0
    %1741 = vmatpush1.msra.mxu0 %v673
    %1742 = vmatprep.subr.mxu0 0.0
    %1743 = vmatpush1.msra.mxu0 %v670
    %1744 = vmatprep.subr.mxu0 0.0
    %1745 = vmatpush1.msra.mxu0 %v667
    %1746 = vmatprep.subr.mxu0 0.0
    %1747 = vmatpush1.msra.mxu0 %v664
    %1748 = vmatprep.subr.mxu0 0.0
    %1749 = vmatpush1.msra.mxu0 %v661
    %1750 = vmatprep.subr.mxu0 0.0
    %1751 = vmatpush1.msra.mxu0 %v658
    %1752 = vmatprep.subr.mxu0 0.0
    %1753 = vmatpush1.msra.mxu0 %v655
    %1754 = vmatprep.subr.mxu0 0.0
    %1755 = vmatpush1.msra.mxu0 %v652
    %1756 = vmatprep.subr.mxu0 0.0
    %1757 = vmatpush1.msra.mxu0 %v649
    %1758 = vmatprep.subr.mxu0 0.0
    %1759 = vmatpush2.msra.mxu0 0.0
    %1760 = vmatprep.subr.mxu0 0.0
    %1761 = vmatpush2.msra.mxu0 0.0
    %1762 = vmatprep.subr.mxu0 0.0
    %1763 = vmatpush2.msra.mxu0 0.0
    %1764 = vmatprep.subr.mxu0 0.0
    %1765 = vmatpush2.msra.mxu0 0.0
    %1766 = vmatprep.subr.mxu0 0.0
    %1767 = vmatpush2.msra.mxu0 0.0
    %1768 = vmatprep.subr.mxu0 0.0
    %1769 = vmatpush2.msra.mxu0 0.0
    %1770 = vmatprep.subr.mxu0 0.0
    %1771 = vmatpush2.msra.mxu0 0.0
    %1772 = vmatprep.subr.mxu0 0.0
    %1773 = vmatpush2.msra.mxu0 0.0
    %1774 = vmatprep.subr.mxu0 0.0
    %1775 = vmatpush2.msra.mxu0 0.0
    %1776 = vmatprep.subr.mxu0 0.0
    %1777 = vmatpush2.msra.mxu0 0.0
    %1778 = vmatprep.subr.mxu0 0.0
    %1779 = vmatpush2.msra.mxu0 0.0
    %1780 = vmatprep.subr.mxu0 0.0
    %1781 = vmatpush2.msra.mxu0 0.0
    %1782 = vmatprep.subr.mxu0 0.0
    %1783 = vmatpush2.msra.mxu0 0.0
    %1784 = vmatprep.subr.mxu0 0.0
    %1785 = vmatpush2.msra.mxu0 0.0
    %1786 = vmatprep.subr.mxu0 0.0
    %1787 = vmatpush2.msra.mxu0 0.0
    %1788 = vmatprep.subr.mxu0 0.0
    %1789 = vmatpush2.msra.mxu0 0.0
    %1790 = vmatprep.mubr.f32.mxu0 0.0
    %1791 = vmatmul.mubr.f32.gmra.mxu0 %v842
    %v1792 = vpop.f32.mrf.mxu0
    %v1793 = vadd.f32 %v804, %v1792
    %v1794 = vpop.f32.mrf.mxu0
    %1795 = vdwg.mxu0
    %v1796 = vadd.f32 %v1652, %v1722
    %v1797 = vxor.u32 %v1796, 2147483648
    %v1798 = vmul.f32 %v1797, 1.442695
    %v1799 = vpow.pop %v1798
    %v1800 = vadd.f32 %v1799, 1.0
    %v1801 = vrcp.pop %v1800
    %v1802 = vmul.f32 1.0, %v1801
    %v1803 = vadd.f32 %v1653, %v1724
    %v1804 = vxor.u32 %v1803, 2147483648
    %v1805 = vmul.f32 %v1804, 1.442695
    %v1806 = vpow.pop %v1805
    %v1807 = vadd.f32 %v1806, 1.0
    %v1808 = vrcp.pop %v1807
    %v1809 = vmul.f32 1.0, %v1808
    %v1810 = vmul.f32 %v1802, %v1793
    %v1811 = vadd.f32 %v1654, %v1810
    %v1812 = vtanh.pop %v1811
    %v1813 = vsub.f32 1.0, %v1809
    %v1814 = vmul.f32 %v1813, %v1812
    %v1815 = vmul.f32 %v1809, %v842
    %v1816 = vadd.f32 %v1814, %v1815
    %1817 = vmatprep.subr.mxu0 %v741
    %1818 = vmatpush1.msra.mxu0 %v740
    %1819 = vmatprep.subr.mxu0 %v738
    %1820 = vmatpush1.msra.mxu0 %v737
    %1821 = vmatprep.subr.mxu0 %v735
    %1822 = vmatpush1.msra.mxu0 %v734
    %1823 = vmatprep.subr.mxu0 %v732
    %1824 = vmatpush1.msra.mxu0 %v731
    %1825 = vmatprep.subr.mxu0 %v729
    %1826 = vmatpush1.msra.mxu0 %v728
    %1827 = vmatprep.subr.mxu0 %v726
    %1828 = vmatpush1.msra.mxu0 %v725
    %1829 = vmatprep.subr.mxu0 %v723
    %1830 = vmatpush1.msra.mxu0 %v722
    %1831 = vmatprep.subr.mxu0 %v720
    %1832 = vmatpush1.msra.mxu0 %v719
    %1833 = vmatprep.subr.mxu0 %v717
    %1834 = vmatpush1.msra.mxu0 %v716
    %1835 = vmatprep.subr.mxu0 %v714
    %1836 = vmatpush1.msra.mxu0 %v713
    %1837 = vmatprep.subr.mxu0 %v711
    %1838 = vmatpush1.msra.mxu0 %v710
    %1839 = vmatprep.subr.mxu0 %v708
    %1840 = vmatpush1.msra.mxu0 %v707
    %1841 = vmatprep.subr.mxu0 %v705
    %1842 = vmatpush1.msra.mxu0 %v704
    %1843 = vmatprep.subr.mxu0 %v702
    %1844 = vmatpush1.msra.mxu0 %v701
    %1845 = vmatprep.subr.mxu0 %v699
    %1846 = vmatpush1.msra.mxu0 %v698
    %1847 = vmatprep.subr.mxu0 %v696
    %1848 = vmatpush1.msra.mxu0 %v695
    %1849 = vmatprep.subr.mxu0 0.0
    %1850 = vmatpush2.msra.mxu0 0.0
    %1851 = vmatprep.subr.mxu0 0.0
    %1852 = vmatpush2.msra.mxu0 0.0
    %1853 = vmatprep.subr.mxu0 0.0
    %1854 = vmatpush2.msra.mxu0 0.0
    %1855 = vmatprep.subr.mxu0 0.0
    %1856 = vmatpush2.msra.mxu0 0.0
    %1857 = vmatprep.subr.mxu0 0.0
    %1858 = vmatpush2.msra.mxu0 0.0
    %1859 = vmatprep.subr.mxu0 0.0
    %1860 = vmatpush2.msra.mxu0 0.0
    %1861 = vmatprep.subr.mxu0 0.0
    %1862 = vmatpush2.msra.mxu0 0.0
    %1863 = vmatprep.subr.mxu0 0.0
    %1864 = vmatpush2.msra.mxu0 0.0
    %1865 = vmatprep.subr.mxu0 0.0
    %1866 = vmatpush2.msra.mxu0 0.0
    %1867 = vmatprep.subr.mxu0 0.0
    %1868 = vmatpush2.msra.mxu0 0.0
    %1869 = vmatprep.subr.mxu0 0.0
    %1870 = vmatpush2.msra.mxu0 0.0
    %1871 = vmatprep.subr.mxu0 0.0
    %1872 = vmatpush2.msra.mxu0 0.0
    %1873 = vmatprep.subr.mxu0 0.0
    %1874 = vmatpush2.msra.mxu0 0.0
    %1875 = vmatprep.subr.mxu0 0.0
    %1876 = vmatpush2.msra.mxu0 0.0
    %1877 = vmatprep.subr.mxu0 0.0
    %1878 = vmatpush2.msra.mxu0 0.0
    %1879 = vmatprep.subr.mxu0 0.0
    %1880 = vmatpush2.msra.mxu0 0.0
    %1881 = vmatprep.mubr.f32.mxu0 0.0
    %1882 = vmatmul.mubr.f32.gmra.mxu0 %v1816
    %v1883 = vpop.f32.mrf.mxu0
    %v1884 = vadd.f32 %v813, %v1883
    %v1885 = vpop.f32.mrf.mxu0
    %v1886 = vadd.f32 %v817, %v1885
    %1887 = vdwg.mxu0
    %1888 = vmatprep.subr.mxu0 0.0
    %1889 = vmatpush1.msra.mxu0 %v742
    %1890 = vmatprep.subr.mxu0 0.0
    %1891 = vmatpush1.msra.mxu0 %v739
    %1892 = vmatprep.subr.mxu0 0.0
    %1893 = vmatpush1.msra.mxu0 %v736
    %1894 = vmatprep.subr.mxu0 0.0
    %1895 = vmatpush1.msra.mxu0 %v733
    %1896 = vmatprep.subr.mxu0 0.0
    %1897 = vmatpush1.msra.mxu0 %v730
    %1898 = vmatprep.subr.mxu0 0.0
    %1899 = vmatpush1.msra.mxu0 %v727
    %1900 = vmatprep.subr.mxu0 0.0
    %1901 = vmatpush1.msra.mxu0 %v724
    %1902 = vmatprep.subr.mxu0 0.0
    %1903 = vmatpush1.msra.mxu0 %v721
    %1904 = vmatprep.subr.mxu0 0.0
    %1905 = vmatpush1.msra.mxu0 %v718
    %1906 = vmatprep.subr.mxu0 0.0
    %1907 = vmatpush1.msra.mxu0 %v715
    %1908 = vmatprep.subr.mxu0 0.0
    %1909 = vmatpush1.msra.mxu0 %v712
    %1910 = vmatprep.subr.mxu0 0.0
    %1911 = vmatpush1.msra.mxu0 %v709
    %1912 = vmatprep.subr.mxu0 0.0
    %1913 = vmatpush1.msra.mxu0 %v706
    %1914 = vmatprep.subr.mxu0 0.0
    %1915 = vmatpush1.msra.mxu0 %v703
    %1916 = vmatprep.subr.mxu0 0.0
    %1917 = vmatpush1.msra.mxu0 %v700
    %1918 = vmatprep.subr.mxu0 0.0
    %1919 = vmatpush1.msra.mxu0 %v697
    %1920 = vmatprep.subr.mxu0 0.0
    %1921 = vmatpush2.msra.mxu0 0.0
    %1922 = vmatprep.subr.mxu0 0.0
    %1923 = vmatpush2.msra.mxu0 0.0
    %1924 = vmatprep.subr.mxu0 0.0
    %1925 = vmatpush2.msra.mxu0 0.0
    %1926 = vmatprep.subr.mxu0 0.0
    %1927 = vmatpush2.msra.mxu0 0.0
    %1928 = vmatprep.subr.mxu0 0.0
    %1929 = vmatpush2.msra.mxu0 0.0
    %1930 = vmatprep.subr.mxu0 0.0
    %1931 = vmatpush2.msra.mxu0 0.0
    %1932 = vmatprep.subr.mxu0 0.0
    %1933 = vmatpush2.msra.mxu0 0.0
    %1934 = vmatprep.subr.mxu0 0.0
    %1935 = vmatpush2.msra.mxu0 0.0
    %1936 = vmatprep.subr.mxu0 0.0
    %1937 = vmatpush2.msra.mxu0 0.0
    %1938 = vmatprep.subr.mxu0 0.0
    %1939 = vmatpush2.msra.mxu0 0.0
    %1940 = vmatprep.subr.mxu0 0.0
    %1941 = vmatpush2.msra.mxu0 0.0
    %1942 = vmatprep.subr.mxu0 0.0
    %1943 = vmatpush2.msra.mxu0 0.0
    %1944 = vmatprep.subr.mxu0 0.0
    %1945 = vmatpush2.msra.mxu0 0.0
    %1946 = vmatprep.subr.mxu0 0.0
    %1947 = vmatpush2.msra.mxu0 0.0
    %1948 = vmatprep.subr.mxu0 0.0
    %1949 = vmatpush2.msra.mxu0 0.0
    %1950 = vmatprep.subr.mxu0 0.0
    %1951 = vmatpush2.msra.mxu0 0.0
    %1952 = vmatprep.mubr.f32.mxu0 0.0
    %1953 = vmatmul.mubr.f32.gmra.mxu0 %v1816
    %v1954 = vpop.f32.mrf.mxu0
    %v1955 = vadd.f32 %v821, %v1954
    %v1956 = vpop.f32.mrf.mxu0
    %1957 = vdwg.mxu0
    %1958 = vmatprep.subr.mxu0 %v789
    %1959 = vmatpush1.msra.mxu0 %v788
    %1960 = vmatprep.subr.mxu0 %v786
    %1961 = vmatpush1.msra.mxu0 %v785
    %1962 = vmatprep.subr.mxu0 %v783
    %1963 = vmatpush1.msra.mxu0 %v782
    %1964 = vmatprep.subr.mxu0 %v780
    %1965 = vmatpush1.msra.mxu0 %v779
    %1966 = vmatprep.subr.mxu0 %v777
    %1967 = vmatpush1.msra.mxu0 %v776
    %1968 = vmatprep.subr.mxu0 %v774
    %1969 = vmatpush1.msra.mxu0 %v773
    %1970 = vmatprep.subr.mxu0 %v771
    %1971 = vmatpush1.msra.mxu0 %v770
    %1972 = vmatprep.subr.mxu0 %v768
    %1973 = vmatpush1.msra.mxu0 %v767
    %1974 = vmatprep.subr.mxu0 %v765
    %1975 = vmatpush1.msra.mxu0 %v764
    %1976 = vmatprep.subr.mxu0 %v762
    %1977 = vmatpush1.msra.mxu0 %v761
    %1978 = vmatprep.subr.mxu0 %v759
    %1979 = vmatpush1.msra.mxu0 %v758
    %1980 = vmatprep.subr.mxu0 %v756
    %1981 = vmatpush1.msra.mxu0 %v755
    %1982 = vmatprep.subr.mxu0 %v753
    %1983 = vmatpush1.msra.mxu0 %v752
    %1984 = vmatprep.subr.mxu0 %v750
    %1985 = vmatpush1.msra.mxu0 %v749
    %1986 = vmatprep.subr.mxu0 %v747
    %1987 = vmatpush1.msra.mxu0 %v746
    %1988 = vmatprep.subr.mxu0 %v744
    %1989 = vmatpush1.msra.mxu0 %v743
    %1990 = vmatprep.subr.mxu0 0.0
    %1991 = vmatpush2.msra.mxu0 0.0
    %1992 = vmatprep.subr.mxu0 0.0
    %1993 = vmatpush2.msra.mxu0 0.0
    %1994 = vmatprep.subr.mxu0 0.0
    %1995 = vmatpush2.msra.mxu0 0.0
    %1996 = vmatprep.subr.mxu0 0.0
    %1997 = vmatpush2.msra.mxu0 0.0
    %1998 = vmatprep.subr.mxu0 0.0
    %1999 = vmatpush2.msra.mxu0 0.0
    %2000 = vmatprep.subr.mxu0 0.0
    %2001 = vmatpush2.msra.mxu0 0.0
    %2002 = vmatprep.subr.mxu0 0.0
    %2003 = vmatpush2.msra.mxu0 0.0
    %2004 = vmatprep.subr.mxu0 0.0
    %2005 = vmatpush2.msra.mxu0 0.0
    %2006 = vmatprep.subr.mxu0 0.0
    %2007 = vmatpush2.msra.mxu0 0.0
    %2008 = vmatprep.subr.mxu0 0.0
    %2009 = vmatpush2.msra.mxu0 0.0
    %2010 = vmatprep.subr.mxu0 0.0
    %2011 = vmatpush2.msra.mxu0 0.0
    %2012 = vmatprep.subr.mxu0 0.0
    %2013 = vmatpush2.msra.mxu0 0.0
    %2014 = vmatprep.subr.mxu0 0.0
    %2015 = vmatpush2.msra.mxu0 0.0
    %2016 = vmatprep.subr.mxu0 0.0
    %2017 = vmatpush2.msra.mxu0 0.0
    %2018 = vmatprep.subr.mxu0 0.0
    %2019 = vmatpush2.msra.mxu0 0.0
    %2020 = vmatprep.subr.mxu0 0.0
    %2021 = vmatpush2.msra.mxu0 0.0
    %2022 = vmatprep.mubr.f32.mxu0 0.0
    %2023 = vmatmul.mubr.f32.gmra.mxu0 %v844
    %v2024 = vpop.f32.mrf.mxu0
    %v2025 = vadd.f32 %v830, %v2024
    %v2026 = vpop.f32.mrf.mxu0
    %v2027 = vadd.f32 %v834, %v2026
    %2028 = vdwg.mxu0
    %2029 = vmatprep.subr.mxu0 0.0
    %2030 = vmatpush1.msra.mxu0 %v790
    %2031 = vmatprep.subr.mxu0 0.0
    %2032 = vmatpush1.msra.mxu0 %v787
    %2033 = vmatprep.subr.mxu0 0.0
    %2034 = vmatpush1.msra.mxu0 %v784
    %2035 = vmatprep.subr.mxu0 0.0
    %2036 = vmatpush1.msra.mxu0 %v781
    %2037 = vmatprep.subr.mxu0 0.0
    %2038 = vmatpush1.msra.mxu0 %v778
    %2039 = vmatprep.subr.mxu0 0.0
    %2040 = vmatpush1.msra.mxu0 %v775
    %2041 = vmatprep.subr.mxu0 0.0
    %2042 = vmatpush1.msra.mxu0 %v772
    %2043 = vmatprep.subr.mxu0 0.0
    %2044 = vmatpush1.msra.mxu0 %v769
    %2045 = vmatprep.subr.mxu0 0.0
    %2046 = vmatpush1.msra.mxu0 %v766
    %2047 = vmatprep.subr.mxu0 0.0
    %2048 = vmatpush1.msra.mxu0 %v763
    %2049 = vmatprep.subr.mxu0 0.0
    %2050 = vmatpush1.msra.mxu0 %v760
    %2051 = vmatprep.subr.mxu0 0.0
    %2052 = vmatpush1.msra.mxu0 %v757
    %2053 = vmatprep.subr.mxu0 0.0
    %2054 = vmatpush1.msra.mxu0 %v754
    %2055 = vmatprep.subr.mxu0 0.0
    %2056 = vmatpush1.msra.mxu0 %v751
    %2057 = vmatprep.subr.mxu0 0.0
    %2058 = vmatpush1.msra.mxu0 %v748
    %2059 = vmatprep.subr.mxu0 0.0
    %2060 = vmatpush1.msra.mxu0 %v745
    %2061 = vmatprep.subr.mxu0 0.0
    %2062 = vmatpush2.msra.mxu0 0.0
    %2063 = vmatprep.subr.mxu0 0.0
    %2064 = vmatpush2.msra.mxu0 0.0
    %2065 = vmatprep.subr.mxu0 0.0
    %2066 = vmatpush2.msra.mxu0 0.0
    %2067 = vmatprep.subr.mxu0 0.0
    %2068 = vmatpush2.msra.mxu0 0.0
    %2069 = vmatprep.subr.mxu0 0.0
    %2070 = vmatpush2.msra.mxu0 0.0
    %2071 = vmatprep.subr.mxu0 0.0
    %2072 = vmatpush2.msra.mxu0 0.0
    %2073 = vmatprep.subr.mxu0 0.0
    %2074 = vmatpush2.msra.mxu0 0.0
    %2075 = vmatprep.subr.mxu0 0.0
    %2076 = vmatpush2.msra.mxu0 0.0
    %2077 = vmatprep.subr.mxu0 0.0
    %2078 = vmatpush2.msra.mxu0 0.0
    %2079 = vmatprep.subr.mxu0 0.0
    %2080 = vmatpush2.msra.mxu0 0.0
    %2081 = vmatprep.subr.mxu0 0.0
    %2082 = vmatpush2.msra.mxu0 0.0
    %2083 = vmatprep.subr.mxu0 0.0
    %2084 = vmatpush2.msra.mxu0 0.0
    %2085 = vmatprep.subr.mxu0 0.0
    %2086 = vmatpush2.msra.mxu0 0.0
    %2087 = vmatprep.subr.mxu0 0.0
    %2088 = vmatpush2.msra.mxu0 0.0
    %2089 = vmatprep.subr.mxu0 0.0
    %2090 = vmatpush2.msra.mxu0 0.0
    %2091 = vmatprep.subr.mxu0 0.0
    %2092 = vmatpush2.msra.mxu0 0.0
    %2093 = vmatprep.mubr.f32.mxu0 0.0
    %2094 = vmatmul.mubr.f32.gmra.mxu0 %v844
    %v2095 = vpop.f32.mrf.mxu0
    %v2096 = vadd.f32 %v838, %v2095
    %v2097 = vpop.f32.mrf.mxu0
    %2098 = vdwg.mxu0
    %v2099 = vadd.f32 %v1884, %v2025
    %v2100 = vxor.u32 %v2099, 2147483648
    %v2101 = vmul.f32 %v2100, 1.442695
    %v2102 = vpow.pop %v2101
    %v2103 = vadd.f32 %v2102, 1.0
    %v2104 = vrcp.pop %v2103
    %v2105 = vmul.f32 1.0, %v2104
    %v2106 = vadd.f32 %v1886, %v2027
    %v2107 = vxor.u32 %v2106, 2147483648
    %v2108 = vmul.f32 %v2107, 1.442695
    %v2109 = vpow.pop %v2108
    %v2110 = vadd.f32 %v2109, 1.0
    %v2111 = vrcp.pop %v2110
    %v2112 = vmul.f32 1.0, %v2111
    %v2113 = vmul.f32 %v2105, %v2096
    %v2114 = vadd.f32 %v1955, %v2113
    %v2115 = vtanh.pop %v2114
    %v2116 = vsub.f32 1.0, %v2112
    %v2117 = vmul.f32 %v2116, %v2115
    %v2118 = vmul.f32 %v2112, %v844
    %v2119 = vadd.f32 %v2117, %v2118
    %2120 = vst [vmem:[#allocation2] sm:$0xff] %v2119
    %2121 = vmatprep.subr.mxu0 0.0
    %2122 = vmatpush1.msra.mxu0 %v597
    %2123 = vmatprep.subr.mxu0 0.0
    %2124 = vmatpush1.msra.mxu0 %v596
    %2125 = vmatprep.subr.mxu0 0.0
    %2126 = vmatpush1.msra.mxu0 %v595
    %2127 = vmatprep.subr.mxu0 0.0
    %2128 = vmatpush1.msra.mxu0 %v594
    %2129 = vmatprep.subr.mxu0 0.0
    %2130 = vmatpush1.msra.mxu0 %v593
    %2131 = vmatprep.subr.mxu0 0.0
    %2132 = vmatpush1.msra.mxu0 %v592
    %2133 = vmatprep.subr.mxu0 0.0
    %2134 = vmatpush1.msra.mxu0 %v591
    %2135 = vmatprep.subr.mxu0 0.0
    %2136 = vmatpush1.msra.mxu0 %v590
    %2137 = vmatprep.subr.mxu0 0.0
    %2138 = vmatpush1.msra.mxu0 %v589
    %2139 = vmatprep.subr.mxu0 0.0
    %2140 = vmatpush1.msra.mxu0 %v588
    %2141 = vmatprep.subr.mxu0 0.0
    %2142 = vmatpush1.msra.mxu0 %v587
    %2143 = vmatprep.subr.mxu0 0.0
    %2144 = vmatpush1.msra.mxu0 %v586
    %2145 = vmatprep.subr.mxu0 0.0
    %2146 = vmatpush1.msra.mxu0 %v585
    %2147 = vmatprep.subr.mxu0 0.0
    %2148 = vmatpush1.msra.mxu0 %v584
    %2149 = vmatprep.subr.mxu0 0.0
    %2150 = vmatpush1.msra.mxu0 %v583
    %2151 = vmatprep.subr.mxu0 0.0
    %2152 = vmatpush1.msra.mxu0 %v582
    %2153 = vmatprep.subr.mxu0 0.0
    %2154 = vmatpush2.msra.mxu0 0.0
    %2155 = vmatprep.subr.mxu0 0.0
    %2156 = vmatpush2.msra.mxu0 0.0
    %2157 = vmatprep.subr.mxu0 0.0
    %2158 = vmatpush2.msra.mxu0 0.0
    %2159 = vmatprep.subr.mxu0 0.0
    %2160 = vmatpush2.msra.mxu0 0.0
    %2161 = vmatprep.subr.mxu0 0.0
    %2162 = vmatpush2.msra.mxu0 0.0
    %2163 = vmatprep.subr.mxu0 0.0
    %2164 = vmatpush2.msra.mxu0 0.0
    %2165 = vmatprep.subr.mxu0 0.0
    %2166 = vmatpush2.msra.mxu0 0.0
    %2167 = vmatprep.subr.mxu0 0.0
    %2168 = vmatpush2.msra.mxu0 0.0
    %2169 = vmatprep.subr.mxu0 0.0
    %2170 = vmatpush2.msra.mxu0 0.0
    %2171 = vmatprep.subr.mxu0 0.0
    %2172 = vmatpush2.msra.mxu0 0.0
    %2173 = vmatprep.subr.mxu0 0.0
    %2174 = vmatpush2.msra.mxu0 0.0
    %2175 = vmatprep.subr.mxu0 0.0
    %2176 = vmatpush2.msra.mxu0 0.0
    %2177 = vmatprep.subr.mxu0 0.0
    %2178 = vmatpush2.msra.mxu0 0.0
    %2179 = vmatprep.subr.mxu0 0.0
    %2180 = vmatpush2.msra.mxu0 0.0
    %2181 = vmatprep.subr.mxu0 0.0
    %2182 = vmatpush2.msra.mxu0 0.0
    %2183 = vmatprep.subr.mxu0 0.0
    %2184 = vmatpush2.msra.mxu0 0.0
    %2185 = vmatprep.mubr.f32.mxu0 0.0
    %2186 = vmatmul.mubr.f32.gmra.mxu0 %v2119
    %v2187 = vpop.f32.mrf.mxu0
    %v2188 = vadd.f32 0.0, %v2187
    %v2189 = vpop.f32.mrf.mxu0
    %2190 = vdwg.mxu0
    %v2192 = vcombine.high %v2188, %v2188
    %v2194 = vunpack.c.l.s4 1966171168
    %v2195 = vunpack.c.0.s8 %v2194
    %v2196 = vlaneseq
    %v2197 = vshrl.u32 %v2196, 7
    %v2198 = vsub.s32 %v2195, %v2197
    %v2199 = vrot.slane %v2188, %v2198
    %v2201 = vunpack.c.l.s4 1966171168
    %v2202 = vunpack.c.0.s8 %v2201
    %v2203 = vlaneseq
    %v2204 = vshrl.u32 %v2203, 7
    %v2205 = vsub.s32 %v2202, %v2204
    %v2206 = vrot.slane %v2192, %v2205
    %v2207 = vcombine.high %v2199, %v2199
    %v2208 = vcombine.high %v2206, %v2206
    %v2210 = vunpack.c.l.s4 1966171168
    %v2211 = vunpack.c.0.s8 %v2210
    %v2212 = vlaneseq
    %v2213 = vshrl.u32 %v2212, 7
    %v2214 = vsub.s32 %v2211, %v2213
    %v2215 = vrot.slane %v2199, %v2214
    %v2217 = vunpack.c.l.s4 1966171168
    %v2218 = vunpack.c.0.s8 %v2217
    %v2219 = vlaneseq
    %v2220 = vshrl.u32 %v2219, 7
    %v2221 = vsub.s32 %v2218, %v2220
    %v2222 = vrot.slane %v2206, %v2221
    %v2224 = vunpack.c.l.s4 1966171168
    %v2225 = vunpack.c.0.s8 %v2224
    %v2226 = vlaneseq
    %v2227 = vshrl.u32 %v2226, 7
    %v2228 = vsub.s32 %v2225, %v2227
    %v2229 = vrot.slane %v2207, %v2228
    %v2231 = vunpack.c.l.s4 1966171168
    %v2232 = vunpack.c.0.s8 %v2231
    %v2233 = vlaneseq
    %v2234 = vshrl.u32 %v2233, 7
    %v2235 = vsub.s32 %v2232, %v2234
    %v2236 = vrot.slane %v2208, %v2235
    %v2237 = vcombine.high %v2215, %v2215
    %v2238 = vcombine.high %v2222, %v2222
    %v2239 = vcombine.high %v2229, %v2229
    %v2240 = vcombine.high %v2236, %v2236
    %v2241 = vlaneseq
    %v2242 = vshrl.u32 %v2241, 7
    %v2243 = vsub.s32 0, %v2242
    %v2244 = vrot.slane %v2215, %v2243
    %v2245 = vlaneseq
    %v2246 = vshrl.u32 %v2245, 7
    %v2247 = vsub.s32 0, %v2246
    %v2248 = vrot.slane %v2229, %v2247
    %v2249 = vlaneseq
    %v2250 = vshrl.u32 %v2249, 7
    %v2251 = vsub.s32 0, %v2250
    %v2252 = vrot.slane %v2237, %v2251
    %v2253 = vlaneseq
    %v2254 = vshrl.u32 %v2253, 7
    %v2255 = vsub.s32 0, %v2254
    %v2256 = vrot.slane %v2239, %v2255
    %v2257 = vlaneseq
    %v2258 = vshrl.u32 %v2257, 7
    %v2259 = vsub.s32 0, %v2258
    %v2260 = vrot.slane %v2222, %v2259
    %v2261 = vlaneseq
    %v2262 = vshrl.u32 %v2261, 7
    %v2263 = vsub.s32 0, %v2262
    %v2264 = vrot.slane %v2236, %v2263
    %v2265 = vlaneseq
    %v2266 = vshrl.u32 %v2265, 7
    %v2267 = vsub.s32 0, %v2266
    %v2268 = vrot.slane %v2238, %v2267
    %v2269 = vlaneseq
    %v2270 = vshrl.u32 %v2269, 7
    %v2271 = vsub.s32 0, %v2270
    %v2272 = vrot.slane %v2240, %v2271
    %v2281 = vadd.f32 %v2244, %v300
    %v2282 = vadd.f32 %v2248, %v305
    %v2283 = vadd.f32 %v2252, %v310
    %v2284 = vadd.f32 %v2256, %v315
    %v2285 = vadd.f32 %v2260, %v320
    %v2286 = vadd.f32 %v2264, %v325
    %v2287 = vadd.f32 %v2268, %v330
    %v2288 = vadd.f32 %v2272, %v335
    %v2289 = vtanh.pop %v2281
    %v2290 = vtanh.pop %v2282
    %v2291 = vtanh.pop %v2283
    %v2292 = vtanh.pop %v2284
    %v2293 = vtanh.pop %v2285
    %v2294 = vtanh.pop %v2286
    %v2295 = vtanh.pop %v2287
    %v2296 = vtanh.pop %v2288
    %v2297 = vmul.f32 %v2289, %v1025
    %v2298 = vmul.f32 %v2290, %v1025
    %v2299 = vmul.f32 %v2291, %v1025
    %v2300 = vmul.f32 %v2292, %v1025
    %v2301 = vmul.f32 %v2293, %v1025
    %v2302 = vmul.f32 %v2294, %v1025
    %v2303 = vmul.f32 %v2295, %v1025
    %v2304 = vmul.f32 %v2296, %v1025
    %2305 = vadd.xlane.f32.xlu0 %v2297
    %v2306 = vpop.xlane.xlu0 %2305
    %2307 = vadd.xlane.f32.xlu0 %v2298
    %v2308 = vpop.xlane.xlu0 %2307
    %2309 = vadd.xlane.f32.xlu0 %v2299
    %v2310 = vpop.xlane.xlu0 %2309
    %2311 = vadd.xlane.f32.xlu0 %v2300
    %v2312 = vpop.xlane.xlu0 %2311
    %2313 = vadd.xlane.f32.xlu0 %v2301
    %v2314 = vpop.xlane.xlu0 %2313
    %2315 = vadd.xlane.f32.xlu0 %v2302
    %v2316 = vpop.xlane.xlu0 %2315
    %2317 = vadd.xlane.f32.xlu0 %v2303
    %v2318 = vpop.xlane.xlu0 %2317
    %2319 = vadd.xlane.f32.xlu0 %v2304
    %v2320 = vpop.xlane.xlu0 %2319
    %v2321 = vadd.f32 %v2306, %v1058
    %v2322 = vadd.f32 %v2308, %v1065
    %v2323 = vadd.f32 %v2310, %v1072
    %v2324 = vadd.f32 %v2312, %v1079
    %v2325 = vadd.f32 %v2314, %v1086
    %v2326 = vadd.f32 %v2316, %v1093
    %v2327 = vadd.f32 %v2318, %v1100
    %v2328 = vadd.f32 %v2320, %v1107
    %2337 = vset.pattern.permute.xlu0 0
    %2338 = vperm.xlu0 %2337, %v2321
    %v2339 = vpop.permute.xlu0 %2338
    %2340 = vset.pattern.permute.xlu0 0
    %2341 = vperm.xlu0 %2340, %v2322
    %v2342 = vpop.permute.xlu0 %2341
    %2343 = vset.pattern.permute.xlu0 0
    %2344 = vperm.xlu0 %2343, %v2323
    %v2345 = vpop.permute.xlu0 %2344
    %2346 = vset.pattern.permute.xlu0 0
    %2347 = vperm.xlu0 %2346, %v2324
    %v2348 = vpop.permute.xlu0 %2347
    %2349 = vset.pattern.permute.xlu0 0
    %2350 = vperm.xlu0 %2349, %v2325
    %v2351 = vpop.permute.xlu0 %2350
    %2352 = vset.pattern.permute.xlu0 0
    %2353 = vperm.xlu0 %2352, %v2326
    %v2354 = vpop.permute.xlu0 %2353
    %2355 = vset.pattern.permute.xlu0 0
    %2356 = vperm.xlu0 %2355, %v2327
    %v2357 = vpop.permute.xlu0 %2356
    %2358 = vset.pattern.permute.xlu0 0
    %2359 = vperm.xlu0 %2358, %v2328
    %v2360 = vpop.permute.xlu0 %2359
    %v2361 = vlaneseq
    %v2362 = vshrl.u32 %v2361, 7
    %v2363 = vsub.s32 %v1157, %v2362
    %v2364 = vrot.slane %v2339, %v2363
    %v2365 = vlaneseq
    %v2366 = vshrl.u32 %v2365, 7
    %v2367 = vsub.s32 %v1157, %v2366
    %v2368 = vrot.slane %v2342, %v2367
    %v2369 = vlaneseq
    %v2370 = vshrl.u32 %v2369, 7
    %v2371 = vsub.s32 %v1157, %v2370
    %v2372 = vrot.slane %v2345, %v2371
    %v2373 = vlaneseq
    %v2374 = vshrl.u32 %v2373, 7
    %v2375 = vsub.s32 %v1157, %v2374
    %v2376 = vrot.slane %v2348, %v2375
    %v2377 = vlaneseq
    %v2378 = vshrl.u32 %v2377, 7
    %v2379 = vsub.s32 %v1157, %v2378
    %v2380 = vrot.slane %v2351, %v2379
    %v2381 = vlaneseq
    %v2382 = vshrl.u32 %v2381, 7
    %v2383 = vsub.s32 %v1157, %v2382
    %v2384 = vrot.slane %v2354, %v2383
    %v2385 = vlaneseq
    %v2386 = vshrl.u32 %v2385, 7
    %v2387 = vsub.s32 %v1157, %v2386
    %v2388 = vrot.slane %v2357, %v2387
    %v2389 = vlaneseq
    %v2390 = vshrl.u32 %v2389, 7
    %v2391 = vsub.s32 %v1157, %v2390
    %v2392 = vrot.slane %v2360, %v2391
    %v2393 = vsel %vm1190, %v2368, %v2364
    %v2394 = vsel %vm1192, %v2372, %v2393
    %v2395 = vsel %vm1194, %v2376, %v2394
    %v2396 = vsel %vm1196, %v2380, %v2395
    %v2397 = vsel %vm1198, %v2384, %v2396
    %v2398 = vsel %vm1200, %v2388, %v2397
    %v2399 = vsel %vm1202, %v2392, %v2398
    %v2401 = vsel %vm1205, %v2399, -inf
    %2402 = vmax.xlane.f32.xlu0 %v2401
    %v2403 = vpop.xlane.xlu0 %2402
    %v2405 = vlaneseq
    %v2406 = vshrl.u32 %v2405, 7
    %v2407 = vsub.s32 0, %v2406
    %v2408 = vrot.slane %v2403, %v2407
    %v2409 = vlaneseq
    %v2410 = vshrl.u32 %v2409, 7
    %v2411 = vsub.s32 1, %v2410
    %v2412 = vrot.slane %v2403, %v2411
    %v2413 = vlaneseq
    %v2414 = vshrl.u32 %v2413, 7
    %v2415 = vsub.s32 2, %v2414
    %v2416 = vrot.slane %v2403, %v2415
    %v2417 = vlaneseq
    %v2418 = vshrl.u32 %v2417, 7
    %v2419 = vsub.s32 3, %v2418
    %v2420 = vrot.slane %v2403, %v2419
    %v2421 = vlaneseq
    %v2422 = vshrl.u32 %v2421, 7
    %v2423 = vsub.s32 4, %v2422
    %v2424 = vrot.slane %v2403, %v2423
    %v2425 = vlaneseq
    %v2426 = vshrl.u32 %v2425, 7
    %v2427 = vsub.s32 5, %v2426
    %v2428 = vrot.slane %v2403, %v2427
    %v2429 = vlaneseq
    %v2430 = vshrl.u32 %v2429, 7
    %v2431 = vsub.s32 6, %v2430
    %v2432 = vrot.slane %v2403, %v2431
    %v2433 = vlaneseq
    %v2434 = vshrl.u32 %v2433, 7
    %v2435 = vsub.s32 7, %v2434
    %v2436 = vrot.slane %v2403, %v2435
    %v2445 = vsub.f32 %v2321, %v2408
    %v2446 = vsub.f32 %v2322, %v2412
    %v2447 = vsub.f32 %v2323, %v2416
    %v2448 = vsub.f32 %v2324, %v2420
    %v2449 = vsub.f32 %v2325, %v2424
    %v2450 = vsub.f32 %v2326, %v2428
    %v2451 = vsub.f32 %v2327, %v2432
    %v2452 = vsub.f32 %v2328, %v2436
    %v2453 = vmul.f32 %v2445, 1.442695
    %v2454 = vpow.pop %v2453
    %v2455 = vmul.f32 %v2446, 1.442695
    %v2456 = vpow.pop %v2455
    %v2457 = vmul.f32 %v2447, 1.442695
    %v2458 = vpow.pop %v2457
    %v2459 = vmul.f32 %v2448, 1.442695
    %v2460 = vpow.pop %v2459
    %v2461 = vmul.f32 %v2449, 1.442695
    %v2462 = vpow.pop %v2461
    %v2463 = vmul.f32 %v2450, 1.442695
    %v2464 = vpow.pop %v2463
    %v2465 = vmul.f32 %v2451, 1.442695
    %v2466 = vpow.pop %v2465
    %v2467 = vmul.f32 %v2452, 1.442695
    %v2468 = vpow.pop %v2467
    %2477 = vset.pattern.permute.xlu0 0
    %2478 = vperm.xlu0 %2477, %v2454
    %v2479 = vpop.permute.xlu0 %2478
    %2480 = vset.pattern.permute.xlu0 0
    %2481 = vperm.xlu0 %2480, %v2456
    %v2482 = vpop.permute.xlu0 %2481
    %2483 = vset.pattern.permute.xlu0 0
    %2484 = vperm.xlu0 %2483, %v2458
    %v2485 = vpop.permute.xlu0 %2484
    %2486 = vset.pattern.permute.xlu0 0
    %2487 = vperm.xlu0 %2486, %v2460
    %v2488 = vpop.permute.xlu0 %2487
    %2489 = vset.pattern.permute.xlu0 0
    %2490 = vperm.xlu0 %2489, %v2462
    %v2491 = vpop.permute.xlu0 %2490
    %2492 = vset.pattern.permute.xlu0 0
    %2493 = vperm.xlu0 %2492, %v2464
    %v2494 = vpop.permute.xlu0 %2493
    %2495 = vset.pattern.permute.xlu0 0
    %2496 = vperm.xlu0 %2495, %v2466
    %v2497 = vpop.permute.xlu0 %2496
    %2498 = vset.pattern.permute.xlu0 0
    %2499 = vperm.xlu0 %2498, %v2468
    %v2500 = vpop.permute.xlu0 %2499
    %v2501 = vlaneseq
    %v2502 = vshrl.u32 %v2501, 7
    %v2503 = vsub.s32 %v1157, %v2502
    %v2504 = vrot.slane %v2479, %v2503
    %v2505 = vlaneseq
    %v2506 = vshrl.u32 %v2505, 7
    %v2507 = vsub.s32 %v1157, %v2506
    %v2508 = vrot.slane %v2482, %v2507
    %v2509 = vlaneseq
    %v2510 = vshrl.u32 %v2509, 7
    %v2511 = vsub.s32 %v1157, %v2510
    %v2512 = vrot.slane %v2485, %v2511
    %v2513 = vlaneseq
    %v2514 = vshrl.u32 %v2513, 7
    %v2515 = vsub.s32 %v1157, %v2514
    %v2516 = vrot.slane %v2488, %v2515
    %v2517 = vlaneseq
    %v2518 = vshrl.u32 %v2517, 7
    %v2519 = vsub.s32 %v1157, %v2518
    %v2520 = vrot.slane %v2491, %v2519
    %v2521 = vlaneseq
    %v2522 = vshrl.u32 %v2521, 7
    %v2523 = vsub.s32 %v1157, %v2522
    %v2524 = vrot.slane %v2494, %v2523
    %v2525 = vlaneseq
    %v2526 = vshrl.u32 %v2525, 7
    %v2527 = vsub.s32 %v1157, %v2526
    %v2528 = vrot.slane %v2497, %v2527
    %v2529 = vlaneseq
    %v2530 = vshrl.u32 %v2529, 7
    %v2531 = vsub.s32 %v1157, %v2530
    %v2532 = vrot.slane %v2500, %v2531
    %v2533 = vsel %vm1190, %v2508, %v2504
    %v2534 = vsel %vm1192, %v2512, %v2533
    %v2535 = vsel %vm1194, %v2516, %v2534
    %v2536 = vsel %vm1196, %v2520, %v2535
    %v2537 = vsel %vm1198, %v2524, %v2536
    %v2538 = vsel %vm1200, %v2528, %v2537
    %v2539 = vsel %vm1202, %v2532, %v2538
    %v2541 = vsel %vm1205, %v2539, 0.0
    %2542 = vadd.xlane.f32.xlu0 %v2541
    %v2543 = vpop.xlane.xlu0 %2542
    %v2544 = vrcp.pop %v2543
    %v2546 = vlaneseq
    %v2547 = vshrl.u32 %v2546, 7
    %v2548 = vsub.s32 0, %v2547
    %v2549 = vrot.slane %v2544, %v2548
    %v2550 = vlaneseq
    %v2551 = vshrl.u32 %v2550, 7
    %v2552 = vsub.s32 1, %v2551
    %v2553 = vrot.slane %v2544, %v2552
    %v2554 = vlaneseq
    %v2555 = vshrl.u32 %v2554, 7
    %v2556 = vsub.s32 2, %v2555
    %v2557 = vrot.slane %v2544, %v2556
    %v2558 = vlaneseq
    %v2559 = vshrl.u32 %v2558, 7
    %v2560 = vsub.s32 3, %v2559
    %v2561 = vrot.slane %v2544, %v2560
    %v2562 = vlaneseq
    %v2563 = vshrl.u32 %v2562, 7
    %v2564 = vsub.s32 4, %v2563
    %v2565 = vrot.slane %v2544, %v2564
    %v2566 = vlaneseq
    %v2567 = vshrl.u32 %v2566, 7
    %v2568 = vsub.s32 5, %v2567
    %v2569 = vrot.slane %v2544, %v2568
    %v2570 = vlaneseq
    %v2571 = vshrl.u32 %v2570, 7
    %v2572 = vsub.s32 6, %v2571
    %v2573 = vrot.slane %v2544, %v2572
    %v2574 = vlaneseq
    %v2575 = vshrl.u32 %v2574, 7
    %v2576 = vsub.s32 7, %v2575
    %v2577 = vrot.slane %v2544, %v2576
    %v2586 = vmul.f32 %v2454, %v2549
    %v2587 = vmul.f32 %v2456, %v2553
    %v2588 = vmul.f32 %v2458, %v2557
    %v2589 = vmul.f32 %v2460, %v2561
    %v2590 = vmul.f32 %v2462, %v2565
    %v2591 = vmul.f32 %v2464, %v2569
    %v2592 = vmul.f32 %v2466, %v2573
    %v2593 = vmul.f32 %v2468, %v2577
    %2595 = vset.pattern.permute.xlu0 0
    %2596 = vperm.xlu0 %2595, %v2586
    %v2597 = vpop.permute.xlu0 %2596
    %2600 = vset.pattern.permute.xlu0 0
    %2601 = vperm.xlu0 %2600, %v2587
    %v2602 = vpop.permute.xlu0 %2601
    %2605 = vset.pattern.permute.xlu0 0
    %2606 = vperm.xlu0 %2605, %v2588
    %v2607 = vpop.permute.xlu0 %2606
    %2610 = vset.pattern.permute.xlu0 0
    %2611 = vperm.xlu0 %2610, %v2589
    %v2612 = vpop.permute.xlu0 %2611
    %2615 = vset.pattern.permute.xlu0 0
    %2616 = vperm.xlu0 %2615, %v2590
    %v2617 = vpop.permute.xlu0 %2616
    %2620 = vset.pattern.permute.xlu0 0
    %2621 = vperm.xlu0 %2620, %v2591
    %v2622 = vpop.permute.xlu0 %2621
    %2625 = vset.pattern.permute.xlu0 0
    %2626 = vperm.xlu0 %2625, %v2592
    %v2627 = vpop.permute.xlu0 %2626
    %2630 = vset.pattern.permute.xlu0 0
    %2631 = vperm.xlu0 %2630, %v2593
    %v2632 = vpop.permute.xlu0 %2631
    %v2634 = vmul.f32 %v2597, %v208
    %v2635 = vmul.f32 %v2602, %v209
    %v2636 = vmul.f32 %v2607, %v210
    %v2637 = vmul.f32 %v2612, %v211
    %v2638 = vmul.f32 %v2617, %v212
    %v2639 = vmul.f32 %v2622, %v213
    %v2640 = vmul.f32 %v2627, %v214
    %v2641 = vmul.f32 %v2632, %v215
    %v2642 = vrot.slane %v2634, 4
    %v2643 = vadd.f32 %v2634, %v2642
    %v2644 = vrot.slane %v2643, 2
    %v2645 = vadd.f32 %v2643, %v2644
    %v2646 = vrot.slane %v2645, 1
    %v2647 = vadd.f32 %v2645, %v2646
    %v2648 = vrot.slane %v2635, 4
    %v2649 = vadd.f32 %v2635, %v2648
    %v2650 = vrot.slane %v2649, 2
    %v2651 = vadd.f32 %v2649, %v2650
    %v2652 = vrot.slane %v2651, 1
    %v2653 = vadd.f32 %v2651, %v2652
    %v2654 = vrot.slane %v2636, 4
    %v2655 = vadd.f32 %v2636, %v2654
    %v2656 = vrot.slane %v2655, 2
    %v2657 = vadd.f32 %v2655, %v2656
    %v2658 = vrot.slane %v2657, 1
    %v2659 = vadd.f32 %v2657, %v2658
    %v2660 = vrot.slane %v2637, 4
    %v2661 = vadd.f32 %v2637, %v2660
    %v2662 = vrot.slane %v2661, 2
    %v2663 = vadd.f32 %v2661, %v2662
    %v2664 = vrot.slane %v2663, 1
    %v2665 = vadd.f32 %v2663, %v2664
    %v2666 = vrot.slane %v2638, 4
    %v2667 = vadd.f32 %v2638, %v2666
    %v2668 = vrot.slane %v2667, 2
    %v2669 = vadd.f32 %v2667, %v2668
    %v2670 = vrot.slane %v2669, 1
    %v2671 = vadd.f32 %v2669, %v2670
    %v2672 = vrot.slane %v2639, 4
    %v2673 = vadd.f32 %v2639, %v2672
    %v2674 = vrot.slane %v2673, 2
    %v2675 = vadd.f32 %v2673, %v2674
    %v2676 = vrot.slane %v2675, 1
    %v2677 = vadd.f32 %v2675, %v2676
    %v2678 = vrot.slane %v2640, 4
    %v2679 = vadd.f32 %v2640, %v2678
    %v2680 = vrot.slane %v2679, 2
    %v2681 = vadd.f32 %v2679, %v2680
    %v2682 = vrot.slane %v2681, 1
    %v2683 = vadd.f32 %v2681, %v2682
    %v2684 = vrot.slane %v2641, 4
    %v2685 = vadd.f32 %v2641, %v2684
    %v2686 = vrot.slane %v2685, 2
    %v2687 = vadd.f32 %v2685, %v2686
    %v2688 = vrot.slane %v2687, 1
    %v2689 = vadd.f32 %v2687, %v2688
    %v2698 = vsel %vm1190, %v2653, %v2647
    %v2699 = vsel %vm1192, %v2659, %v2698
    %v2700 = vsel %vm1194, %v2665, %v2699
    %v2701 = vsel %vm1196, %v2671, %v2700
    %v2702 = vsel %vm1198, %v2677, %v2701
    %v2703 = vsel %vm1200, %v2683, %v2702
    %v2704 = vsel %vm1202, %v2689, %v2703
    %2706 = vmatprep.subr.mxu0 %v645
    %2707 = vmatpush1.msra.mxu0 %v644
    %2708 = vmatprep.subr.mxu0 %v642
    %2709 = vmatpush1.msra.mxu0 %v641
    %2710 = vmatprep.subr.mxu0 %v639
    %2711 = vmatpush1.msra.mxu0 %v638
    %2712 = vmatprep.subr.mxu0 %v636
    %2713 = vmatpush1.msra.mxu0 %v635
    %2714 = vmatprep.subr.mxu0 %v633
    %2715 = vmatpush1.msra.mxu0 %v632
    %2716 = vmatprep.subr.mxu0 %v630
    %2717 = vmatpush1.msra.mxu0 %v629
    %2718 = vmatprep.subr.mxu0 %v627
    %2719 = vmatpush1.msra.mxu0 %v626
    %2720 = vmatprep.subr.mxu0 %v624
    %2721 = vmatpush1.msra.mxu0 %v623
    %2722 = vmatprep.subr.mxu0 %v621
    %2723 = vmatpush1.msra.mxu0 %v620
    %2724 = vmatprep.subr.mxu0 %v618
    %2725 = vmatpush1.msra.mxu0 %v617
    %2726 = vmatprep.subr.mxu0 %v615
    %2727 = vmatpush1.msra.mxu0 %v614
    %2728 = vmatprep.subr.mxu0 %v612
    %2729 = vmatpush1.msra.mxu0 %v611
    %2730 = vmatprep.subr.mxu0 %v609
    %2731 = vmatpush1.msra.mxu0 %v608
    %2732 = vmatprep.subr.mxu0 %v606
    %2733 = vmatpush1.msra.mxu0 %v605
    %2734 = vmatprep.subr.mxu0 %v603
    %2735 = vmatpush1.msra.mxu0 %v602
    %2736 = vmatprep.subr.mxu0 %v600
    %2737 = vmatpush1.msra.mxu0 %v599
    %2738 = vmatprep.subr.mxu0 0.0
    %2739 = vmatpush2.msra.mxu0 0.0
    %2740 = vmatprep.subr.mxu0 0.0
    %2741 = vmatpush2.msra.mxu0 0.0
    %2742 = vmatprep.subr.mxu0 0.0
    %2743 = vmatpush2.msra.mxu0 0.0
    %2744 = vmatprep.subr.mxu0 0.0
    %2745 = vmatpush2.msra.mxu0 0.0
    %2746 = vmatprep.subr.mxu0 0.0
    %2747 = vmatpush2.msra.mxu0 0.0
    %2748 = vmatprep.subr.mxu0 0.0
    %2749 = vmatpush2.msra.mxu0 0.0
    %2750 = vmatprep.subr.mxu0 0.0
    %2751 = vmatpush2.msra.mxu0 0.0
    %2752 = vmatprep.subr.mxu0 0.0
    %2753 = vmatpush2.msra.mxu0 0.0
    %2754 = vmatprep.subr.mxu0 0.0
    %2755 = vmatpush2.msra.mxu0 0.0
    %2756 = vmatprep.subr.mxu0 0.0
    %2757 = vmatpush2.msra.mxu0 0.0
    %2758 = vmatprep.subr.mxu0 0.0
    %2759 = vmatpush2.msra.mxu0 0.0
    %2760 = vmatprep.subr.mxu0 0.0
    %2761 = vmatpush2.msra.mxu0 0.0
    %2762 = vmatprep.subr.mxu0 0.0
    %2763 = vmatpush2.msra.mxu0 0.0
    %2764 = vmatprep.subr.mxu0 0.0
    %2765 = vmatpush2.msra.mxu0 0.0
    %2766 = vmatprep.subr.mxu0 0.0
    %2767 = vmatpush2.msra.mxu0 0.0
    %2768 = vmatprep.subr.mxu0 0.0
    %2769 = vmatpush2.msra.mxu0 0.0
    %2770 = vmatprep.mubr.f32.mxu0 0.0
    %2771 = vmatmul.mubr.f32.gmra.mxu0 %v2704
    %v2772 = vpop.f32.mrf.mxu0
    %v2773 = vadd.f32 0.0, %v2772
    %v2774 = vpop.f32.mrf.mxu0
    %v2775 = vadd.f32 0.0, %v2774
    %2776 = vdwg.mxu0
    %2777 = vmatprep.subr.mxu0 0.0
    %2778 = vmatpush1.msra.mxu0 %v646
    %2779 = vmatprep.subr.mxu0 0.0
    %2780 = vmatpush1.msra.mxu0 %v643
    %2781 = vmatprep.subr.mxu0 0.0
    %2782 = vmatpush1.msra.mxu0 %v640
    %2783 = vmatprep.subr.mxu0 0.0
    %2784 = vmatpush1.msra.mxu0 %v637
    %2785 = vmatprep.subr.mxu0 0.0
    %2786 = vmatpush1.msra.mxu0 %v634
    %2787 = vmatprep.subr.mxu0 0.0
    %2788 = vmatpush1.msra.mxu0 %v631
    %2789 = vmatprep.subr.mxu0 0.0
    %2790 = vmatpush1.msra.mxu0 %v628
    %2791 = vmatprep.subr.mxu0 0.0
    %2792 = vmatpush1.msra.mxu0 %v625
    %2793 = vmatprep.subr.mxu0 0.0
    %2794 = vmatpush1.msra.mxu0 %v622
    %2795 = vmatprep.subr.mxu0 0.0
    %2796 = vmatpush1.msra.mxu0 %v619
    %2797 = vmatprep.subr.mxu0 0.0
    %2798 = vmatpush1.msra.mxu0 %v616
    %2799 = vmatprep.subr.mxu0 0.0
    %2800 = vmatpush1.msra.mxu0 %v613
    %2801 = vmatprep.subr.mxu0 0.0
    %2802 = vmatpush1.msra.mxu0 %v610
    %2803 = vmatprep.subr.mxu0 0.0
    %2804 = vmatpush1.msra.mxu0 %v607
    %2805 = vmatprep.subr.mxu0 0.0
    %2806 = vmatpush1.msra.mxu0 %v604
    %2807 = vmatprep.subr.mxu0 0.0
    %2808 = vmatpush1.msra.mxu0 %v601
    %2809 = vmatprep.subr.mxu0 0.0
    %2810 = vmatpush2.msra.mxu0 0.0
    %2811 = vmatprep.subr.mxu0 0.0
    %2812 = vmatpush2.msra.mxu0 0.0
    %2813 = vmatprep.subr.mxu0 0.0
    %2814 = vmatpush2.msra.mxu0 0.0
    %2815 = vmatprep.subr.mxu0 0.0
    %2816 = vmatpush2.msra.mxu0 0.0
    %2817 = vmatprep.subr.mxu0 0.0
    %2818 = vmatpush2.msra.mxu0 0.0
    %2819 = vmatprep.subr.mxu0 0.0
    %2820 = vmatpush2.msra.mxu0 0.0
    %2821 = vmatprep.subr.mxu0 0.0
    %2822 = vmatpush2.msra.mxu0 0.0
    %2823 = vmatprep.subr.mxu0 0.0
    %2824 = vmatpush2.msra.mxu0 0.0
    %2825 = vmatprep.subr.mxu0 0.0
    %2826 = vmatpush2.msra.mxu0 0.0
    %2827 = vmatprep.subr.mxu0 0.0
    %2828 = vmatpush2.msra.mxu0 0.0
    %2829 = vmatprep.subr.mxu0 0.0
    %2830 = vmatpush2.msra.mxu0 0.0
    %2831 = vmatprep.subr.mxu0 0.0
    %2832 = vmatpush2.msra.mxu0 0.0
    %2833 = vmatprep.subr.mxu0 0.0
    %2834 = vmatpush2.msra.mxu0 0.0
    %2835 = vmatprep.subr.mxu0 0.0
    %2836 = vmatpush2.msra.mxu0 0.0
    %2837 = vmatprep.subr.mxu0 0.0
    %2838 = vmatpush2.msra.mxu0 0.0
    %2839 = vmatprep.subr.mxu0 0.0
    %2840 = vmatpush2.msra.mxu0 0.0
    %2841 = vmatprep.mubr.f32.mxu0 0.0
    %2842 = vmatmul.mubr.f32.gmra.mxu0 %v2704
    %v2843 = vpop.f32.mrf.mxu0
    %v2844 = vadd.f32 0.0, %v2843
    %v2845 = vpop.f32.mrf.mxu0
    %2846 = vdwg.mxu0
    %v2847 = vadd.f32 %v459, %v2773
    %v2848 = vadd.f32 %v461, %v2775
    %v2849 = vadd.f32 %v559, %v2844
    %2850 = vmatprep.subr.mxu0 %v693
    %2851 = vmatpush1.msra.mxu0 %v692
    %2852 = vmatprep.subr.mxu0 %v690
    %2853 = vmatpush1.msra.mxu0 %v689
    %2854 = vmatprep.subr.mxu0 %v687
    %2855 = vmatpush1.msra.mxu0 %v686
    %2856 = vmatprep.subr.mxu0 %v684
    %2857 = vmatpush1.msra.mxu0 %v683
    %2858 = vmatprep.subr.mxu0 %v681
    %2859 = vmatpush1.msra.mxu0 %v680
    %2860 = vmatprep.subr.mxu0 %v678
    %2861 = vmatpush1.msra.mxu0 %v677
    %2862 = vmatprep.subr.mxu0 %v675
    %2863 = vmatpush1.msra.mxu0 %v674
    %2864 = vmatprep.subr.mxu0 %v672
    %2865 = vmatpush1.msra.mxu0 %v671
    %2866 = vmatprep.subr.mxu0 %v669
    %2867 = vmatpush1.msra.mxu0 %v668
    %2868 = vmatprep.subr.mxu0 %v666
    %2869 = vmatpush1.msra.mxu0 %v665
    %2870 = vmatprep.subr.mxu0 %v663
    %2871 = vmatpush1.msra.mxu0 %v662
    %2872 = vmatprep.subr.mxu0 %v660
    %2873 = vmatpush1.msra.mxu0 %v659
    %2874 = vmatprep.subr.mxu0 %v657
    %2875 = vmatpush1.msra.mxu0 %v656
    %2876 = vmatprep.subr.mxu0 %v654
    %2877 = vmatpush1.msra.mxu0 %v653
    %2878 = vmatprep.subr.mxu0 %v651
    %2879 = vmatpush1.msra.mxu0 %v650
    %2880 = vmatprep.subr.mxu0 %v648
    %2881 = vmatpush1.msra.mxu0 %v647
    %2882 = vmatprep.subr.mxu0 0.0
    %2883 = vmatpush2.msra.mxu0 0.0
    %2884 = vmatprep.subr.mxu0 0.0
    %2885 = vmatpush2.msra.mxu0 0.0
    %2886 = vmatprep.subr.mxu0 0.0
    %2887 = vmatpush2.msra.mxu0 0.0
    %2888 = vmatprep.subr.mxu0 0.0
    %2889 = vmatpush2.msra.mxu0 0.0
    %2890 = vmatprep.subr.mxu0 0.0
    %2891 = vmatpush2.msra.mxu0 0.0
    %2892 = vmatprep.subr.mxu0 0.0
    %2893 = vmatpush2.msra.mxu0 0.0
    %2894 = vmatprep.subr.mxu0 0.0
    %2895 = vmatpush2.msra.mxu0 0.0
    %2896 = vmatprep.subr.mxu0 0.0
    %2897 = vmatpush2.msra.mxu0 0.0
    %2898 = vmatprep.subr.mxu0 0.0
    %2899 = vmatpush2.msra.mxu0 0.0
    %2900 = vmatprep.subr.mxu0 0.0
    %2901 = vmatpush2.msra.mxu0 0.0
    %2902 = vmatprep.subr.mxu0 0.0
    %2903 = vmatpush2.msra.mxu0 0.0
    %2904 = vmatprep.subr.mxu0 0.0
    %2905 = vmatpush2.msra.mxu0 0.0
    %2906 = vmatprep.subr.mxu0 0.0
    %2907 = vmatpush2.msra.mxu0 0.0
    %2908 = vmatprep.subr.mxu0 0.0
    %2909 = vmatpush2.msra.mxu0 0.0
    %2910 = vmatprep.subr.mxu0 0.0
    %2911 = vmatpush2.msra.mxu0 0.0
    %2912 = vmatprep.subr.mxu0 0.0
    %2913 = vmatpush2.msra.mxu0 0.0
    %2914 = vmatprep.mubr.f32.mxu0 0.0
    %2915 = vmatmul.mubr.f32.gmra.mxu0 %v1816
    %v2916 = vpop.f32.mrf.mxu0
    %v2917 = vadd.f32 %v796, %v2916
    %v2918 = vpop.f32.mrf.mxu0
    %v2919 = vadd.f32 %v800, %v2918
    %2920 = vdwg.mxu0
    %2921 = vmatprep.subr.mxu0 0.0
    %2922 = vmatpush1.msra.mxu0 %v694
    %2923 = vmatprep.subr.mxu0 0.0
    %2924 = vmatpush1.msra.mxu0 %v691
    %2925 = vmatprep.subr.mxu0 0.0
    %2926 = vmatpush1.msra.mxu0 %v688
    %2927 = vmatprep.subr.mxu0 0.0
    %2928 = vmatpush1.msra.mxu0 %v685
    %2929 = vmatprep.subr.mxu0 0.0
    %2930 = vmatpush1.msra.mxu0 %v682
    %2931 = vmatprep.subr.mxu0 0.0
    %2932 = vmatpush1.msra.mxu0 %v679
    %2933 = vmatprep.subr.mxu0 0.0
    %2934 = vmatpush1.msra.mxu0 %v676
    %2935 = vmatprep.subr.mxu0 0.0
    %2936 = vmatpush1.msra.mxu0 %v673
    %2937 = vmatprep.subr.mxu0 0.0
    %2938 = vmatpush1.msra.mxu0 %v670
    %2939 = vmatprep.subr.mxu0 0.0
    %2940 = vmatpush1.msra.mxu0 %v667
    %2941 = vmatprep.subr.mxu0 0.0
    %2942 = vmatpush1.msra.mxu0 %v664
    %2943 = vmatprep.subr.mxu0 0.0
    %2944 = vmatpush1.msra.mxu0 %v661
    %2945 = vmatprep.subr.mxu0 0.0
    %2946 = vmatpush1.msra.mxu0 %v658
    %2947 = vmatprep.subr.mxu0 0.0
    %2948 = vmatpush1.msra.mxu0 %v655
    %2949 = vmatprep.subr.mxu0 0.0
    %2950 = vmatpush1.msra.mxu0 %v652
    %2951 = vmatprep.subr.mxu0 0.0
    %2952 = vmatpush1.msra.mxu0 %v649
    %2953 = vmatprep.subr.mxu0 0.0
    %2954 = vmatpush2.msra.mxu0 0.0
    %2955 = vmatprep.subr.mxu0 0.0
    %2956 = vmatpush2.msra.mxu0 0.0
    %2957 = vmatprep.subr.mxu0 0.0
    %2958 = vmatpush2.msra.mxu0 0.0
    %2959 = vmatprep.subr.mxu0 0.0
    %2960 = vmatpush2.msra.mxu0 0.0
    %2961 = vmatprep.subr.mxu0 0.0
    %2962 = vmatpush2.msra.mxu0 0.0
    %2963 = vmatprep.subr.mxu0 0.0
    %2964 = vmatpush2.msra.mxu0 0.0
    %2965 = vmatprep.subr.mxu0 0.0
    %2966 = vmatpush2.msra.mxu0 0.0
    %2967 = vmatprep.subr.mxu0 0.0
    %2968 = vmatpush2.msra.mxu0 0.0
    %2969 = vmatprep.subr.mxu0 0.0
    %2970 = vmatpush2.msra.mxu0 0.0
    %2971 = vmatprep.subr.mxu0 0.0
    %2972 = vmatpush2.msra.mxu0 0.0
    %2973 = vmatprep.subr.mxu0 0.0
    %2974 = vmatpush2.msra.mxu0 0.0
    %2975 = vmatprep.subr.mxu0 0.0
    %2976 = vmatpush2.msra.mxu0 0.0
    %2977 = vmatprep.subr.mxu0 0.0
    %2978 = vmatpush2.msra.mxu0 0.0
    %2979 = vmatprep.subr.mxu0 0.0
    %2980 = vmatpush2.msra.mxu0 0.0
    %2981 = vmatprep.subr.mxu0 0.0
    %2982 = vmatpush2.msra.mxu0 0.0
    %2983 = vmatprep.subr.mxu0 0.0
    %2984 = vmatpush2.msra.mxu0 0.0
    %2985 = vmatprep.mubr.f32.mxu0 0.0
    %2986 = vmatmul.mubr.f32.gmra.mxu0 %v1816
    %v2987 = vpop.f32.mrf.mxu0
    %v2988 = vadd.f32 %v804, %v2987
    %v2989 = vpop.f32.mrf.mxu0
    %2990 = vdwg.mxu0
    %v2991 = vadd.f32 %v2847, %v2917
    %v2992 = vxor.u32 %v2991, 2147483648
    %v2993 = vmul.f32 %v2992, 1.442695
    %v2994 = vpow.pop %v2993
    %v2995 = vadd.f32 %v2994, 1.0
    %v2996 = vrcp.pop %v2995
    %v2997 = vmul.f32 1.0, %v2996
    %v2998 = vadd.f32 %v2848, %v2919
    %v2999 = vxor.u32 %v2998, 2147483648
    %v3000 = vmul.f32 %v2999, 1.442695
    %v3001 = vpow.pop %v3000
    %v3002 = vadd.f32 %v3001, 1.0
    %v3003 = vrcp.pop %v3002
    %v3004 = vmul.f32 1.0, %v3003
    %v3005 = vmul.f32 %v2997, %v2988
    %v3006 = vadd.f32 %v2849, %v3005
    %v3007 = vtanh.pop %v3006
    %v3008 = vsub.f32 1.0, %v3004
    %v3009 = vmul.f32 %v3008, %v3007
    %v3010 = vmul.f32 %v3004, %v1816
    %v3011 = vadd.f32 %v3009, %v3010
    %3012 = vmatprep.subr.mxu0 %v741
    %3013 = vmatpush1.msra.mxu0 %v740
    %3014 = vmatprep.subr.mxu0 %v738
    %3015 = vmatpush1.msra.mxu0 %v737
    %3016 = vmatprep.subr.mxu0 %v735
    %3017 = vmatpush1.msra.mxu0 %v734
    %3018 = vmatprep.subr.mxu0 %v732
    %3019 = vmatpush1.msra.mxu0 %v731
    %3020 = vmatprep.subr.mxu0 %v729
    %3021 = vmatpush1.msra.mxu0 %v728
    %3022 = vmatprep.subr.mxu0 %v726
    %3023 = vmatpush1.msra.mxu0 %v725
    %3024 = vmatprep.subr.mxu0 %v723
    %3025 = vmatpush1.msra.mxu0 %v722
    %3026 = vmatprep.subr.mxu0 %v720
    %3027 = vmatpush1.msra.mxu0 %v719
    %3028 = vmatprep.subr.mxu0 %v717
    %3029 = vmatpush1.msra.mxu0 %v716
    %3030 = vmatprep.subr.mxu0 %v714
    %3031 = vmatpush1.msra.mxu0 %v713
    %3032 = vmatprep.subr.mxu0 %v711
    %3033 = vmatpush1.msra.mxu0 %v710
    %3034 = vmatprep.subr.mxu0 %v708
    %3035 = vmatpush1.msra.mxu0 %v707
    %3036 = vmatprep.subr.mxu0 %v705
    %3037 = vmatpush1.msra.mxu0 %v704
    %3038 = vmatprep.subr.mxu0 %v702
    %3039 = vmatpush1.msra.mxu0 %v701
    %3040 = vmatprep.subr.mxu0 %v699
    %3041 = vmatpush1.msra.mxu0 %v698
    %3042 = vmatprep.subr.mxu0 %v696
    %3043 = vmatpush1.msra.mxu0 %v695
    %3044 = vmatprep.subr.mxu0 0.0
    %3045 = vmatpush2.msra.mxu0 0.0
    %3046 = vmatprep.subr.mxu0 0.0
    %3047 = vmatpush2.msra.mxu0 0.0
    %3048 = vmatprep.subr.mxu0 0.0
    %3049 = vmatpush2.msra.mxu0 0.0
    %3050 = vmatprep.subr.mxu0 0.0
    %3051 = vmatpush2.msra.mxu0 0.0
    %3052 = vmatprep.subr.mxu0 0.0
    %3053 = vmatpush2.msra.mxu0 0.0
    %3054 = vmatprep.subr.mxu0 0.0
    %3055 = vmatpush2.msra.mxu0 0.0
    %3056 = vmatprep.subr.mxu0 0.0
    %3057 = vmatpush2.msra.mxu0 0.0
    %3058 = vmatprep.subr.mxu0 0.0
    %3059 = vmatpush2.msra.mxu0 0.0
    %3060 = vmatprep.subr.mxu0 0.0
    %3061 = vmatpush2.msra.mxu0 0.0
    %3062 = vmatprep.subr.mxu0 0.0
    %3063 = vmatpush2.msra.mxu0 0.0
    %3064 = vmatprep.subr.mxu0 0.0
    %3065 = vmatpush2.msra.mxu0 0.0
    %3066 = vmatprep.subr.mxu0 0.0
    %3067 = vmatpush2.msra.mxu0 0.0
    %3068 = vmatprep.subr.mxu0 0.0
    %3069 = vmatpush2.msra.mxu0 0.0
    %3070 = vmatprep.subr.mxu0 0.0
    %3071 = vmatpush2.msra.mxu0 0.0
    %3072 = vmatprep.subr.mxu0 0.0
    %3073 = vmatpush2.msra.mxu0 0.0
    %3074 = vmatprep.subr.mxu0 0.0
    %3075 = vmatpush2.msra.mxu0 0.0
    %3076 = vmatprep.mubr.f32.mxu0 0.0
    %3077 = vmatmul.mubr.f32.gmra.mxu0 %v3011
    %v3078 = vpop.f32.mrf.mxu0
    %v3079 = vadd.f32 %v813, %v3078
    %v3080 = vpop.f32.mrf.mxu0
    %v3081 = vadd.f32 %v817, %v3080
    %3082 = vdwg.mxu0
    %3083 = vmatprep.subr.mxu0 0.0
    %3084 = vmatpush1.msra.mxu0 %v742
    %3085 = vmatprep.subr.mxu0 0.0
    %3086 = vmatpush1.msra.mxu0 %v739
    %3087 = vmatprep.subr.mxu0 0.0
    %3088 = vmatpush1.msra.mxu0 %v736
    %3089 = vmatprep.subr.mxu0 0.0
    %3090 = vmatpush1.msra.mxu0 %v733
    %3091 = vmatprep.subr.mxu0 0.0
    %3092 = vmatpush1.msra.mxu0 %v730
    %3093 = vmatprep.subr.mxu0 0.0
    %3094 = vmatpush1.msra.mxu0 %v727
    %3095 = vmatprep.subr.mxu0 0.0
    %3096 = vmatpush1.msra.mxu0 %v724
    %3097 = vmatprep.subr.mxu0 0.0
    %3098 = vmatpush1.msra.mxu0 %v721
    %3099 = vmatprep.subr.mxu0 0.0
    %3100 = vmatpush1.msra.mxu0 %v718
    %3101 = vmatprep.subr.mxu0 0.0
    %3102 = vmatpush1.msra.mxu0 %v715
    %3103 = vmatprep.subr.mxu0 0.0
    %3104 = vmatpush1.msra.mxu0 %v712
    %3105 = vmatprep.subr.mxu0 0.0
    %3106 = vmatpush1.msra.mxu0 %v709
    %3107 = vmatprep.subr.mxu0 0.0
    %3108 = vmatpush1.msra.mxu0 %v706
    %3109 = vmatprep.subr.mxu0 0.0
    %3110 = vmatpush1.msra.mxu0 %v703
    %3111 = vmatprep.subr.mxu0 0.0
    %3112 = vmatpush1.msra.mxu0 %v700
    %3113 = vmatprep.subr.mxu0 0.0
    %3114 = vmatpush1.msra.mxu0 %v697
    %3115 = vmatprep.subr.mxu0 0.0
    %3116 = vmatpush2.msra.mxu0 0.0
    %3117 = vmatprep.subr.mxu0 0.0
    %3118 = vmatpush2.msra.mxu0 0.0
    %3119 = vmatprep.subr.mxu0 0.0
    %3120 = vmatpush2.msra.mxu0 0.0
    %3121 = vmatprep.subr.mxu0 0.0
    %3122 = vmatpush2.msra.mxu0 0.0
    %3123 = vmatprep.subr.mxu0 0.0
    %3124 = vmatpush2.msra.mxu0 0.0
    %3125 = vmatprep.subr.mxu0 0.0
    %3126 = vmatpush2.msra.mxu0 0.0
    %3127 = vmatprep.subr.mxu0 0.0
    %3128 = vmatpush2.msra.mxu0 0.0
    %3129 = vmatprep.subr.mxu0 0.0
    %3130 = vmatpush2.msra.mxu0 0.0
    %3131 = vmatprep.subr.mxu0 0.0
    %3132 = vmatpush2.msra.mxu0 0.0
    %3133 = vmatprep.subr.mxu0 0.0
    %3134 = vmatpush2.msra.mxu0 0.0
    %3135 = vmatprep.subr.mxu0 0.0
    %3136 = vmatpush2.msra.mxu0 0.0
    %3137 = vmatprep.subr.mxu0 0.0
    %3138 = vmatpush2.msra.mxu0 0.0
    %3139 = vmatprep.subr.mxu0 0.0
    %3140 = vmatpush2.msra.mxu0 0.0
    %3141 = vmatprep.subr.mxu0 0.0
    %3142 = vmatpush2.msra.mxu0 0.0
    %3143 = vmatprep.subr.mxu0 0.0
    %3144 = vmatpush2.msra.mxu0 0.0
    %3145 = vmatprep.subr.mxu0 0.0
    %3146 = vmatpush2.msra.mxu0 0.0
    %3147 = vmatprep.mubr.f32.mxu0 0.0
    %3148 = vmatmul.mubr.f32.gmra.mxu0 %v3011
    %v3149 = vpop.f32.mrf.mxu0
    %v3150 = vadd.f32 %v821, %v3149
    %v3151 = vpop.f32.mrf.mxu0
    %3152 = vdwg.mxu0
    %3153 = vmatprep.subr.mxu0 %v789
    %3154 = vmatpush1.msra.mxu0 %v788
    %3155 = vmatprep.subr.mxu0 %v786
    %3156 = vmatpush1.msra.mxu0 %v785
    %3157 = vmatprep.subr.mxu0 %v783
    %3158 = vmatpush1.msra.mxu0 %v782
    %3159 = vmatprep.subr.mxu0 %v780
    %3160 = vmatpush1.msra.mxu0 %v779
    %3161 = vmatprep.subr.mxu0 %v777
    %3162 = vmatpush1.msra.mxu0 %v776
    %3163 = vmatprep.subr.mxu0 %v774
    %3164 = vmatpush1.msra.mxu0 %v773
    %3165 = vmatprep.subr.mxu0 %v771
    %3166 = vmatpush1.msra.mxu0 %v770
    %3167 = vmatprep.subr.mxu0 %v768
    %3168 = vmatpush1.msra.mxu0 %v767
    %3169 = vmatprep.subr.mxu0 %v765
    %3170 = vmatpush1.msra.mxu0 %v764
    %3171 = vmatprep.subr.mxu0 %v762
    %3172 = vmatpush1.msra.mxu0 %v761
    %3173 = vmatprep.subr.mxu0 %v759
    %3174 = vmatpush1.msra.mxu0 %v758
    %3175 = vmatprep.subr.mxu0 %v756
    %3176 = vmatpush1.msra.mxu0 %v755
    %3177 = vmatprep.subr.mxu0 %v753
    %3178 = vmatpush1.msra.mxu0 %v752
    %3179 = vmatprep.subr.mxu0 %v750
    %3180 = vmatpush1.msra.mxu0 %v749
    %3181 = vmatprep.subr.mxu0 %v747
    %3182 = vmatpush1.msra.mxu0 %v746
    %3183 = vmatprep.subr.mxu0 %v744
    %3184 = vmatpush1.msra.mxu0 %v743
    %3185 = vmatprep.subr.mxu0 0.0
    %3186 = vmatpush2.msra.mxu0 0.0
    %3187 = vmatprep.subr.mxu0 0.0
    %3188 = vmatpush2.msra.mxu0 0.0
    %3189 = vmatprep.subr.mxu0 0.0
    %3190 = vmatpush2.msra.mxu0 0.0
    %3191 = vmatprep.subr.mxu0 0.0
    %3192 = vmatpush2.msra.mxu0 0.0
    %3193 = vmatprep.subr.mxu0 0.0
    %3194 = vmatpush2.msra.mxu0 0.0
    %3195 = vmatprep.subr.mxu0 0.0
    %3196 = vmatpush2.msra.mxu0 0.0
    %3197 = vmatprep.subr.mxu0 0.0
    %3198 = vmatpush2.msra.mxu0 0.0
    %3199 = vmatprep.subr.mxu0 0.0
    %3200 = vmatpush2.msra.mxu0 0.0
    %3201 = vmatprep.subr.mxu0 0.0
    %3202 = vmatpush2.msra.mxu0 0.0
    %3203 = vmatprep.subr.mxu0 0.0
    %3204 = vmatpush2.msra.mxu0 0.0
    %3205 = vmatprep.subr.mxu0 0.0
    %3206 = vmatpush2.msra.mxu0 0.0
    %3207 = vmatprep.subr.mxu0 0.0
    %3208 = vmatpush2.msra.mxu0 0.0
    %3209 = vmatprep.subr.mxu0 0.0
    %3210 = vmatpush2.msra.mxu0 0.0
    %3211 = vmatprep.subr.mxu0 0.0
    %3212 = vmatpush2.msra.mxu0 0.0
    %3213 = vmatprep.subr.mxu0 0.0
    %3214 = vmatpush2.msra.mxu0 0.0
    %3215 = vmatprep.subr.mxu0 0.0
    %3216 = vmatpush2.msra.mxu0 0.0
    %3217 = vmatprep.mubr.f32.mxu0 0.0
    %3218 = vmatmul.mubr.f32.gmra.mxu0 %v2119
    %v3219 = vpop.f32.mrf.mxu0
    %v3220 = vadd.f32 %v830, %v3219
    %v3221 = vpop.f32.mrf.mxu0
    %v3222 = vadd.f32 %v834, %v3221
    %3223 = vdwg.mxu0
    %3224 = vmatprep.subr.mxu0 0.0
    %3225 = vmatpush1.msra.mxu0 %v790
    %3226 = vmatprep.subr.mxu0 0.0
    %3227 = vmatpush1.msra.mxu0 %v787
    %3228 = vmatprep.subr.mxu0 0.0
    %3229 = vmatpush1.msra.mxu0 %v784
    %3230 = vmatprep.subr.mxu0 0.0
    %3231 = vmatpush1.msra.mxu0 %v781
    %3232 = vmatprep.subr.mxu0 0.0
    %3233 = vmatpush1.msra.mxu0 %v778
    %3234 = vmatprep.subr.mxu0 0.0
    %3235 = vmatpush1.msra.mxu0 %v775
    %3236 = vmatprep.subr.mxu0 0.0
    %3237 = vmatpush1.msra.mxu0 %v772
    %3238 = vmatprep.subr.mxu0 0.0
    %3239 = vmatpush1.msra.mxu0 %v769
    %3240 = vmatprep.subr.mxu0 0.0
    %3241 = vmatpush1.msra.mxu0 %v766
    %3242 = vmatprep.subr.mxu0 0.0
    %3243 = vmatpush1.msra.mxu0 %v763
    %3244 = vmatprep.subr.mxu0 0.0
    %3245 = vmatpush1.msra.mxu0 %v760
    %3246 = vmatprep.subr.mxu0 0.0
    %3247 = vmatpush1.msra.mxu0 %v757
    %3248 = vmatprep.subr.mxu0 0.0
    %3249 = vmatpush1.msra.mxu0 %v754
    %3250 = vmatprep.subr.mxu0 0.0
    %3251 = vmatpush1.msra.mxu0 %v751
    %3252 = vmatprep.subr.mxu0 0.0
    %3253 = vmatpush1.msra.mxu0 %v748
    %3254 = vmatprep.subr.mxu0 0.0
    %3255 = vmatpush1.msra.mxu0 %v745
    %3256 = vmatprep.subr.mxu0 0.0
    %3257 = vmatpush2.msra.mxu0 0.0
    %3258 = vmatprep.subr.mxu0 0.0
    %3259 = vmatpush2.msra.mxu0 0.0
    %3260 = vmatprep.subr.mxu0 0.0
    %3261 = vmatpush2.msra.mxu0 0.0
    %3262 = vmatprep.subr.mxu0 0.0
    %3263 = vmatpush2.msra.mxu0 0.0
    %3264 = vmatprep.subr.mxu0 0.0
    %3265 = vmatpush2.msra.mxu0 0.0
    %3266 = vmatprep.subr.mxu0 0.0
    %3267 = vmatpush2.msra.mxu0 0.0
    %3268 = vmatprep.subr.mxu0 0.0
    %3269 = vmatpush2.msra.mxu0 0.0
    %3270 = vmatprep.subr.mxu0 0.0
    %3271 = vmatpush2.msra.mxu0 0.0
    %3272 = vmatprep.subr.mxu0 0.0
    %3273 = vmatpush2.msra.mxu0 0.0
    %3274 = vmatprep.subr.mxu0 0.0
    %3275 = vmatpush2.msra.mxu0 0.0
    %3276 = vmatprep.subr.mxu0 0.0
    %3277 = vmatpush2.msra.mxu0 0.0
    %3278 = vmatprep.subr.mxu0 0.0
    %3279 = vmatpush2.msra.mxu0 0.0
    %3280 = vmatprep.subr.mxu0 0.0
    %3281 = vmatpush2.msra.mxu0 0.0
    %3282 = vmatprep.subr.mxu0 0.0
    %3283 = vmatpush2.msra.mxu0 0.0
    %3284 = vmatprep.subr.mxu0 0.0
    %3285 = vmatpush2.msra.mxu0 0.0
    %3286 = vmatprep.subr.mxu0 0.0
    %3287 = vmatpush2.msra.mxu0 0.0
    %3288 = vmatprep.mubr.f32.mxu0 0.0
    %3289 = vmatmul.mubr.f32.gmra.mxu0 %v2119
    %v3290 = vpop.f32.mrf.mxu0
    %v3291 = vadd.f32 %v838, %v3290
    %v3292 = vpop.f32.mrf.mxu0
    %3293 = vdwg.mxu0
    %v3294 = vadd.f32 %v3079, %v3220
    %v3295 = vxor.u32 %v3294, 2147483648
    %v3296 = vmul.f32 %v3295, 1.442695
    %v3297 = vpow.pop %v3296
    %v3298 = vadd.f32 %v3297, 1.0
    %v3299 = vrcp.pop %v3298
    %v3300 = vmul.f32 1.0, %v3299
    %v3301 = vadd.f32 %v3081, %v3222
    %v3302 = vxor.u32 %v3301, 2147483648
    %v3303 = vmul.f32 %v3302, 1.442695
    %v3304 = vpow.pop %v3303
    %v3305 = vadd.f32 %v3304, 1.0
    %v3306 = vrcp.pop %v3305
    %v3307 = vmul.f32 1.0, %v3306
    %v3308 = vmul.f32 %v3300, %v3291
    %v3309 = vadd.f32 %v3150, %v3308
    %v3310 = vtanh.pop %v3309
    %v3311 = vsub.f32 1.0, %v3307
    %v3312 = vmul.f32 %v3311, %v3310
    %v3313 = vmul.f32 %v3307, %v2119
    %v3314 = vadd.f32 %v3312, %v3313
    %3315 = vst [vmem:[#allocation2 + $0x8] sm:$0xff] %v3314
    %3316 = vmatprep.subr.mxu0 0.0
    %3317 = vmatpush1.msra.mxu0 %v597
    %3318 = vmatprep.subr.mxu0 0.0
    %3319 = vmatpush1.msra.mxu0 %v596
    %3320 = vmatprep.subr.mxu0 0.0
    %3321 = vmatpush1.msra.mxu0 %v595
    %3322 = vmatprep.subr.mxu0 0.0
    %3323 = vmatpush1.msra.mxu0 %v594
    %3324 = vmatprep.subr.mxu0 0.0
    %3325 = vmatpush1.msra.mxu0 %v593
    %3326 = vmatprep.subr.mxu0 0.0
    %3327 = vmatpush1.msra.mxu0 %v592
    %3328 = vmatprep.subr.mxu0 0.0
    %3329 = vmatpush1.msra.mxu0 %v591
    %3330 = vmatprep.subr.mxu0 0.0
    %3331 = vmatpush1.msra.mxu0 %v590
    %3332 = vmatprep.subr.mxu0 0.0
    %3333 = vmatpush1.msra.mxu0 %v589
    %3334 = vmatprep.subr.mxu0 0.0
    %3335 = vmatpush1.msra.mxu0 %v588
    %3336 = vmatprep.subr.mxu0 0.0
    %3337 = vmatpush1.msra.mxu0 %v587
    %3338 = vmatprep.subr.mxu0 0.0
    %3339 = vmatpush1.msra.mxu0 %v586
    %3340 = vmatprep.subr.mxu0 0.0
    %3341 = vmatpush1.msra.mxu0 %v585
    %3342 = vmatprep.subr.mxu0 0.0
    %3343 = vmatpush1.msra.mxu0 %v584
    %3344 = vmatprep.subr.mxu0 0.0
    %3345 = vmatpush1.msra.mxu0 %v583
    %3346 = vmatprep.subr.mxu0 0.0
    %3347 = vmatpush1.msra.mxu0 %v582
    %3348 = vmatprep.subr.mxu0 0.0
    %3349 = vmatpush2.msra.mxu0 0.0
    %3350 = vmatprep.subr.mxu0 0.0
    %3351 = vmatpush2.msra.mxu0 0.0
    %3352 = vmatprep.subr.mxu0 0.0
    %3353 = vmatpush2.msra.mxu0 0.0
    %3354 = vmatprep.subr.mxu0 0.0
    %3355 = vmatpush2.msra.mxu0 0.0
    %3356 = vmatprep.subr.mxu0 0.0
    %3357 = vmatpush2.msra.mxu0 0.0
    %3358 = vmatprep.subr.mxu0 0.0
    %3359 = vmatpush2.msra.mxu0 0.0
    %3360 = vmatprep.subr.mxu0 0.0
    %3361 = vmatpush2.msra.mxu0 0.0
    %3362 = vmatprep.subr.mxu0 0.0
    %3363 = vmatpush2.msra.mxu0 0.0
    %3364 = vmatprep.subr.mxu0 0.0
    %3365 = vmatpush2.msra.mxu0 0.0
    %3366 = vmatprep.subr.mxu0 0.0
    %3367 = vmatpush2.msra.mxu0 0.0
    %3368 = vmatprep.subr.mxu0 0.0
    %3369 = vmatpush2.msra.mxu0 0.0
    %3370 = vmatprep.subr.mxu0 0.0
    %3371 = vmatpush2.msra.mxu0 0.0
    %3372 = vmatprep.subr.mxu0 0.0
    %3373 = vmatpush2.msra.mxu0 0.0
    %3374 = vmatprep.subr.mxu0 0.0
    %3375 = vmatpush2.msra.mxu0 0.0
    %3376 = vmatprep.subr.mxu0 0.0
    %3377 = vmatpush2.msra.mxu0 0.0
    %3378 = vmatprep.subr.mxu0 0.0
    %3379 = vmatpush2.msra.mxu0 0.0
    %3380 = vmatprep.mubr.f32.mxu0 0.0
    %3381 = vmatmul.mubr.f32.gmra.mxu0 %v3314
    %v3382 = vpop.f32.mrf.mxu0
    %v3383 = vadd.f32 0.0, %v3382
    %v3384 = vpop.f32.mrf.mxu0
    %3385 = vdwg.mxu0
    %v3387 = vcombine.high %v3383, %v3383
    %v3389 = vunpack.c.l.s4 1966171168
    %v3390 = vunpack.c.0.s8 %v3389
    %v3391 = vlaneseq
    %v3392 = vshrl.u32 %v3391, 7
    %v3393 = vsub.s32 %v3390, %v3392
    %v3394 = vrot.slane %v3383, %v3393
    %v3396 = vunpack.c.l.s4 1966171168
    %v3397 = vunpack.c.0.s8 %v3396
    %v3398 = vlaneseq
    %v3399 = vshrl.u32 %v3398, 7
    %v3400 = vsub.s32 %v3397, %v3399
    %v3401 = vrot.slane %v3387, %v3400
    %v3402 = vcombine.high %v3394, %v3394
    %v3403 = vcombine.high %v3401, %v3401
    %v3405 = vunpack.c.l.s4 1966171168
    %v3406 = vunpack.c.0.s8 %v3405
    %v3407 = vlaneseq
    %v3408 = vshrl.u32 %v3407, 7
    %v3409 = vsub.s32 %v3406, %v3408
    %v3410 = vrot.slane %v3394, %v3409
    %v3412 = vunpack.c.l.s4 1966171168
    %v3413 = vunpack.c.0.s8 %v3412
    %v3414 = vlaneseq
    %v3415 = vshrl.u32 %v3414, 7
    %v3416 = vsub.s32 %v3413, %v3415
    %v3417 = vrot.slane %v3401, %v3416
    %v3419 = vunpack.c.l.s4 1966171168
    %v3420 = vunpack.c.0.s8 %v3419
    %v3421 = vlaneseq
    %v3422 = vshrl.u32 %v3421, 7
    %v3423 = vsub.s32 %v3420, %v3422
    %v3424 = vrot.slane %v3402, %v3423
    %v3426 = vunpack.c.l.s4 1966171168
    %v3427 = vunpack.c.0.s8 %v3426
    %v3428 = vlaneseq
    %v3429 = vshrl.u32 %v3428, 7
    %v3430 = vsub.s32 %v3427, %v3429
    %v3431 = vrot.slane %v3403, %v3430
    %v3432 = vcombine.high %v3410, %v3410
    %v3433 = vcombine.high %v3417, %v3417
    %v3434 = vcombine.high %v3424, %v3424
    %v3435 = vcombine.high %v3431, %v3431
    %v3436 = vlaneseq
    %v3437 = vshrl.u32 %v3436, 7
    %v3438 = vsub.s32 0, %v3437
    %v3439 = vrot.slane %v3410, %v3438
    %v3440 = vlaneseq
    %v3441 = vshrl.u32 %v3440, 7
    %v3442 = vsub.s32 0, %v3441
    %v3443 = vrot.slane %v3424, %v3442
    %v3444 = vlaneseq
    %v3445 = vshrl.u32 %v3444, 7
    %v3446 = vsub.s32 0, %v3445
    %v3447 = vrot.slane %v3432, %v3446
    %v3448 = vlaneseq
    %v3449 = vshrl.u32 %v3448, 7
    %v3450 = vsub.s32 0, %v3449
    %v3451 = vrot.slane %v3434, %v3450
    %v3452 = vlaneseq
    %v3453 = vshrl.u32 %v3452, 7
    %v3454 = vsub.s32 0, %v3453
    %v3455 = vrot.slane %v3417, %v3454
    %v3456 = vlaneseq
    %v3457 = vshrl.u32 %v3456, 7
    %v3458 = vsub.s32 0, %v3457
    %v3459 = vrot.slane %v3431, %v3458
    %v3460 = vlaneseq
    %v3461 = vshrl.u32 %v3460, 7
    %v3462 = vsub.s32 0, %v3461
    %v3463 = vrot.slane %v3433, %v3462
    %v3464 = vlaneseq
    %v3465 = vshrl.u32 %v3464, 7
    %v3466 = vsub.s32 0, %v3465
    %v3467 = vrot.slane %v3435, %v3466
    %v3476 = vadd.f32 %v3439, %v300
    %v3477 = vadd.f32 %v3443, %v305
    %v3478 = vadd.f32 %v3447, %v310
    %v3479 = vadd.f32 %v3451, %v315
    %v3480 = vadd.f32 %v3455, %v320
    %v3481 = vadd.f32 %v3459, %v325
    %v3482 = vadd.f32 %v3463, %v330
    %v3483 = vadd.f32 %v3467, %v335
    %v3484 = vtanh.pop %v3476
    %v3485 = vtanh.pop %v3477
    %v3486 = vtanh.pop %v3478
    %v3487 = vtanh.pop %v3479
    %v3488 = vtanh.pop %v3480
    %v3489 = vtanh.pop %v3481
    %v3490 = vtanh.pop %v3482
    %v3491 = vtanh.pop %v3483
    %v3492 = vmul.f32 %v3484, %v1025
    %v3493 = vmul.f32 %v3485, %v1025
    %v3494 = vmul.f32 %v3486, %v1025
    %v3495 = vmul.f32 %v3487, %v1025
    %v3496 = vmul.f32 %v3488, %v1025
    %v3497 = vmul.f32 %v3489, %v1025
    %v3498 = vmul.f32 %v3490, %v1025
    %v3499 = vmul.f32 %v3491, %v1025
    %3500 = vadd.xlane.f32.xlu0 %v3492
    %v3501 = vpop.xlane.xlu0 %3500
    %3502 = vadd.xlane.f32.xlu0 %v3493
    %v3503 = vpop.xlane.xlu0 %3502
    %3504 = vadd.xlane.f32.xlu0 %v3494
    %v3505 = vpop.xlane.xlu0 %3504
    %3506 = vadd.xlane.f32.xlu0 %v3495
    %v3507 = vpop.xlane.xlu0 %3506
    %3508 = vadd.xlane.f32.xlu0 %v3496
    %v3509 = vpop.xlane.xlu0 %3508
    %3510 = vadd.xlane.f32.xlu0 %v3497
    %v3511 = vpop.xlane.xlu0 %3510
    %3512 = vadd.xlane.f32.xlu0 %v3498
    %v3513 = vpop.xlane.xlu0 %3512
    %3514 = vadd.xlane.f32.xlu0 %v3499
    %v3515 = vpop.xlane.xlu0 %3514
    %v3516 = vadd.f32 %v3501, %v1058
    %v3517 = vadd.f32 %v3503, %v1065
    %v3518 = vadd.f32 %v3505, %v1072
    %v3519 = vadd.f32 %v3507, %v1079
    %v3520 = vadd.f32 %v3509, %v1086
    %v3521 = vadd.f32 %v3511, %v1093
    %v3522 = vadd.f32 %v3513, %v1100
    %v3523 = vadd.f32 %v3515, %v1107
    %3532 = vset.pattern.permute.xlu0 0
    %3533 = vperm.xlu0 %3532, %v3516
    %v3534 = vpop.permute.xlu0 %3533
    %3535 = vset.pattern.permute.xlu0 0
    %3536 = vperm.xlu0 %3535, %v3517
    %v3537 = vpop.permute.xlu0 %3536
    %3538 = vset.pattern.permute.xlu0 0
    %3539 = vperm.xlu0 %3538, %v3518
    %v3540 = vpop.permute.xlu0 %3539
    %3541 = vset.pattern.permute.xlu0 0
    %3542 = vperm.xlu0 %3541, %v3519
    %v3543 = vpop.permute.xlu0 %3542
    %3544 = vset.pattern.permute.xlu0 0
    %3545 = vperm.xlu0 %3544, %v3520
    %v3546 = vpop.permute.xlu0 %3545
    %3547 = vset.pattern.permute.xlu0 0
    %3548 = vperm.xlu0 %3547, %v3521
    %v3549 = vpop.permute.xlu0 %3548
    %3550 = vset.pattern.permute.xlu0 0
    %3551 = vperm.xlu0 %3550, %v3522
    %v3552 = vpop.permute.xlu0 %3551
    %3553 = vset.pattern.permute.xlu0 0
    %3554 = vperm.xlu0 %3553, %v3523
    %v3555 = vpop.permute.xlu0 %3554
    %v3556 = vlaneseq
    %v3557 = vshrl.u32 %v3556, 7
    %v3558 = vsub.s32 %v1157, %v3557
    %v3559 = vrot.slane %v3534, %v3558
    %v3560 = vlaneseq
    %v3561 = vshrl.u32 %v3560, 7
    %v3562 = vsub.s32 %v1157, %v3561
    %v3563 = vrot.slane %v3537, %v3562
    %v3564 = vlaneseq
    %v3565 = vshrl.u32 %v3564, 7
    %v3566 = vsub.s32 %v1157, %v3565
    %v3567 = vrot.slane %v3540, %v3566
    %v3568 = vlaneseq
    %v3569 = vshrl.u32 %v3568, 7
    %v3570 = vsub.s32 %v1157, %v3569
    %v3571 = vrot.slane %v3543, %v3570
    %v3572 = vlaneseq
    %v3573 = vshrl.u32 %v3572, 7
    %v3574 = vsub.s32 %v1157, %v3573
    %v3575 = vrot.slane %v3546, %v3574
    %v3576 = vlaneseq
    %v3577 = vshrl.u32 %v3576, 7
    %v3578 = vsub.s32 %v1157, %v3577
    %v3579 = vrot.slane %v3549, %v3578
    %v3580 = vlaneseq
    %v3581 = vshrl.u32 %v3580, 7
    %v3582 = vsub.s32 %v1157, %v3581
    %v3583 = vrot.slane %v3552, %v3582
    %v3584 = vlaneseq
    %v3585 = vshrl.u32 %v3584, 7
    %v3586 = vsub.s32 %v1157, %v3585
    %v3587 = vrot.slane %v3555, %v3586
    %v3588 = vsel %vm1190, %v3563, %v3559
    %v3589 = vsel %vm1192, %v3567, %v3588
    %v3590 = vsel %vm1194, %v3571, %v3589
    %v3591 = vsel %vm1196, %v3575, %v3590
    %v3592 = vsel %vm1198, %v3579, %v3591
    %v3593 = vsel %vm1200, %v3583, %v3592
    %v3594 = vsel %vm1202, %v3587, %v3593
    %v3596 = vsel %vm1205, %v3594, -inf
    %3597 = vmax.xlane.f32.xlu0 %v3596
    %v3598 = vpop.xlane.xlu0 %3597
    %v3600 = vlaneseq
    %v3601 = vshrl.u32 %v3600, 7
    %v3602 = vsub.s32 0, %v3601
    %v3603 = vrot.slane %v3598, %v3602
    %v3604 = vlaneseq
    %v3605 = vshrl.u32 %v3604, 7
    %v3606 = vsub.s32 1, %v3605
    %v3607 = vrot.slane %v3598, %v3606
    %v3608 = vlaneseq
    %v3609 = vshrl.u32 %v3608, 7
    %v3610 = vsub.s32 2, %v3609
    %v3611 = vrot.slane %v3598, %v3610
    %v3612 = vlaneseq
    %v3613 = vshrl.u32 %v3612, 7
    %v3614 = vsub.s32 3, %v3613
    %v3615 = vrot.slane %v3598, %v3614
    %v3616 = vlaneseq
    %v3617 = vshrl.u32 %v3616, 7
    %v3618 = vsub.s32 4, %v3617
    %v3619 = vrot.slane %v3598, %v3618
    %v3620 = vlaneseq
    %v3621 = vshrl.u32 %v3620, 7
    %v3622 = vsub.s32 5, %v3621
    %v3623 = vrot.slane %v3598, %v3622
    %v3624 = vlaneseq
    %v3625 = vshrl.u32 %v3624, 7
    %v3626 = vsub.s32 6, %v3625
    %v3627 = vrot.slane %v3598, %v3626
    %v3628 = vlaneseq
    %v3629 = vshrl.u32 %v3628, 7
    %v3630 = vsub.s32 7, %v3629
    %v3631 = vrot.slane %v3598, %v3630
    %v3640 = vsub.f32 %v3516, %v3603
    %v3641 = vsub.f32 %v3517, %v3607
    %v3642 = vsub.f32 %v3518, %v3611
    %v3643 = vsub.f32 %v3519, %v3615
    %v3644 = vsub.f32 %v3520, %v3619
    %v3645 = vsub.f32 %v3521, %v3623
    %v3646 = vsub.f32 %v3522, %v3627
    %v3647 = vsub.f32 %v3523, %v3631
    %v3648 = vmul.f32 %v3640, 1.442695
    %v3649 = vpow.pop %v3648
    %v3650 = vmul.f32 %v3641, 1.442695
    %v3651 = vpow.pop %v3650
    %v3652 = vmul.f32 %v3642, 1.442695
    %v3653 = vpow.pop %v3652
    %v3654 = vmul.f32 %v3643, 1.442695
    %v3655 = vpow.pop %v3654
    %v3656 = vmul.f32 %v3644, 1.442695
    %v3657 = vpow.pop %v3656
    %v3658 = vmul.f32 %v3645, 1.442695
    %v3659 = vpow.pop %v3658
    %v3660 = vmul.f32 %v3646, 1.442695
    %v3661 = vpow.pop %v3660
    %v3662 = vmul.f32 %v3647, 1.442695
    %v3663 = vpow.pop %v3662
    %3672 = vset.pattern.permute.xlu0 0
    %3673 = vperm.xlu0 %3672, %v3649
    %v3674 = vpop.permute.xlu0 %3673
    %3675 = vset.pattern.permute.xlu0 0
    %3676 = vperm.xlu0 %3675, %v3651
    %v3677 = vpop.permute.xlu0 %3676
    %3678 = vset.pattern.permute.xlu0 0
    %3679 = vperm.xlu0 %3678, %v3653
    %v3680 = vpop.permute.xlu0 %3679
    %3681 = vset.pattern.permute.xlu0 0
    %3682 = vperm.xlu0 %3681, %v3655
    %v3683 = vpop.permute.xlu0 %3682
    %3684 = vset.pattern.permute.xlu0 0
    %3685 = vperm.xlu0 %3684, %v3657
    %v3686 = vpop.permute.xlu0 %3685
    %3687 = vset.pattern.permute.xlu0 0
    %3688 = vperm.xlu0 %3687, %v3659
    %v3689 = vpop.permute.xlu0 %3688
    %3690 = vset.pattern.permute.xlu0 0
    %3691 = vperm.xlu0 %3690, %v3661
    %v3692 = vpop.permute.xlu0 %3691
    %3693 = vset.pattern.permute.xlu0 0
    %3694 = vperm.xlu0 %3693, %v3663
    %v3695 = vpop.permute.xlu0 %3694
    %v3696 = vlaneseq
    %v3697 = vshrl.u32 %v3696, 7
    %v3698 = vsub.s32 %v1157, %v3697
    %v3699 = vrot.slane %v3674, %v3698
    %v3700 = vlaneseq
    %v3701 = vshrl.u32 %v3700, 7
    %v3702 = vsub.s32 %v1157, %v3701
    %v3703 = vrot.slane %v3677, %v3702
    %v3704 = vlaneseq
    %v3705 = vshrl.u32 %v3704, 7
    %v3706 = vsub.s32 %v1157, %v3705
    %v3707 = vrot.slane %v3680, %v3706
    %v3708 = vlaneseq
    %v3709 = vshrl.u32 %v3708, 7
    %v3710 = vsub.s32 %v1157, %v3709
    %v3711 = vrot.slane %v3683, %v3710
    %v3712 = vlaneseq
    %v3713 = vshrl.u32 %v3712, 7
    %v3714 = vsub.s32 %v1157, %v3713
    %v3715 = vrot.slane %v3686, %v3714
    %v3716 = vlaneseq
    %v3717 = vshrl.u32 %v3716, 7
    %v3718 = vsub.s32 %v1157, %v3717
    %v3719 = vrot.slane %v3689, %v3718
    %v3720 = vlaneseq
    %v3721 = vshrl.u32 %v3720, 7
    %v3722 = vsub.s32 %v1157, %v3721
    %v3723 = vrot.slane %v3692, %v3722
    %v3724 = vlaneseq
    %v3725 = vshrl.u32 %v3724, 7
    %v3726 = vsub.s32 %v1157, %v3725
    %v3727 = vrot.slane %v3695, %v3726
    %v3728 = vsel %vm1190, %v3703, %v3699
    %v3729 = vsel %vm1192, %v3707, %v3728
    %v3730 = vsel %vm1194, %v3711, %v3729
    %v3731 = vsel %vm1196, %v3715, %v3730
    %v3732 = vsel %vm1198, %v3719, %v3731
    %v3733 = vsel %vm1200, %v3723, %v3732
    %v3734 = vsel %vm1202, %v3727, %v3733
    %v3736 = vsel %vm1205, %v3734, 0.0
    %3737 = vadd.xlane.f32.xlu0 %v3736
    %v3738 = vpop.xlane.xlu0 %3737
    %v3739 = vrcp.pop %v3738
    %v3741 = vlaneseq
    %v3742 = vshrl.u32 %v3741, 7
    %v3743 = vsub.s32 0, %v3742
    %v3744 = vrot.slane %v3739, %v3743
    %v3745 = vlaneseq
    %v3746 = vshrl.u32 %v3745, 7
    %v3747 = vsub.s32 1, %v3746
    %v3748 = vrot.slane %v3739, %v3747
    %v3749 = vlaneseq
    %v3750 = vshrl.u32 %v3749, 7
    %v3751 = vsub.s32 2, %v3750
    %v3752 = vrot.slane %v3739, %v3751
    %v3753 = vlaneseq
    %v3754 = vshrl.u32 %v3753, 7
    %v3755 = vsub.s32 3, %v3754
    %v3756 = vrot.slane %v3739, %v3755
    %v3757 = vlaneseq
    %v3758 = vshrl.u32 %v3757, 7
    %v3759 = vsub.s32 4, %v3758
    %v3760 = vrot.slane %v3739, %v3759
    %v3761 = vlaneseq
    %v3762 = vshrl.u32 %v3761, 7
    %v3763 = vsub.s32 5, %v3762
    %v3764 = vrot.slane %v3739, %v3763
    %v3765 = vlaneseq
    %v3766 = vshrl.u32 %v3765, 7
    %v3767 = vsub.s32 6, %v3766
    %v3768 = vrot.slane %v3739, %v3767
    %v3769 = vlaneseq
    %v3770 = vshrl.u32 %v3769, 7
    %v3771 = vsub.s32 7, %v3770
    %v3772 = vrot.slane %v3739, %v3771
    %v3781 = vmul.f32 %v3649, %v3744
    %v3782 = vmul.f32 %v3651, %v3748
    %v3783 = vmul.f32 %v3653, %v3752
    %v3784 = vmul.f32 %v3655, %v3756
    %v3785 = vmul.f32 %v3657, %v3760
    %v3786 = vmul.f32 %v3659, %v3764
    %v3787 = vmul.f32 %v3661, %v3768
    %v3788 = vmul.f32 %v3663, %v3772
    %3790 = vset.pattern.permute.xlu0 0
    %3791 = vperm.xlu0 %3790, %v3781
    %v3792 = vpop.permute.xlu0 %3791
    %3795 = vset.pattern.permute.xlu0 0
    %3796 = vperm.xlu0 %3795, %v3782
    %v3797 = vpop.permute.xlu0 %3796
    %3800 = vset.pattern.permute.xlu0 0
    %3801 = vperm.xlu0 %3800, %v3783
    %v3802 = vpop.permute.xlu0 %3801
    %3805 = vset.pattern.permute.xlu0 0
    %3806 = vperm.xlu0 %3805, %v3784
    %v3807 = vpop.permute.xlu0 %3806
    %3810 = vset.pattern.permute.xlu0 0
    %3811 = vperm.xlu0 %3810, %v3785
    %v3812 = vpop.permute.xlu0 %3811
    %3815 = vset.pattern.permute.xlu0 0
    %3816 = vperm.xlu0 %3815, %v3786
    %v3817 = vpop.permute.xlu0 %3816
    %3820 = vset.pattern.permute.xlu0 0
    %3821 = vperm.xlu0 %3820, %v3787
    %v3822 = vpop.permute.xlu0 %3821
    %3825 = vset.pattern.permute.xlu0 0
    %3826 = vperm.xlu0 %3825, %v3788
    %v3827 = vpop.permute.xlu0 %3826
    %v3829 = vmul.f32 %v3792, %v208
    %v3830 = vmul.f32 %v3797, %v209
    %v3831 = vmul.f32 %v3802, %v210
    %v3832 = vmul.f32 %v3807, %v211
    %v3833 = vmul.f32 %v3812, %v212
    %v3834 = vmul.f32 %v3817, %v213
    %v3835 = vmul.f32 %v3822, %v214
    %v3836 = vmul.f32 %v3827, %v215
    %v3837 = vrot.slane %v3829, 4
    %v3838 = vadd.f32 %v3829, %v3837
    %v3839 = vrot.slane %v3838, 2
    %v3840 = vadd.f32 %v3838, %v3839
    %v3841 = vrot.slane %v3840, 1
    %v3842 = vadd.f32 %v3840, %v3841
    %v3843 = vrot.slane %v3830, 4
    %v3844 = vadd.f32 %v3830, %v3843
    %v3845 = vrot.slane %v3844, 2
    %v3846 = vadd.f32 %v3844, %v3845
    %v3847 = vrot.slane %v3846, 1
    %v3848 = vadd.f32 %v3846, %v3847
    %v3849 = vrot.slane %v3831, 4
    %v3850 = vadd.f32 %v3831, %v3849
    %v3851 = vrot.slane %v3850, 2
    %v3852 = vadd.f32 %v3850, %v3851
    %v3853 = vrot.slane %v3852, 1
    %v3854 = vadd.f32 %v3852, %v3853
    %v3855 = vrot.slane %v3832, 4
    %v3856 = vadd.f32 %v3832, %v3855
    %v3857 = vrot.slane %v3856, 2
    %v3858 = vadd.f32 %v3856, %v3857
    %v3859 = vrot.slane %v3858, 1
    %v3860 = vadd.f32 %v3858, %v3859
    %v3861 = vrot.slane %v3833, 4
    %v3862 = vadd.f32 %v3833, %v3861
    %v3863 = vrot.slane %v3862, 2
    %v3864 = vadd.f32 %v3862, %v3863
    %v3865 = vrot.slane %v3864, 1
    %v3866 = vadd.f32 %v3864, %v3865
    %v3867 = vrot.slane %v3834, 4
    %v3868 = vadd.f32 %v3834, %v3867
    %v3869 = vrot.slane %v3868, 2
    %v3870 = vadd.f32 %v3868, %v3869
    %v3871 = vrot.slane %v3870, 1
    %v3872 = vadd.f32 %v3870, %v3871
    %v3873 = vrot.slane %v3835, 4
    %v3874 = vadd.f32 %v3835, %v3873
    %v3875 = vrot.slane %v3874, 2
    %v3876 = vadd.f32 %v3874, %v3875
    %v3877 = vrot.slane %v3876, 1
    %v3878 = vadd.f32 %v3876, %v3877
    %v3879 = vrot.slane %v3836, 4
    %v3880 = vadd.f32 %v3836, %v3879
    %v3881 = vrot.slane %v3880, 2
    %v3882 = vadd.f32 %v3880, %v3881
    %v3883 = vrot.slane %v3882, 1
    %v3884 = vadd.f32 %v3882, %v3883
    %v3893 = vsel %vm1190, %v3848, %v3842
    %v3894 = vsel %vm1192, %v3854, %v3893
    %v3895 = vsel %vm1194, %v3860, %v3894
    %v3896 = vsel %vm1196, %v3866, %v3895
    %v3897 = vsel %vm1198, %v3872, %v3896
    %v3898 = vsel %vm1200, %v3878, %v3897
    %v3899 = vsel %vm1202, %v3884, %v3898
    %3901 = vmatprep.subr.mxu0 %v645
    %3902 = vmatpush1.msra.mxu0 %v644
    %3903 = vmatprep.subr.mxu0 %v642
    %3904 = vmatpush1.msra.mxu0 %v641
    %3905 = vmatprep.subr.mxu0 %v639
    %3906 = vmatpush1.msra.mxu0 %v638
    %3907 = vmatprep.subr.mxu0 %v636
    %3908 = vmatpush1.msra.mxu0 %v635
    %3909 = vmatprep.subr.mxu0 %v633
    %3910 = vmatpush1.msra.mxu0 %v632
    %3911 = vmatprep.subr.mxu0 %v630
    %3912 = vmatpush1.msra.mxu0 %v629
    %3913 = vmatprep.subr.mxu0 %v627
    %3914 = vmatpush1.msra.mxu0 %v626
    %3915 = vmatprep.subr.mxu0 %v624
    %3916 = vmatpush1.msra.mxu0 %v623
    %3917 = vmatprep.subr.mxu0 %v621
    %3918 = vmatpush1.msra.mxu0 %v620
    %3919 = vmatprep.subr.mxu0 %v618
    %3920 = vmatpush1.msra.mxu0 %v617
    %3921 = vmatprep.subr.mxu0 %v615
    %3922 = vmatpush1.msra.mxu0 %v614
    %3923 = vmatprep.subr.mxu0 %v612
    %3924 = vmatpush1.msra.mxu0 %v611
    %3925 = vmatprep.subr.mxu0 %v609
    %3926 = vmatpush1.msra.mxu0 %v608
    %3927 = vmatprep.subr.mxu0 %v606
    %3928 = vmatpush1.msra.mxu0 %v605
    %3929 = vmatprep.subr.mxu0 %v603
    %3930 = vmatpush1.msra.mxu0 %v602
    %3931 = vmatprep.subr.mxu0 %v600
    %3932 = vmatpush1.msra.mxu0 %v599
    %3933 = vmatprep.subr.mxu0 0.0
    %3934 = vmatpush2.msra.mxu0 0.0
    %3935 = vmatprep.subr.mxu0 0.0
    %3936 = vmatpush2.msra.mxu0 0.0
    %3937 = vmatprep.subr.mxu0 0.0
    %3938 = vmatpush2.msra.mxu0 0.0
    %3939 = vmatprep.subr.mxu0 0.0
    %3940 = vmatpush2.msra.mxu0 0.0
    %3941 = vmatprep.subr.mxu0 0.0
    %3942 = vmatpush2.msra.mxu0 0.0
    %3943 = vmatprep.subr.mxu0 0.0
    %3944 = vmatpush2.msra.mxu0 0.0
    %3945 = vmatprep.subr.mxu0 0.0
    %3946 = vmatpush2.msra.mxu0 0.0
    %3947 = vmatprep.subr.mxu0 0.0
    %3948 = vmatpush2.msra.mxu0 0.0
    %3949 = vmatprep.subr.mxu0 0.0
    %3950 = vmatpush2.msra.mxu0 0.0
    %3951 = vmatprep.subr.mxu0 0.0
    %3952 = vmatpush2.msra.mxu0 0.0
    %3953 = vmatprep.subr.mxu0 0.0
    %3954 = vmatpush2.msra.mxu0 0.0
    %3955 = vmatprep.subr.mxu0 0.0
    %3956 = vmatpush2.msra.mxu0 0.0
    %3957 = vmatprep.subr.mxu0 0.0
    %3958 = vmatpush2.msra.mxu0 0.0
    %3959 = vmatprep.subr.mxu0 0.0
    %3960 = vmatpush2.msra.mxu0 0.0
    %3961 = vmatprep.subr.mxu0 0.0
    %3962 = vmatpush2.msra.mxu0 0.0
    %3963 = vmatprep.subr.mxu0 0.0
    %3964 = vmatpush2.msra.mxu0 0.0
    %3965 = vmatprep.mubr.f32.mxu0 0.0
    %3966 = vmatmul.mubr.f32.gmra.mxu0 %v3899
    %v3967 = vpop.f32.mrf.mxu0
    %v3968 = vadd.f32 0.0, %v3967
    %v3969 = vpop.f32.mrf.mxu0
    %v3970 = vadd.f32 0.0, %v3969
    %3971 = vdwg.mxu0
    %3972 = vmatprep.subr.mxu0 0.0
    %3973 = vmatpush1.msra.mxu0 %v646
    %3974 = vmatprep.subr.mxu0 0.0
    %3975 = vmatpush1.msra.mxu0 %v643
    %3976 = vmatprep.subr.mxu0 0.0
    %3977 = vmatpush1.msra.mxu0 %v640
    %3978 = vmatprep.subr.mxu0 0.0
    %3979 = vmatpush1.msra.mxu0 %v637
    %3980 = vmatprep.subr.mxu0 0.0
    %3981 = vmatpush1.msra.mxu0 %v634
    %3982 = vmatprep.subr.mxu0 0.0
    %3983 = vmatpush1.msra.mxu0 %v631
    %3984 = vmatprep.subr.mxu0 0.0
    %3985 = vmatpush1.msra.mxu0 %v628
    %3986 = vmatprep.subr.mxu0 0.0
    %3987 = vmatpush1.msra.mxu0 %v625
    %3988 = vmatprep.subr.mxu0 0.0
    %3989 = vmatpush1.msra.mxu0 %v622
    %3990 = vmatprep.subr.mxu0 0.0
    %3991 = vmatpush1.msra.mxu0 %v619
    %3992 = vmatprep.subr.mxu0 0.0
    %3993 = vmatpush1.msra.mxu0 %v616
    %3994 = vmatprep.subr.mxu0 0.0
    %3995 = vmatpush1.msra.mxu0 %v613
    %3996 = vmatprep.subr.mxu0 0.0
    %3997 = vmatpush1.msra.mxu0 %v610
    %3998 = vmatprep.subr.mxu0 0.0
    %3999 = vmatpush1.msra.mxu0 %v607
    %4000 = vmatprep.subr.mxu0 0.0
    %4001 = vmatpush1.msra.mxu0 %v604
    %4002 = vmatprep.subr.mxu0 0.0
    %4003 = vmatpush1.msra.mxu0 %v601
    %4004 = vmatprep.subr.mxu0 0.0
    %4005 = vmatpush2.msra.mxu0 0.0
    %4006 = vmatprep.subr.mxu0 0.0
    %4007 = vmatpush2.msra.mxu0 0.0
    %4008 = vmatprep.subr.mxu0 0.0
    %4009 = vmatpush2.msra.mxu0 0.0
    %4010 = vmatprep.subr.mxu0 0.0
    %4011 = vmatpush2.msra.mxu0 0.0
    %4012 = vmatprep.subr.mxu0 0.0
    %4013 = vmatpush2.msra.mxu0 0.0
    %4014 = vmatprep.subr.mxu0 0.0
    %4015 = vmatpush2.msra.mxu0 0.0
    %4016 = vmatprep.subr.mxu0 0.0
    %4017 = vmatpush2.msra.mxu0 0.0
    %4018 = vmatprep.subr.mxu0 0.0
    %4019 = vmatpush2.msra.mxu0 0.0
    %4020 = vmatprep.subr.mxu0 0.0
    %4021 = vmatpush2.msra.mxu0 0.0
    %4022 = vmatprep.subr.mxu0 0.0
    %4023 = vmatpush2.msra.mxu0 0.0
    %4024 = vmatprep.subr.mxu0 0.0
    %4025 = vmatpush2.msra.mxu0 0.0
    %4026 = vmatprep.subr.mxu0 0.0
    %4027 = vmatpush2.msra.mxu0 0.0
    %4028 = vmatprep.subr.mxu0 0.0
    %4029 = vmatpush2.msra.mxu0 0.0
    %4030 = vmatprep.subr.mxu0 0.0
    %4031 = vmatpush2.msra.mxu0 0.0
    %4032 = vmatprep.subr.mxu0 0.0
    %4033 = vmatpush2.msra.mxu0 0.0
    %4034 = vmatprep.subr.mxu0 0.0
    %4035 = vmatpush2.msra.mxu0 0.0
    %4036 = vmatprep.mubr.f32.mxu0 0.0
    %4037 = vmatmul.mubr.f32.gmra.mxu0 %v3899
    %v4038 = vpop.f32.mrf.mxu0
    %v4039 = vadd.f32 0.0, %v4038
    %v4040 = vpop.f32.mrf.mxu0
    %4041 = vdwg.mxu0
    %v4042 = vadd.f32 %v465, %v3968
    %v4043 = vadd.f32 %v467, %v3970
    %v4044 = vadd.f32 %v564, %v4039
    %4045 = vmatprep.subr.mxu0 %v693
    %4046 = vmatpush1.msra.mxu0 %v692
    %4047 = vmatprep.subr.mxu0 %v690
    %4048 = vmatpush1.msra.mxu0 %v689
    %4049 = vmatprep.subr.mxu0 %v687
    %4050 = vmatpush1.msra.mxu0 %v686
    %4051 = vmatprep.subr.mxu0 %v684
    %4052 = vmatpush1.msra.mxu0 %v683
    %4053 = vmatprep.subr.mxu0 %v681
    %4054 = vmatpush1.msra.mxu0 %v680
    %4055 = vmatprep.subr.mxu0 %v678
    %4056 = vmatpush1.msra.mxu0 %v677
    %4057 = vmatprep.subr.mxu0 %v675
    %4058 = vmatpush1.msra.mxu0 %v674
    %4059 = vmatprep.subr.mxu0 %v672
    %4060 = vmatpush1.msra.mxu0 %v671
    %4061 = vmatprep.subr.mxu0 %v669
    %4062 = vmatpush1.msra.mxu0 %v668
    %4063 = vmatprep.subr.mxu0 %v666
    %4064 = vmatpush1.msra.mxu0 %v665
    %4065 = vmatprep.subr.mxu0 %v663
    %4066 = vmatpush1.msra.mxu0 %v662
    %4067 = vmatprep.subr.mxu0 %v660
    %4068 = vmatpush1.msra.mxu0 %v659
    %4069 = vmatprep.subr.mxu0 %v657
    %4070 = vmatpush1.msra.mxu0 %v656
    %4071 = vmatprep.subr.mxu0 %v654
    %4072 = vmatpush1.msra.mxu0 %v653
    %4073 = vmatprep.subr.mxu0 %v651
    %4074 = vmatpush1.msra.mxu0 %v650
    %4075 = vmatprep.subr.mxu0 %v648
    %4076 = vmatpush1.msra.mxu0 %v647
    %4077 = vmatprep.subr.mxu0 0.0
    %4078 = vmatpush2.msra.mxu0 0.0
    %4079 = vmatprep.subr.mxu0 0.0
    %4080 = vmatpush2.msra.mxu0 0.0
    %4081 = vmatprep.subr.mxu0 0.0
    %4082 = vmatpush2.msra.mxu0 0.0
    %4083 = vmatprep.subr.mxu0 0.0
    %4084 = vmatpush2.msra.mxu0 0.0
    %4085 = vmatprep.subr.mxu0 0.0
    %4086 = vmatpush2.msra.mxu0 0.0
    %4087 = vmatprep.subr.mxu0 0.0
    %4088 = vmatpush2.msra.mxu0 0.0
    %4089 = vmatprep.subr.mxu0 0.0
    %4090 = vmatpush2.msra.mxu0 0.0
    %4091 = vmatprep.subr.mxu0 0.0
    %4092 = vmatpush2.msra.mxu0 0.0
    %4093 = vmatprep.subr.mxu0 0.0
    %4094 = vmatpush2.msra.mxu0 0.0
    %4095 = vmatprep.subr.mxu0 0.0
    %4096 = vmatpush2.msra.mxu0 0.0
    %4097 = vmatprep.subr.mxu0 0.0
    %4098 = vmatpush2.msra.mxu0 0.0
    %4099 = vmatprep.subr.mxu0 0.0
    %4100 = vmatpush2.msra.mxu0 0.0
    %4101 = vmatprep.subr.mxu0 0.0
    %4102 = vmatpush2.msra.mxu0 0.0
    %4103 = vmatprep.subr.mxu0 0.0
    %4104 = vmatpush2.msra.mxu0 0.0
    %4105 = vmatprep.subr.mxu0 0.0
    %4106 = vmatpush2.msra.mxu0 0.0
    %4107 = vmatprep.subr.mxu0 0.0
    %4108 = vmatpush2.msra.mxu0 0.0
    %4109 = vmatprep.mubr.f32.mxu0 0.0
    %4110 = vmatmul.mubr.f32.gmra.mxu0 %v3011
    %v4111 = vpop.f32.mrf.mxu0
    %v4112 = vadd.f32 %v796, %v4111
    %v4113 = vpop.f32.mrf.mxu0
    %v4114 = vadd.f32 %v800, %v4113
    %4115 = vdwg.mxu0
    %4116 = vmatprep.subr.mxu0 0.0
    %4117 = vmatpush1.msra.mxu0 %v694
    %4118 = vmatprep.subr.mxu0 0.0
    %4119 = vmatpush1.msra.mxu0 %v691
    %4120 = vmatprep.subr.mxu0 0.0
    %4121 = vmatpush1.msra.mxu0 %v688
    %4122 = vmatprep.subr.mxu0 0.0
    %4123 = vmatpush1.msra.mxu0 %v685
    %4124 = vmatprep.subr.mxu0 0.0
    %4125 = vmatpush1.msra.mxu0 %v682
    %4126 = vmatprep.subr.mxu0 0.0
    %4127 = vmatpush1.msra.mxu0 %v679
    %4128 = vmatprep.subr.mxu0 0.0
    %4129 = vmatpush1.msra.mxu0 %v676
    %4130 = vmatprep.subr.mxu0 0.0
    %4131 = vmatpush1.msra.mxu0 %v673
    %4132 = vmatprep.subr.mxu0 0.0
    %4133 = vmatpush1.msra.mxu0 %v670
    %4134 = vmatprep.subr.mxu0 0.0
    %4135 = vmatpush1.msra.mxu0 %v667
    %4136 = vmatprep.subr.mxu0 0.0
    %4137 = vmatpush1.msra.mxu0 %v664
    %4138 = vmatprep.subr.mxu0 0.0
    %4139 = vmatpush1.msra.mxu0 %v661
    %4140 = vmatprep.subr.mxu0 0.0
    %4141 = vmatpush1.msra.mxu0 %v658
    %4142 = vmatprep.subr.mxu0 0.0
    %4143 = vmatpush1.msra.mxu0 %v655
    %4144 = vmatprep.subr.mxu0 0.0
    %4145 = vmatpush1.msra.mxu0 %v652
    %4146 = vmatprep.subr.mxu0 0.0
    %4147 = vmatpush1.msra.mxu0 %v649
    %4148 = vmatprep.subr.mxu0 0.0
    %4149 = vmatpush2.msra.mxu0 0.0
    %4150 = vmatprep.subr.mxu0 0.0
    %4151 = vmatpush2.msra.mxu0 0.0
    %4152 = vmatprep.subr.mxu0 0.0
    %4153 = vmatpush2.msra.mxu0 0.0
    %4154 = vmatprep.subr.mxu0 0.0
    %4155 = vmatpush2.msra.mxu0 0.0
    %4156 = vmatprep.subr.mxu0 0.0
    %4157 = vmatpush2.msra.mxu0 0.0
    %4158 = vmatprep.subr.mxu0 0.0
    %4159 = vmatpush2.msra.mxu0 0.0
    %4160 = vmatprep.subr.mxu0 0.0
    %4161 = vmatpush2.msra.mxu0 0.0
    %4162 = vmatprep.subr.mxu0 0.0
    %4163 = vmatpush2.msra.mxu0 0.0
    %4164 = vmatprep.subr.mxu0 0.0
    %4165 = vmatpush2.msra.mxu0 0.0
    %4166 = vmatprep.subr.mxu0 0.0
    %4167 = vmatpush2.msra.mxu0 0.0
    %4168 = vmatprep.subr.mxu0 0.0
    %4169 = vmatpush2.msra.mxu0 0.0
    %4170 = vmatprep.subr.mxu0 0.0
    %4171 = vmatpush2.msra.mxu0 0.0
    %4172 = vmatprep.subr.mxu0 0.0
    %4173 = vmatpush2.msra.mxu0 0.0
    %4174 = vmatprep.subr.mxu0 0.0
    %4175 = vmatpush2.msra.mxu0 0.0
    %4176 = vmatprep.subr.mxu0 0.0
    %4177 = vmatpush2.msra.mxu0 0.0
    %4178 = vmatprep.subr.mxu0 0.0
    %4179 = vmatpush2.msra.mxu0 0.0
    %4180 = vmatprep.mubr.f32.mxu0 0.0
    %4181 = vmatmul.mubr.f32.gmra.mxu0 %v3011
    %v4182 = vpop.f32.mrf.mxu0
    %v4183 = vadd.f32 %v804, %v4182
    %v4184 = vpop.f32.mrf.mxu0
    %4185 = vdwg.mxu0
    %v4186 = vadd.f32 %v4042, %v4112
    %v4187 = vxor.u32 %v4186, 2147483648
    %v4188 = vmul.f32 %v4187, 1.442695
    %v4189 = vpow.pop %v4188
    %v4190 = vadd.f32 %v4189, 1.0
    %v4191 = vrcp.pop %v4190
    %v4192 = vmul.f32 1.0, %v4191
    %v4193 = vadd.f32 %v4043, %v4114
    %v4194 = vxor.u32 %v4193, 2147483648
    %v4195 = vmul.f32 %v4194, 1.442695
    %v4196 = vpow.pop %v4195
    %v4197 = vadd.f32 %v4196, 1.0
    %v4198 = vrcp.pop %v4197
    %v4199 = vmul.f32 1.0, %v4198
    %v4200 = vmul.f32 %v4192, %v4183
    %v4201 = vadd.f32 %v4044, %v4200
    %v4202 = vtanh.pop %v4201
    %v4203 = vsub.f32 1.0, %v4199
    %v4204 = vmul.f32 %v4203, %v4202
    %v4205 = vmul.f32 %v4199, %v3011
    %v4206 = vadd.f32 %v4204, %v4205
    %4207 = vmatprep.subr.mxu0 %v741
    %4208 = vmatpush1.msra.mxu0 %v740
    %4209 = vmatprep.subr.mxu0 %v738
    %4210 = vmatpush1.msra.mxu0 %v737
    %4211 = vmatprep.subr.mxu0 %v735
    %4212 = vmatpush1.msra.mxu0 %v734
    %4213 = vmatprep.subr.mxu0 %v732
    %4214 = vmatpush1.msra.mxu0 %v731
    %4215 = vmatprep.subr.mxu0 %v729
    %4216 = vmatpush1.msra.mxu0 %v728
    %4217 = vmatprep.subr.mxu0 %v726
    %4218 = vmatpush1.msra.mxu0 %v725
    %4219 = vmatprep.subr.mxu0 %v723
    %4220 = vmatpush1.msra.mxu0 %v722
    %4221 = vmatprep.subr.mxu0 %v720
    %4222 = vmatpush1.msra.mxu0 %v719
    %4223 = vmatprep.subr.mxu0 %v717
    %4224 = vmatpush1.msra.mxu0 %v716
    %4225 = vmatprep.subr.mxu0 %v714
    %4226 = vmatpush1.msra.mxu0 %v713
    %4227 = vmatprep.subr.mxu0 %v711
    %4228 = vmatpush1.msra.mxu0 %v710
    %4229 = vmatprep.subr.mxu0 %v708
    %4230 = vmatpush1.msra.mxu0 %v707
    %4231 = vmatprep.subr.mxu0 %v705
    %4232 = vmatpush1.msra.mxu0 %v704
    %4233 = vmatprep.subr.mxu0 %v702
    %4234 = vmatpush1.msra.mxu0 %v701
    %4235 = vmatprep.subr.mxu0 %v699
    %4236 = vmatpush1.msra.mxu0 %v698
    %4237 = vmatprep.subr.mxu0 %v696
    %4238 = vmatpush1.msra.mxu0 %v695
    %4239 = vmatprep.subr.mxu0 0.0
    %4240 = vmatpush2.msra.mxu0 0.0
    %4241 = vmatprep.subr.mxu0 0.0
    %4242 = vmatpush2.msra.mxu0 0.0
    %4243 = vmatprep.subr.mxu0 0.0
    %4244 = vmatpush2.msra.mxu0 0.0
    %4245 = vmatprep.subr.mxu0 0.0
    %4246 = vmatpush2.msra.mxu0 0.0
    %4247 = vmatprep.subr.mxu0 0.0
    %4248 = vmatpush2.msra.mxu0 0.0
    %4249 = vmatprep.subr.mxu0 0.0
    %4250 = vmatpush2.msra.mxu0 0.0
    %4251 = vmatprep.subr.mxu0 0.0
    %4252 = vmatpush2.msra.mxu0 0.0
    %4253 = vmatprep.subr.mxu0 0.0
    %4254 = vmatpush2.msra.mxu0 0.0
    %4255 = vmatprep.subr.mxu0 0.0
    %4256 = vmatpush2.msra.mxu0 0.0
    %4257 = vmatprep.subr.mxu0 0.0
    %4258 = vmatpush2.msra.mxu0 0.0
    %4259 = vmatprep.subr.mxu0 0.0
    %4260 = vmatpush2.msra.mxu0 0.0
    %4261 = vmatprep.subr.mxu0 0.0
    %4262 = vmatpush2.msra.mxu0 0.0
    %4263 = vmatprep.subr.mxu0 0.0
    %4264 = vmatpush2.msra.mxu0 0.0
    %4265 = vmatprep.subr.mxu0 0.0
    %4266 = vmatpush2.msra.mxu0 0.0
    %4267 = vmatprep.subr.mxu0 0.0
    %4268 = vmatpush2.msra.mxu0 0.0
    %4269 = vmatprep.subr.mxu0 0.0
    %4270 = vmatpush2.msra.mxu0 0.0
    %4271 = vmatprep.mubr.f32.mxu0 0.0
    %4272 = vmatmul.mubr.f32.gmra.mxu0 %v4206
    %v4273 = vpop.f32.mrf.mxu0
    %v4274 = vadd.f32 %v813, %v4273
    %v4275 = vpop.f32.mrf.mxu0
    %v4276 = vadd.f32 %v817, %v4275
    %4277 = vdwg.mxu0
    %4278 = vmatprep.subr.mxu0 0.0
    %4279 = vmatpush1.msra.mxu0 %v742
    %4280 = vmatprep.subr.mxu0 0.0
    %4281 = vmatpush1.msra.mxu0 %v739
    %4282 = vmatprep.subr.mxu0 0.0
    %4283 = vmatpush1.msra.mxu0 %v736
    %4284 = vmatprep.subr.mxu0 0.0
    %4285 = vmatpush1.msra.mxu0 %v733
    %4286 = vmatprep.subr.mxu0 0.0
    %4287 = vmatpush1.msra.mxu0 %v730
    %4288 = vmatprep.subr.mxu0 0.0
    %4289 = vmatpush1.msra.mxu0 %v727
    %4290 = vmatprep.subr.mxu0 0.0
    %4291 = vmatpush1.msra.mxu0 %v724
    %4292 = vmatprep.subr.mxu0 0.0
    %4293 = vmatpush1.msra.mxu0 %v721
    %4294 = vmatprep.subr.mxu0 0.0
    %4295 = vmatpush1.msra.mxu0 %v718
    %4296 = vmatprep.subr.mxu0 0.0
    %4297 = vmatpush1.msra.mxu0 %v715
    %4298 = vmatprep.subr.mxu0 0.0
    %4299 = vmatpush1.msra.mxu0 %v712
    %4300 = vmatprep.subr.mxu0 0.0
    %4301 = vmatpush1.msra.mxu0 %v709
    %4302 = vmatprep.subr.mxu0 0.0
    %4303 = vmatpush1.msra.mxu0 %v706
    %4304 = vmatprep.subr.mxu0 0.0
    %4305 = vmatpush1.msra.mxu0 %v703
    %4306 = vmatprep.subr.mxu0 0.0
    %4307 = vmatpush1.msra.mxu0 %v700
    %4308 = vmatprep.subr.mxu0 0.0
    %4309 = vmatpush1.msra.mxu0 %v697
    %4310 = vmatprep.subr.mxu0 0.0
    %4311 = vmatpush2.msra.mxu0 0.0
    %4312 = vmatprep.subr.mxu0 0.0
    %4313 = vmatpush2.msra.mxu0 0.0
    %4314 = vmatprep.subr.mxu0 0.0
    %4315 = vmatpush2.msra.mxu0 0.0
    %4316 = vmatprep.subr.mxu0 0.0
    %4317 = vmatpush2.msra.mxu0 0.0
    %4318 = vmatprep.subr.mxu0 0.0
    %4319 = vmatpush2.msra.mxu0 0.0
    %4320 = vmatprep.subr.mxu0 0.0
    %4321 = vmatpush2.msra.mxu0 0.0
    %4322 = vmatprep.subr.mxu0 0.0
    %4323 = vmatpush2.msra.mxu0 0.0
    %4324 = vmatprep.subr.mxu0 0.0
    %4325 = vmatpush2.msra.mxu0 0.0
    %4326 = vmatprep.subr.mxu0 0.0
    %4327 = vmatpush2.msra.mxu0 0.0
    %4328 = vmatprep.subr.mxu0 0.0
    %4329 = vmatpush2.msra.mxu0 0.0
    %4330 = vmatprep.subr.mxu0 0.0
    %4331 = vmatpush2.msra.mxu0 0.0
    %4332 = vmatprep.subr.mxu0 0.0
    %4333 = vmatpush2.msra.mxu0 0.0
    %4334 = vmatprep.subr.mxu0 0.0
    %4335 = vmatpush2.msra.mxu0 0.0
    %4336 = vmatprep.subr.mxu0 0.0
    %4337 = vmatpush2.msra.mxu0 0.0
    %4338 = vmatprep.subr.mxu0 0.0
    %4339 = vmatpush2.msra.mxu0 0.0
    %4340 = vmatprep.subr.mxu0 0.0
    %4341 = vmatpush2.msra.mxu0 0.0
    %4342 = vmatprep.mubr.f32.mxu0 0.0
    %4343 = vmatmul.mubr.f32.gmra.mxu0 %v4206
    %v4344 = vpop.f32.mrf.mxu0
    %v4345 = vadd.f32 %v821, %v4344
    %v4346 = vpop.f32.mrf.mxu0
    %4347 = vdwg.mxu0
    %4348 = vmatprep.subr.mxu0 %v789
    %4349 = vmatpush1.msra.mxu0 %v788
    %4350 = vmatprep.subr.mxu0 %v786
    %4351 = vmatpush1.msra.mxu0 %v785
    %4352 = vmatprep.subr.mxu0 %v783
    %4353 = vmatpush1.msra.mxu0 %v782
    %4354 = vmatprep.subr.mxu0 %v780
    %4355 = vmatpush1.msra.mxu0 %v779
    %4356 = vmatprep.subr.mxu0 %v777
    %4357 = vmatpush1.msra.mxu0 %v776
    %4358 = vmatprep.subr.mxu0 %v774
    %4359 = vmatpush1.msra.mxu0 %v773
    %4360 = vmatprep.subr.mxu0 %v771
    %4361 = vmatpush1.msra.mxu0 %v770
    %4362 = vmatprep.subr.mxu0 %v768
    %4363 = vmatpush1.msra.mxu0 %v767
    %4364 = vmatprep.subr.mxu0 %v765
    %4365 = vmatpush1.msra.mxu0 %v764
    %4366 = vmatprep.subr.mxu0 %v762
    %4367 = vmatpush1.msra.mxu0 %v761
    %4368 = vmatprep.subr.mxu0 %v759
    %4369 = vmatpush1.msra.mxu0 %v758
    %4370 = vmatprep.subr.mxu0 %v756
    %4371 = vmatpush1.msra.mxu0 %v755
    %4372 = vmatprep.subr.mxu0 %v753
    %4373 = vmatpush1.msra.mxu0 %v752
    %4374 = vmatprep.subr.mxu0 %v750
    %4375 = vmatpush1.msra.mxu0 %v749
    %4376 = vmatprep.subr.mxu0 %v747
    %4377 = vmatpush1.msra.mxu0 %v746
    %4378 = vmatprep.subr.mxu0 %v744
    %4379 = vmatpush1.msra.mxu0 %v743
    %4380 = vmatprep.subr.mxu0 0.0
    %4381 = vmatpush2.msra.mxu0 0.0
    %4382 = vmatprep.subr.mxu0 0.0
    %4383 = vmatpush2.msra.mxu0 0.0
    %4384 = vmatprep.subr.mxu0 0.0
    %4385 = vmatpush2.msra.mxu0 0.0
    %4386 = vmatprep.subr.mxu0 0.0
    %4387 = vmatpush2.msra.mxu0 0.0
    %4388 = vmatprep.subr.mxu0 0.0
    %4389 = vmatpush2.msra.mxu0 0.0
    %4390 = vmatprep.subr.mxu0 0.0
    %4391 = vmatpush2.msra.mxu0 0.0
    %4392 = vmatprep.subr.mxu0 0.0
    %4393 = vmatpush2.msra.mxu0 0.0
    %4394 = vmatprep.subr.mxu0 0.0
    %4395 = vmatpush2.msra.mxu0 0.0
    %4396 = vmatprep.subr.mxu0 0.0
    %4397 = vmatpush2.msra.mxu0 0.0
    %4398 = vmatprep.subr.mxu0 0.0
    %4399 = vmatpush2.msra.mxu0 0.0
    %4400 = vmatprep.subr.mxu0 0.0
    %4401 = vmatpush2.msra.mxu0 0.0
    %4402 = vmatprep.subr.mxu0 0.0
    %4403 = vmatpush2.msra.mxu0 0.0
    %4404 = vmatprep.subr.mxu0 0.0
    %4405 = vmatpush2.msra.mxu0 0.0
    %4406 = vmatprep.subr.mxu0 0.0
    %4407 = vmatpush2.msra.mxu0 0.0
    %4408 = vmatprep.subr.mxu0 0.0
    %4409 = vmatpush2.msra.mxu0 0.0
    %4410 = vmatprep.subr.mxu0 0.0
    %4411 = vmatpush2.msra.mxu0 0.0
    %4412 = vmatprep.mubr.f32.mxu0 0.0
    %4413 = vmatmul.mubr.f32.gmra.mxu0 %v3314
    %v4414 = vpop.f32.mrf.mxu0
    %v4415 = vadd.f32 %v830, %v4414
    %v4416 = vpop.f32.mrf.mxu0
    %v4417 = vadd.f32 %v834, %v4416
    %4418 = vdwg.mxu0
    %4419 = vmatprep.subr.mxu0 0.0
    %4420 = vmatpush1.msra.mxu0 %v790
    %4421 = vmatprep.subr.mxu0 0.0
    %4422 = vmatpush1.msra.mxu0 %v787
    %4423 = vmatprep.subr.mxu0 0.0
    %4424 = vmatpush1.msra.mxu0 %v784
    %4425 = vmatprep.subr.mxu0 0.0
    %4426 = vmatpush1.msra.mxu0 %v781
    %4427 = vmatprep.subr.mxu0 0.0
    %4428 = vmatpush1.msra.mxu0 %v778
    %4429 = vmatprep.subr.mxu0 0.0
    %4430 = vmatpush1.msra.mxu0 %v775
    %4431 = vmatprep.subr.mxu0 0.0
    %4432 = vmatpush1.msra.mxu0 %v772
    %4433 = vmatprep.subr.mxu0 0.0
    %4434 = vmatpush1.msra.mxu0 %v769
    %4435 = vmatprep.subr.mxu0 0.0
    %4436 = vmatpush1.msra.mxu0 %v766
    %4437 = vmatprep.subr.mxu0 0.0
    %4438 = vmatpush1.msra.mxu0 %v763
    %4439 = vmatprep.subr.mxu0 0.0
    %4440 = vmatpush1.msra.mxu0 %v760
    %4441 = vmatprep.subr.mxu0 0.0
    %4442 = vmatpush1.msra.mxu0 %v757
    %4443 = vmatprep.subr.mxu0 0.0
    %4444 = vmatpush1.msra.mxu0 %v754
    %4445 = vmatprep.subr.mxu0 0.0
    %4446 = vmatpush1.msra.mxu0 %v751
    %4447 = vmatprep.subr.mxu0 0.0
    %4448 = vmatpush1.msra.mxu0 %v748
    %4449 = vmatprep.subr.mxu0 0.0
    %4450 = vmatpush1.msra.mxu0 %v745
    %4451 = vmatprep.subr.mxu0 0.0
    %4452 = vmatpush2.msra.mxu0 0.0
    %4453 = vmatprep.subr.mxu0 0.0
    %4454 = vmatpush2.msra.mxu0 0.0
    %4455 = vmatprep.subr.mxu0 0.0
    %4456 = vmatpush2.msra.mxu0 0.0
    %4457 = vmatprep.subr.mxu0 0.0
    %4458 = vmatpush2.msra.mxu0 0.0
    %4459 = vmatprep.subr.mxu0 0.0
    %4460 = vmatpush2.msra.mxu0 0.0
    %4461 = vmatprep.subr.mxu0 0.0
    %4462 = vmatpush2.msra.mxu0 0.0
    %4463 = vmatprep.subr.mxu0 0.0
    %4464 = vmatpush2.msra.mxu0 0.0
    %4465 = vmatprep.subr.mxu0 0.0
    %4466 = vmatpush2.msra.mxu0 0.0
    %4467 = vmatprep.subr.mxu0 0.0
    %4468 = vmatpush2.msra.mxu0 0.0
    %4469 = vmatprep.subr.mxu0 0.0
    %4470 = vmatpush2.msra.mxu0 0.0
    %4471 = vmatprep.subr.mxu0 0.0
    %4472 = vmatpush2.msra.mxu0 0.0
    %4473 = vmatprep.subr.mxu0 0.0
    %4474 = vmatpush2.msra.mxu0 0.0
    %4475 = vmatprep.subr.mxu0 0.0
    %4476 = vmatpush2.msra.mxu0 0.0
    %4477 = vmatprep.subr.mxu0 0.0
    %4478 = vmatpush2.msra.mxu0 0.0
    %4479 = vmatprep.subr.mxu0 0.0
    %4480 = vmatpush2.msra.mxu0 0.0
    %4481 = vmatprep.subr.mxu0 0.0
    %4482 = vmatpush2.msra.mxu0 0.0
    %4483 = vmatprep.mubr.f32.mxu0 0.0
    %4484 = vmatmul.mubr.f32.gmra.mxu0 %v3314
    %v4485 = vpop.f32.mrf.mxu0
    %v4486 = vadd.f32 %v838, %v4485
    %v4487 = vpop.f32.mrf.mxu0
    %4488 = vdwg.mxu0
    %v4489 = vadd.f32 %v4274, %v4415
    %v4490 = vxor.u32 %v4489, 2147483648
    %v4491 = vmul.f32 %v4490, 1.442695
    %v4492 = vpow.pop %v4491
    %v4493 = vadd.f32 %v4492, 1.0
    %v4494 = vrcp.pop %v4493
    %v4495 = vmul.f32 1.0, %v4494
    %v4496 = vadd.f32 %v4276, %v4417
    %v4497 = vxor.u32 %v4496, 2147483648
    %v4498 = vmul.f32 %v4497, 1.442695
    %v4499 = vpow.pop %v4498
    %v4500 = vadd.f32 %v4499, 1.0
    %v4501 = vrcp.pop %v4500
    %v4502 = vmul.f32 1.0, %v4501
    %v4503 = vmul.f32 %v4495, %v4486
    %v4504 = vadd.f32 %v4345, %v4503
    %v4505 = vtanh.pop %v4504
    %v4506 = vsub.f32 1.0, %v4502
    %v4507 = vmul.f32 %v4506, %v4505
    %v4508 = vmul.f32 %v4502, %v3314
    %v4509 = vadd.f32 %v4507, %v4508
    %4510 = vst [vmem:[#allocation2 + $0x10] sm:$0xff] %v4509
    %4511 = vmatprep.subr.mxu0 0.0
    %4512 = vmatpush1.msra.mxu0 %v597
    %4513 = vmatprep.subr.mxu0 0.0
    %4514 = vmatpush1.msra.mxu0 %v596
    %4515 = vmatprep.subr.mxu0 0.0
    %4516 = vmatpush1.msra.mxu0 %v595
    %4517 = vmatprep.subr.mxu0 0.0
    %4518 = vmatpush1.msra.mxu0 %v594
    %4519 = vmatprep.subr.mxu0 0.0
    %4520 = vmatpush1.msra.mxu0 %v593
    %4521 = vmatprep.subr.mxu0 0.0
    %4522 = vmatpush1.msra.mxu0 %v592
    %4523 = vmatprep.subr.mxu0 0.0
    %4524 = vmatpush1.msra.mxu0 %v591
    %4525 = vmatprep.subr.mxu0 0.0
    %4526 = vmatpush1.msra.mxu0 %v590
    %4527 = vmatprep.subr.mxu0 0.0
    %4528 = vmatpush1.msra.mxu0 %v589
    %4529 = vmatprep.subr.mxu0 0.0
    %4530 = vmatpush1.msra.mxu0 %v588
    %4531 = vmatprep.subr.mxu0 0.0
    %4532 = vmatpush1.msra.mxu0 %v587
    %4533 = vmatprep.subr.mxu0 0.0
    %4534 = vmatpush1.msra.mxu0 %v586
    %4535 = vmatprep.subr.mxu0 0.0
    %4536 = vmatpush1.msra.mxu0 %v585
    %4537 = vmatprep.subr.mxu0 0.0
    %4538 = vmatpush1.msra.mxu0 %v584
    %4539 = vmatprep.subr.mxu0 0.0
    %4540 = vmatpush1.msra.mxu0 %v583
    %4541 = vmatprep.subr.mxu0 0.0
    %4542 = vmatpush1.msra.mxu0 %v582
    %4543 = vmatprep.subr.mxu0 0.0
    %4544 = vmatpush2.msra.mxu0 0.0
    %4545 = vmatprep.subr.mxu0 0.0
    %4546 = vmatpush2.msra.mxu0 0.0
    %4547 = vmatprep.subr.mxu0 0.0
    %4548 = vmatpush2.msra.mxu0 0.0
    %4549 = vmatprep.subr.mxu0 0.0
    %4550 = vmatpush2.msra.mxu0 0.0
    %4551 = vmatprep.subr.mxu0 0.0
    %4552 = vmatpush2.msra.mxu0 0.0
    %4553 = vmatprep.subr.mxu0 0.0
    %4554 = vmatpush2.msra.mxu0 0.0
    %4555 = vmatprep.subr.mxu0 0.0
    %4556 = vmatpush2.msra.mxu0 0.0
    %4557 = vmatprep.subr.mxu0 0.0
    %4558 = vmatpush2.msra.mxu0 0.0
    %4559 = vmatprep.subr.mxu0 0.0
    %4560 = vmatpush2.msra.mxu0 0.0
    %4561 = vmatprep.subr.mxu0 0.0
    %4562 = vmatpush2.msra.mxu0 0.0
    %4563 = vmatprep.subr.mxu0 0.0
    %4564 = vmatpush2.msra.mxu0 0.0
    %4565 = vmatprep.subr.mxu0 0.0
    %4566 = vmatpush2.msra.mxu0 0.0
    %4567 = vmatprep.subr.mxu0 0.0
    %4568 = vmatpush2.msra.mxu0 0.0
    %4569 = vmatprep.subr.mxu0 0.0
    %4570 = vmatpush2.msra.mxu0 0.0
    %4571 = vmatprep.subr.mxu0 0.0
    %4572 = vmatpush2.msra.mxu0 0.0
    %4573 = vmatprep.subr.mxu0 0.0
    %4574 = vmatpush2.msra.mxu0 0.0
    %4575 = vmatprep.mubr.f32.mxu0 0.0
    %4576 = vmatmul.mubr.f32.gmra.mxu0 %v4509
    %v4577 = vpop.f32.mrf.mxu0
    %v4578 = vadd.f32 0.0, %v4577
    %v4579 = vpop.f32.mrf.mxu0
    %4580 = vdwg.mxu0
    %v4582 = vcombine.high %v4578, %v4578
    %v4584 = vunpack.c.l.s4 1966171168
    %v4585 = vunpack.c.0.s8 %v4584
    %v4586 = vlaneseq
    %v4587 = vshrl.u32 %v4586, 7
    %v4588 = vsub.s32 %v4585, %v4587
    %v4589 = vrot.slane %v4578, %v4588
    %v4591 = vunpack.c.l.s4 1966171168
    %v4592 = vunpack.c.0.s8 %v4591
    %v4593 = vlaneseq
    %v4594 = vshrl.u32 %v4593, 7
    %v4595 = vsub.s32 %v4592, %v4594
    %v4596 = vrot.slane %v4582, %v4595
    %v4597 = vcombine.high %v4589, %v4589
    %v4598 = vcombine.high %v4596, %v4596
    %v4600 = vunpack.c.l.s4 1966171168
    %v4601 = vunpack.c.0.s8 %v4600
    %v4602 = vlaneseq
    %v4603 = vshrl.u32 %v4602, 7
    %v4604 = vsub.s32 %v4601, %v4603
    %v4605 = vrot.slane %v4589, %v4604
    %v4607 = vunpack.c.l.s4 1966171168
    %v4608 = vunpack.c.0.s8 %v4607
    %v4609 = vlaneseq
    %v4610 = vshrl.u32 %v4609, 7
    %v4611 = vsub.s32 %v4608, %v4610
    %v4612 = vrot.slane %v4596, %v4611
    %v4614 = vunpack.c.l.s4 1966171168
    %v4615 = vunpack.c.0.s8 %v4614
    %v4616 = vlaneseq
    %v4617 = vshrl.u32 %v4616, 7
    %v4618 = vsub.s32 %v4615, %v4617
    %v4619 = vrot.slane %v4597, %v4618
    %v4621 = vunpack.c.l.s4 1966171168
    %v4622 = vunpack.c.0.s8 %v4621
    %v4623 = vlaneseq
    %v4624 = vshrl.u32 %v4623, 7
    %v4625 = vsub.s32 %v4622, %v4624
    %v4626 = vrot.slane %v4598, %v4625
    %v4627 = vcombine.high %v4605, %v4605
    %v4628 = vcombine.high %v4612, %v4612
    %v4629 = vcombine.high %v4619, %v4619
    %v4630 = vcombine.high %v4626, %v4626
    %v4631 = vlaneseq
    %v4632 = vshrl.u32 %v4631, 7
    %v4633 = vsub.s32 0, %v4632
    %v4634 = vrot.slane %v4605, %v4633
    %v4635 = vlaneseq
    %v4636 = vshrl.u32 %v4635, 7
    %v4637 = vsub.s32 0, %v4636
    %v4638 = vrot.slane %v4619, %v4637
    %v4639 = vlaneseq
    %v4640 = vshrl.u32 %v4639, 7
    %v4641 = vsub.s32 0, %v4640
    %v4642 = vrot.slane %v4627, %v4641
    %v4643 = vlaneseq
    %v4644 = vshrl.u32 %v4643, 7
    %v4645 = vsub.s32 0, %v4644
    %v4646 = vrot.slane %v4629, %v4645
    %v4647 = vlaneseq
    %v4648 = vshrl.u32 %v4647, 7
    %v4649 = vsub.s32 0, %v4648
    %v4650 = vrot.slane %v4612, %v4649
    %v4651 = vlaneseq
    %v4652 = vshrl.u32 %v4651, 7
    %v4653 = vsub.s32 0, %v4652
    %v4654 = vrot.slane %v4626, %v4653
    %v4655 = vlaneseq
    %v4656 = vshrl.u32 %v4655, 7
    %v4657 = vsub.s32 0, %v4656
    %v4658 = vrot.slane %v4628, %v4657
    %v4659 = vlaneseq
    %v4660 = vshrl.u32 %v4659, 7
    %v4661 = vsub.s32 0, %v4660
    %v4662 = vrot.slane %v4630, %v4661
    %v4671 = vadd.f32 %v4634, %v300
    %v4672 = vadd.f32 %v4638, %v305
    %v4673 = vadd.f32 %v4642, %v310
    %v4674 = vadd.f32 %v4646, %v315
    %v4675 = vadd.f32 %v4650, %v320
    %v4676 = vadd.f32 %v4654, %v325
    %v4677 = vadd.f32 %v4658, %v330
    %v4678 = vadd.f32 %v4662, %v335
    %v4679 = vtanh.pop %v4671
    %v4680 = vtanh.pop %v4672
    %v4681 = vtanh.pop %v4673
    %v4682 = vtanh.pop %v4674
    %v4683 = vtanh.pop %v4675
    %v4684 = vtanh.pop %v4676
    %v4685 = vtanh.pop %v4677
    %v4686 = vtanh.pop %v4678
    %v4687 = vmul.f32 %v4679, %v1025
    %v4688 = vmul.f32 %v4680, %v1025
    %v4689 = vmul.f32 %v4681, %v1025
    %v4690 = vmul.f32 %v4682, %v1025
    %v4691 = vmul.f32 %v4683, %v1025
    %v4692 = vmul.f32 %v4684, %v1025
    %v4693 = vmul.f32 %v4685, %v1025
    %v4694 = vmul.f32 %v4686, %v1025
    %4695 = vadd.xlane.f32.xlu0 %v4687
    %v4696 = vpop.xlane.xlu0 %4695
    %4697 = vadd.xlane.f32.xlu0 %v4688
    %v4698 = vpop.xlane.xlu0 %4697
    %4699 = vadd.xlane.f32.xlu0 %v4689
    %v4700 = vpop.xlane.xlu0 %4699
    %4701 = vadd.xlane.f32.xlu0 %v4690
    %v4702 = vpop.xlane.xlu0 %4701
    %4703 = vadd.xlane.f32.xlu0 %v4691
    %v4704 = vpop.xlane.xlu0 %4703
    %4705 = vadd.xlane.f32.xlu0 %v4692
    %v4706 = vpop.xlane.xlu0 %4705
    %4707 = vadd.xlane.f32.xlu0 %v4693
    %v4708 = vpop.xlane.xlu0 %4707
    %4709 = vadd.xlane.f32.xlu0 %v4694
    %v4710 = vpop.xlane.xlu0 %4709
    %v4711 = vadd.f32 %v4696, %v1058
    %v4712 = vadd.f32 %v4698, %v1065
    %v4713 = vadd.f32 %v4700, %v1072
    %v4714 = vadd.f32 %v4702, %v1079
    %v4715 = vadd.f32 %v4704, %v1086
    %v4716 = vadd.f32 %v4706, %v1093
    %v4717 = vadd.f32 %v4708, %v1100
    %v4718 = vadd.f32 %v4710, %v1107
    %4727 = vset.pattern.permute.xlu0 0
    %4728 = vperm.xlu0 %4727, %v4711
    %v4729 = vpop.permute.xlu0 %4728
    %4730 = vset.pattern.permute.xlu0 0
    %4731 = vperm.xlu0 %4730, %v4712
    %v4732 = vpop.permute.xlu0 %4731
    %4733 = vset.pattern.permute.xlu0 0
    %4734 = vperm.xlu0 %4733, %v4713
    %v4735 = vpop.permute.xlu0 %4734
    %4736 = vset.pattern.permute.xlu0 0
    %4737 = vperm.xlu0 %4736, %v4714
    %v4738 = vpop.permute.xlu0 %4737
    %4739 = vset.pattern.permute.xlu0 0
    %4740 = vperm.xlu0 %4739, %v4715
    %v4741 = vpop.permute.xlu0 %4740
    %4742 = vset.pattern.permute.xlu0 0
    %4743 = vperm.xlu0 %4742, %v4716
    %v4744 = vpop.permute.xlu0 %4743
    %4745 = vset.pattern.permute.xlu0 0
    %4746 = vperm.xlu0 %4745, %v4717
    %v4747 = vpop.permute.xlu0 %4746
    %4748 = vset.pattern.permute.xlu0 0
    %4749 = vperm.xlu0 %4748, %v4718
    %v4750 = vpop.permute.xlu0 %4749
    %v4751 = vlaneseq
    %v4752 = vshrl.u32 %v4751, 7
    %v4753 = vsub.s32 %v1157, %v4752
    %v4754 = vrot.slane %v4729, %v4753
    %v4755 = vlaneseq
    %v4756 = vshrl.u32 %v4755, 7
    %v4757 = vsub.s32 %v1157, %v4756
    %v4758 = vrot.slane %v4732, %v4757
    %v4759 = vlaneseq
    %v4760 = vshrl.u32 %v4759, 7
    %v4761 = vsub.s32 %v1157, %v4760
    %v4762 = vrot.slane %v4735, %v4761
    %v4763 = vlaneseq
    %v4764 = vshrl.u32 %v4763, 7
    %v4765 = vsub.s32 %v1157, %v4764
    %v4766 = vrot.slane %v4738, %v4765
    %v4767 = vlaneseq
    %v4768 = vshrl.u32 %v4767, 7
    %v4769 = vsub.s32 %v1157, %v4768
    %v4770 = vrot.slane %v4741, %v4769
    %v4771 = vlaneseq
    %v4772 = vshrl.u32 %v4771, 7
    %v4773 = vsub.s32 %v1157, %v4772
    %v4774 = vrot.slane %v4744, %v4773
    %v4775 = vlaneseq
    %v4776 = vshrl.u32 %v4775, 7
    %v4777 = vsub.s32 %v1157, %v4776
    %v4778 = vrot.slane %v4747, %v4777
    %v4779 = vlaneseq
    %v4780 = vshrl.u32 %v4779, 7
    %v4781 = vsub.s32 %v1157, %v4780
    %v4782 = vrot.slane %v4750, %v4781
    %v4783 = vsel %vm1190, %v4758, %v4754
    %v4784 = vsel %vm1192, %v4762, %v4783
    %v4785 = vsel %vm1194, %v4766, %v4784
    %v4786 = vsel %vm1196, %v4770, %v4785
    %v4787 = vsel %vm1198, %v4774, %v4786
    %v4788 = vsel %vm1200, %v4778, %v4787
    %v4789 = vsel %vm1202, %v4782, %v4788
    %v4791 = vsel %vm1205, %v4789, -inf
    %4792 = vmax.xlane.f32.xlu0 %v4791
    %v4793 = vpop.xlane.xlu0 %4792
    %v4795 = vlaneseq
    %v4796 = vshrl.u32 %v4795, 7
    %v4797 = vsub.s32 0, %v4796
    %v4798 = vrot.slane %v4793, %v4797
    %v4799 = vlaneseq
    %v4800 = vshrl.u32 %v4799, 7
    %v4801 = vsub.s32 1, %v4800
    %v4802 = vrot.slane %v4793, %v4801
    %v4803 = vlaneseq
    %v4804 = vshrl.u32 %v4803, 7
    %v4805 = vsub.s32 2, %v4804
    %v4806 = vrot.slane %v4793, %v4805
    %v4807 = vlaneseq
    %v4808 = vshrl.u32 %v4807, 7
    %v4809 = vsub.s32 3, %v4808
    %v4810 = vrot.slane %v4793, %v4809
    %v4811 = vlaneseq
    %v4812 = vshrl.u32 %v4811, 7
    %v4813 = vsub.s32 4, %v4812
    %v4814 = vrot.slane %v4793, %v4813
    %v4815 = vlaneseq
    %v4816 = vshrl.u32 %v4815, 7
    %v4817 = vsub.s32 5, %v4816
    %v4818 = vrot.slane %v4793, %v4817
    %v4819 = vlaneseq
    %v4820 = vshrl.u32 %v4819, 7
    %v4821 = vsub.s32 6, %v4820
    %v4822 = vrot.slane %v4793, %v4821
    %v4823 = vlaneseq
    %v4824 = vshrl.u32 %v4823, 7
    %v4825 = vsub.s32 7, %v4824
    %v4826 = vrot.slane %v4793, %v4825
    %v4835 = vsub.f32 %v4711, %v4798
    %v4836 = vsub.f32 %v4712, %v4802
    %v4837 = vsub.f32 %v4713, %v4806
    %v4838 = vsub.f32 %v4714, %v4810
    %v4839 = vsub.f32 %v4715, %v4814
    %v4840 = vsub.f32 %v4716, %v4818
    %v4841 = vsub.f32 %v4717, %v4822
    %v4842 = vsub.f32 %v4718, %v4826
    %v4843 = vmul.f32 %v4835, 1.442695
    %v4844 = vpow.pop %v4843
    %v4845 = vmul.f32 %v4836, 1.442695
    %v4846 = vpow.pop %v4845
    %v4847 = vmul.f32 %v4837, 1.442695
    %v4848 = vpow.pop %v4847
    %v4849 = vmul.f32 %v4838, 1.442695
    %v4850 = vpow.pop %v4849
    %v4851 = vmul.f32 %v4839, 1.442695
    %v4852 = vpow.pop %v4851
    %v4853 = vmul.f32 %v4840, 1.442695
    %v4854 = vpow.pop %v4853
    %v4855 = vmul.f32 %v4841, 1.442695
    %v4856 = vpow.pop %v4855
    %v4857 = vmul.f32 %v4842, 1.442695
    %v4858 = vpow.pop %v4857
    %4867 = vset.pattern.permute.xlu0 0
    %4868 = vperm.xlu0 %4867, %v4844
    %v4869 = vpop.permute.xlu0 %4868
    %4870 = vset.pattern.permute.xlu0 0
    %4871 = vperm.xlu0 %4870, %v4846
    %v4872 = vpop.permute.xlu0 %4871
    %4873 = vset.pattern.permute.xlu0 0
    %4874 = vperm.xlu0 %4873, %v4848
    %v4875 = vpop.permute.xlu0 %4874
    %4876 = vset.pattern.permute.xlu0 0
    %4877 = vperm.xlu0 %4876, %v4850
    %v4878 = vpop.permute.xlu0 %4877
    %4879 = vset.pattern.permute.xlu0 0
    %4880 = vperm.xlu0 %4879, %v4852
    %v4881 = vpop.permute.xlu0 %4880
    %4882 = vset.pattern.permute.xlu0 0
    %4883 = vperm.xlu0 %4882, %v4854
    %v4884 = vpop.permute.xlu0 %4883
    %4885 = vset.pattern.permute.xlu0 0
    %4886 = vperm.xlu0 %4885, %v4856
    %v4887 = vpop.permute.xlu0 %4886
    %4888 = vset.pattern.permute.xlu0 0
    %4889 = vperm.xlu0 %4888, %v4858
    %v4890 = vpop.permute.xlu0 %4889
    %v4891 = vlaneseq
    %v4892 = vshrl.u32 %v4891, 7
    %v4893 = vsub.s32 %v1157, %v4892
    %v4894 = vrot.slane %v4869, %v4893
    %v4895 = vlaneseq
    %v4896 = vshrl.u32 %v4895, 7
    %v4897 = vsub.s32 %v1157, %v4896
    %v4898 = vrot.slane %v4872, %v4897
    %v4899 = vlaneseq
    %v4900 = vshrl.u32 %v4899, 7
    %v4901 = vsub.s32 %v1157, %v4900
    %v4902 = vrot.slane %v4875, %v4901
    %v4903 = vlaneseq
    %v4904 = vshrl.u32 %v4903, 7
    %v4905 = vsub.s32 %v1157, %v4904
    %v4906 = vrot.slane %v4878, %v4905
    %v4907 = vlaneseq
    %v4908 = vshrl.u32 %v4907, 7
    %v4909 = vsub.s32 %v1157, %v4908
    %v4910 = vrot.slane %v4881, %v4909
    %v4911 = vlaneseq
    %v4912 = vshrl.u32 %v4911, 7
    %v4913 = vsub.s32 %v1157, %v4912
    %v4914 = vrot.slane %v4884, %v4913
    %v4915 = vlaneseq
    %v4916 = vshrl.u32 %v4915, 7
    %v4917 = vsub.s32 %v1157, %v4916
    %v4918 = vrot.slane %v4887, %v4917
    %v4919 = vlaneseq
    %v4920 = vshrl.u32 %v4919, 7
    %v4921 = vsub.s32 %v1157, %v4920
    %v4922 = vrot.slane %v4890, %v4921
    %v4923 = vsel %vm1190, %v4898, %v4894
    %v4924 = vsel %vm1192, %v4902, %v4923
    %v4925 = vsel %vm1194, %v4906, %v4924
    %v4926 = vsel %vm1196, %v4910, %v4925
    %v4927 = vsel %vm1198, %v4914, %v4926
    %v4928 = vsel %vm1200, %v4918, %v4927
    %v4929 = vsel %vm1202, %v4922, %v4928
    %v4931 = vsel %vm1205, %v4929, 0.0
    %4932 = vadd.xlane.f32.xlu0 %v4931
    %v4933 = vpop.xlane.xlu0 %4932
    %v4934 = vrcp.pop %v4933
    %v4936 = vlaneseq
    %v4937 = vshrl.u32 %v4936, 7
    %v4938 = vsub.s32 0, %v4937
    %v4939 = vrot.slane %v4934, %v4938
    %v4940 = vlaneseq
    %v4941 = vshrl.u32 %v4940, 7
    %v4942 = vsub.s32 1, %v4941
    %v4943 = vrot.slane %v4934, %v4942
    %v4944 = vlaneseq
    %v4945 = vshrl.u32 %v4944, 7
    %v4946 = vsub.s32 2, %v4945
    %v4947 = vrot.slane %v4934, %v4946
    %v4948 = vlaneseq
    %v4949 = vshrl.u32 %v4948, 7
    %v4950 = vsub.s32 3, %v4949
    %v4951 = vrot.slane %v4934, %v4950
    %v4952 = vlaneseq
    %v4953 = vshrl.u32 %v4952, 7
    %v4954 = vsub.s32 4, %v4953
    %v4955 = vrot.slane %v4934, %v4954
    %v4956 = vlaneseq
    %v4957 = vshrl.u32 %v4956, 7
    %v4958 = vsub.s32 5, %v4957
    %v4959 = vrot.slane %v4934, %v4958
    %v4960 = vlaneseq
    %v4961 = vshrl.u32 %v4960, 7
    %v4962 = vsub.s32 6, %v4961
    %v4963 = vrot.slane %v4934, %v4962
    %v4964 = vlaneseq
    %v4965 = vshrl.u32 %v4964, 7
    %v4966 = vsub.s32 7, %v4965
    %v4967 = vrot.slane %v4934, %v4966
    %v4976 = vmul.f32 %v4844, %v4939
    %v4977 = vmul.f32 %v4846, %v4943
    %v4978 = vmul.f32 %v4848, %v4947
    %v4979 = vmul.f32 %v4850, %v4951
    %v4980 = vmul.f32 %v4852, %v4955
    %v4981 = vmul.f32 %v4854, %v4959
    %v4982 = vmul.f32 %v4856, %v4963
    %v4983 = vmul.f32 %v4858, %v4967
    %4985 = vset.pattern.permute.xlu0 0
    %4986 = vperm.xlu0 %4985, %v4976
    %v4987 = vpop.permute.xlu0 %4986
    %4990 = vset.pattern.permute.xlu0 0
    %4991 = vperm.xlu0 %4990, %v4977
    %v4992 = vpop.permute.xlu0 %4991
    %4995 = vset.pattern.permute.xlu0 0
    %4996 = vperm.xlu0 %4995, %v4978
    %v4997 = vpop.permute.xlu0 %4996
    %5000 = vset.pattern.permute.xlu0 0
    %5001 = vperm.xlu0 %5000, %v4979
    %v5002 = vpop.permute.xlu0 %5001
    %5005 = vset.pattern.permute.xlu0 0
    %5006 = vperm.xlu0 %5005, %v4980
    %v5007 = vpop.permute.xlu0 %5006
    %5010 = vset.pattern.permute.xlu0 0
    %5011 = vperm.xlu0 %5010, %v4981
    %v5012 = vpop.permute.xlu0 %5011
    %5015 = vset.pattern.permute.xlu0 0
    %5016 = vperm.xlu0 %5015, %v4982
    %v5017 = vpop.permute.xlu0 %5016
    %5020 = vset.pattern.permute.xlu0 0
    %5021 = vperm.xlu0 %5020, %v4983
    %v5022 = vpop.permute.xlu0 %5021
    %v5024 = vmul.f32 %v4987, %v208
    %v5025 = vmul.f32 %v4992, %v209
    %v5026 = vmul.f32 %v4997, %v210
    %v5027 = vmul.f32 %v5002, %v211
    %v5028 = vmul.f32 %v5007, %v212
    %v5029 = vmul.f32 %v5012, %v213
    %v5030 = vmul.f32 %v5017, %v214
    %v5031 = vmul.f32 %v5022, %v215
    %v5032 = vrot.slane %v5024, 4
    %v5033 = vadd.f32 %v5024, %v5032
    %v5034 = vrot.slane %v5033, 2
    %v5035 = vadd.f32 %v5033, %v5034
    %v5036 = vrot.slane %v5035, 1
    %v5037 = vadd.f32 %v5035, %v5036
    %v5038 = vrot.slane %v5025, 4
    %v5039 = vadd.f32 %v5025, %v5038
    %v5040 = vrot.slane %v5039, 2
    %v5041 = vadd.f32 %v5039, %v5040
    %v5042 = vrot.slane %v5041, 1
    %v5043 = vadd.f32 %v5041, %v5042
    %v5044 = vrot.slane %v5026, 4
    %v5045 = vadd.f32 %v5026, %v5044
    %v5046 = vrot.slane %v5045, 2
    %v5047 = vadd.f32 %v5045, %v5046
    %v5048 = vrot.slane %v5047, 1
    %v5049 = vadd.f32 %v5047, %v5048
    %v5050 = vrot.slane %v5027, 4
    %v5051 = vadd.f32 %v5027, %v5050
    %v5052 = vrot.slane %v5051, 2
    %v5053 = vadd.f32 %v5051, %v5052
    %v5054 = vrot.slane %v5053, 1
    %v5055 = vadd.f32 %v5053, %v5054
    %v5056 = vrot.slane %v5028, 4
    %v5057 = vadd.f32 %v5028, %v5056
    %v5058 = vrot.slane %v5057, 2
    %v5059 = vadd.f32 %v5057, %v5058
    %v5060 = vrot.slane %v5059, 1
    %v5061 = vadd.f32 %v5059, %v5060
    %v5062 = vrot.slane %v5029, 4
    %v5063 = vadd.f32 %v5029, %v5062
    %v5064 = vrot.slane %v5063, 2
    %v5065 = vadd.f32 %v5063, %v5064
    %v5066 = vrot.slane %v5065, 1
    %v5067 = vadd.f32 %v5065, %v5066
    %v5068 = vrot.slane %v5030, 4
    %v5069 = vadd.f32 %v5030, %v5068
    %v5070 = vrot.slane %v5069, 2
    %v5071 = vadd.f32 %v5069, %v5070
    %v5072 = vrot.slane %v5071, 1
    %v5073 = vadd.f32 %v5071, %v5072
    %v5074 = vrot.slane %v5031, 4
    %v5075 = vadd.f32 %v5031, %v5074
    %v5076 = vrot.slane %v5075, 2
    %v5077 = vadd.f32 %v5075, %v5076
    %v5078 = vrot.slane %v5077, 1
    %v5079 = vadd.f32 %v5077, %v5078
    %v5088 = vsel %vm1190, %v5043, %v5037
    %v5089 = vsel %vm1192, %v5049, %v5088
    %v5090 = vsel %vm1194, %v5055, %v5089
    %v5091 = vsel %vm1196, %v5061, %v5090
    %v5092 = vsel %vm1198, %v5067, %v5091
    %v5093 = vsel %vm1200, %v5073, %v5092
    %v5094 = vsel %vm1202, %v5079, %v5093
    %5096 = vmatprep.subr.mxu0 %v645
    %5097 = vmatpush1.msra.mxu0 %v644
    %5098 = vmatprep.subr.mxu0 %v642
    %5099 = vmatpush1.msra.mxu0 %v641
    %5100 = vmatprep.subr.mxu0 %v639
    %5101 = vmatpush1.msra.mxu0 %v638
    %5102 = vmatprep.subr.mxu0 %v636
    %5103 = vmatpush1.msra.mxu0 %v635
    %5104 = vmatprep.subr.mxu0 %v633
    %5105 = vmatpush1.msra.mxu0 %v632
    %5106 = vmatprep.subr.mxu0 %v630
    %5107 = vmatpush1.msra.mxu0 %v629
    %5108 = vmatprep.subr.mxu0 %v627
    %5109 = vmatpush1.msra.mxu0 %v626
    %5110 = vmatprep.subr.mxu0 %v624
    %5111 = vmatpush1.msra.mxu0 %v623
    %5112 = vmatprep.subr.mxu0 %v621
    %5113 = vmatpush1.msra.mxu0 %v620
    %5114 = vmatprep.subr.mxu0 %v618
    %5115 = vmatpush1.msra.mxu0 %v617
    %5116 = vmatprep.subr.mxu0 %v615
    %5117 = vmatpush1.msra.mxu0 %v614
    %5118 = vmatprep.subr.mxu0 %v612
    %5119 = vmatpush1.msra.mxu0 %v611
    %5120 = vmatprep.subr.mxu0 %v609
    %5121 = vmatpush1.msra.mxu0 %v608
    %5122 = vmatprep.subr.mxu0 %v606
    %5123 = vmatpush1.msra.mxu0 %v605
    %5124 = vmatprep.subr.mxu0 %v603
    %5125 = vmatpush1.msra.mxu0 %v602
    %5126 = vmatprep.subr.mxu0 %v600
    %5127 = vmatpush1.msra.mxu0 %v599
    %5128 = vmatprep.subr.mxu0 0.0
    %5129 = vmatpush2.msra.mxu0 0.0
    %5130 = vmatprep.subr.mxu0 0.0
    %5131 = vmatpush2.msra.mxu0 0.0
    %5132 = vmatprep.subr.mxu0 0.0
    %5133 = vmatpush2.msra.mxu0 0.0
    %5134 = vmatprep.subr.mxu0 0.0
    %5135 = vmatpush2.msra.mxu0 0.0
    %5136 = vmatprep.subr.mxu0 0.0
    %5137 = vmatpush2.msra.mxu0 0.0
    %5138 = vmatprep.subr.mxu0 0.0
    %5139 = vmatpush2.msra.mxu0 0.0
    %5140 = vmatprep.subr.mxu0 0.0
    %5141 = vmatpush2.msra.mxu0 0.0
    %5142 = vmatprep.subr.mxu0 0.0
    %5143 = vmatpush2.msra.mxu0 0.0
    %5144 = vmatprep.subr.mxu0 0.0
    %5145 = vmatpush2.msra.mxu0 0.0
    %5146 = vmatprep.subr.mxu0 0.0
    %5147 = vmatpush2.msra.mxu0 0.0
    %5148 = vmatprep.subr.mxu0 0.0
    %5149 = vmatpush2.msra.mxu0 0.0
    %5150 = vmatprep.subr.mxu0 0.0
    %5151 = vmatpush2.msra.mxu0 0.0
    %5152 = vmatprep.subr.mxu0 0.0
    %5153 = vmatpush2.msra.mxu0 0.0
    %5154 = vmatprep.subr.mxu0 0.0
    %5155 = vmatpush2.msra.mxu0 0.0
    %5156 = vmatprep.subr.mxu0 0.0
    %5157 = vmatpush2.msra.mxu0 0.0
    %5158 = vmatprep.subr.mxu0 0.0
    %5159 = vmatpush2.msra.mxu0 0.0
    %5160 = vmatprep.mubr.f32.mxu0 0.0
    %5161 = vmatmul.mubr.f32.gmra.mxu0 %v5094
    %v5162 = vpop.f32.mrf.mxu0
    %v5163 = vadd.f32 0.0, %v5162
    %v5164 = vpop.f32.mrf.mxu0
    %v5165 = vadd.f32 0.0, %v5164
    %5166 = vdwg.mxu0
    %5167 = vmatprep.subr.mxu0 0.0
    %5168 = vmatpush1.msra.mxu0 %v646
    %5169 = vmatprep.subr.mxu0 0.0
    %5170 = vmatpush1.msra.mxu0 %v643
    %5171 = vmatprep.subr.mxu0 0.0
    %5172 = vmatpush1.msra.mxu0 %v640
    %5173 = vmatprep.subr.mxu0 0.0
    %5174 = vmatpush1.msra.mxu0 %v637
    %5175 = vmatprep.subr.mxu0 0.0
    %5176 = vmatpush1.msra.mxu0 %v634
    %5177 = vmatprep.subr.mxu0 0.0
    %5178 = vmatpush1.msra.mxu0 %v631
    %5179 = vmatprep.subr.mxu0 0.0
    %5180 = vmatpush1.msra.mxu0 %v628
    %5181 = vmatprep.subr.mxu0 0.0
    %5182 = vmatpush1.msra.mxu0 %v625
    %5183 = vmatprep.subr.mxu0 0.0
    %5184 = vmatpush1.msra.mxu0 %v622
    %5185 = vmatprep.subr.mxu0 0.0
    %5186 = vmatpush1.msra.mxu0 %v619
    %5187 = vmatprep.subr.mxu0 0.0
    %5188 = vmatpush1.msra.mxu0 %v616
    %5189 = vmatprep.subr.mxu0 0.0
    %5190 = vmatpush1.msra.mxu0 %v613
    %5191 = vmatprep.subr.mxu0 0.0
    %5192 = vmatpush1.msra.mxu0 %v610
    %5193 = vmatprep.subr.mxu0 0.0
    %5194 = vmatpush1.msra.mxu0 %v607
    %5195 = vmatprep.subr.mxu0 0.0
    %5196 = vmatpush1.msra.mxu0 %v604
    %5197 = vmatprep.subr.mxu0 0.0
    %5198 = vmatpush1.msra.mxu0 %v601
    %5199 = vmatprep.subr.mxu0 0.0
    %5200 = vmatpush2.msra.mxu0 0.0
    %5201 = vmatprep.subr.mxu0 0.0
    %5202 = vmatpush2.msra.mxu0 0.0
    %5203 = vmatprep.subr.mxu0 0.0
    %5204 = vmatpush2.msra.mxu0 0.0
    %5205 = vmatprep.subr.mxu0 0.0
    %5206 = vmatpush2.msra.mxu0 0.0
    %5207 = vmatprep.subr.mxu0 0.0
    %5208 = vmatpush2.msra.mxu0 0.0
    %5209 = vmatprep.subr.mxu0 0.0
    %5210 = vmatpush2.msra.mxu0 0.0
    %5211 = vmatprep.subr.mxu0 0.0
    %5212 = vmatpush2.msra.mxu0 0.0
    %5213 = vmatprep.subr.mxu0 0.0
    %5214 = vmatpush2.msra.mxu0 0.0
    %5215 = vmatprep.subr.mxu0 0.0
    %5216 = vmatpush2.msra.mxu0 0.0
    %5217 = vmatprep.subr.mxu0 0.0
    %5218 = vmatpush2.msra.mxu0 0.0
    %5219 = vmatprep.subr.mxu0 0.0
    %5220 = vmatpush2.msra.mxu0 0.0
    %5221 = vmatprep.subr.mxu0 0.0
    %5222 = vmatpush2.msra.mxu0 0.0
    %5223 = vmatprep.subr.mxu0 0.0
    %5224 = vmatpush2.msra.mxu0 0.0
    %5225 = vmatprep.subr.mxu0 0.0
    %5226 = vmatpush2.msra.mxu0 0.0
    %5227 = vmatprep.subr.mxu0 0.0
    %5228 = vmatpush2.msra.mxu0 0.0
    %5229 = vmatprep.subr.mxu0 0.0
    %5230 = vmatpush2.msra.mxu0 0.0
    %5231 = vmatprep.mubr.f32.mxu0 0.0
    %5232 = vmatmul.mubr.f32.gmra.mxu0 %v5094
    %v5233 = vpop.f32.mrf.mxu0
    %v5234 = vadd.f32 0.0, %v5233
    %v5235 = vpop.f32.mrf.mxu0
    %5236 = vdwg.mxu0
    %v5237 = vadd.f32 %v471, %v5163
    %v5238 = vadd.f32 %v473, %v5165
    %v5239 = vadd.f32 %v569, %v5234
    %5240 = vmatprep.subr.mxu0 %v693
    %5241 = vmatpush1.msra.mxu0 %v692
    %5242 = vmatprep.subr.mxu0 %v690
    %5243 = vmatpush1.msra.mxu0 %v689
    %5244 = vmatprep.subr.mxu0 %v687
    %5245 = vmatpush1.msra.mxu0 %v686
    %5246 = vmatprep.subr.mxu0 %v684
    %5247 = vmatpush1.msra.mxu0 %v683
    %5248 = vmatprep.subr.mxu0 %v681
    %5249 = vmatpush1.msra.mxu0 %v680
    %5250 = vmatprep.subr.mxu0 %v678
    %5251 = vmatpush1.msra.mxu0 %v677
    %5252 = vmatprep.subr.mxu0 %v675
    %5253 = vmatpush1.msra.mxu0 %v674
    %5254 = vmatprep.subr.mxu0 %v672
    %5255 = vmatpush1.msra.mxu0 %v671
    %5256 = vmatprep.subr.mxu0 %v669
    %5257 = vmatpush1.msra.mxu0 %v668
    %5258 = vmatprep.subr.mxu0 %v666
    %5259 = vmatpush1.msra.mxu0 %v665
    %5260 = vmatprep.subr.mxu0 %v663
    %5261 = vmatpush1.msra.mxu0 %v662
    %5262 = vmatprep.subr.mxu0 %v660
    %5263 = vmatpush1.msra.mxu0 %v659
    %5264 = vmatprep.subr.mxu0 %v657
    %5265 = vmatpush1.msra.mxu0 %v656
    %5266 = vmatprep.subr.mxu0 %v654
    %5267 = vmatpush1.msra.mxu0 %v653
    %5268 = vmatprep.subr.mxu0 %v651
    %5269 = vmatpush1.msra.mxu0 %v650
    %5270 = vmatprep.subr.mxu0 %v648
    %5271 = vmatpush1.msra.mxu0 %v647
    %5272 = vmatprep.subr.mxu0 0.0
    %5273 = vmatpush2.msra.mxu0 0.0
    %5274 = vmatprep.subr.mxu0 0.0
    %5275 = vmatpush2.msra.mxu0 0.0
    %5276 = vmatprep.subr.mxu0 0.0
    %5277 = vmatpush2.msra.mxu0 0.0
    %5278 = vmatprep.subr.mxu0 0.0
    %5279 = vmatpush2.msra.mxu0 0.0
    %5280 = vmatprep.subr.mxu0 0.0
    %5281 = vmatpush2.msra.mxu0 0.0
    %5282 = vmatprep.subr.mxu0 0.0
    %5283 = vmatpush2.msra.mxu0 0.0
    %5284 = vmatprep.subr.mxu0 0.0
    %5285 = vmatpush2.msra.mxu0 0.0
    %5286 = vmatprep.subr.mxu0 0.0
    %5287 = vmatpush2.msra.mxu0 0.0
    %5288 = vmatprep.subr.mxu0 0.0
    %5289 = vmatpush2.msra.mxu0 0.0
    %5290 = vmatprep.subr.mxu0 0.0
    %5291 = vmatpush2.msra.mxu0 0.0
    %5292 = vmatprep.subr.mxu0 0.0
    %5293 = vmatpush2.msra.mxu0 0.0
    %5294 = vmatprep.subr.mxu0 0.0
    %5295 = vmatpush2.msra.mxu0 0.0
    %5296 = vmatprep.subr.mxu0 0.0
    %5297 = vmatpush2.msra.mxu0 0.0
    %5298 = vmatprep.subr.mxu0 0.0
    %5299 = vmatpush2.msra.mxu0 0.0
    %5300 = vmatprep.subr.mxu0 0.0
    %5301 = vmatpush2.msra.mxu0 0.0
    %5302 = vmatprep.subr.mxu0 0.0
    %5303 = vmatpush2.msra.mxu0 0.0
    %5304 = vmatprep.mubr.f32.mxu0 0.0
    %5305 = vmatmul.mubr.f32.gmra.mxu0 %v4206
    %v5306 = vpop.f32.mrf.mxu0
    %v5307 = vadd.f32 %v796, %v5306
    %v5308 = vpop.f32.mrf.mxu0
    %v5309 = vadd.f32 %v800, %v5308
    %5310 = vdwg.mxu0
    %5311 = vmatprep.subr.mxu0 0.0
    %5312 = vmatpush1.msra.mxu0 %v694
    %5313 = vmatprep.subr.mxu0 0.0
    %5314 = vmatpush1.msra.mxu0 %v691
    %5315 = vmatprep.subr.mxu0 0.0
    %5316 = vmatpush1.msra.mxu0 %v688
    %5317 = vmatprep.subr.mxu0 0.0
    %5318 = vmatpush1.msra.mxu0 %v685
    %5319 = vmatprep.subr.mxu0 0.0
    %5320 = vmatpush1.msra.mxu0 %v682
    %5321 = vmatprep.subr.mxu0 0.0
    %5322 = vmatpush1.msra.mxu0 %v679
    %5323 = vmatprep.subr.mxu0 0.0
    %5324 = vmatpush1.msra.mxu0 %v676
    %5325 = vmatprep.subr.mxu0 0.0
    %5326 = vmatpush1.msra.mxu0 %v673
    %5327 = vmatprep.subr.mxu0 0.0
    %5328 = vmatpush1.msra.mxu0 %v670
    %5329 = vmatprep.subr.mxu0 0.0
    %5330 = vmatpush1.msra.mxu0 %v667
    %5331 = vmatprep.subr.mxu0 0.0
    %5332 = vmatpush1.msra.mxu0 %v664
    %5333 = vmatprep.subr.mxu0 0.0
    %5334 = vmatpush1.msra.mxu0 %v661
    %5335 = vmatprep.subr.mxu0 0.0
    %5336 = vmatpush1.msra.mxu0 %v658
    %5337 = vmatprep.subr.mxu0 0.0
    %5338 = vmatpush1.msra.mxu0 %v655
    %5339 = vmatprep.subr.mxu0 0.0
    %5340 = vmatpush1.msra.mxu0 %v652
    %5341 = vmatprep.subr.mxu0 0.0
    %5342 = vmatpush1.msra.mxu0 %v649
    %5343 = vmatprep.subr.mxu0 0.0
    %5344 = vmatpush2.msra.mxu0 0.0
    %5345 = vmatprep.subr.mxu0 0.0
    %5346 = vmatpush2.msra.mxu0 0.0
    %5347 = vmatprep.subr.mxu0 0.0
    %5348 = vmatpush2.msra.mxu0 0.0
    %5349 = vmatprep.subr.mxu0 0.0
    %5350 = vmatpush2.msra.mxu0 0.0
    %5351 = vmatprep.subr.mxu0 0.0
    %5352 = vmatpush2.msra.mxu0 0.0
    %5353 = vmatprep.subr.mxu0 0.0
    %5354 = vmatpush2.msra.mxu0 0.0
    %5355 = vmatprep.subr.mxu0 0.0
    %5356 = vmatpush2.msra.mxu0 0.0
    %5357 = vmatprep.subr.mxu0 0.0
    %5358 = vmatpush2.msra.mxu0 0.0
    %5359 = vmatprep.subr.mxu0 0.0
    %5360 = vmatpush2.msra.mxu0 0.0
    %5361 = vmatprep.subr.mxu0 0.0
    %5362 = vmatpush2.msra.mxu0 0.0
    %5363 = vmatprep.subr.mxu0 0.0
    %5364 = vmatpush2.msra.mxu0 0.0
    %5365 = vmatprep.subr.mxu0 0.0
    %5366 = vmatpush2.msra.mxu0 0.0
    %5367 = vmatprep.subr.mxu0 0.0
    %5368 = vmatpush2.msra.mxu0 0.0
    %5369 = vmatprep.subr.mxu0 0.0
    %5370 = vmatpush2.msra.mxu0 0.0
    %5371 = vmatprep.subr.mxu0 0.0
    %5372 = vmatpush2.msra.mxu0 0.0
    %5373 = vmatprep.subr.mxu0 0.0
    %5374 = vmatpush2.msra.mxu0 0.0
    %5375 = vmatprep.mubr.f32.mxu0 0.0
    %5376 = vmatmul.mubr.f32.gmra.mxu0 %v4206
    %v5377 = vpop.f32.mrf.mxu0
    %v5378 = vadd.f32 %v804, %v5377
    %v5379 = vpop.f32.mrf.mxu0
    %5380 = vdwg.mxu0
    %v5381 = vadd.f32 %v5237, %v5307
    %v5382 = vxor.u32 %v5381, 2147483648
    %v5383 = vmul.f32 %v5382, 1.442695
    %v5384 = vpow.pop %v5383
    %v5385 = vadd.f32 %v5384, 1.0
    %v5386 = vrcp.pop %v5385
    %v5387 = vmul.f32 1.0, %v5386
    %v5388 = vadd.f32 %v5238, %v5309
    %v5389 = vxor.u32 %v5388, 2147483648
    %v5390 = vmul.f32 %v5389, 1.442695
    %v5391 = vpow.pop %v5390
    %v5392 = vadd.f32 %v5391, 1.0
    %v5393 = vrcp.pop %v5392
    %v5394 = vmul.f32 1.0, %v5393
    %v5395 = vmul.f32 %v5387, %v5378
    %v5396 = vadd.f32 %v5239, %v5395
    %v5397 = vtanh.pop %v5396
    %v5398 = vsub.f32 1.0, %v5394
    %v5399 = vmul.f32 %v5398, %v5397
    %v5400 = vmul.f32 %v5394, %v4206
    %v5401 = vadd.f32 %v5399, %v5400
    %5402 = vmatprep.subr.mxu0 %v741
    %5403 = vmatpush1.msra.mxu0 %v740
    %5404 = vmatprep.subr.mxu0 %v738
    %5405 = vmatpush1.msra.mxu0 %v737
    %5406 = vmatprep.subr.mxu0 %v735
    %5407 = vmatpush1.msra.mxu0 %v734
    %5408 = vmatprep.subr.mxu0 %v732
    %5409 = vmatpush1.msra.mxu0 %v731
    %5410 = vmatprep.subr.mxu0 %v729
    %5411 = vmatpush1.msra.mxu0 %v728
    %5412 = vmatprep.subr.mxu0 %v726
    %5413 = vmatpush1.msra.mxu0 %v725
    %5414 = vmatprep.subr.mxu0 %v723
    %5415 = vmatpush1.msra.mxu0 %v722
    %5416 = vmatprep.subr.mxu0 %v720
    %5417 = vmatpush1.msra.mxu0 %v719
    %5418 = vmatprep.subr.mxu0 %v717
    %5419 = vmatpush1.msra.mxu0 %v716
    %5420 = vmatprep.subr.mxu0 %v714
    %5421 = vmatpush1.msra.mxu0 %v713
    %5422 = vmatprep.subr.mxu0 %v711
    %5423 = vmatpush1.msra.mxu0 %v710
    %5424 = vmatprep.subr.mxu0 %v708
    %5425 = vmatpush1.msra.mxu0 %v707
    %5426 = vmatprep.subr.mxu0 %v705
    %5427 = vmatpush1.msra.mxu0 %v704
    %5428 = vmatprep.subr.mxu0 %v702
    %5429 = vmatpush1.msra.mxu0 %v701
    %5430 = vmatprep.subr.mxu0 %v699
    %5431 = vmatpush1.msra.mxu0 %v698
    %5432 = vmatprep.subr.mxu0 %v696
    %5433 = vmatpush1.msra.mxu0 %v695
    %5434 = vmatprep.subr.mxu0 0.0
    %5435 = vmatpush2.msra.mxu0 0.0
    %5436 = vmatprep.subr.mxu0 0.0
    %5437 = vmatpush2.msra.mxu0 0.0
    %5438 = vmatprep.subr.mxu0 0.0
    %5439 = vmatpush2.msra.mxu0 0.0
    %5440 = vmatprep.subr.mxu0 0.0
    %5441 = vmatpush2.msra.mxu0 0.0
    %5442 = vmatprep.subr.mxu0 0.0
    %5443 = vmatpush2.msra.mxu0 0.0
    %5444 = vmatprep.subr.mxu0 0.0
    %5445 = vmatpush2.msra.mxu0 0.0
    %5446 = vmatprep.subr.mxu0 0.0
    %5447 = vmatpush2.msra.mxu0 0.0
    %5448 = vmatprep.subr.mxu0 0.0
    %5449 = vmatpush2.msra.mxu0 0.0
    %5450 = vmatprep.subr.mxu0 0.0
    %5451 = vmatpush2.msra.mxu0 0.0
    %5452 = vmatprep.subr.mxu0 0.0
    %5453 = vmatpush2.msra.mxu0 0.0
    %5454 = vmatprep.subr.mxu0 0.0
    %5455 = vmatpush2.msra.mxu0 0.0
    %5456 = vmatprep.subr.mxu0 0.0
    %5457 = vmatpush2.msra.mxu0 0.0
    %5458 = vmatprep.subr.mxu0 0.0
    %5459 = vmatpush2.msra.mxu0 0.0
    %5460 = vmatprep.subr.mxu0 0.0
    %5461 = vmatpush2.msra.mxu0 0.0
    %5462 = vmatprep.subr.mxu0 0.0
    %5463 = vmatpush2.msra.mxu0 0.0
    %5464 = vmatprep.subr.mxu0 0.0
    %5465 = vmatpush2.msra.mxu0 0.0
    %5466 = vmatprep.mubr.f32.mxu0 0.0
    %5467 = vmatmul.mubr.f32.gmra.mxu0 %v5401
    %v5468 = vpop.f32.mrf.mxu0
    %v5469 = vadd.f32 %v813, %v5468
    %v5470 = vpop.f32.mrf.mxu0
    %v5471 = vadd.f32 %v817, %v5470
    %5472 = vdwg.mxu0
    %5473 = vmatprep.subr.mxu0 0.0
    %5474 = vmatpush1.msra.mxu0 %v742
    %5475 = vmatprep.subr.mxu0 0.0
    %5476 = vmatpush1.msra.mxu0 %v739
    %5477 = vmatprep.subr.mxu0 0.0
    %5478 = vmatpush1.msra.mxu0 %v736
    %5479 = vmatprep.subr.mxu0 0.0
    %5480 = vmatpush1.msra.mxu0 %v733
    %5481 = vmatprep.subr.mxu0 0.0
    %5482 = vmatpush1.msra.mxu0 %v730
    %5483 = vmatprep.subr.mxu0 0.0
    %5484 = vmatpush1.msra.mxu0 %v727
    %5485 = vmatprep.subr.mxu0 0.0
    %5486 = vmatpush1.msra.mxu0 %v724
    %5487 = vmatprep.subr.mxu0 0.0
    %5488 = vmatpush1.msra.mxu0 %v721
    %5489 = vmatprep.subr.mxu0 0.0
    %5490 = vmatpush1.msra.mxu0 %v718
    %5491 = vmatprep.subr.mxu0 0.0
    %5492 = vmatpush1.msra.mxu0 %v715
    %5493 = vmatprep.subr.mxu0 0.0
    %5494 = vmatpush1.msra.mxu0 %v712
    %5495 = vmatprep.subr.mxu0 0.0
    %5496 = vmatpush1.msra.mxu0 %v709
    %5497 = vmatprep.subr.mxu0 0.0
    %5498 = vmatpush1.msra.mxu0 %v706
    %5499 = vmatprep.subr.mxu0 0.0
    %5500 = vmatpush1.msra.mxu0 %v703
    %5501 = vmatprep.subr.mxu0 0.0
    %5502 = vmatpush1.msra.mxu0 %v700
    %5503 = vmatprep.subr.mxu0 0.0
    %5504 = vmatpush1.msra.mxu0 %v697
    %5505 = vmatprep.subr.mxu0 0.0
    %5506 = vmatpush2.msra.mxu0 0.0
    %5507 = vmatprep.subr.mxu0 0.0
    %5508 = vmatpush2.msra.mxu0 0.0
    %5509 = vmatprep.subr.mxu0 0.0
    %5510 = vmatpush2.msra.mxu0 0.0
    %5511 = vmatprep.subr.mxu0 0.0
    %5512 = vmatpush2.msra.mxu0 0.0
    %5513 = vmatprep.subr.mxu0 0.0
    %5514 = vmatpush2.msra.mxu0 0.0
    %5515 = vmatprep.subr.mxu0 0.0
    %5516 = vmatpush2.msra.mxu0 0.0
    %5517 = vmatprep.subr.mxu0 0.0
    %5518 = vmatpush2.msra.mxu0 0.0
    %5519 = vmatprep.subr.mxu0 0.0
    %5520 = vmatpush2.msra.mxu0 0.0
    %5521 = vmatprep.subr.mxu0 0.0
    %5522 = vmatpush2.msra.mxu0 0.0
    %5523 = vmatprep.subr.mxu0 0.0
    %5524 = vmatpush2.msra.mxu0 0.0
    %5525 = vmatprep.subr.mxu0 0.0
    %5526 = vmatpush2.msra.mxu0 0.0
    %5527 = vmatprep.subr.mxu0 0.0
    %5528 = vmatpush2.msra.mxu0 0.0
    %5529 = vmatprep.subr.mxu0 0.0
    %5530 = vmatpush2.msra.mxu0 0.0
    %5531 = vmatprep.subr.mxu0 0.0
    %5532 = vmatpush2.msra.mxu0 0.0
    %5533 = vmatprep.subr.mxu0 0.0
    %5534 = vmatpush2.msra.mxu0 0.0
    %5535 = vmatprep.subr.mxu0 0.0
    %5536 = vmatpush2.msra.mxu0 0.0
    %5537 = vmatprep.mubr.f32.mxu0 0.0
    %5538 = vmatmul.mubr.f32.gmra.mxu0 %v5401
    %v5539 = vpop.f32.mrf.mxu0
    %v5540 = vadd.f32 %v821, %v5539
    %v5541 = vpop.f32.mrf.mxu0
    %5542 = vdwg.mxu0
    %5543 = vmatprep.subr.mxu0 %v789
    %5544 = vmatpush1.msra.mxu0 %v788
    %5545 = vmatprep.subr.mxu0 %v786
    %5546 = vmatpush1.msra.mxu0 %v785
    %5547 = vmatprep.subr.mxu0 %v783
    %5548 = vmatpush1.msra.mxu0 %v782
    %5549 = vmatprep.subr.mxu0 %v780
    %5550 = vmatpush1.msra.mxu0 %v779
    %5551 = vmatprep.subr.mxu0 %v777
    %5552 = vmatpush1.msra.mxu0 %v776
    %5553 = vmatprep.subr.mxu0 %v774
    %5554 = vmatpush1.msra.mxu0 %v773
    %5555 = vmatprep.subr.mxu0 %v771
    %5556 = vmatpush1.msra.mxu0 %v770
    %5557 = vmatprep.subr.mxu0 %v768
    %5558 = vmatpush1.msra.mxu0 %v767
    %5559 = vmatprep.subr.mxu0 %v765
    %5560 = vmatpush1.msra.mxu0 %v764
    %5561 = vmatprep.subr.mxu0 %v762
    %5562 = vmatpush1.msra.mxu0 %v761
    %5563 = vmatprep.subr.mxu0 %v759
    %5564 = vmatpush1.msra.mxu0 %v758
    %5565 = vmatprep.subr.mxu0 %v756
    %5566 = vmatpush1.msra.mxu0 %v755
    %5567 = vmatprep.subr.mxu0 %v753
    %5568 = vmatpush1.msra.mxu0 %v752
    %5569 = vmatprep.subr.mxu0 %v750
    %5570 = vmatpush1.msra.mxu0 %v749
    %5571 = vmatprep.subr.mxu0 %v747
    %5572 = vmatpush1.msra.mxu0 %v746
    %5573 = vmatprep.subr.mxu0 %v744
    %5574 = vmatpush1.msra.mxu0 %v743
    %5575 = vmatprep.subr.mxu0 0.0
    %5576 = vmatpush2.msra.mxu0 0.0
    %5577 = vmatprep.subr.mxu0 0.0
    %5578 = vmatpush2.msra.mxu0 0.0
    %5579 = vmatprep.subr.mxu0 0.0
    %5580 = vmatpush2.msra.mxu0 0.0
    %5581 = vmatprep.subr.mxu0 0.0
    %5582 = vmatpush2.msra.mxu0 0.0
    %5583 = vmatprep.subr.mxu0 0.0
    %5584 = vmatpush2.msra.mxu0 0.0
    %5585 = vmatprep.subr.mxu0 0.0
    %5586 = vmatpush2.msra.mxu0 0.0
    %5587 = vmatprep.subr.mxu0 0.0
    %5588 = vmatpush2.msra.mxu0 0.0
    %5589 = vmatprep.subr.mxu0 0.0
    %5590 = vmatpush2.msra.mxu0 0.0
    %5591 = vmatprep.subr.mxu0 0.0
    %5592 = vmatpush2.msra.mxu0 0.0
    %5593 = vmatprep.subr.mxu0 0.0
    %5594 = vmatpush2.msra.mxu0 0.0
    %5595 = vmatprep.subr.mxu0 0.0
    %5596 = vmatpush2.msra.mxu0 0.0
    %5597 = vmatprep.subr.mxu0 0.0
    %5598 = vmatpush2.msra.mxu0 0.0
    %5599 = vmatprep.subr.mxu0 0.0
    %5600 = vmatpush2.msra.mxu0 0.0
    %5601 = vmatprep.subr.mxu0 0.0
    %5602 = vmatpush2.msra.mxu0 0.0
    %5603 = vmatprep.subr.mxu0 0.0
    %5604 = vmatpush2.msra.mxu0 0.0
    %5605 = vmatprep.subr.mxu0 0.0
    %5606 = vmatpush2.msra.mxu0 0.0
    %5607 = vmatprep.mubr.f32.mxu0 0.0
    %5608 = vmatmul.mubr.f32.gmra.mxu0 %v4509
    %v5609 = vpop.f32.mrf.mxu0
    %v5610 = vadd.f32 %v830, %v5609
    %v5611 = vpop.f32.mrf.mxu0
    %v5612 = vadd.f32 %v834, %v5611
    %5613 = vdwg.mxu0
    %5614 = vmatprep.subr.mxu0 0.0
    %5615 = vmatpush1.msra.mxu0 %v790
    %5616 = vmatprep.subr.mxu0 0.0
    %5617 = vmatpush1.msra.mxu0 %v787
    %5618 = vmatprep.subr.mxu0 0.0
    %5619 = vmatpush1.msra.mxu0 %v784
    %5620 = vmatprep.subr.mxu0 0.0
    %5621 = vmatpush1.msra.mxu0 %v781
    %5622 = vmatprep.subr.mxu0 0.0
    %5623 = vmatpush1.msra.mxu0 %v778
    %5624 = vmatprep.subr.mxu0 0.0
    %5625 = vmatpush1.msra.mxu0 %v775
    %5626 = vmatprep.subr.mxu0 0.0
    %5627 = vmatpush1.msra.mxu0 %v772
    %5628 = vmatprep.subr.mxu0 0.0
    %5629 = vmatpush1.msra.mxu0 %v769
    %5630 = vmatprep.subr.mxu0 0.0
    %5631 = vmatpush1.msra.mxu0 %v766
    %5632 = vmatprep.subr.mxu0 0.0
    %5633 = vmatpush1.msra.mxu0 %v763
    %5634 = vmatprep.subr.mxu0 0.0
    %5635 = vmatpush1.msra.mxu0 %v760
    %5636 = vmatprep.subr.mxu0 0.0
    %5637 = vmatpush1.msra.mxu0 %v757
    %5638 = vmatprep.subr.mxu0 0.0
    %5639 = vmatpush1.msra.mxu0 %v754
    %5640 = vmatprep.subr.mxu0 0.0
    %5641 = vmatpush1.msra.mxu0 %v751
    %5642 = vmatprep.subr.mxu0 0.0
    %5643 = vmatpush1.msra.mxu0 %v748
    %5644 = vmatprep.subr.mxu0 0.0
    %5645 = vmatpush1.msra.mxu0 %v745
    %5646 = vmatprep.subr.mxu0 0.0
    %5647 = vmatpush2.msra.mxu0 0.0
    %5648 = vmatprep.subr.mxu0 0.0
    %5649 = vmatpush2.msra.mxu0 0.0
    %5650 = vmatprep.subr.mxu0 0.0
    %5651 = vmatpush2.msra.mxu0 0.0
    %5652 = vmatprep.subr.mxu0 0.0
    %5653 = vmatpush2.msra.mxu0 0.0
    %5654 = vmatprep.subr.mxu0 0.0
    %5655 = vmatpush2.msra.mxu0 0.0
    %5656 = vmatprep.subr.mxu0 0.0
    %5657 = vmatpush2.msra.mxu0 0.0
    %5658 = vmatprep.subr.mxu0 0.0
    %5659 = vmatpush2.msra.mxu0 0.0
    %5660 = vmatprep.subr.mxu0 0.0
    %5661 = vmatpush2.msra.mxu0 0.0
    %5662 = vmatprep.subr.mxu0 0.0
    %5663 = vmatpush2.msra.mxu0 0.0
    %5664 = vmatprep.subr.mxu0 0.0
    %5665 = vmatpush2.msra.mxu0 0.0
    %5666 = vmatprep.subr.mxu0 0.0
    %5667 = vmatpush2.msra.mxu0 0.0
    %5668 = vmatprep.subr.mxu0 0.0
    %5669 = vmatpush2.msra.mxu0 0.0
    %5670 = vmatprep.subr.mxu0 0.0
    %5671 = vmatpush2.msra.mxu0 0.0
    %5672 = vmatprep.subr.mxu0 0.0
    %5673 = vmatpush2.msra.mxu0 0.0
    %5674 = vmatprep.subr.mxu0 0.0
    %5675 = vmatpush2.msra.mxu0 0.0
    %5676 = vmatprep.subr.mxu0 0.0
    %5677 = vmatpush2.msra.mxu0 0.0
    %5678 = vmatprep.mubr.f32.mxu0 0.0
    %5679 = vmatmul.mubr.f32.gmra.mxu0 %v4509
    %v5680 = vpop.f32.mrf.mxu0
    %v5681 = vadd.f32 %v838, %v5680
    %v5682 = vpop.f32.mrf.mxu0
    %5683 = vdwg.mxu0
    %v5684 = vadd.f32 %v5469, %v5610
    %v5685 = vxor.u32 %v5684, 2147483648
    %v5686 = vmul.f32 %v5685, 1.442695
    %v5687 = vpow.pop %v5686
    %v5688 = vadd.f32 %v5687, 1.0
    %v5689 = vrcp.pop %v5688
    %v5690 = vmul.f32 1.0, %v5689
    %v5691 = vadd.f32 %v5471, %v5612
    %v5692 = vxor.u32 %v5691, 2147483648
    %v5693 = vmul.f32 %v5692, 1.442695
    %v5694 = vpow.pop %v5693
    %v5695 = vadd.f32 %v5694, 1.0
    %v5696 = vrcp.pop %v5695
    %v5697 = vmul.f32 1.0, %v5696
    %v5698 = vmul.f32 %v5690, %v5681
    %v5699 = vadd.f32 %v5540, %v5698
    %v5700 = vtanh.pop %v5699
    %v5701 = vsub.f32 1.0, %v5697
    %v5702 = vmul.f32 %v5701, %v5700
    %v5703 = vmul.f32 %v5697, %v4509
    %v5704 = vadd.f32 %v5702, %v5703
    %5705 = vst [vmem:[#allocation2 + $0x18] sm:$0xff] %v5704
    %5706 = vmatprep.subr.mxu0 0.0
    %5707 = vmatpush1.msra.mxu0 %v597
    %5708 = vmatprep.subr.mxu0 0.0
    %5709 = vmatpush1.msra.mxu0 %v596
    %5710 = vmatprep.subr.mxu0 0.0
    %5711 = vmatpush1.msra.mxu0 %v595
    %5712 = vmatprep.subr.mxu0 0.0
    %5713 = vmatpush1.msra.mxu0 %v594
    %5714 = vmatprep.subr.mxu0 0.0
    %5715 = vmatpush1.msra.mxu0 %v593
    %5716 = vmatprep.subr.mxu0 0.0
    %5717 = vmatpush1.msra.mxu0 %v592
    %5718 = vmatprep.subr.mxu0 0.0
    %5719 = vmatpush1.msra.mxu0 %v591
    %5720 = vmatprep.subr.mxu0 0.0
    %5721 = vmatpush1.msra.mxu0 %v590
    %5722 = vmatprep.subr.mxu0 0.0
    %5723 = vmatpush1.msra.mxu0 %v589
    %5724 = vmatprep.subr.mxu0 0.0
    %5725 = vmatpush1.msra.mxu0 %v588
    %5726 = vmatprep.subr.mxu0 0.0
    %5727 = vmatpush1.msra.mxu0 %v587
    %5728 = vmatprep.subr.mxu0 0.0
    %5729 = vmatpush1.msra.mxu0 %v586
    %5730 = vmatprep.subr.mxu0 0.0
    %5731 = vmatpush1.msra.mxu0 %v585
    %5732 = vmatprep.subr.mxu0 0.0
    %5733 = vmatpush1.msra.mxu0 %v584
    %5734 = vmatprep.subr.mxu0 0.0
    %5735 = vmatpush1.msra.mxu0 %v583
    %5736 = vmatprep.subr.mxu0 0.0
    %5737 = vmatpush1.msra.mxu0 %v582
    %5738 = vmatprep.subr.mxu0 0.0
    %5739 = vmatpush2.msra.mxu0 0.0
    %5740 = vmatprep.subr.mxu0 0.0
    %5741 = vmatpush2.msra.mxu0 0.0
    %5742 = vmatprep.subr.mxu0 0.0
    %5743 = vmatpush2.msra.mxu0 0.0
    %5744 = vmatprep.subr.mxu0 0.0
    %5745 = vmatpush2.msra.mxu0 0.0
    %5746 = vmatprep.subr.mxu0 0.0
    %5747 = vmatpush2.msra.mxu0 0.0
    %5748 = vmatprep.subr.mxu0 0.0
    %5749 = vmatpush2.msra.mxu0 0.0
    %5750 = vmatprep.subr.mxu0 0.0
    %5751 = vmatpush2.msra.mxu0 0.0
    %5752 = vmatprep.subr.mxu0 0.0
    %5753 = vmatpush2.msra.mxu0 0.0
    %5754 = vmatprep.subr.mxu0 0.0
    %5755 = vmatpush2.msra.mxu0 0.0
    %5756 = vmatprep.subr.mxu0 0.0
    %5757 = vmatpush2.msra.mxu0 0.0
    %5758 = vmatprep.subr.mxu0 0.0
    %5759 = vmatpush2.msra.mxu0 0.0
    %5760 = vmatprep.subr.mxu0 0.0
    %5761 = vmatpush2.msra.mxu0 0.0
    %5762 = vmatprep.subr.mxu0 0.0
    %5763 = vmatpush2.msra.mxu0 0.0
    %5764 = vmatprep.subr.mxu0 0.0
    %5765 = vmatpush2.msra.mxu0 0.0
    %5766 = vmatprep.subr.mxu0 0.0
    %5767 = vmatpush2.msra.mxu0 0.0
    %5768 = vmatprep.subr.mxu0 0.0
    %5769 = vmatpush2.msra.mxu0 0.0
    %5770 = vmatprep.mubr.f32.mxu0 0.0
    %5771 = vmatmul.mubr.f32.gmra.mxu0 %v5704
    %v5772 = vpop.f32.mrf.mxu0
    %v5773 = vadd.f32 0.0, %v5772
    %v5774 = vpop.f32.mrf.mxu0
    %5775 = vdwg.mxu0
    %v5777 = vcombine.high %v5773, %v5773
    %v5779 = vunpack.c.l.s4 1966171168
    %v5780 = vunpack.c.0.s8 %v5779
    %v5781 = vlaneseq
    %v5782 = vshrl.u32 %v5781, 7
    %v5783 = vsub.s32 %v5780, %v5782
    %v5784 = vrot.slane %v5773, %v5783
    %v5786 = vunpack.c.l.s4 1966171168
    %v5787 = vunpack.c.0.s8 %v5786
    %v5788 = vlaneseq
    %v5789 = vshrl.u32 %v5788, 7
    %v5790 = vsub.s32 %v5787, %v5789
    %v5791 = vrot.slane %v5777, %v5790
    %v5792 = vcombine.high %v5784, %v5784
    %v5793 = vcombine.high %v5791, %v5791
    %v5795 = vunpack.c.l.s4 1966171168
    %v5796 = vunpack.c.0.s8 %v5795
    %v5797 = vlaneseq
    %v5798 = vshrl.u32 %v5797, 7
    %v5799 = vsub.s32 %v5796, %v5798
    %v5800 = vrot.slane %v5784, %v5799
    %v5802 = vunpack.c.l.s4 1966171168
    %v5803 = vunpack.c.0.s8 %v5802
    %v5804 = vlaneseq
    %v5805 = vshrl.u32 %v5804, 7
    %v5806 = vsub.s32 %v5803, %v5805
    %v5807 = vrot.slane %v5791, %v5806
    %v5809 = vunpack.c.l.s4 1966171168
    %v5810 = vunpack.c.0.s8 %v5809
    %v5811 = vlaneseq
    %v5812 = vshrl.u32 %v5811, 7
    %v5813 = vsub.s32 %v5810, %v5812
    %v5814 = vrot.slane %v5792, %v5813
    %v5816 = vunpack.c.l.s4 1966171168
    %v5817 = vunpack.c.0.s8 %v5816
    %v5818 = vlaneseq
    %v5819 = vshrl.u32 %v5818, 7
    %v5820 = vsub.s32 %v5817, %v5819
    %v5821 = vrot.slane %v5793, %v5820
    %v5822 = vcombine.high %v5800, %v5800
    %v5823 = vcombine.high %v5807, %v5807
    %v5824 = vcombine.high %v5814, %v5814
    %v5825 = vcombine.high %v5821, %v5821
    %v5826 = vlaneseq
    %v5827 = vshrl.u32 %v5826, 7
    %v5828 = vsub.s32 0, %v5827
    %v5829 = vrot.slane %v5800, %v5828
    %v5830 = vlaneseq
    %v5831 = vshrl.u32 %v5830, 7
    %v5832 = vsub.s32 0, %v5831
    %v5833 = vrot.slane %v5814, %v5832
    %v5834 = vlaneseq
    %v5835 = vshrl.u32 %v5834, 7
    %v5836 = vsub.s32 0, %v5835
    %v5837 = vrot.slane %v5822, %v5836
    %v5838 = vlaneseq
    %v5839 = vshrl.u32 %v5838, 7
    %v5840 = vsub.s32 0, %v5839
    %v5841 = vrot.slane %v5824, %v5840
    %v5842 = vlaneseq
    %v5843 = vshrl.u32 %v5842, 7
    %v5844 = vsub.s32 0, %v5843
    %v5845 = vrot.slane %v5807, %v5844
    %v5846 = vlaneseq
    %v5847 = vshrl.u32 %v5846, 7
    %v5848 = vsub.s32 0, %v5847
    %v5849 = vrot.slane %v5821, %v5848
    %v5850 = vlaneseq
    %v5851 = vshrl.u32 %v5850, 7
    %v5852 = vsub.s32 0, %v5851
    %v5853 = vrot.slane %v5823, %v5852
    %v5854 = vlaneseq
    %v5855 = vshrl.u32 %v5854, 7
    %v5856 = vsub.s32 0, %v5855
    %v5857 = vrot.slane %v5825, %v5856
    %v5866 = vadd.f32 %v5829, %v300
    %v5867 = vadd.f32 %v5833, %v305
    %v5868 = vadd.f32 %v5837, %v310
    %v5869 = vadd.f32 %v5841, %v315
    %v5870 = vadd.f32 %v5845, %v320
    %v5871 = vadd.f32 %v5849, %v325
    %v5872 = vadd.f32 %v5853, %v330
    %v5873 = vadd.f32 %v5857, %v335
    %v5874 = vtanh.pop %v5866
    %v5875 = vtanh.pop %v5867
    %v5876 = vtanh.pop %v5868
    %v5877 = vtanh.pop %v5869
    %v5878 = vtanh.pop %v5870
    %v5879 = vtanh.pop %v5871
    %v5880 = vtanh.pop %v5872
    %v5881 = vtanh.pop %v5873
    %v5882 = vmul.f32 %v5874, %v1025
    %v5883 = vmul.f32 %v5875, %v1025
    %v5884 = vmul.f32 %v5876, %v1025
    %v5885 = vmul.f32 %v5877, %v1025
    %v5886 = vmul.f32 %v5878, %v1025
    %v5887 = vmul.f32 %v5879, %v1025
    %v5888 = vmul.f32 %v5880, %v1025
    %v5889 = vmul.f32 %v5881, %v1025
    %5890 = vadd.xlane.f32.xlu0 %v5882
    %v5891 = vpop.xlane.xlu0 %5890
    %5892 = vadd.xlane.f32.xlu0 %v5883
    %v5893 = vpop.xlane.xlu0 %5892
    %5894 = vadd.xlane.f32.xlu0 %v5884
    %v5895 = vpop.xlane.xlu0 %5894
    %5896 = vadd.xlane.f32.xlu0 %v5885
    %v5897 = vpop.xlane.xlu0 %5896
    %5898 = vadd.xlane.f32.xlu0 %v5886
    %v5899 = vpop.xlane.xlu0 %5898
    %5900 = vadd.xlane.f32.xlu0 %v5887
    %v5901 = vpop.xlane.xlu0 %5900
    %5902 = vadd.xlane.f32.xlu0 %v5888
    %v5903 = vpop.xlane.xlu0 %5902
    %5904 = vadd.xlane.f32.xlu0 %v5889
    %v5905 = vpop.xlane.xlu0 %5904
    %v5906 = vadd.f32 %v5891, %v1058
    %v5907 = vadd.f32 %v5893, %v1065
    %v5908 = vadd.f32 %v5895, %v1072
    %v5909 = vadd.f32 %v5897, %v1079
    %v5910 = vadd.f32 %v5899, %v1086
    %v5911 = vadd.f32 %v5901, %v1093
    %v5912 = vadd.f32 %v5903, %v1100
    %v5913 = vadd.f32 %v5905, %v1107
    %5922 = vset.pattern.permute.xlu0 0
    %5923 = vperm.xlu0 %5922, %v5906
    %v5924 = vpop.permute.xlu0 %5923
    %5925 = vset.pattern.permute.xlu0 0
    %5926 = vperm.xlu0 %5925, %v5907
    %v5927 = vpop.permute.xlu0 %5926
    %5928 = vset.pattern.permute.xlu0 0
    %5929 = vperm.xlu0 %5928, %v5908
    %v5930 = vpop.permute.xlu0 %5929
    %5931 = vset.pattern.permute.xlu0 0
    %5932 = vperm.xlu0 %5931, %v5909
    %v5933 = vpop.permute.xlu0 %5932
    %5934 = vset.pattern.permute.xlu0 0
    %5935 = vperm.xlu0 %5934, %v5910
    %v5936 = vpop.permute.xlu0 %5935
    %5937 = vset.pattern.permute.xlu0 0
    %5938 = vperm.xlu0 %5937, %v5911
    %v5939 = vpop.permute.xlu0 %5938
    %5940 = vset.pattern.permute.xlu0 0
    %5941 = vperm.xlu0 %5940, %v5912
    %v5942 = vpop.permute.xlu0 %5941
    %5943 = vset.pattern.permute.xlu0 0
    %5944 = vperm.xlu0 %5943, %v5913
    %v5945 = vpop.permute.xlu0 %5944
    %v5946 = vlaneseq
    %v5947 = vshrl.u32 %v5946, 7
    %v5948 = vsub.s32 %v1157, %v5947
    %v5949 = vrot.slane %v5924, %v5948
    %v5950 = vlaneseq
    %v5951 = vshrl.u32 %v5950, 7
    %v5952 = vsub.s32 %v1157, %v5951
    %v5953 = vrot.slane %v5927, %v5952
    %v5954 = vlaneseq
    %v5955 = vshrl.u32 %v5954, 7
    %v5956 = vsub.s32 %v1157, %v5955
    %v5957 = vrot.slane %v5930, %v5956
    %v5958 = vlaneseq
    %v5959 = vshrl.u32 %v5958, 7
    %v5960 = vsub.s32 %v1157, %v5959
    %v5961 = vrot.slane %v5933, %v5960
    %v5962 = vlaneseq
    %v5963 = vshrl.u32 %v5962, 7
    %v5964 = vsub.s32 %v1157, %v5963
    %v5965 = vrot.slane %v5936, %v5964
    %v5966 = vlaneseq
    %v5967 = vshrl.u32 %v5966, 7
    %v5968 = vsub.s32 %v1157, %v5967
    %v5969 = vrot.slane %v5939, %v5968
    %v5970 = vlaneseq
    %v5971 = vshrl.u32 %v5970, 7
    %v5972 = vsub.s32 %v1157, %v5971
    %v5973 = vrot.slane %v5942, %v5972
    %v5974 = vlaneseq
    %v5975 = vshrl.u32 %v5974, 7
    %v5976 = vsub.s32 %v1157, %v5975
    %v5977 = vrot.slane %v5945, %v5976
    %v5978 = vsel %vm1190, %v5953, %v5949
    %v5979 = vsel %vm1192, %v5957, %v5978
    %v5980 = vsel %vm1194, %v5961, %v5979
    %v5981 = vsel %vm1196, %v5965, %v5980
    %v5982 = vsel %vm1198, %v5969, %v5981
    %v5983 = vsel %vm1200, %v5973, %v5982
    %v5984 = vsel %vm1202, %v5977, %v5983
    %v5986 = vsel %vm1205, %v5984, -inf
    %5987 = vmax.xlane.f32.xlu0 %v5986
    %v5988 = vpop.xlane.xlu0 %5987
    %v5990 = vlaneseq
    %v5991 = vshrl.u32 %v5990, 7
    %v5992 = vsub.s32 0, %v5991
    %v5993 = vrot.slane %v5988, %v5992
    %v5994 = vlaneseq
    %v5995 = vshrl.u32 %v5994, 7
    %v5996 = vsub.s32 1, %v5995
    %v5997 = vrot.slane %v5988, %v5996
    %v5998 = vlaneseq
    %v5999 = vshrl.u32 %v5998, 7
    %v6000 = vsub.s32 2, %v5999
    %v6001 = vrot.slane %v5988, %v6000
    %v6002 = vlaneseq
    %v6003 = vshrl.u32 %v6002, 7
    %v6004 = vsub.s32 3, %v6003
    %v6005 = vrot.slane %v5988, %v6004
    %v6006 = vlaneseq
    %v6007 = vshrl.u32 %v6006, 7
    %v6008 = vsub.s32 4, %v6007
    %v6009 = vrot.slane %v5988, %v6008
    %v6010 = vlaneseq
    %v6011 = vshrl.u32 %v6010, 7
    %v6012 = vsub.s32 5, %v6011
    %v6013 = vrot.slane %v5988, %v6012
    %v6014 = vlaneseq
    %v6015 = vshrl.u32 %v6014, 7
    %v6016 = vsub.s32 6, %v6015
    %v6017 = vrot.slane %v5988, %v6016
    %v6018 = vlaneseq
    %v6019 = vshrl.u32 %v6018, 7
    %v6020 = vsub.s32 7, %v6019
    %v6021 = vrot.slane %v5988, %v6020
    %v6030 = vsub.f32 %v5906, %v5993
    %v6031 = vsub.f32 %v5907, %v5997
    %v6032 = vsub.f32 %v5908, %v6001
    %v6033 = vsub.f32 %v5909, %v6005
    %v6034 = vsub.f32 %v5910, %v6009
    %v6035 = vsub.f32 %v5911, %v6013
    %v6036 = vsub.f32 %v5912, %v6017
    %v6037 = vsub.f32 %v5913, %v6021
    %v6038 = vmul.f32 %v6030, 1.442695
    %v6039 = vpow.pop %v6038
    %v6040 = vmul.f32 %v6031, 1.442695
    %v6041 = vpow.pop %v6040
    %v6042 = vmul.f32 %v6032, 1.442695
    %v6043 = vpow.pop %v6042
    %v6044 = vmul.f32 %v6033, 1.442695
    %v6045 = vpow.pop %v6044
    %v6046 = vmul.f32 %v6034, 1.442695
    %v6047 = vpow.pop %v6046
    %v6048 = vmul.f32 %v6035, 1.442695
    %v6049 = vpow.pop %v6048
    %v6050 = vmul.f32 %v6036, 1.442695
    %v6051 = vpow.pop %v6050
    %v6052 = vmul.f32 %v6037, 1.442695
    %v6053 = vpow.pop %v6052
    %6062 = vset.pattern.permute.xlu0 0
    %6063 = vperm.xlu0 %6062, %v6039
    %v6064 = vpop.permute.xlu0 %6063
    %6065 = vset.pattern.permute.xlu0 0
    %6066 = vperm.xlu0 %6065, %v6041
    %v6067 = vpop.permute.xlu0 %6066
    %6068 = vset.pattern.permute.xlu0 0
    %6069 = vperm.xlu0 %6068, %v6043
    %v6070 = vpop.permute.xlu0 %6069
    %6071 = vset.pattern.permute.xlu0 0
    %6072 = vperm.xlu0 %6071, %v6045
    %v6073 = vpop.permute.xlu0 %6072
    %6074 = vset.pattern.permute.xlu0 0
    %6075 = vperm.xlu0 %6074, %v6047
    %v6076 = vpop.permute.xlu0 %6075
    %6077 = vset.pattern.permute.xlu0 0
    %6078 = vperm.xlu0 %6077, %v6049
    %v6079 = vpop.permute.xlu0 %6078
    %6080 = vset.pattern.permute.xlu0 0
    %6081 = vperm.xlu0 %6080, %v6051
    %v6082 = vpop.permute.xlu0 %6081
    %6083 = vset.pattern.permute.xlu0 0
    %6084 = vperm.xlu0 %6083, %v6053
    %v6085 = vpop.permute.xlu0 %6084
    %v6086 = vlaneseq
    %v6087 = vshrl.u32 %v6086, 7
    %v6088 = vsub.s32 %v1157, %v6087
    %v6089 = vrot.slane %v6064, %v6088
    %v6090 = vlaneseq
    %v6091 = vshrl.u32 %v6090, 7
    %v6092 = vsub.s32 %v1157, %v6091
    %v6093 = vrot.slane %v6067, %v6092
    %v6094 = vlaneseq
    %v6095 = vshrl.u32 %v6094, 7
    %v6096 = vsub.s32 %v1157, %v6095
    %v6097 = vrot.slane %v6070, %v6096
    %v6098 = vlaneseq
    %v6099 = vshrl.u32 %v6098, 7
    %v6100 = vsub.s32 %v1157, %v6099
    %v6101 = vrot.slane %v6073, %v6100
    %v6102 = vlaneseq
    %v6103 = vshrl.u32 %v6102, 7
    %v6104 = vsub.s32 %v1157, %v6103
    %v6105 = vrot.slane %v6076, %v6104
    %v6106 = vlaneseq
    %v6107 = vshrl.u32 %v6106, 7
    %v6108 = vsub.s32 %v1157, %v6107
    %v6109 = vrot.slane %v6079, %v6108
    %v6110 = vlaneseq
    %v6111 = vshrl.u32 %v6110, 7
    %v6112 = vsub.s32 %v1157, %v6111
    %v6113 = vrot.slane %v6082, %v6112
    %v6114 = vlaneseq
    %v6115 = vshrl.u32 %v6114, 7
    %v6116 = vsub.s32 %v1157, %v6115
    %v6117 = vrot.slane %v6085, %v6116
    %v6118 = vsel %vm1190, %v6093, %v6089
    %v6119 = vsel %vm1192, %v6097, %v6118
    %v6120 = vsel %vm1194, %v6101, %v6119
    %v6121 = vsel %vm1196, %v6105, %v6120
    %v6122 = vsel %vm1198, %v6109, %v6121
    %v6123 = vsel %vm1200, %v6113, %v6122
    %v6124 = vsel %vm1202, %v6117, %v6123
    %v6126 = vsel %vm1205, %v6124, 0.0
    %6127 = vadd.xlane.f32.xlu0 %v6126
    %v6128 = vpop.xlane.xlu0 %6127
    %v6129 = vrcp.pop %v6128
    %v6131 = vlaneseq
    %v6132 = vshrl.u32 %v6131, 7
    %v6133 = vsub.s32 0, %v6132
    %v6134 = vrot.slane %v6129, %v6133
    %v6135 = vlaneseq
    %v6136 = vshrl.u32 %v6135, 7
    %v6137 = vsub.s32 1, %v6136
    %v6138 = vrot.slane %v6129, %v6137
    %v6139 = vlaneseq
    %v6140 = vshrl.u32 %v6139, 7
    %v6141 = vsub.s32 2, %v6140
    %v6142 = vrot.slane %v6129, %v6141
    %v6143 = vlaneseq
    %v6144 = vshrl.u32 %v6143, 7
    %v6145 = vsub.s32 3, %v6144
    %v6146 = vrot.slane %v6129, %v6145
    %v6147 = vlaneseq
    %v6148 = vshrl.u32 %v6147, 7
    %v6149 = vsub.s32 4, %v6148
    %v6150 = vrot.slane %v6129, %v6149
    %v6151 = vlaneseq
    %v6152 = vshrl.u32 %v6151, 7
    %v6153 = vsub.s32 5, %v6152
    %v6154 = vrot.slane %v6129, %v6153
    %v6155 = vlaneseq
    %v6156 = vshrl.u32 %v6155, 7
    %v6157 = vsub.s32 6, %v6156
    %v6158 = vrot.slane %v6129, %v6157
    %v6159 = vlaneseq
    %v6160 = vshrl.u32 %v6159, 7
    %v6161 = vsub.s32 7, %v6160
    %v6162 = vrot.slane %v6129, %v6161
    %v6171 = vmul.f32 %v6039, %v6134
    %v6172 = vmul.f32 %v6041, %v6138
    %v6173 = vmul.f32 %v6043, %v6142
    %v6174 = vmul.f32 %v6045, %v6146
    %v6175 = vmul.f32 %v6047, %v6150
    %v6176 = vmul.f32 %v6049, %v6154
    %v6177 = vmul.f32 %v6051, %v6158
    %v6178 = vmul.f32 %v6053, %v6162
    %6180 = vset.pattern.permute.xlu0 0
    %6181 = vperm.xlu0 %6180, %v6171
    %v6182 = vpop.permute.xlu0 %6181
    %6185 = vset.pattern.permute.xlu0 0
    %6186 = vperm.xlu0 %6185, %v6172
    %v6187 = vpop.permute.xlu0 %6186
    %6190 = vset.pattern.permute.xlu0 0
    %6191 = vperm.xlu0 %6190, %v6173
    %v6192 = vpop.permute.xlu0 %6191
    %6195 = vset.pattern.permute.xlu0 0
    %6196 = vperm.xlu0 %6195, %v6174
    %v6197 = vpop.permute.xlu0 %6196
    %6200 = vset.pattern.permute.xlu0 0
    %6201 = vperm.xlu0 %6200, %v6175
    %v6202 = vpop.permute.xlu0 %6201
    %6205 = vset.pattern.permute.xlu0 0
    %6206 = vperm.xlu0 %6205, %v6176
    %v6207 = vpop.permute.xlu0 %6206
    %6210 = vset.pattern.permute.xlu0 0
    %6211 = vperm.xlu0 %6210, %v6177
    %v6212 = vpop.permute.xlu0 %6211
    %6215 = vset.pattern.permute.xlu0 0
    %6216 = vperm.xlu0 %6215, %v6178
    %v6217 = vpop.permute.xlu0 %6216
    %v6219 = vmul.f32 %v6182, %v208
    %v6220 = vmul.f32 %v6187, %v209
    %v6221 = vmul.f32 %v6192, %v210
    %v6222 = vmul.f32 %v6197, %v211
    %v6223 = vmul.f32 %v6202, %v212
    %v6224 = vmul.f32 %v6207, %v213
    %v6225 = vmul.f32 %v6212, %v214
    %v6226 = vmul.f32 %v6217, %v215
    %v6227 = vrot.slane %v6219, 4
    %v6228 = vadd.f32 %v6219, %v6227
    %v6229 = vrot.slane %v6228, 2
    %v6230 = vadd.f32 %v6228, %v6229
    %v6231 = vrot.slane %v6230, 1
    %v6232 = vadd.f32 %v6230, %v6231
    %v6233 = vrot.slane %v6220, 4
    %v6234 = vadd.f32 %v6220, %v6233
    %v6235 = vrot.slane %v6234, 2
    %v6236 = vadd.f32 %v6234, %v6235
    %v6237 = vrot.slane %v6236, 1
    %v6238 = vadd.f32 %v6236, %v6237
    %v6239 = vrot.slane %v6221, 4
    %v6240 = vadd.f32 %v6221, %v6239
    %v6241 = vrot.slane %v6240, 2
    %v6242 = vadd.f32 %v6240, %v6241
    %v6243 = vrot.slane %v6242, 1
    %v6244 = vadd.f32 %v6242, %v6243
    %v6245 = vrot.slane %v6222, 4
    %v6246 = vadd.f32 %v6222, %v6245
    %v6247 = vrot.slane %v6246, 2
    %v6248 = vadd.f32 %v6246, %v6247
    %v6249 = vrot.slane %v6248, 1
    %v6250 = vadd.f32 %v6248, %v6249
    %v6251 = vrot.slane %v6223, 4
    %v6252 = vadd.f32 %v6223, %v6251
    %v6253 = vrot.slane %v6252, 2
    %v6254 = vadd.f32 %v6252, %v6253
    %v6255 = vrot.slane %v6254, 1
    %v6256 = vadd.f32 %v6254, %v6255
    %v6257 = vrot.slane %v6224, 4
    %v6258 = vadd.f32 %v6224, %v6257
    %v6259 = vrot.slane %v6258, 2
    %v6260 = vadd.f32 %v6258, %v6259
    %v6261 = vrot.slane %v6260, 1
    %v6262 = vadd.f32 %v6260, %v6261
    %v6263 = vrot.slane %v6225, 4
    %v6264 = vadd.f32 %v6225, %v6263
    %v6265 = vrot.slane %v6264, 2
    %v6266 = vadd.f32 %v6264, %v6265
    %v6267 = vrot.slane %v6266, 1
    %v6268 = vadd.f32 %v6266, %v6267
    %v6269 = vrot.slane %v6226, 4
    %v6270 = vadd.f32 %v6226, %v6269
    %v6271 = vrot.slane %v6270, 2
    %v6272 = vadd.f32 %v6270, %v6271
    %v6273 = vrot.slane %v6272, 1
    %v6274 = vadd.f32 %v6272, %v6273
    %v6283 = vsel %vm1190, %v6238, %v6232
    %v6284 = vsel %vm1192, %v6244, %v6283
    %v6285 = vsel %vm1194, %v6250, %v6284
    %v6286 = vsel %vm1196, %v6256, %v6285
    %v6287 = vsel %vm1198, %v6262, %v6286
    %v6288 = vsel %vm1200, %v6268, %v6287
    %v6289 = vsel %vm1202, %v6274, %v6288
    %6291 = vmatprep.subr.mxu0 %v645
    %6292 = vmatpush1.msra.mxu0 %v644
    %6293 = vmatprep.subr.mxu0 %v642
    %6294 = vmatpush1.msra.mxu0 %v641
    %6295 = vmatprep.subr.mxu0 %v639
    %6296 = vmatpush1.msra.mxu0 %v638
    %6297 = vmatprep.subr.mxu0 %v636
    %6298 = vmatpush1.msra.mxu0 %v635
    %6299 = vmatprep.subr.mxu0 %v633
    %6300 = vmatpush1.msra.mxu0 %v632
    %6301 = vmatprep.subr.mxu0 %v630
    %6302 = vmatpush1.msra.mxu0 %v629
    %6303 = vmatprep.subr.mxu0 %v627
    %6304 = vmatpush1.msra.mxu0 %v626
    %6305 = vmatprep.subr.mxu0 %v624
    %6306 = vmatpush1.msra.mxu0 %v623
    %6307 = vmatprep.subr.mxu0 %v621
    %6308 = vmatpush1.msra.mxu0 %v620
    %6309 = vmatprep.subr.mxu0 %v618
    %6310 = vmatpush1.msra.mxu0 %v617
    %6311 = vmatprep.subr.mxu0 %v615
    %6312 = vmatpush1.msra.mxu0 %v614
    %6313 = vmatprep.subr.mxu0 %v612
    %6314 = vmatpush1.msra.mxu0 %v611
    %6315 = vmatprep.subr.mxu0 %v609
    %6316 = vmatpush1.msra.mxu0 %v608
    %6317 = vmatprep.subr.mxu0 %v606
    %6318 = vmatpush1.msra.mxu0 %v605
    %6319 = vmatprep.subr.mxu0 %v603
    %6320 = vmatpush1.msra.mxu0 %v602
    %6321 = vmatprep.subr.mxu0 %v600
    %6322 = vmatpush1.msra.mxu0 %v599
    %6323 = vmatprep.subr.mxu0 0.0
    %6324 = vmatpush2.msra.mxu0 0.0
    %6325 = vmatprep.subr.mxu0 0.0
    %6326 = vmatpush2.msra.mxu0 0.0
    %6327 = vmatprep.subr.mxu0 0.0
    %6328 = vmatpush2.msra.mxu0 0.0
    %6329 = vmatprep.subr.mxu0 0.0
    %6330 = vmatpush2.msra.mxu0 0.0
    %6331 = vmatprep.subr.mxu0 0.0
    %6332 = vmatpush2.msra.mxu0 0.0
    %6333 = vmatprep.subr.mxu0 0.0
    %6334 = vmatpush2.msra.mxu0 0.0
    %6335 = vmatprep.subr.mxu0 0.0
    %6336 = vmatpush2.msra.mxu0 0.0
    %6337 = vmatprep.subr.mxu0 0.0
    %6338 = vmatpush2.msra.mxu0 0.0
    %6339 = vmatprep.subr.mxu0 0.0
    %6340 = vmatpush2.msra.mxu0 0.0
    %6341 = vmatprep.subr.mxu0 0.0
    %6342 = vmatpush2.msra.mxu0 0.0
    %6343 = vmatprep.subr.mxu0 0.0
    %6344 = vmatpush2.msra.mxu0 0.0
    %6345 = vmatprep.subr.mxu0 0.0
    %6346 = vmatpush2.msra.mxu0 0.0
    %6347 = vmatprep.subr.mxu0 0.0
    %6348 = vmatpush2.msra.mxu0 0.0
    %6349 = vmatprep.subr.mxu0 0.0
    %6350 = vmatpush2.msra.mxu0 0.0
    %6351 = vmatprep.subr.mxu0 0.0
    %6352 = vmatpush2.msra.mxu0 0.0
    %6353 = vmatprep.subr.mxu0 0.0
    %6354 = vmatpush2.msra.mxu0 0.0
    %6355 = vmatprep.mubr.f32.mxu0 0.0
    %6356 = vmatmul.mubr.f32.gmra.mxu0 %v6289
    %v6357 = vpop.f32.mrf.mxu0
    %v6358 = vadd.f32 0.0, %v6357
    %v6359 = vpop.f32.mrf.mxu0
    %v6360 = vadd.f32 0.0, %v6359
    %6361 = vdwg.mxu0
    %6362 = vmatprep.subr.mxu0 0.0
    %6363 = vmatpush1.msra.mxu0 %v646
    %6364 = vmatprep.subr.mxu0 0.0
    %6365 = vmatpush1.msra.mxu0 %v643
    %6366 = vmatprep.subr.mxu0 0.0
    %6367 = vmatpush1.msra.mxu0 %v640
    %6368 = vmatprep.subr.mxu0 0.0
    %6369 = vmatpush1.msra.mxu0 %v637
    %6370 = vmatprep.subr.mxu0 0.0
    %6371 = vmatpush1.msra.mxu0 %v634
    %6372 = vmatprep.subr.mxu0 0.0
    %6373 = vmatpush1.msra.mxu0 %v631
    %6374 = vmatprep.subr.mxu0 0.0
    %6375 = vmatpush1.msra.mxu0 %v628
    %6376 = vmatprep.subr.mxu0 0.0
    %6377 = vmatpush1.msra.mxu0 %v625
    %6378 = vmatprep.subr.mxu0 0.0
    %6379 = vmatpush1.msra.mxu0 %v622
    %6380 = vmatprep.subr.mxu0 0.0
    %6381 = vmatpush1.msra.mxu0 %v619
    %6382 = vmatprep.subr.mxu0 0.0
    %6383 = vmatpush1.msra.mxu0 %v616
    %6384 = vmatprep.subr.mxu0 0.0
    %6385 = vmatpush1.msra.mxu0 %v613
    %6386 = vmatprep.subr.mxu0 0.0
    %6387 = vmatpush1.msra.mxu0 %v610
    %6388 = vmatprep.subr.mxu0 0.0
    %6389 = vmatpush1.msra.mxu0 %v607
    %6390 = vmatprep.subr.mxu0 0.0
    %6391 = vmatpush1.msra.mxu0 %v604
    %6392 = vmatprep.subr.mxu0 0.0
    %6393 = vmatpush1.msra.mxu0 %v601
    %6394 = vmatprep.subr.mxu0 0.0
    %6395 = vmatpush2.msra.mxu0 0.0
    %6396 = vmatprep.subr.mxu0 0.0
    %6397 = vmatpush2.msra.mxu0 0.0
    %6398 = vmatprep.subr.mxu0 0.0
    %6399 = vmatpush2.msra.mxu0 0.0
    %6400 = vmatprep.subr.mxu0 0.0
    %6401 = vmatpush2.msra.mxu0 0.0
    %6402 = vmatprep.subr.mxu0 0.0
    %6403 = vmatpush2.msra.mxu0 0.0
    %6404 = vmatprep.subr.mxu0 0.0
    %6405 = vmatpush2.msra.mxu0 0.0
    %6406 = vmatprep.subr.mxu0 0.0
    %6407 = vmatpush2.msra.mxu0 0.0
    %6408 = vmatprep.subr.mxu0 0.0
    %6409 = vmatpush2.msra.mxu0 0.0
    %6410 = vmatprep.subr.mxu0 0.0
    %6411 = vmatpush2.msra.mxu0 0.0
    %6412 = vmatprep.subr.mxu0 0.0
    %6413 = vmatpush2.msra.mxu0 0.0
    %6414 = vmatprep.subr.mxu0 0.0
    %6415 = vmatpush2.msra.mxu0 0.0
    %6416 = vmatprep.subr.mxu0 0.0
    %6417 = vmatpush2.msra.mxu0 0.0
    %6418 = vmatprep.subr.mxu0 0.0
    %6419 = vmatpush2.msra.mxu0 0.0
    %6420 = vmatprep.subr.mxu0 0.0
    %6421 = vmatpush2.msra.mxu0 0.0
    %6422 = vmatprep.subr.mxu0 0.0
    %6423 = vmatpush2.msra.mxu0 0.0
    %6424 = vmatprep.subr.mxu0 0.0
    %6425 = vmatpush2.msra.mxu0 0.0
    %6426 = vmatprep.mubr.f32.mxu0 0.0
    %6427 = vmatmul.mubr.f32.gmra.mxu0 %v6289
    %v6428 = vpop.f32.mrf.mxu0
    %v6429 = vadd.f32 0.0, %v6428
    %v6430 = vpop.f32.mrf.mxu0
    %6431 = vdwg.mxu0
    %v6432 = vadd.f32 %v477, %v6358
    %v6433 = vadd.f32 %v479, %v6360
    %v6434 = vadd.f32 %v574, %v6429
    %6435 = vmatprep.subr.mxu0 %v693
    %6436 = vmatpush1.msra.mxu0 %v692
    %6437 = vmatprep.subr.mxu0 %v690
    %6438 = vmatpush1.msra.mxu0 %v689
    %6439 = vmatprep.subr.mxu0 %v687
    %6440 = vmatpush1.msra.mxu0 %v686
    %6441 = vmatprep.subr.mxu0 %v684
    %6442 = vmatpush1.msra.mxu0 %v683
    %6443 = vmatprep.subr.mxu0 %v681
    %6444 = vmatpush1.msra.mxu0 %v680
    %6445 = vmatprep.subr.mxu0 %v678
    %6446 = vmatpush1.msra.mxu0 %v677
    %6447 = vmatprep.subr.mxu0 %v675
    %6448 = vmatpush1.msra.mxu0 %v674
    %6449 = vmatprep.subr.mxu0 %v672
    %6450 = vmatpush1.msra.mxu0 %v671
    %6451 = vmatprep.subr.mxu0 %v669
    %6452 = vmatpush1.msra.mxu0 %v668
    %6453 = vmatprep.subr.mxu0 %v666
    %6454 = vmatpush1.msra.mxu0 %v665
    %6455 = vmatprep.subr.mxu0 %v663
    %6456 = vmatpush1.msra.mxu0 %v662
    %6457 = vmatprep.subr.mxu0 %v660
    %6458 = vmatpush1.msra.mxu0 %v659
    %6459 = vmatprep.subr.mxu0 %v657
    %6460 = vmatpush1.msra.mxu0 %v656
    %6461 = vmatprep.subr.mxu0 %v654
    %6462 = vmatpush1.msra.mxu0 %v653
    %6463 = vmatprep.subr.mxu0 %v651
    %6464 = vmatpush1.msra.mxu0 %v650
    %6465 = vmatprep.subr.mxu0 %v648
    %6466 = vmatpush1.msra.mxu0 %v647
    %6467 = vmatprep.subr.mxu0 0.0
    %6468 = vmatpush2.msra.mxu0 0.0
    %6469 = vmatprep.subr.mxu0 0.0
    %6470 = vmatpush2.msra.mxu0 0.0
    %6471 = vmatprep.subr.mxu0 0.0
    %6472 = vmatpush2.msra.mxu0 0.0
    %6473 = vmatprep.subr.mxu0 0.0
    %6474 = vmatpush2.msra.mxu0 0.0
    %6475 = vmatprep.subr.mxu0 0.0
    %6476 = vmatpush2.msra.mxu0 0.0
    %6477 = vmatprep.subr.mxu0 0.0
    %6478 = vmatpush2.msra.mxu0 0.0
    %6479 = vmatprep.subr.mxu0 0.0
    %6480 = vmatpush2.msra.mxu0 0.0
    %6481 = vmatprep.subr.mxu0 0.0
    %6482 = vmatpush2.msra.mxu0 0.0
    %6483 = vmatprep.subr.mxu0 0.0
    %6484 = vmatpush2.msra.mxu0 0.0
    %6485 = vmatprep.subr.mxu0 0.0
    %6486 = vmatpush2.msra.mxu0 0.0
    %6487 = vmatprep.subr.mxu0 0.0
    %6488 = vmatpush2.msra.mxu0 0.0
    %6489 = vmatprep.subr.mxu0 0.0
    %6490 = vmatpush2.msra.mxu0 0.0
    %6491 = vmatprep.subr.mxu0 0.0
    %6492 = vmatpush2.msra.mxu0 0.0
    %6493 = vmatprep.subr.mxu0 0.0
    %6494 = vmatpush2.msra.mxu0 0.0
    %6495 = vmatprep.subr.mxu0 0.0
    %6496 = vmatpush2.msra.mxu0 0.0
    %6497 = vmatprep.subr.mxu0 0.0
    %6498 = vmatpush2.msra.mxu0 0.0
    %6499 = vmatprep.mubr.f32.mxu0 0.0
    %6500 = vmatmul.mubr.f32.gmra.mxu0 %v5401
    %v6501 = vpop.f32.mrf.mxu0
    %v6502 = vadd.f32 %v796, %v6501
    %v6503 = vpop.f32.mrf.mxu0
    %v6504 = vadd.f32 %v800, %v6503
    %6505 = vdwg.mxu0
    %6506 = vmatprep.subr.mxu0 0.0
    %6507 = vmatpush1.msra.mxu0 %v694
    %6508 = vmatprep.subr.mxu0 0.0
    %6509 = vmatpush1.msra.mxu0 %v691
    %6510 = vmatprep.subr.mxu0 0.0
    %6511 = vmatpush1.msra.mxu0 %v688
    %6512 = vmatprep.subr.mxu0 0.0
    %6513 = vmatpush1.msra.mxu0 %v685
    %6514 = vmatprep.subr.mxu0 0.0
    %6515 = vmatpush1.msra.mxu0 %v682
    %6516 = vmatprep.subr.mxu0 0.0
    %6517 = vmatpush1.msra.mxu0 %v679
    %6518 = vmatprep.subr.mxu0 0.0
    %6519 = vmatpush1.msra.mxu0 %v676
    %6520 = vmatprep.subr.mxu0 0.0
    %6521 = vmatpush1.msra.mxu0 %v673
    %6522 = vmatprep.subr.mxu0 0.0
    %6523 = vmatpush1.msra.mxu0 %v670
    %6524 = vmatprep.subr.mxu0 0.0
    %6525 = vmatpush1.msra.mxu0 %v667
    %6526 = vmatprep.subr.mxu0 0.0
    %6527 = vmatpush1.msra.mxu0 %v664
    %6528 = vmatprep.subr.mxu0 0.0
    %6529 = vmatpush1.msra.mxu0 %v661
    %6530 = vmatprep.subr.mxu0 0.0
    %6531 = vmatpush1.msra.mxu0 %v658
    %6532 = vmatprep.subr.mxu0 0.0
    %6533 = vmatpush1.msra.mxu0 %v655
    %6534 = vmatprep.subr.mxu0 0.0
    %6535 = vmatpush1.msra.mxu0 %v652
    %6536 = vmatprep.subr.mxu0 0.0
    %6537 = vmatpush1.msra.mxu0 %v649
    %6538 = vmatprep.subr.mxu0 0.0
    %6539 = vmatpush2.msra.mxu0 0.0
    %6540 = vmatprep.subr.mxu0 0.0
    %6541 = vmatpush2.msra.mxu0 0.0
    %6542 = vmatprep.subr.mxu0 0.0
    %6543 = vmatpush2.msra.mxu0 0.0
    %6544 = vmatprep.subr.mxu0 0.0
    %6545 = vmatpush2.msra.mxu0 0.0
    %6546 = vmatprep.subr.mxu0 0.0
    %6547 = vmatpush2.msra.mxu0 0.0
    %6548 = vmatprep.subr.mxu0 0.0
    %6549 = vmatpush2.msra.mxu0 0.0
    %6550 = vmatprep.subr.mxu0 0.0
    %6551 = vmatpush2.msra.mxu0 0.0
    %6552 = vmatprep.subr.mxu0 0.0
    %6553 = vmatpush2.msra.mxu0 0.0
    %6554 = vmatprep.subr.mxu0 0.0
    %6555 = vmatpush2.msra.mxu0 0.0
    %6556 = vmatprep.subr.mxu0 0.0
    %6557 = vmatpush2.msra.mxu0 0.0
    %6558 = vmatprep.subr.mxu0 0.0
    %6559 = vmatpush2.msra.mxu0 0.0
    %6560 = vmatprep.subr.mxu0 0.0
    %6561 = vmatpush2.msra.mxu0 0.0
    %6562 = vmatprep.subr.mxu0 0.0
    %6563 = vmatpush2.msra.mxu0 0.0
    %6564 = vmatprep.subr.mxu0 0.0
    %6565 = vmatpush2.msra.mxu0 0.0
    %6566 = vmatprep.subr.mxu0 0.0
    %6567 = vmatpush2.msra.mxu0 0.0
    %6568 = vmatprep.subr.mxu0 0.0
    %6569 = vmatpush2.msra.mxu0 0.0
    %6570 = vmatprep.mubr.f32.mxu0 0.0
    %6571 = vmatmul.mubr.f32.gmra.mxu0 %v5401
    %v6572 = vpop.f32.mrf.mxu0
    %v6573 = vadd.f32 %v804, %v6572
    %v6574 = vpop.f32.mrf.mxu0
    %6575 = vdwg.mxu0
    %v6576 = vadd.f32 %v6432, %v6502
    %v6577 = vxor.u32 %v6576, 2147483648
    %v6578 = vmul.f32 %v6577, 1.442695
    %v6579 = vpow.pop %v6578
    %v6580 = vadd.f32 %v6579, 1.0
    %v6581 = vrcp.pop %v6580
    %v6582 = vmul.f32 1.0, %v6581
    %v6583 = vadd.f32 %v6433, %v6504
    %v6584 = vxor.u32 %v6583, 2147483648
    %v6585 = vmul.f32 %v6584, 1.442695
    %v6586 = vpow.pop %v6585
    %v6587 = vadd.f32 %v6586, 1.0
    %v6588 = vrcp.pop %v6587
    %v6589 = vmul.f32 1.0, %v6588
    %v6590 = vmul.f32 %v6582, %v6573
    %v6591 = vadd.f32 %v6434, %v6590
    %v6592 = vtanh.pop %v6591
    %v6593 = vsub.f32 1.0, %v6589
    %v6594 = vmul.f32 %v6593, %v6592
    %v6595 = vmul.f32 %v6589, %v5401
    %v6596 = vadd.f32 %v6594, %v6595
    %6597 = vmatprep.subr.mxu0 %v741
    %6598 = vmatpush1.msra.mxu0 %v740
    %6599 = vmatprep.subr.mxu0 %v738
    %6600 = vmatpush1.msra.mxu0 %v737
    %6601 = vmatprep.subr.mxu0 %v735
    %6602 = vmatpush1.msra.mxu0 %v734
    %6603 = vmatprep.subr.mxu0 %v732
    %6604 = vmatpush1.msra.mxu0 %v731
    %6605 = vmatprep.subr.mxu0 %v729
    %6606 = vmatpush1.msra.mxu0 %v728
    %6607 = vmatprep.subr.mxu0 %v726
    %6608 = vmatpush1.msra.mxu0 %v725
    %6609 = vmatprep.subr.mxu0 %v723
    %6610 = vmatpush1.msra.mxu0 %v722
    %6611 = vmatprep.subr.mxu0 %v720
    %6612 = vmatpush1.msra.mxu0 %v719
    %6613 = vmatprep.subr.mxu0 %v717
    %6614 = vmatpush1.msra.mxu0 %v716
    %6615 = vmatprep.subr.mxu0 %v714
    %6616 = vmatpush1.msra.mxu0 %v713
    %6617 = vmatprep.subr.mxu0 %v711
    %6618 = vmatpush1.msra.mxu0 %v710
    %6619 = vmatprep.subr.mxu0 %v708
    %6620 = vmatpush1.msra.mxu0 %v707
    %6621 = vmatprep.subr.mxu0 %v705
    %6622 = vmatpush1.msra.mxu0 %v704
    %6623 = vmatprep.subr.mxu0 %v702
    %6624 = vmatpush1.msra.mxu0 %v701
    %6625 = vmatprep.subr.mxu0 %v699
    %6626 = vmatpush1.msra.mxu0 %v698
    %6627 = vmatprep.subr.mxu0 %v696
    %6628 = vmatpush1.msra.mxu0 %v695
    %6629 = vmatprep.subr.mxu0 0.0
    %6630 = vmatpush2.msra.mxu0 0.0
    %6631 = vmatprep.subr.mxu0 0.0
    %6632 = vmatpush2.msra.mxu0 0.0
    %6633 = vmatprep.subr.mxu0 0.0
    %6634 = vmatpush2.msra.mxu0 0.0
    %6635 = vmatprep.subr.mxu0 0.0
    %6636 = vmatpush2.msra.mxu0 0.0
    %6637 = vmatprep.subr.mxu0 0.0
    %6638 = vmatpush2.msra.mxu0 0.0
    %6639 = vmatprep.subr.mxu0 0.0
    %6640 = vmatpush2.msra.mxu0 0.0
    %6641 = vmatprep.subr.mxu0 0.0
    %6642 = vmatpush2.msra.mxu0 0.0
    %6643 = vmatprep.subr.mxu0 0.0
    %6644 = vmatpush2.msra.mxu0 0.0
    %6645 = vmatprep.subr.mxu0 0.0
    %6646 = vmatpush2.msra.mxu0 0.0
    %6647 = vmatprep.subr.mxu0 0.0
    %6648 = vmatpush2.msra.mxu0 0.0
    %6649 = vmatprep.subr.mxu0 0.0
    %6650 = vmatpush2.msra.mxu0 0.0
    %6651 = vmatprep.subr.mxu0 0.0
    %6652 = vmatpush2.msra.mxu0 0.0
    %6653 = vmatprep.subr.mxu0 0.0
    %6654 = vmatpush2.msra.mxu0 0.0
    %6655 = vmatprep.subr.mxu0 0.0
    %6656 = vmatpush2.msra.mxu0 0.0
    %6657 = vmatprep.subr.mxu0 0.0
    %6658 = vmatpush2.msra.mxu0 0.0
    %6659 = vmatprep.subr.mxu0 0.0
    %6660 = vmatpush2.msra.mxu0 0.0
    %6661 = vmatprep.mubr.f32.mxu0 0.0
    %6662 = vmatmul.mubr.f32.gmra.mxu0 %v6596
    %v6663 = vpop.f32.mrf.mxu0
    %v6664 = vadd.f32 %v813, %v6663
    %v6665 = vpop.f32.mrf.mxu0
    %v6666 = vadd.f32 %v817, %v6665
    %6667 = vdwg.mxu0
    %6668 = vmatprep.subr.mxu0 0.0
    %6669 = vmatpush1.msra.mxu0 %v742
    %6670 = vmatprep.subr.mxu0 0.0
    %6671 = vmatpush1.msra.mxu0 %v739
    %6672 = vmatprep.subr.mxu0 0.0
    %6673 = vmatpush1.msra.mxu0 %v736
    %6674 = vmatprep.subr.mxu0 0.0
    %6675 = vmatpush1.msra.mxu0 %v733
    %6676 = vmatprep.subr.mxu0 0.0
    %6677 = vmatpush1.msra.mxu0 %v730
    %6678 = vmatprep.subr.mxu0 0.0
    %6679 = vmatpush1.msra.mxu0 %v727
    %6680 = vmatprep.subr.mxu0 0.0
    %6681 = vmatpush1.msra.mxu0 %v724
    %6682 = vmatprep.subr.mxu0 0.0
    %6683 = vmatpush1.msra.mxu0 %v721
    %6684 = vmatprep.subr.mxu0 0.0
    %6685 = vmatpush1.msra.mxu0 %v718
    %6686 = vmatprep.subr.mxu0 0.0
    %6687 = vmatpush1.msra.mxu0 %v715
    %6688 = vmatprep.subr.mxu0 0.0
    %6689 = vmatpush1.msra.mxu0 %v712
    %6690 = vmatprep.subr.mxu0 0.0
    %6691 = vmatpush1.msra.mxu0 %v709
    %6692 = vmatprep.subr.mxu0 0.0
    %6693 = vmatpush1.msra.mxu0 %v706
    %6694 = vmatprep.subr.mxu0 0.0
    %6695 = vmatpush1.msra.mxu0 %v703
    %6696 = vmatprep.subr.mxu0 0.0
    %6697 = vmatpush1.msra.mxu0 %v700
    %6698 = vmatprep.subr.mxu0 0.0
    %6699 = vmatpush1.msra.mxu0 %v697
    %6700 = vmatprep.subr.mxu0 0.0
    %6701 = vmatpush2.msra.mxu0 0.0
    %6702 = vmatprep.subr.mxu0 0.0
    %6703 = vmatpush2.msra.mxu0 0.0
    %6704 = vmatprep.subr.mxu0 0.0
    %6705 = vmatpush2.msra.mxu0 0.0
    %6706 = vmatprep.subr.mxu0 0.0
    %6707 = vmatpush2.msra.mxu0 0.0
    %6708 = vmatprep.subr.mxu0 0.0
    %6709 = vmatpush2.msra.mxu0 0.0
    %6710 = vmatprep.subr.mxu0 0.0
    %6711 = vmatpush2.msra.mxu0 0.0
    %6712 = vmatprep.subr.mxu0 0.0
    %6713 = vmatpush2.msra.mxu0 0.0
    %6714 = vmatprep.subr.mxu0 0.0
    %6715 = vmatpush2.msra.mxu0 0.0
    %6716 = vmatprep.subr.mxu0 0.0
    %6717 = vmatpush2.msra.mxu0 0.0
    %6718 = vmatprep.subr.mxu0 0.0
    %6719 = vmatpush2.msra.mxu0 0.0
    %6720 = vmatprep.subr.mxu0 0.0
    %6721 = vmatpush2.msra.mxu0 0.0
    %6722 = vmatprep.subr.mxu0 0.0
    %6723 = vmatpush2.msra.mxu0 0.0
    %6724 = vmatprep.subr.mxu0 0.0
    %6725 = vmatpush2.msra.mxu0 0.0
    %6726 = vmatprep.subr.mxu0 0.0
    %6727 = vmatpush2.msra.mxu0 0.0
    %6728 = vmatprep.subr.mxu0 0.0
    %6729 = vmatpush2.msra.mxu0 0.0
    %6730 = vmatprep.subr.mxu0 0.0
    %6731 = vmatpush2.msra.mxu0 0.0
    %6732 = vmatprep.mubr.f32.mxu0 0.0
    %6733 = vmatmul.mubr.f32.gmra.mxu0 %v6596
    %v6734 = vpop.f32.mrf.mxu0
    %v6735 = vadd.f32 %v821, %v6734
    %v6736 = vpop.f32.mrf.mxu0
    %6737 = vdwg.mxu0
    %6738 = vmatprep.subr.mxu0 %v789
    %6739 = vmatpush1.msra.mxu0 %v788
    %6740 = vmatprep.subr.mxu0 %v786
    %6741 = vmatpush1.msra.mxu0 %v785
    %6742 = vmatprep.subr.mxu0 %v783
    %6743 = vmatpush1.msra.mxu0 %v782
    %6744 = vmatprep.subr.mxu0 %v780
    %6745 = vmatpush1.msra.mxu0 %v779
    %6746 = vmatprep.subr.mxu0 %v777
    %6747 = vmatpush1.msra.mxu0 %v776
    %6748 = vmatprep.subr.mxu0 %v774
    %6749 = vmatpush1.msra.mxu0 %v773
    %6750 = vmatprep.subr.mxu0 %v771
    %6751 = vmatpush1.msra.mxu0 %v770
    %6752 = vmatprep.subr.mxu0 %v768
    %6753 = vmatpush1.msra.mxu0 %v767
    %6754 = vmatprep.subr.mxu0 %v765
    %6755 = vmatpush1.msra.mxu0 %v764
    %6756 = vmatprep.subr.mxu0 %v762
    %6757 = vmatpush1.msra.mxu0 %v761
    %6758 = vmatprep.subr.mxu0 %v759
    %6759 = vmatpush1.msra.mxu0 %v758
    %6760 = vmatprep.subr.mxu0 %v756
    %6761 = vmatpush1.msra.mxu0 %v755
    %6762 = vmatprep.subr.mxu0 %v753
    %6763 = vmatpush1.msra.mxu0 %v752
    %6764 = vmatprep.subr.mxu0 %v750
    %6765 = vmatpush1.msra.mxu0 %v749
    %6766 = vmatprep.subr.mxu0 %v747
    %6767 = vmatpush1.msra.mxu0 %v746
    %6768 = vmatprep.subr.mxu0 %v744
    %6769 = vmatpush1.msra.mxu0 %v743
    %6770 = vmatprep.subr.mxu0 0.0
    %6771 = vmatpush2.msra.mxu0 0.0
    %6772 = vmatprep.subr.mxu0 0.0
    %6773 = vmatpush2.msra.mxu0 0.0
    %6774 = vmatprep.subr.mxu0 0.0
    %6775 = vmatpush2.msra.mxu0 0.0
    %6776 = vmatprep.subr.mxu0 0.0
    %6777 = vmatpush2.msra.mxu0 0.0
    %6778 = vmatprep.subr.mxu0 0.0
    %6779 = vmatpush2.msra.mxu0 0.0
    %6780 = vmatprep.subr.mxu0 0.0
    %6781 = vmatpush2.msra.mxu0 0.0
    %6782 = vmatprep.subr.mxu0 0.0
    %6783 = vmatpush2.msra.mxu0 0.0
    %6784 = vmatprep.subr.mxu0 0.0
    %6785 = vmatpush2.msra.mxu0 0.0
    %6786 = vmatprep.subr.mxu0 0.0
    %6787 = vmatpush2.msra.mxu0 0.0
    %6788 = vmatprep.subr.mxu0 0.0
    %6789 = vmatpush2.msra.mxu0 0.0
    %6790 = vmatprep.subr.mxu0 0.0
    %6791 = vmatpush2.msra.mxu0 0.0
    %6792 = vmatprep.subr.mxu0 0.0
    %6793 = vmatpush2.msra.mxu0 0.0
    %6794 = vmatprep.subr.mxu0 0.0
    %6795 = vmatpush2.msra.mxu0 0.0
    %6796 = vmatprep.subr.mxu0 0.0
    %6797 = vmatpush2.msra.mxu0 0.0
    %6798 = vmatprep.subr.mxu0 0.0
    %6799 = vmatpush2.msra.mxu0 0.0
    %6800 = vmatprep.subr.mxu0 0.0
    %6801 = vmatpush2.msra.mxu0 0.0
    %6802 = vmatprep.mubr.f32.mxu0 0.0
    %6803 = vmatmul.mubr.f32.gmra.mxu0 %v5704
    %v6804 = vpop.f32.mrf.mxu0
    %v6805 = vadd.f32 %v830, %v6804
    %v6806 = vpop.f32.mrf.mxu0
    %v6807 = vadd.f32 %v834, %v6806
    %6808 = vdwg.mxu0
    %6809 = vmatprep.subr.mxu0 0.0
    %6810 = vmatpush1.msra.mxu0 %v790
    %6811 = vmatprep.subr.mxu0 0.0
    %6812 = vmatpush1.msra.mxu0 %v787
    %6813 = vmatprep.subr.mxu0 0.0
    %6814 = vmatpush1.msra.mxu0 %v784
    %6815 = vmatprep.subr.mxu0 0.0
    %6816 = vmatpush1.msra.mxu0 %v781
    %6817 = vmatprep.subr.mxu0 0.0
    %6818 = vmatpush1.msra.mxu0 %v778
    %6819 = vmatprep.subr.mxu0 0.0
    %6820 = vmatpush1.msra.mxu0 %v775
    %6821 = vmatprep.subr.mxu0 0.0
    %6822 = vmatpush1.msra.mxu0 %v772
    %6823 = vmatprep.subr.mxu0 0.0
    %6824 = vmatpush1.msra.mxu0 %v769
    %6825 = vmatprep.subr.mxu0 0.0
    %6826 = vmatpush1.msra.mxu0 %v766
    %6827 = vmatprep.subr.mxu0 0.0
    %6828 = vmatpush1.msra.mxu0 %v763
    %6829 = vmatprep.subr.mxu0 0.0
    %6830 = vmatpush1.msra.mxu0 %v760
    %6831 = vmatprep.subr.mxu0 0.0
    %6832 = vmatpush1.msra.mxu0 %v757
    %6833 = vmatprep.subr.mxu0 0.0
    %6834 = vmatpush1.msra.mxu0 %v754
    %6835 = vmatprep.subr.mxu0 0.0
    %6836 = vmatpush1.msra.mxu0 %v751
    %6837 = vmatprep.subr.mxu0 0.0
    %6838 = vmatpush1.msra.mxu0 %v748
    %6839 = vmatprep.subr.mxu0 0.0
    %6840 = vmatpush1.msra.mxu0 %v745
    %6841 = vmatprep.subr.mxu0 0.0
    %6842 = vmatpush2.msra.mxu0 0.0
    %6843 = vmatprep.subr.mxu0 0.0
    %6844 = vmatpush2.msra.mxu0 0.0
    %6845 = vmatprep.subr.mxu0 0.0
    %6846 = vmatpush2.msra.mxu0 0.0
    %6847 = vmatprep.subr.mxu0 0.0
    %6848 = vmatpush2.msra.mxu0 0.0
    %6849 = vmatprep.subr.mxu0 0.0
    %6850 = vmatpush2.msra.mxu0 0.0
    %6851 = vmatprep.subr.mxu0 0.0
    %6852 = vmatpush2.msra.mxu0 0.0
    %6853 = vmatprep.subr.mxu0 0.0
    %6854 = vmatpush2.msra.mxu0 0.0
    %6855 = vmatprep.subr.mxu0 0.0
    %6856 = vmatpush2.msra.mxu0 0.0
    %6857 = vmatprep.subr.mxu0 0.0
    %6858 = vmatpush2.msra.mxu0 0.0
    %6859 = vmatprep.subr.mxu0 0.0
    %6860 = vmatpush2.msra.mxu0 0.0
    %6861 = vmatprep.subr.mxu0 0.0
    %6862 = vmatpush2.msra.mxu0 0.0
    %6863 = vmatprep.subr.mxu0 0.0
    %6864 = vmatpush2.msra.mxu0 0.0
    %6865 = vmatprep.subr.mxu0 0.0
    %6866 = vmatpush2.msra.mxu0 0.0
    %6867 = vmatprep.subr.mxu0 0.0
    %6868 = vmatpush2.msra.mxu0 0.0
    %6869 = vmatprep.subr.mxu0 0.0
    %6870 = vmatpush2.msra.mxu0 0.0
    %6871 = vmatprep.subr.mxu0 0.0
    %6872 = vmatpush2.msra.mxu0 0.0
    %6873 = vmatprep.mubr.f32.mxu0 0.0
    %6874 = vmatmul.mubr.f32.gmra.mxu0 %v5704
    %v6875 = vpop.f32.mrf.mxu0
    %v6876 = vadd.f32 %v838, %v6875
    %v6877 = vpop.f32.mrf.mxu0
    %6878 = vdwg.mxu0
    %v6879 = vadd.f32 %v6664, %v6805
    %v6880 = vxor.u32 %v6879, 2147483648
    %v6881 = vmul.f32 %v6880, 1.442695
    %v6882 = vpow.pop %v6881
    %v6883 = vadd.f32 %v6882, 1.0
    %v6884 = vrcp.pop %v6883
    %v6885 = vmul.f32 1.0, %v6884
    %v6886 = vadd.f32 %v6666, %v6807
    %v6887 = vxor.u32 %v6886, 2147483648
    %v6888 = vmul.f32 %v6887, 1.442695
    %v6889 = vpow.pop %v6888
    %v6890 = vadd.f32 %v6889, 1.0
    %v6891 = vrcp.pop %v6890
    %v6892 = vmul.f32 1.0, %v6891
    %v6893 = vmul.f32 %v6885, %v6876
    %v6894 = vadd.f32 %v6735, %v6893
    %v6895 = vtanh.pop %v6894
    %v6896 = vsub.f32 1.0, %v6892
    %v6897 = vmul.f32 %v6896, %v6895
    %v6898 = vmul.f32 %v6892, %v5704
    %v6899 = vadd.f32 %v6897, %v6898
    %6900 = vst [vmem:[#allocation2 + $0x20] sm:$0xff] %v6899
    %6901 = vmatprep.subr.mxu0 0.0
    %6902 = vmatpush1.msra.mxu0 %v597
    %6903 = vmatprep.subr.mxu0 0.0
    %6904 = vmatpush1.msra.mxu0 %v596
    %6905 = vmatprep.subr.mxu0 0.0
    %6906 = vmatpush1.msra.mxu0 %v595
    %6907 = vmatprep.subr.mxu0 0.0
    %6908 = vmatpush1.msra.mxu0 %v594
    %6909 = vmatprep.subr.mxu0 0.0
    %6910 = vmatpush1.msra.mxu0 %v593
    %6911 = vmatprep.subr.mxu0 0.0
    %6912 = vmatpush1.msra.mxu0 %v592
    %6913 = vmatprep.subr.mxu0 0.0
    %6914 = vmatpush1.msra.mxu0 %v591
    %6915 = vmatprep.subr.mxu0 0.0
    %6916 = vmatpush1.msra.mxu0 %v590
    %6917 = vmatprep.subr.mxu0 0.0
    %6918 = vmatpush1.msra.mxu0 %v589
    %6919 = vmatprep.subr.mxu0 0.0
    %6920 = vmatpush1.msra.mxu0 %v588
    %6921 = vmatprep.subr.mxu0 0.0
    %6922 = vmatpush1.msra.mxu0 %v587
    %6923 = vmatprep.subr.mxu0 0.0
    %6924 = vmatpush1.msra.mxu0 %v586
    %6925 = vmatprep.subr.mxu0 0.0
    %6926 = vmatpush1.msra.mxu0 %v585
    %6927 = vmatprep.subr.mxu0 0.0
    %6928 = vmatpush1.msra.mxu0 %v584
    %6929 = vmatprep.subr.mxu0 0.0
    %6930 = vmatpush1.msra.mxu0 %v583
    %6931 = vmatprep.subr.mxu0 0.0
    %6932 = vmatpush1.msra.mxu0 %v582
    %6933 = vmatprep.subr.mxu0 0.0
    %6934 = vmatpush2.msra.mxu0 0.0
    %6935 = vmatprep.subr.mxu0 0.0
    %6936 = vmatpush2.msra.mxu0 0.0
    %6937 = vmatprep.subr.mxu0 0.0
    %6938 = vmatpush2.msra.mxu0 0.0
    %6939 = vmatprep.subr.mxu0 0.0
    %6940 = vmatpush2.msra.mxu0 0.0
    %6941 = vmatprep.subr.mxu0 0.0
    %6942 = vmatpush2.msra.mxu0 0.0
    %6943 = vmatprep.subr.mxu0 0.0
    %6944 = vmatpush2.msra.mxu0 0.0
    %6945 = vmatprep.subr.mxu0 0.0
    %6946 = vmatpush2.msra.mxu0 0.0
    %6947 = vmatprep.subr.mxu0 0.0
    %6948 = vmatpush2.msra.mxu0 0.0
    %6949 = vmatprep.subr.mxu0 0.0
    %6950 = vmatpush2.msra.mxu0 0.0
    %6951 = vmatprep.subr.mxu0 0.0
    %6952 = vmatpush2.msra.mxu0 0.0
    %6953 = vmatprep.subr.mxu0 0.0
    %6954 = vmatpush2.msra.mxu0 0.0
    %6955 = vmatprep.subr.mxu0 0.0
    %6956 = vmatpush2.msra.mxu0 0.0
    %6957 = vmatprep.subr.mxu0 0.0
    %6958 = vmatpush2.msra.mxu0 0.0
    %6959 = vmatprep.subr.mxu0 0.0
    %6960 = vmatpush2.msra.mxu0 0.0
    %6961 = vmatprep.subr.mxu0 0.0
    %6962 = vmatpush2.msra.mxu0 0.0
    %6963 = vmatprep.subr.mxu0 0.0
    %6964 = vmatpush2.msra.mxu0 0.0
    %6965 = vmatprep.mubr.f32.mxu0 0.0
    %6966 = vmatmul.mubr.f32.gmra.mxu0 %v6899
    %v6967 = vpop.f32.mrf.mxu0
    %v6968 = vadd.f32 0.0, %v6967
    %v6969 = vpop.f32.mrf.mxu0
    %6970 = vdwg.mxu0
    %v6972 = vcombine.high %v6968, %v6968
    %v6974 = vunpack.c.l.s4 1966171168
    %v6975 = vunpack.c.0.s8 %v6974
    %v6976 = vlaneseq
    %v6977 = vshrl.u32 %v6976, 7
    %v6978 = vsub.s32 %v6975, %v6977
    %v6979 = vrot.slane %v6968, %v6978
    %v6981 = vunpack.c.l.s4 1966171168
    %v6982 = vunpack.c.0.s8 %v6981
    %v6983 = vlaneseq
    %v6984 = vshrl.u32 %v6983, 7
    %v6985 = vsub.s32 %v6982, %v6984
    %v6986 = vrot.slane %v6972, %v6985
    %v6987 = vcombine.high %v6979, %v6979
    %v6988 = vcombine.high %v6986, %v6986
    %v6990 = vunpack.c.l.s4 1966171168
    %v6991 = vunpack.c.0.s8 %v6990
    %v6992 = vlaneseq
    %v6993 = vshrl.u32 %v6992, 7
    %v6994 = vsub.s32 %v6991, %v6993
    %v6995 = vrot.slane %v6979, %v6994
    %v6997 = vunpack.c.l.s4 1966171168
    %v6998 = vunpack.c.0.s8 %v6997
    %v6999 = vlaneseq
    %v7000 = vshrl.u32 %v6999, 7
    %v7001 = vsub.s32 %v6998, %v7000
    %v7002 = vrot.slane %v6986, %v7001
    %v7004 = vunpack.c.l.s4 1966171168
    %v7005 = vunpack.c.0.s8 %v7004
    %v7006 = vlaneseq
    %v7007 = vshrl.u32 %v7006, 7
    %v7008 = vsub.s32 %v7005, %v7007
    %v7009 = vrot.slane %v6987, %v7008
    %v7011 = vunpack.c.l.s4 1966171168
    %v7012 = vunpack.c.0.s8 %v7011
    %v7013 = vlaneseq
    %v7014 = vshrl.u32 %v7013, 7
    %v7015 = vsub.s32 %v7012, %v7014
    %v7016 = vrot.slane %v6988, %v7015
    %v7017 = vcombine.high %v6995, %v6995
    %v7018 = vcombine.high %v7002, %v7002
    %v7019 = vcombine.high %v7009, %v7009
    %v7020 = vcombine.high %v7016, %v7016
    %v7021 = vlaneseq
    %v7022 = vshrl.u32 %v7021, 7
    %v7023 = vsub.s32 0, %v7022
    %v7024 = vrot.slane %v6995, %v7023
    %v7025 = vlaneseq
    %v7026 = vshrl.u32 %v7025, 7
    %v7027 = vsub.s32 0, %v7026
    %v7028 = vrot.slane %v7009, %v7027
    %v7029 = vlaneseq
    %v7030 = vshrl.u32 %v7029, 7
    %v7031 = vsub.s32 0, %v7030
    %v7032 = vrot.slane %v7017, %v7031
    %v7033 = vlaneseq
    %v7034 = vshrl.u32 %v7033, 7
    %v7035 = vsub.s32 0, %v7034
    %v7036 = vrot.slane %v7019, %v7035
    %v7037 = vlaneseq
    %v7038 = vshrl.u32 %v7037, 7
    %v7039 = vsub.s32 0, %v7038
    %v7040 = vrot.slane %v7002, %v7039
    %v7041 = vlaneseq
    %v7042 = vshrl.u32 %v7041, 7
    %v7043 = vsub.s32 0, %v7042
    %v7044 = vrot.slane %v7016, %v7043
    %v7045 = vlaneseq
    %v7046 = vshrl.u32 %v7045, 7
    %v7047 = vsub.s32 0, %v7046
    %v7048 = vrot.slane %v7018, %v7047
    %v7049 = vlaneseq
    %v7050 = vshrl.u32 %v7049, 7
    %v7051 = vsub.s32 0, %v7050
    %v7052 = vrot.slane %v7020, %v7051
    %v7061 = vadd.f32 %v7024, %v300
    %v7062 = vadd.f32 %v7028, %v305
    %v7063 = vadd.f32 %v7032, %v310
    %v7064 = vadd.f32 %v7036, %v315
    %v7065 = vadd.f32 %v7040, %v320
    %v7066 = vadd.f32 %v7044, %v325
    %v7067 = vadd.f32 %v7048, %v330
    %v7068 = vadd.f32 %v7052, %v335
    %v7069 = vtanh.pop %v7061
    %v7070 = vtanh.pop %v7062
    %v7071 = vtanh.pop %v7063
    %v7072 = vtanh.pop %v7064
    %v7073 = vtanh.pop %v7065
    %v7074 = vtanh.pop %v7066
    %v7075 = vtanh.pop %v7067
    %v7076 = vtanh.pop %v7068
    %v7077 = vmul.f32 %v7069, %v1025
    %v7078 = vmul.f32 %v7070, %v1025
    %v7079 = vmul.f32 %v7071, %v1025
    %v7080 = vmul.f32 %v7072, %v1025
    %v7081 = vmul.f32 %v7073, %v1025
    %v7082 = vmul.f32 %v7074, %v1025
    %v7083 = vmul.f32 %v7075, %v1025
    %v7084 = vmul.f32 %v7076, %v1025
    %7085 = vadd.xlane.f32.xlu0 %v7077
    %v7086 = vpop.xlane.xlu0 %7085
    %7087 = vadd.xlane.f32.xlu0 %v7078
    %v7088 = vpop.xlane.xlu0 %7087
    %7089 = vadd.xlane.f32.xlu0 %v7079
    %v7090 = vpop.xlane.xlu0 %7089
    %7091 = vadd.xlane.f32.xlu0 %v7080
    %v7092 = vpop.xlane.xlu0 %7091
    %7093 = vadd.xlane.f32.xlu0 %v7081
    %v7094 = vpop.xlane.xlu0 %7093
    %7095 = vadd.xlane.f32.xlu0 %v7082
    %v7096 = vpop.xlane.xlu0 %7095
    %7097 = vadd.xlane.f32.xlu0 %v7083
    %v7098 = vpop.xlane.xlu0 %7097
    %7099 = vadd.xlane.f32.xlu0 %v7084
    %v7100 = vpop.xlane.xlu0 %7099
    %v7101 = vadd.f32 %v7086, %v1058
    %v7102 = vadd.f32 %v7088, %v1065
    %v7103 = vadd.f32 %v7090, %v1072
    %v7104 = vadd.f32 %v7092, %v1079
    %v7105 = vadd.f32 %v7094, %v1086
    %v7106 = vadd.f32 %v7096, %v1093
    %v7107 = vadd.f32 %v7098, %v1100
    %v7108 = vadd.f32 %v7100, %v1107
    %7117 = vset.pattern.permute.xlu0 0
    %7118 = vperm.xlu0 %7117, %v7101
    %v7119 = vpop.permute.xlu0 %7118
    %7120 = vset.pattern.permute.xlu0 0
    %7121 = vperm.xlu0 %7120, %v7102
    %v7122 = vpop.permute.xlu0 %7121
    %7123 = vset.pattern.permute.xlu0 0
    %7124 = vperm.xlu0 %7123, %v7103
    %v7125 = vpop.permute.xlu0 %7124
    %7126 = vset.pattern.permute.xlu0 0
    %7127 = vperm.xlu0 %7126, %v7104
    %v7128 = vpop.permute.xlu0 %7127
    %7129 = vset.pattern.permute.xlu0 0
    %7130 = vperm.xlu0 %7129, %v7105
    %v7131 = vpop.permute.xlu0 %7130
    %7132 = vset.pattern.permute.xlu0 0
    %7133 = vperm.xlu0 %7132, %v7106
    %v7134 = vpop.permute.xlu0 %7133
    %7135 = vset.pattern.permute.xlu0 0
    %7136 = vperm.xlu0 %7135, %v7107
    %v7137 = vpop.permute.xlu0 %7136
    %7138 = vset.pattern.permute.xlu0 0
    %7139 = vperm.xlu0 %7138, %v7108
    %v7140 = vpop.permute.xlu0 %7139
    %v7141 = vlaneseq
    %v7142 = vshrl.u32 %v7141, 7
    %v7143 = vsub.s32 %v1157, %v7142
    %v7144 = vrot.slane %v7119, %v7143
    %v7145 = vlaneseq
    %v7146 = vshrl.u32 %v7145, 7
    %v7147 = vsub.s32 %v1157, %v7146
    %v7148 = vrot.slane %v7122, %v7147
    %v7149 = vlaneseq
    %v7150 = vshrl.u32 %v7149, 7
    %v7151 = vsub.s32 %v1157, %v7150
    %v7152 = vrot.slane %v7125, %v7151
    %v7153 = vlaneseq
    %v7154 = vshrl.u32 %v7153, 7
    %v7155 = vsub.s32 %v1157, %v7154
    %v7156 = vrot.slane %v7128, %v7155
    %v7157 = vlaneseq
    %v7158 = vshrl.u32 %v7157, 7
    %v7159 = vsub.s32 %v1157, %v7158
    %v7160 = vrot.slane %v7131, %v7159
    %v7161 = vlaneseq
    %v7162 = vshrl.u32 %v7161, 7
    %v7163 = vsub.s32 %v1157, %v7162
    %v7164 = vrot.slane %v7134, %v7163
    %v7165 = vlaneseq
    %v7166 = vshrl.u32 %v7165, 7
    %v7167 = vsub.s32 %v1157, %v7166
    %v7168 = vrot.slane %v7137, %v7167
    %v7169 = vlaneseq
    %v7170 = vshrl.u32 %v7169, 7
    %v7171 = vsub.s32 %v1157, %v7170
    %v7172 = vrot.slane %v7140, %v7171
    %v7173 = vsel %vm1190, %v7148, %v7144
    %v7174 = vsel %vm1192, %v7152, %v7173
    %v7175 = vsel %vm1194, %v7156, %v7174
    %v7176 = vsel %vm1196, %v7160, %v7175
    %v7177 = vsel %vm1198, %v7164, %v7176
    %v7178 = vsel %vm1200, %v7168, %v7177
    %v7179 = vsel %vm1202, %v7172, %v7178
    %v7181 = vsel %vm1205, %v7179, -inf
    %7182 = vmax.xlane.f32.xlu0 %v7181
    %v7183 = vpop.xlane.xlu0 %7182
    %v7185 = vlaneseq
    %v7186 = vshrl.u32 %v7185, 7
    %v7187 = vsub.s32 0, %v7186
    %v7188 = vrot.slane %v7183, %v7187
    %v7189 = vlaneseq
    %v7190 = vshrl.u32 %v7189, 7
    %v7191 = vsub.s32 1, %v7190
    %v7192 = vrot.slane %v7183, %v7191
    %v7193 = vlaneseq
    %v7194 = vshrl.u32 %v7193, 7
    %v7195 = vsub.s32 2, %v7194
    %v7196 = vrot.slane %v7183, %v7195
    %v7197 = vlaneseq
    %v7198 = vshrl.u32 %v7197, 7
    %v7199 = vsub.s32 3, %v7198
    %v7200 = vrot.slane %v7183, %v7199
    %v7201 = vlaneseq
    %v7202 = vshrl.u32 %v7201, 7
    %v7203 = vsub.s32 4, %v7202
    %v7204 = vrot.slane %v7183, %v7203
    %v7205 = vlaneseq
    %v7206 = vshrl.u32 %v7205, 7
    %v7207 = vsub.s32 5, %v7206
    %v7208 = vrot.slane %v7183, %v7207
    %v7209 = vlaneseq
    %v7210 = vshrl.u32 %v7209, 7
    %v7211 = vsub.s32 6, %v7210
    %v7212 = vrot.slane %v7183, %v7211
    %v7213 = vlaneseq
    %v7214 = vshrl.u32 %v7213, 7
    %v7215 = vsub.s32 7, %v7214
    %v7216 = vrot.slane %v7183, %v7215
    %v7225 = vsub.f32 %v7101, %v7188
    %v7226 = vsub.f32 %v7102, %v7192
    %v7227 = vsub.f32 %v7103, %v7196
    %v7228 = vsub.f32 %v7104, %v7200
    %v7229 = vsub.f32 %v7105, %v7204
    %v7230 = vsub.f32 %v7106, %v7208
    %v7231 = vsub.f32 %v7107, %v7212
    %v7232 = vsub.f32 %v7108, %v7216
    %v7233 = vmul.f32 %v7225, 1.442695
    %v7234 = vpow.pop %v7233
    %v7235 = vmul.f32 %v7226, 1.442695
    %v7236 = vpow.pop %v7235
    %v7237 = vmul.f32 %v7227, 1.442695
    %v7238 = vpow.pop %v7237
    %v7239 = vmul.f32 %v7228, 1.442695
    %v7240 = vpow.pop %v7239
    %v7241 = vmul.f32 %v7229, 1.442695
    %v7242 = vpow.pop %v7241
    %v7243 = vmul.f32 %v7230, 1.442695
    %v7244 = vpow.pop %v7243
    %v7245 = vmul.f32 %v7231, 1.442695
    %v7246 = vpow.pop %v7245
    %v7247 = vmul.f32 %v7232, 1.442695
    %v7248 = vpow.pop %v7247
    %7257 = vset.pattern.permute.xlu0 0
    %7258 = vperm.xlu0 %7257, %v7234
    %v7259 = vpop.permute.xlu0 %7258
    %7260 = vset.pattern.permute.xlu0 0
    %7261 = vperm.xlu0 %7260, %v7236
    %v7262 = vpop.permute.xlu0 %7261
    %7263 = vset.pattern.permute.xlu0 0
    %7264 = vperm.xlu0 %7263, %v7238
    %v7265 = vpop.permute.xlu0 %7264
    %7266 = vset.pattern.permute.xlu0 0
    %7267 = vperm.xlu0 %7266, %v7240
    %v7268 = vpop.permute.xlu0 %7267
    %7269 = vset.pattern.permute.xlu0 0
    %7270 = vperm.xlu0 %7269, %v7242
    %v7271 = vpop.permute.xlu0 %7270
    %7272 = vset.pattern.permute.xlu0 0
    %7273 = vperm.xlu0 %7272, %v7244
    %v7274 = vpop.permute.xlu0 %7273
    %7275 = vset.pattern.permute.xlu0 0
    %7276 = vperm.xlu0 %7275, %v7246
    %v7277 = vpop.permute.xlu0 %7276
    %7278 = vset.pattern.permute.xlu0 0
    %7279 = vperm.xlu0 %7278, %v7248
    %v7280 = vpop.permute.xlu0 %7279
    %v7281 = vlaneseq
    %v7282 = vshrl.u32 %v7281, 7
    %v7283 = vsub.s32 %v1157, %v7282
    %v7284 = vrot.slane %v7259, %v7283
    %v7285 = vlaneseq
    %v7286 = vshrl.u32 %v7285, 7
    %v7287 = vsub.s32 %v1157, %v7286
    %v7288 = vrot.slane %v7262, %v7287
    %v7289 = vlaneseq
    %v7290 = vshrl.u32 %v7289, 7
    %v7291 = vsub.s32 %v1157, %v7290
    %v7292 = vrot.slane %v7265, %v7291
    %v7293 = vlaneseq
    %v7294 = vshrl.u32 %v7293, 7
    %v7295 = vsub.s32 %v1157, %v7294
    %v7296 = vrot.slane %v7268, %v7295
    %v7297 = vlaneseq
    %v7298 = vshrl.u32 %v7297, 7
    %v7299 = vsub.s32 %v1157, %v7298
    %v7300 = vrot.slane %v7271, %v7299
    %v7301 = vlaneseq
    %v7302 = vshrl.u32 %v7301, 7
    %v7303 = vsub.s32 %v1157, %v7302
    %v7304 = vrot.slane %v7274, %v7303
    %v7305 = vlaneseq
    %v7306 = vshrl.u32 %v7305, 7
    %v7307 = vsub.s32 %v1157, %v7306
    %v7308 = vrot.slane %v7277, %v7307
    %v7309 = vlaneseq
    %v7310 = vshrl.u32 %v7309, 7
    %v7311 = vsub.s32 %v1157, %v7310
    %v7312 = vrot.slane %v7280, %v7311
    %v7313 = vsel %vm1190, %v7288, %v7284
    %v7314 = vsel %vm1192, %v7292, %v7313
    %v7315 = vsel %vm1194, %v7296, %v7314
    %v7316 = vsel %vm1196, %v7300, %v7315
    %v7317 = vsel %vm1198, %v7304, %v7316
    %v7318 = vsel %vm1200, %v7308, %v7317
    %v7319 = vsel %vm1202, %v7312, %v7318
    %v7321 = vsel %vm1205, %v7319, 0.0
    %7322 = vadd.xlane.f32.xlu0 %v7321
    %v7323 = vpop.xlane.xlu0 %7322
    %v7324 = vrcp.pop %v7323
    %v7326 = vlaneseq
    %v7327 = vshrl.u32 %v7326, 7
    %v7328 = vsub.s32 0, %v7327
    %v7329 = vrot.slane %v7324, %v7328
    %v7330 = vlaneseq
    %v7331 = vshrl.u32 %v7330, 7
    %v7332 = vsub.s32 1, %v7331
    %v7333 = vrot.slane %v7324, %v7332
    %v7334 = vlaneseq
    %v7335 = vshrl.u32 %v7334, 7
    %v7336 = vsub.s32 2, %v7335
    %v7337 = vrot.slane %v7324, %v7336
    %v7338 = vlaneseq
    %v7339 = vshrl.u32 %v7338, 7
    %v7340 = vsub.s32 3, %v7339
    %v7341 = vrot.slane %v7324, %v7340
    %v7342 = vlaneseq
    %v7343 = vshrl.u32 %v7342, 7
    %v7344 = vsub.s32 4, %v7343
    %v7345 = vrot.slane %v7324, %v7344
    %v7346 = vlaneseq
    %v7347 = vshrl.u32 %v7346, 7
    %v7348 = vsub.s32 5, %v7347
    %v7349 = vrot.slane %v7324, %v7348
    %v7350 = vlaneseq
    %v7351 = vshrl.u32 %v7350, 7
    %v7352 = vsub.s32 6, %v7351
    %v7353 = vrot.slane %v7324, %v7352
    %v7354 = vlaneseq
    %v7355 = vshrl.u32 %v7354, 7
    %v7356 = vsub.s32 7, %v7355
    %v7357 = vrot.slane %v7324, %v7356
    %v7366 = vmul.f32 %v7234, %v7329
    %v7367 = vmul.f32 %v7236, %v7333
    %v7368 = vmul.f32 %v7238, %v7337
    %v7369 = vmul.f32 %v7240, %v7341
    %v7370 = vmul.f32 %v7242, %v7345
    %v7371 = vmul.f32 %v7244, %v7349
    %v7372 = vmul.f32 %v7246, %v7353
    %v7373 = vmul.f32 %v7248, %v7357
    %7375 = vset.pattern.permute.xlu0 0
    %7376 = vperm.xlu0 %7375, %v7366
    %v7377 = vpop.permute.xlu0 %7376
    %7380 = vset.pattern.permute.xlu0 0
    %7381 = vperm.xlu0 %7380, %v7367
    %v7382 = vpop.permute.xlu0 %7381
    %7385 = vset.pattern.permute.xlu0 0
    %7386 = vperm.xlu0 %7385, %v7368
    %v7387 = vpop.permute.xlu0 %7386
    %7390 = vset.pattern.permute.xlu0 0
    %7391 = vperm.xlu0 %7390, %v7369
    %v7392 = vpop.permute.xlu0 %7391
    %7395 = vset.pattern.permute.xlu0 0
    %7396 = vperm.xlu0 %7395, %v7370
    %v7397 = vpop.permute.xlu0 %7396
    %7400 = vset.pattern.permute.xlu0 0
    %7401 = vperm.xlu0 %7400, %v7371
    %v7402 = vpop.permute.xlu0 %7401
    %7405 = vset.pattern.permute.xlu0 0
    %7406 = vperm.xlu0 %7405, %v7372
    %v7407 = vpop.permute.xlu0 %7406
    %7410 = vset.pattern.permute.xlu0 0
    %7411 = vperm.xlu0 %7410, %v7373
    %v7412 = vpop.permute.xlu0 %7411
    %v7414 = vmul.f32 %v7377, %v208
    %v7415 = vmul.f32 %v7382, %v209
    %v7416 = vmul.f32 %v7387, %v210
    %v7417 = vmul.f32 %v7392, %v211
    %v7418 = vmul.f32 %v7397, %v212
    %v7419 = vmul.f32 %v7402, %v213
    %v7420 = vmul.f32 %v7407, %v214
    %v7421 = vmul.f32 %v7412, %v215
    %v7422 = vrot.slane %v7414, 4
    %v7423 = vadd.f32 %v7414, %v7422
    %v7424 = vrot.slane %v7423, 2
    %v7425 = vadd.f32 %v7423, %v7424
    %v7426 = vrot.slane %v7425, 1
    %v7427 = vadd.f32 %v7425, %v7426
    %v7428 = vrot.slane %v7415, 4
    %v7429 = vadd.f32 %v7415, %v7428
    %v7430 = vrot.slane %v7429, 2
    %v7431 = vadd.f32 %v7429, %v7430
    %v7432 = vrot.slane %v7431, 1
    %v7433 = vadd.f32 %v7431, %v7432
    %v7434 = vrot.slane %v7416, 4
    %v7435 = vadd.f32 %v7416, %v7434
    %v7436 = vrot.slane %v7435, 2
    %v7437 = vadd.f32 %v7435, %v7436
    %v7438 = vrot.slane %v7437, 1
    %v7439 = vadd.f32 %v7437, %v7438
    %v7440 = vrot.slane %v7417, 4
    %v7441 = vadd.f32 %v7417, %v7440
    %v7442 = vrot.slane %v7441, 2
    %v7443 = vadd.f32 %v7441, %v7442
    %v7444 = vrot.slane %v7443, 1
    %v7445 = vadd.f32 %v7443, %v7444
    %v7446 = vrot.slane %v7418, 4
    %v7447 = vadd.f32 %v7418, %v7446
    %v7448 = vrot.slane %v7447, 2
    %v7449 = vadd.f32 %v7447, %v7448
    %v7450 = vrot.slane %v7449, 1
    %v7451 = vadd.f32 %v7449, %v7450
    %v7452 = vrot.slane %v7419, 4
    %v7453 = vadd.f32 %v7419, %v7452
    %v7454 = vrot.slane %v7453, 2
    %v7455 = vadd.f32 %v7453, %v7454
    %v7456 = vrot.slane %v7455, 1
    %v7457 = vadd.f32 %v7455, %v7456
    %v7458 = vrot.slane %v7420, 4
    %v7459 = vadd.f32 %v7420, %v7458
    %v7460 = vrot.slane %v7459, 2
    %v7461 = vadd.f32 %v7459, %v7460
    %v7462 = vrot.slane %v7461, 1
    %v7463 = vadd.f32 %v7461, %v7462
    %v7464 = vrot.slane %v7421, 4
    %v7465 = vadd.f32 %v7421, %v7464
    %v7466 = vrot.slane %v7465, 2
    %v7467 = vadd.f32 %v7465, %v7466
    %v7468 = vrot.slane %v7467, 1
    %v7469 = vadd.f32 %v7467, %v7468
    %v7478 = vsel %vm1190, %v7433, %v7427
    %v7479 = vsel %vm1192, %v7439, %v7478
    %v7480 = vsel %vm1194, %v7445, %v7479
    %v7481 = vsel %vm1196, %v7451, %v7480
    %v7482 = vsel %vm1198, %v7457, %v7481
    %v7483 = vsel %vm1200, %v7463, %v7482
    %v7484 = vsel %vm1202, %v7469, %v7483
    %7486 = vmatprep.subr.mxu0 %v645
    %7487 = vmatpush1.msra.mxu0 %v644
    %7488 = vmatprep.subr.mxu0 %v642
    %7489 = vmatpush1.msra.mxu0 %v641
    %7490 = vmatprep.subr.mxu0 %v639
    %7491 = vmatpush1.msra.mxu0 %v638
    %7492 = vmatprep.subr.mxu0 %v636
    %7493 = vmatpush1.msra.mxu0 %v635
    %7494 = vmatprep.subr.mxu0 %v633
    %7495 = vmatpush1.msra.mxu0 %v632
    %7496 = vmatprep.subr.mxu0 %v630
    %7497 = vmatpush1.msra.mxu0 %v629
    %7498 = vmatprep.subr.mxu0 %v627
    %7499 = vmatpush1.msra.mxu0 %v626
    %7500 = vmatprep.subr.mxu0 %v624
    %7501 = vmatpush1.msra.mxu0 %v623
    %7502 = vmatprep.subr.mxu0 %v621
    %7503 = vmatpush1.msra.mxu0 %v620
    %7504 = vmatprep.subr.mxu0 %v618
    %7505 = vmatpush1.msra.mxu0 %v617
    %7506 = vmatprep.subr.mxu0 %v615
    %7507 = vmatpush1.msra.mxu0 %v614
    %7508 = vmatprep.subr.mxu0 %v612
    %7509 = vmatpush1.msra.mxu0 %v611
    %7510 = vmatprep.subr.mxu0 %v609
    %7511 = vmatpush1.msra.mxu0 %v608
    %7512 = vmatprep.subr.mxu0 %v606
    %7513 = vmatpush1.msra.mxu0 %v605
    %7514 = vmatprep.subr.mxu0 %v603
    %7515 = vmatpush1.msra.mxu0 %v602
    %7516 = vmatprep.subr.mxu0 %v600
    %7517 = vmatpush1.msra.mxu0 %v599
    %7518 = vmatprep.subr.mxu0 0.0
    %7519 = vmatpush2.msra.mxu0 0.0
    %7520 = vmatprep.subr.mxu0 0.0
    %7521 = vmatpush2.msra.mxu0 0.0
    %7522 = vmatprep.subr.mxu0 0.0
    %7523 = vmatpush2.msra.mxu0 0.0
    %7524 = vmatprep.subr.mxu0 0.0
    %7525 = vmatpush2.msra.mxu0 0.0
    %7526 = vmatprep.subr.mxu0 0.0
    %7527 = vmatpush2.msra.mxu0 0.0
    %7528 = vmatprep.subr.mxu0 0.0
    %7529 = vmatpush2.msra.mxu0 0.0
    %7530 = vmatprep.subr.mxu0 0.0
    %7531 = vmatpush2.msra.mxu0 0.0
    %7532 = vmatprep.subr.mxu0 0.0
    %7533 = vmatpush2.msra.mxu0 0.0
    %7534 = vmatprep.subr.mxu0 0.0
    %7535 = vmatpush2.msra.mxu0 0.0
    %7536 = vmatprep.subr.mxu0 0.0
    %7537 = vmatpush2.msra.mxu0 0.0
    %7538 = vmatprep.subr.mxu0 0.0
    %7539 = vmatpush2.msra.mxu0 0.0
    %7540 = vmatprep.subr.mxu0 0.0
    %7541 = vmatpush2.msra.mxu0 0.0
    %7542 = vmatprep.subr.mxu0 0.0
    %7543 = vmatpush2.msra.mxu0 0.0
    %7544 = vmatprep.subr.mxu0 0.0
    %7545 = vmatpush2.msra.mxu0 0.0
    %7546 = vmatprep.subr.mxu0 0.0
    %7547 = vmatpush2.msra.mxu0 0.0
    %7548 = vmatprep.subr.mxu0 0.0
    %7549 = vmatpush2.msra.mxu0 0.0
    %7550 = vmatprep.mubr.f32.mxu0 0.0
    %7551 = vmatmul.mubr.f32.gmra.mxu0 %v7484
    %v7552 = vpop.f32.mrf.mxu0
    %v7553 = vadd.f32 0.0, %v7552
    %v7554 = vpop.f32.mrf.mxu0
    %v7555 = vadd.f32 0.0, %v7554
    %7556 = vdwg.mxu0
    %7557 = vmatprep.subr.mxu0 0.0
    %7558 = vmatpush1.msra.mxu0 %v646
    %7559 = vmatprep.subr.mxu0 0.0
    %7560 = vmatpush1.msra.mxu0 %v643
    %7561 = vmatprep.subr.mxu0 0.0
    %7562 = vmatpush1.msra.mxu0 %v640
    %7563 = vmatprep.subr.mxu0 0.0
    %7564 = vmatpush1.msra.mxu0 %v637
    %7565 = vmatprep.subr.mxu0 0.0
    %7566 = vmatpush1.msra.mxu0 %v634
    %7567 = vmatprep.subr.mxu0 0.0
    %7568 = vmatpush1.msra.mxu0 %v631
    %7569 = vmatprep.subr.mxu0 0.0
    %7570 = vmatpush1.msra.mxu0 %v628
    %7571 = vmatprep.subr.mxu0 0.0
    %7572 = vmatpush1.msra.mxu0 %v625
    %7573 = vmatprep.subr.mxu0 0.0
    %7574 = vmatpush1.msra.mxu0 %v622
    %7575 = vmatprep.subr.mxu0 0.0
    %7576 = vmatpush1.msra.mxu0 %v619
    %7577 = vmatprep.subr.mxu0 0.0
    %7578 = vmatpush1.msra.mxu0 %v616
    %7579 = vmatprep.subr.mxu0 0.0
    %7580 = vmatpush1.msra.mxu0 %v613
    %7581 = vmatprep.subr.mxu0 0.0
    %7582 = vmatpush1.msra.mxu0 %v610
    %7583 = vmatprep.subr.mxu0 0.0
    %7584 = vmatpush1.msra.mxu0 %v607
    %7585 = vmatprep.subr.mxu0 0.0
    %7586 = vmatpush1.msra.mxu0 %v604
    %7587 = vmatprep.subr.mxu0 0.0
    %7588 = vmatpush1.msra.mxu0 %v601
    %7589 = vmatprep.subr.mxu0 0.0
    %7590 = vmatpush2.msra.mxu0 0.0
    %7591 = vmatprep.subr.mxu0 0.0
    %7592 = vmatpush2.msra.mxu0 0.0
    %7593 = vmatprep.subr.mxu0 0.0
    %7594 = vmatpush2.msra.mxu0 0.0
    %7595 = vmatprep.subr.mxu0 0.0
    %7596 = vmatpush2.msra.mxu0 0.0
    %7597 = vmatprep.subr.mxu0 0.0
    %7598 = vmatpush2.msra.mxu0 0.0
    %7599 = vmatprep.subr.mxu0 0.0
    %7600 = vmatpush2.msra.mxu0 0.0
    %7601 = vmatprep.subr.mxu0 0.0
    %7602 = vmatpush2.msra.mxu0 0.0
    %7603 = vmatprep.subr.mxu0 0.0
    %7604 = vmatpush2.msra.mxu0 0.0
    %7605 = vmatprep.subr.mxu0 0.0
    %7606 = vmatpush2.msra.mxu0 0.0
    %7607 = vmatprep.subr.mxu0 0.0
    %7608 = vmatpush2.msra.mxu0 0.0
    %7609 = vmatprep.subr.mxu0 0.0
    %7610 = vmatpush2.msra.mxu0 0.0
    %7611 = vmatprep.subr.mxu0 0.0
    %7612 = vmatpush2.msra.mxu0 0.0
    %7613 = vmatprep.subr.mxu0 0.0
    %7614 = vmatpush2.msra.mxu0 0.0
    %7615 = vmatprep.subr.mxu0 0.0
    %7616 = vmatpush2.msra.mxu0 0.0
    %7617 = vmatprep.subr.mxu0 0.0
    %7618 = vmatpush2.msra.mxu0 0.0
    %7619 = vmatprep.subr.mxu0 0.0
    %7620 = vmatpush2.msra.mxu0 0.0
    %7621 = vmatprep.mubr.f32.mxu0 0.0
    %7622 = vmatmul.mubr.f32.gmra.mxu0 %v7484
    %v7623 = vpop.f32.mrf.mxu0
    %v7624 = vadd.f32 0.0, %v7623
    %v7625 = vpop.f32.mrf.mxu0
    %7626 = vdwg.mxu0
    %v7627 = vadd.f32 %v483, %v7553
    %v7628 = vadd.f32 %v485, %v7555
    %v7629 = vadd.f32 %v579, %v7624
    %7630 = vmatprep.subr.mxu0 %v693
    %7631 = vmatpush1.msra.mxu0 %v692
    %7632 = vmatprep.subr.mxu0 %v690
    %7633 = vmatpush1.msra.mxu0 %v689
    %7634 = vmatprep.subr.mxu0 %v687
    %7635 = vmatpush1.msra.mxu0 %v686
    %7636 = vmatprep.subr.mxu0 %v684
    %7637 = vmatpush1.msra.mxu0 %v683
    %7638 = vmatprep.subr.mxu0 %v681
    %7639 = vmatpush1.msra.mxu0 %v680
    %7640 = vmatprep.subr.mxu0 %v678
    %7641 = vmatpush1.msra.mxu0 %v677
    %7642 = vmatprep.subr.mxu0 %v675
    %7643 = vmatpush1.msra.mxu0 %v674
    %7644 = vmatprep.subr.mxu0 %v672
    %7645 = vmatpush1.msra.mxu0 %v671
    %7646 = vmatprep.subr.mxu0 %v669
    %7647 = vmatpush1.msra.mxu0 %v668
    %7648 = vmatprep.subr.mxu0 %v666
    %7649 = vmatpush1.msra.mxu0 %v665
    %7650 = vmatprep.subr.mxu0 %v663
    %7651 = vmatpush1.msra.mxu0 %v662
    %7652 = vmatprep.subr.mxu0 %v660
    %7653 = vmatpush1.msra.mxu0 %v659
    %7654 = vmatprep.subr.mxu0 %v657
    %7655 = vmatpush1.msra.mxu0 %v656
    %7656 = vmatprep.subr.mxu0 %v654
    %7657 = vmatpush1.msra.mxu0 %v653
    %7658 = vmatprep.subr.mxu0 %v651
    %7659 = vmatpush1.msra.mxu0 %v650
    %7660 = vmatprep.subr.mxu0 %v648
    %7661 = vmatpush1.msra.mxu0 %v647
    %7662 = vmatprep.subr.mxu0 0.0
    %7663 = vmatpush2.msra.mxu0 0.0
    %7664 = vmatprep.subr.mxu0 0.0
    %7665 = vmatpush2.msra.mxu0 0.0
    %7666 = vmatprep.subr.mxu0 0.0
    %7667 = vmatpush2.msra.mxu0 0.0
    %7668 = vmatprep.subr.mxu0 0.0
    %7669 = vmatpush2.msra.mxu0 0.0
    %7670 = vmatprep.subr.mxu0 0.0
    %7671 = vmatpush2.msra.mxu0 0.0
    %7672 = vmatprep.subr.mxu0 0.0
    %7673 = vmatpush2.msra.mxu0 0.0
    %7674 = vmatprep.subr.mxu0 0.0
    %7675 = vmatpush2.msra.mxu0 0.0
    %7676 = vmatprep.subr.mxu0 0.0
    %7677 = vmatpush2.msra.mxu0 0.0
    %7678 = vmatprep.subr.mxu0 0.0
    %7679 = vmatpush2.msra.mxu0 0.0
    %7680 = vmatprep.subr.mxu0 0.0
    %7681 = vmatpush2.msra.mxu0 0.0
    %7682 = vmatprep.subr.mxu0 0.0
    %7683 = vmatpush2.msra.mxu0 0.0
    %7684 = vmatprep.subr.mxu0 0.0
    %7685 = vmatpush2.msra.mxu0 0.0
    %7686 = vmatprep.subr.mxu0 0.0
    %7687 = vmatpush2.msra.mxu0 0.0
    %7688 = vmatprep.subr.mxu0 0.0
    %7689 = vmatpush2.msra.mxu0 0.0
    %7690 = vmatprep.subr.mxu0 0.0
    %7691 = vmatpush2.msra.mxu0 0.0
    %7692 = vmatprep.subr.mxu0 0.0
    %7693 = vmatpush2.msra.mxu0 0.0
    %7694 = vmatprep.mubr.f32.mxu0 0.0
    %7695 = vmatmul.mubr.f32.gmra.mxu0 %v6596
    %v7696 = vpop.f32.mrf.mxu0
    %v7697 = vadd.f32 %v796, %v7696
    %v7698 = vpop.f32.mrf.mxu0
    %v7699 = vadd.f32 %v800, %v7698
    %7700 = vdwg.mxu0
    %7701 = vmatprep.subr.mxu0 0.0
    %7702 = vmatpush1.msra.mxu0 %v694
    %7703 = vmatprep.subr.mxu0 0.0
    %7704 = vmatpush1.msra.mxu0 %v691
    %7705 = vmatprep.subr.mxu0 0.0
    %7706 = vmatpush1.msra.mxu0 %v688
    %7707 = vmatprep.subr.mxu0 0.0
    %7708 = vmatpush1.msra.mxu0 %v685
    %7709 = vmatprep.subr.mxu0 0.0
    %7710 = vmatpush1.msra.mxu0 %v682
    %7711 = vmatprep.subr.mxu0 0.0
    %7712 = vmatpush1.msra.mxu0 %v679
    %7713 = vmatprep.subr.mxu0 0.0
    %7714 = vmatpush1.msra.mxu0 %v676
    %7715 = vmatprep.subr.mxu0 0.0
    %7716 = vmatpush1.msra.mxu0 %v673
    %7717 = vmatprep.subr.mxu0 0.0
    %7718 = vmatpush1.msra.mxu0 %v670
    %7719 = vmatprep.subr.mxu0 0.0
    %7720 = vmatpush1.msra.mxu0 %v667
    %7721 = vmatprep.subr.mxu0 0.0
    %7722 = vmatpush1.msra.mxu0 %v664
    %7723 = vmatprep.subr.mxu0 0.0
    %7724 = vmatpush1.msra.mxu0 %v661
    %7725 = vmatprep.subr.mxu0 0.0
    %7726 = vmatpush1.msra.mxu0 %v658
    %7727 = vmatprep.subr.mxu0 0.0
    %7728 = vmatpush1.msra.mxu0 %v655
    %7729 = vmatprep.subr.mxu0 0.0
    %7730 = vmatpush1.msra.mxu0 %v652
    %7731 = vmatprep.subr.mxu0 0.0
    %7732 = vmatpush1.msra.mxu0 %v649
    %7733 = vmatprep.subr.mxu0 0.0
    %7734 = vmatpush2.msra.mxu0 0.0
    %7735 = vmatprep.subr.mxu0 0.0
    %7736 = vmatpush2.msra.mxu0 0.0
    %7737 = vmatprep.subr.mxu0 0.0
    %7738 = vmatpush2.msra.mxu0 0.0
    %7739 = vmatprep.subr.mxu0 0.0
    %7740 = vmatpush2.msra.mxu0 0.0
    %7741 = vmatprep.subr.mxu0 0.0
    %7742 = vmatpush2.msra.mxu0 0.0
    %7743 = vmatprep.subr.mxu0 0.0
    %7744 = vmatpush2.msra.mxu0 0.0
    %7745 = vmatprep.subr.mxu0 0.0
    %7746 = vmatpush2.msra.mxu0 0.0
    %7747 = vmatprep.subr.mxu0 0.0
    %7748 = vmatpush2.msra.mxu0 0.0
    %7749 = vmatprep.subr.mxu0 0.0
    %7750 = vmatpush2.msra.mxu0 0.0
    %7751 = vmatprep.subr.mxu0 0.0
    %7752 = vmatpush2.msra.mxu0 0.0
    %7753 = vmatprep.subr.mxu0 0.0
    %7754 = vmatpush2.msra.mxu0 0.0
    %7755 = vmatprep.subr.mxu0 0.0
    %7756 = vmatpush2.msra.mxu0 0.0
    %7757 = vmatprep.subr.mxu0 0.0
    %7758 = vmatpush2.msra.mxu0 0.0
    %7759 = vmatprep.subr.mxu0 0.0
    %7760 = vmatpush2.msra.mxu0 0.0
    %7761 = vmatprep.subr.mxu0 0.0
    %7762 = vmatpush2.msra.mxu0 0.0
    %7763 = vmatprep.subr.mxu0 0.0
    %7764 = vmatpush2.msra.mxu0 0.0
    %7765 = vmatprep.mubr.f32.mxu0 0.0
    %7766 = vmatmul.mubr.f32.gmra.mxu0 %v6596
    %v7767 = vpop.f32.mrf.mxu0
    %v7768 = vadd.f32 %v804, %v7767
    %v7769 = vpop.f32.mrf.mxu0
    %7770 = vdwg.mxu0
    %v7771 = vadd.f32 %v7627, %v7697
    %v7772 = vxor.u32 %v7771, 2147483648
    %v7773 = vmul.f32 %v7772, 1.442695
    %v7774 = vpow.pop %v7773
    %v7775 = vadd.f32 %v7774, 1.0
    %v7776 = vrcp.pop %v7775
    %v7777 = vmul.f32 1.0, %v7776
    %v7778 = vadd.f32 %v7628, %v7699
    %v7779 = vxor.u32 %v7778, 2147483648
    %v7780 = vmul.f32 %v7779, 1.442695
    %v7781 = vpow.pop %v7780
    %v7782 = vadd.f32 %v7781, 1.0
    %v7783 = vrcp.pop %v7782
    %v7784 = vmul.f32 1.0, %v7783
    %v7785 = vmul.f32 %v7777, %v7768
    %v7786 = vadd.f32 %v7629, %v7785
    %v7787 = vtanh.pop %v7786
    %v7788 = vsub.f32 1.0, %v7784
    %v7789 = vmul.f32 %v7788, %v7787
    %v7790 = vmul.f32 %v7784, %v6596
    %v7791 = vadd.f32 %v7789, %v7790
    %7792 = vmatprep.subr.mxu0 %v741
    %7793 = vmatpush1.msra.mxu0 %v740
    %7794 = vmatprep.subr.mxu0 %v738
    %7795 = vmatpush1.msra.mxu0 %v737
    %7796 = vmatprep.subr.mxu0 %v735
    %7797 = vmatpush1.msra.mxu0 %v734
    %7798 = vmatprep.subr.mxu0 %v732
    %7799 = vmatpush1.msra.mxu0 %v731
    %7800 = vmatprep.subr.mxu0 %v729
    %7801 = vmatpush1.msra.mxu0 %v728
    %7802 = vmatprep.subr.mxu0 %v726
    %7803 = vmatpush1.msra.mxu0 %v725
    %7804 = vmatprep.subr.mxu0 %v723
    %7805 = vmatpush1.msra.mxu0 %v722
    %7806 = vmatprep.subr.mxu0 %v720
    %7807 = vmatpush1.msra.mxu0 %v719
    %7808 = vmatprep.subr.mxu0 %v717
    %7809 = vmatpush1.msra.mxu0 %v716
    %7810 = vmatprep.subr.mxu0 %v714
    %7811 = vmatpush1.msra.mxu0 %v713
    %7812 = vmatprep.subr.mxu0 %v711
    %7813 = vmatpush1.msra.mxu0 %v710
    %7814 = vmatprep.subr.mxu0 %v708
    %7815 = vmatpush1.msra.mxu0 %v707
    %7816 = vmatprep.subr.mxu0 %v705
    %7817 = vmatpush1.msra.mxu0 %v704
    %7818 = vmatprep.subr.mxu0 %v702
    %7819 = vmatpush1.msra.mxu0 %v701
    %7820 = vmatprep.subr.mxu0 %v699
    %7821 = vmatpush1.msra.mxu0 %v698
    %7822 = vmatprep.subr.mxu0 %v696
    %7823 = vmatpush1.msra.mxu0 %v695
    %7824 = vmatprep.subr.mxu0 0.0
    %7825 = vmatpush2.msra.mxu0 0.0
    %7826 = vmatprep.subr.mxu0 0.0
    %7827 = vmatpush2.msra.mxu0 0.0
    %7828 = vmatprep.subr.mxu0 0.0
    %7829 = vmatpush2.msra.mxu0 0.0
    %7830 = vmatprep.subr.mxu0 0.0
    %7831 = vmatpush2.msra.mxu0 0.0
    %7832 = vmatprep.subr.mxu0 0.0
    %7833 = vmatpush2.msra.mxu0 0.0
    %7834 = vmatprep.subr.mxu0 0.0
    %7835 = vmatpush2.msra.mxu0 0.0
    %7836 = vmatprep.subr.mxu0 0.0
    %7837 = vmatpush2.msra.mxu0 0.0
    %7838 = vmatprep.subr.mxu0 0.0
    %7839 = vmatpush2.msra.mxu0 0.0
    %7840 = vmatprep.subr.mxu0 0.0
    %7841 = vmatpush2.msra.mxu0 0.0
    %7842 = vmatprep.subr.mxu0 0.0
    %7843 = vmatpush2.msra.mxu0 0.0
    %7844 = vmatprep.subr.mxu0 0.0
    %7845 = vmatpush2.msra.mxu0 0.0
    %7846 = vmatprep.subr.mxu0 0.0
    %7847 = vmatpush2.msra.mxu0 0.0
    %7848 = vmatprep.subr.mxu0 0.0
    %7849 = vmatpush2.msra.mxu0 0.0
    %7850 = vmatprep.subr.mxu0 0.0
    %7851 = vmatpush2.msra.mxu0 0.0
    %7852 = vmatprep.subr.mxu0 0.0
    %7853 = vmatpush2.msra.mxu0 0.0
    %7854 = vmatprep.subr.mxu0 0.0
    %7855 = vmatpush2.msra.mxu0 0.0
    %7856 = vmatprep.mubr.f32.mxu0 0.0
    %7857 = vmatmul.mubr.f32.gmra.mxu0 %v7791
    %v7858 = vpop.f32.mrf.mxu0
    %v7859 = vadd.f32 %v813, %v7858
    %v7860 = vpop.f32.mrf.mxu0
    %v7861 = vadd.f32 %v817, %v7860
    %7862 = vdwg.mxu0
    %7863 = vmatprep.subr.mxu0 0.0
    %7864 = vmatpush1.msra.mxu0 %v742
    %7865 = vmatprep.subr.mxu0 0.0
    %7866 = vmatpush1.msra.mxu0 %v739
    %7867 = vmatprep.subr.mxu0 0.0
    %7868 = vmatpush1.msra.mxu0 %v736
    %7869 = vmatprep.subr.mxu0 0.0
    %7870 = vmatpush1.msra.mxu0 %v733
    %7871 = vmatprep.subr.mxu0 0.0
    %7872 = vmatpush1.msra.mxu0 %v730
    %7873 = vmatprep.subr.mxu0 0.0
    %7874 = vmatpush1.msra.mxu0 %v727
    %7875 = vmatprep.subr.mxu0 0.0
    %7876 = vmatpush1.msra.mxu0 %v724
    %7877 = vmatprep.subr.mxu0 0.0
    %7878 = vmatpush1.msra.mxu0 %v721
    %7879 = vmatprep.subr.mxu0 0.0
    %7880 = vmatpush1.msra.mxu0 %v718
    %7881 = vmatprep.subr.mxu0 0.0
    %7882 = vmatpush1.msra.mxu0 %v715
    %7883 = vmatprep.subr.mxu0 0.0
    %7884 = vmatpush1.msra.mxu0 %v712
    %7885 = vmatprep.subr.mxu0 0.0
    %7886 = vmatpush1.msra.mxu0 %v709
    %7887 = vmatprep.subr.mxu0 0.0
    %7888 = vmatpush1.msra.mxu0 %v706
    %7889 = vmatprep.subr.mxu0 0.0
    %7890 = vmatpush1.msra.mxu0 %v703
    %7891 = vmatprep.subr.mxu0 0.0
    %7892 = vmatpush1.msra.mxu0 %v700
    %7893 = vmatprep.subr.mxu0 0.0
    %7894 = vmatpush1.msra.mxu0 %v697
    %7895 = vmatprep.subr.mxu0 0.0
    %7896 = vmatpush2.msra.mxu0 0.0
    %7897 = vmatprep.subr.mxu0 0.0
    %7898 = vmatpush2.msra.mxu0 0.0
    %7899 = vmatprep.subr.mxu0 0.0
    %7900 = vmatpush2.msra.mxu0 0.0
    %7901 = vmatprep.subr.mxu0 0.0
    %7902 = vmatpush2.msra.mxu0 0.0
    %7903 = vmatprep.subr.mxu0 0.0
    %7904 = vmatpush2.msra.mxu0 0.0
    %7905 = vmatprep.subr.mxu0 0.0
    %7906 = vmatpush2.msra.mxu0 0.0
    %7907 = vmatprep.subr.mxu0 0.0
    %7908 = vmatpush2.msra.mxu0 0.0
    %7909 = vmatprep.subr.mxu0 0.0
    %7910 = vmatpush2.msra.mxu0 0.0
    %7911 = vmatprep.subr.mxu0 0.0
    %7912 = vmatpush2.msra.mxu0 0.0
    %7913 = vmatprep.subr.mxu0 0.0
    %7914 = vmatpush2.msra.mxu0 0.0
    %7915 = vmatprep.subr.mxu0 0.0
    %7916 = vmatpush2.msra.mxu0 0.0
    %7917 = vmatprep.subr.mxu0 0.0
    %7918 = vmatpush2.msra.mxu0 0.0
    %7919 = vmatprep.subr.mxu0 0.0
    %7920 = vmatpush2.msra.mxu0 0.0
    %7921 = vmatprep.subr.mxu0 0.0
    %7922 = vmatpush2.msra.mxu0 0.0
    %7923 = vmatprep.subr.mxu0 0.0
    %7924 = vmatpush2.msra.mxu0 0.0
    %7925 = vmatprep.subr.mxu0 0.0
    %7926 = vmatpush2.msra.mxu0 0.0
    %7927 = vmatprep.mubr.f32.mxu0 0.0
    %7928 = vmatmul.mubr.f32.gmra.mxu0 %v7791
    %v7929 = vpop.f32.mrf.mxu0
    %v7930 = vadd.f32 %v821, %v7929
    %v7931 = vpop.f32.mrf.mxu0
    %7932 = vdwg.mxu0
    %7933 = vmatprep.subr.mxu0 %v789
    %7934 = vmatpush1.msra.mxu0 %v788
    %7935 = vmatprep.subr.mxu0 %v786
    %7936 = vmatpush1.msra.mxu0 %v785
    %7937 = vmatprep.subr.mxu0 %v783
    %7938 = vmatpush1.msra.mxu0 %v782
    %7939 = vmatprep.subr.mxu0 %v780
    %7940 = vmatpush1.msra.mxu0 %v779
    %7941 = vmatprep.subr.mxu0 %v777
    %7942 = vmatpush1.msra.mxu0 %v776
    %7943 = vmatprep.subr.mxu0 %v774
    %7944 = vmatpush1.msra.mxu0 %v773
    %7945 = vmatprep.subr.mxu0 %v771
    %7946 = vmatpush1.msra.mxu0 %v770
    %7947 = vmatprep.subr.mxu0 %v768
    %7948 = vmatpush1.msra.mxu0 %v767
    %7949 = vmatprep.subr.mxu0 %v765
    %7950 = vmatpush1.msra.mxu0 %v764
    %7951 = vmatprep.subr.mxu0 %v762
    %7952 = vmatpush1.msra.mxu0 %v761
    %7953 = vmatprep.subr.mxu0 %v759
    %7954 = vmatpush1.msra.mxu0 %v758
    %7955 = vmatprep.subr.mxu0 %v756
    %7956 = vmatpush1.msra.mxu0 %v755
    %7957 = vmatprep.subr.mxu0 %v753
    %7958 = vmatpush1.msra.mxu0 %v752
    %7959 = vmatprep.subr.mxu0 %v750
    %7960 = vmatpush1.msra.mxu0 %v749
    %7961 = vmatprep.subr.mxu0 %v747
    %7962 = vmatpush1.msra.mxu0 %v746
    %7963 = vmatprep.subr.mxu0 %v744
    %7964 = vmatpush1.msra.mxu0 %v743
    %7965 = vmatprep.subr.mxu0 0.0
    %7966 = vmatpush2.msra.mxu0 0.0
    %7967 = vmatprep.subr.mxu0 0.0
    %7968 = vmatpush2.msra.mxu0 0.0
    %7969 = vmatprep.subr.mxu0 0.0
    %7970 = vmatpush2.msra.mxu0 0.0
    %7971 = vmatprep.subr.mxu0 0.0
    %7972 = vmatpush2.msra.mxu0 0.0
    %7973 = vmatprep.subr.mxu0 0.0
    %7974 = vmatpush2.msra.mxu0 0.0
    %7975 = vmatprep.subr.mxu0 0.0
    %7976 = vmatpush2.msra.mxu0 0.0
    %7977 = vmatprep.subr.mxu0 0.0
    %7978 = vmatpush2.msra.mxu0 0.0
    %7979 = vmatprep.subr.mxu0 0.0
    %7980 = vmatpush2.msra.mxu0 0.0
    %7981 = vmatprep.subr.mxu0 0.0
    %7982 = vmatpush2.msra.mxu0 0.0
    %7983 = vmatprep.subr.mxu0 0.0
    %7984 = vmatpush2.msra.mxu0 0.0
    %7985 = vmatprep.subr.mxu0 0.0
    %7986 = vmatpush2.msra.mxu0 0.0
    %7987 = vmatprep.subr.mxu0 0.0
    %7988 = vmatpush2.msra.mxu0 0.0
    %7989 = vmatprep.subr.mxu0 0.0
    %7990 = vmatpush2.msra.mxu0 0.0
    %7991 = vmatprep.subr.mxu0 0.0
    %7992 = vmatpush2.msra.mxu0 0.0
    %7993 = vmatprep.subr.mxu0 0.0
    %7994 = vmatpush2.msra.mxu0 0.0
    %7995 = vmatprep.subr.mxu0 0.0
    %7996 = vmatpush2.msra.mxu0 0.0
    %7997 = vmatprep.mubr.f32.mxu0 0.0
    %7998 = vmatmul.mubr.f32.gmra.mxu0 %v6899
    %v7999 = vpop.f32.mrf.mxu0
    %v8000 = vadd.f32 %v830, %v7999
    %v8001 = vpop.f32.mrf.mxu0
    %v8002 = vadd.f32 %v834, %v8001
    %8003 = vdwg.mxu0
    %8004 = vmatprep.subr.mxu0 0.0
    %8005 = vmatpush1.msra.mxu0 %v790
    %8006 = vmatprep.subr.mxu0 0.0
    %8007 = vmatpush1.msra.mxu0 %v787
    %8008 = vmatprep.subr.mxu0 0.0
    %8009 = vmatpush1.msra.mxu0 %v784
    %8010 = vmatprep.subr.mxu0 0.0
    %8011 = vmatpush1.msra.mxu0 %v781
    %8012 = vmatprep.subr.mxu0 0.0
    %8013 = vmatpush1.msra.mxu0 %v778
    %8014 = vmatprep.subr.mxu0 0.0
    %8015 = vmatpush1.msra.mxu0 %v775
    %8016 = vmatprep.subr.mxu0 0.0
    %8017 = vmatpush1.msra.mxu0 %v772
    %8018 = vmatprep.subr.mxu0 0.0
    %8019 = vmatpush1.msra.mxu0 %v769
    %8020 = vmatprep.subr.mxu0 0.0
    %8021 = vmatpush1.msra.mxu0 %v766
    %8022 = vmatprep.subr.mxu0 0.0
    %8023 = vmatpush1.msra.mxu0 %v763
    %8024 = vmatprep.subr.mxu0 0.0
    %8025 = vmatpush1.msra.mxu0 %v760
    %8026 = vmatprep.subr.mxu0 0.0
    %8027 = vmatpush1.msra.mxu0 %v757
    %8028 = vmatprep.subr.mxu0 0.0
    %8029 = vmatpush1.msra.mxu0 %v754
    %8030 = vmatprep.subr.mxu0 0.0
    %8031 = vmatpush1.msra.mxu0 %v751
    %8032 = vmatprep.subr.mxu0 0.0
    %8033 = vmatpush1.msra.mxu0 %v748
    %8034 = vmatprep.subr.mxu0 0.0
    %8035 = vmatpush1.msra.mxu0 %v745
    %8036 = vmatprep.subr.mxu0 0.0
    %8037 = vmatpush2.msra.mxu0 0.0
    %8038 = vmatprep.subr.mxu0 0.0
    %8039 = vmatpush2.msra.mxu0 0.0
    %8040 = vmatprep.subr.mxu0 0.0
    %8041 = vmatpush2.msra.mxu0 0.0
    %8042 = vmatprep.subr.mxu0 0.0
    %8043 = vmatpush2.msra.mxu0 0.0
    %8044 = vmatprep.subr.mxu0 0.0
    %8045 = vmatpush2.msra.mxu0 0.0
    %8046 = vmatprep.subr.mxu0 0.0
    %8047 = vmatpush2.msra.mxu0 0.0
    %8048 = vmatprep.subr.mxu0 0.0
    %8049 = vmatpush2.msra.mxu0 0.0
    %8050 = vmatprep.subr.mxu0 0.0
    %8051 = vmatpush2.msra.mxu0 0.0
    %8052 = vmatprep.subr.mxu0 0.0
    %8053 = vmatpush2.msra.mxu0 0.0
    %8054 = vmatprep.subr.mxu0 0.0
    %8055 = vmatpush2.msra.mxu0 0.0
    %8056 = vmatprep.subr.mxu0 0.0
    %8057 = vmatpush2.msra.mxu0 0.0
    %8058 = vmatprep.subr.mxu0 0.0
    %8059 = vmatpush2.msra.mxu0 0.0
    %8060 = vmatprep.subr.mxu0 0.0
    %8061 = vmatpush2.msra.mxu0 0.0
    %8062 = vmatprep.subr.mxu0 0.0
    %8063 = vmatpush2.msra.mxu0 0.0
    %8064 = vmatprep.subr.mxu0 0.0
    %8065 = vmatpush2.msra.mxu0 0.0
    %8066 = vmatprep.subr.mxu0 0.0
    %8067 = vmatpush2.msra.mxu0 0.0
    %8068 = vmatprep.mubr.f32.mxu0 0.0
    %8069 = vmatmul.mubr.f32.gmra.mxu0 %v6899
    %v8070 = vpop.f32.mrf.mxu0
    %v8071 = vadd.f32 %v838, %v8070
    %v8072 = vpop.f32.mrf.mxu0
    %8073 = vdwg.mxu0
    %v8074 = vadd.f32 %v7859, %v8000
    %v8075 = vxor.u32 %v8074, 2147483648
    %v8076 = vmul.f32 %v8075, 1.442695
    %v8077 = vpow.pop %v8076
    %v8078 = vadd.f32 %v8077, 1.0
    %v8079 = vrcp.pop %v8078
    %v8080 = vmul.f32 1.0, %v8079
    %v8081 = vadd.f32 %v7861, %v8002
    %v8082 = vxor.u32 %v8081, 2147483648
    %v8083 = vmul.f32 %v8082, 1.442695
    %v8084 = vpow.pop %v8083
    %v8085 = vadd.f32 %v8084, 1.0
    %v8086 = vrcp.pop %v8085
    %v8087 = vmul.f32 1.0, %v8086
    %v8088 = vmul.f32 %v8080, %v8071
    %v8089 = vadd.f32 %v7930, %v8088
    %v8090 = vtanh.pop %v8089
    %v8091 = vsub.f32 1.0, %v8087
    %v8092 = vmul.f32 %v8091, %v8090
    %v8093 = vmul.f32 %v8087, %v6899
    %v8094 = vadd.f32 %v8092, %v8093
    %8095 = vst [vmem:[#allocation2 + $0x28] sm:$0xff] %v8094
    %8096 = vst [vmem:[#allocation22] sm:$0xff] %v7791
    %s8097 = scalar_lea.vmem [#allocation22], 8
    %8098 = vst [vmem:[%s8097] sm:$0xff] %v8094
    %v8099 = vld [vmem:[#allocation2] sm:$0xff]
    %v8100 = vld [vmem:[#allocation2 + $0x8] sm:$0xff]
    %v8101 = vld [vmem:[#allocation2 + $0x10] sm:$0xff]
    %v8102 = vld [vmem:[#allocation2 + $0x18] sm:$0xff]
    %v8103 = vld [vmem:[#allocation2 + $0x20] sm:$0xff]
    %v8104 = vld [vmem:[#allocation2 + $0x28] sm:$0xff]
    %v8105 = vld [vmem:[#allocation20] sm:$0xff]
    %v8106 = vld [vmem:[#allocation20 + $0x8] sm:$0xff]
    %v8107 = vld [vmem:[#allocation20 + $0x10] sm:$0xff]
    %v8108 = vld [vmem:[#allocation20 + $0x18] sm:$0xff]
    %v8109 = vld [vmem:[#allocation20 + $0x20] sm:$0xff]
    %v8110 = vld [vmem:[#allocation20 + $0x28] sm:$0xff]
    %v8111 = vld [vmem:[#allocation20 + $0x30] sm:$0xff]
    %v8112 = vld [vmem:[#allocation20 + $0x38] sm:$0xff]
    %v8113 = vld [vmem:[#allocation20 + $0x40] sm:$0xff]
    %v8114 = vld [vmem:[#allocation20 + $0x48] sm:$0xff]
    %v8115 = vld [vmem:[#allocation20 + $0x50] sm:$0xff]
    %v8116 = vld [vmem:[#allocation20 + $0x58] sm:$0xff]
    %v8117 = vld [vmem:[#allocation20 + $0x60] sm:$0xff]
    %v8118 = vld [vmem:[#allocation20 + $0x68] sm:$0xff]
    %v8119 = vld [vmem:[#allocation20 + $0x70] sm:$0xff]
    %v8120 = vld [vmem:[#allocation20 + $0x78] sm:$0xff]
    %v8121 = vld [vmem:[%s17] sm:$0x1]
    %v8123 = vlaneseq
    %v8124 = vshrl.u32 %v8123, 7
    %v8125 = vsub.s32 0, %v8124
    %v8126 = vrot.slane %v8121, %v8125
    %8128 = vmatprep.subr.mxu0 0.0
    %8129 = vmatpush1.msra.mxu0 %v8120
    %8130 = vmatprep.subr.mxu0 0.0
    %8131 = vmatpush1.msra.mxu0 %v8119
    %8132 = vmatprep.subr.mxu0 0.0
    %8133 = vmatpush1.msra.mxu0 %v8118
    %8134 = vmatprep.subr.mxu0 0.0
    %8135 = vmatpush1.msra.mxu0 %v8117
    %8136 = vmatprep.subr.mxu0 0.0
    %8137 = vmatpush1.msra.mxu0 %v8116
    %8138 = vmatprep.subr.mxu0 0.0
    %8139 = vmatpush1.msra.mxu0 %v8115
    %8140 = vmatprep.subr.mxu0 0.0
    %8141 = vmatpush1.msra.mxu0 %v8114
    %8142 = vmatprep.subr.mxu0 0.0
    %8143 = vmatpush1.msra.mxu0 %v8113
    %8144 = vmatprep.subr.mxu0 0.0
    %8145 = vmatpush1.msra.mxu0 %v8112
    %8146 = vmatprep.subr.mxu0 0.0
    %8147 = vmatpush1.msra.mxu0 %v8111
    %8148 = vmatprep.subr.mxu0 0.0
    %8149 = vmatpush1.msra.mxu0 %v8110
    %8150 = vmatprep.subr.mxu0 0.0
    %8151 = vmatpush1.msra.mxu0 %v8109
    %8152 = vmatprep.subr.mxu0 0.0
    %8153 = vmatpush1.msra.mxu0 %v8108
    %8154 = vmatprep.subr.mxu0 0.0
    %8155 = vmatpush1.msra.mxu0 %v8107
    %8156 = vmatprep.subr.mxu0 0.0
    %8157 = vmatpush1.msra.mxu0 %v8106
    %8158 = vmatprep.subr.mxu0 0.0
    %8159 = vmatpush1.msra.mxu0 %v8105
    %8160 = vmatprep.subr.mxu0 0.0
    %8161 = vmatpush2.msra.mxu0 0.0
    %8162 = vmatprep.subr.mxu0 0.0
    %8163 = vmatpush2.msra.mxu0 0.0
    %8164 = vmatprep.subr.mxu0 0.0
    %8165 = vmatpush2.msra.mxu0 0.0
    %8166 = vmatprep.subr.mxu0 0.0
    %8167 = vmatpush2.msra.mxu0 0.0
    %8168 = vmatprep.subr.mxu0 0.0
    %8169 = vmatpush2.msra.mxu0 0.0
    %8170 = vmatprep.subr.mxu0 0.0
    %8171 = vmatpush2.msra.mxu0 0.0
    %8172 = vmatprep.subr.mxu0 0.0
    %8173 = vmatpush2.msra.mxu0 0.0
    %8174 = vmatprep.subr.mxu0 0.0
    %8175 = vmatpush2.msra.mxu0 0.0
    %8176 = vmatprep.subr.mxu0 0.0
    %8177 = vmatpush2.msra.mxu0 0.0
    %8178 = vmatprep.subr.mxu0 0.0
    %8179 = vmatpush2.msra.mxu0 0.0
    %8180 = vmatprep.subr.mxu0 0.0
    %8181 = vmatpush2.msra.mxu0 0.0
    %8182 = vmatprep.subr.mxu0 0.0
    %8183 = vmatpush2.msra.mxu0 0.0
    %8184 = vmatprep.subr.mxu0 0.0
    %8185 = vmatpush2.msra.mxu0 0.0
    %8186 = vmatprep.subr.mxu0 0.0
    %8187 = vmatpush2.msra.mxu0 0.0
    %8188 = vmatprep.subr.mxu0 0.0
    %8189 = vmatpush2.msra.mxu0 0.0
    %8190 = vmatprep.subr.mxu0 0.0
    %8191 = vmatpush2.msra.mxu0 0.0
    %8192 = vmatprep.mubr.f32.mxu0 0.0
    %8193 = vmatmul.mubr.f32.gmra.mxu0 %v8099
    %v8194 = vpop.f32.mrf.mxu0
    %v8195 = vadd.f32 %v8126, %v8194
    %v8196 = vpop.f32.mrf.mxu0
    %8197 = vmatprep.mubr.f32.mxu0 0.0
    %8198 = vmatmul.mubr.f32.gmra.mxu0 %v8100
    %v8199 = vpop.f32.mrf.mxu0
    %v8200 = vadd.f32 %v8126, %v8199
    %v8201 = vpop.f32.mrf.mxu0
    %8202 = vmatprep.mubr.f32.mxu0 0.0
    %8203 = vmatmul.mubr.f32.gmra.mxu0 %v8101
    %v8204 = vpop.f32.mrf.mxu0
    %v8205 = vadd.f32 %v8126, %v8204
    %v8206 = vpop.f32.mrf.mxu0
    %8207 = vmatprep.mubr.f32.mxu0 0.0
    %8208 = vmatmul.mubr.f32.gmra.mxu0 %v8102
    %v8209 = vpop.f32.mrf.mxu0
    %v8210 = vadd.f32 %v8126, %v8209
    %v8211 = vpop.f32.mrf.mxu0
    %8212 = vmatprep.mubr.f32.mxu0 0.0
    %8213 = vmatmul.mubr.f32.gmra.mxu0 %v8103
    %v8214 = vpop.f32.mrf.mxu0
    %v8215 = vadd.f32 %v8126, %v8214
    %v8216 = vpop.f32.mrf.mxu0
    %8217 = vmatprep.mubr.f32.mxu0 0.0
    %8218 = vmatmul.mubr.f32.gmra.mxu0 %v8104
    %v8219 = vpop.f32.mrf.mxu0
    %v8220 = vadd.f32 %v8126, %v8219
    %v8221 = vpop.f32.mrf.mxu0
    %8222 = vdwg.mxu0
    %8223 = vst [vmem:[#allocation21] sm:$0xff] %v8195
    %8224 = vst [vmem:[#allocation21 + $0x8] sm:$0xff] %v8200
    %8225 = vst [vmem:[#allocation21 + $0x10] sm:$0xff] %v8205
    %8226 = vst [vmem:[#allocation21 + $0x18] sm:$0xff] %v8210
    %8227 = vst [vmem:[#allocation21 + $0x20] sm:$0xff] %v8215
    %8228 = vst [vmem:[#allocation21 + $0x28] sm:$0xff] %v8220
    // Predicated region
    $region118: #{tpu_custom_call.1} parent=1 // pred_check
      _
    $region119: #{tpu_custom_call.1} parent=1 // pred_check_branch
      %8230 = sbr.rel (0) target = $region121
    $region120: #{tpu_custom_call.1} parent=1 // pred_region
      %s8232 = ssub.s32 768, 768
      %8233 = vsyncadd [#allocation5], %s8232
      %s8234 = sshll.u32 [#allocation21], 4
      %s8235 = int_to_ptr.vmem [resolvable:$true] %s8234
      %8240 = dma.vmem_to_hbm [thread:$0]  %s8235, 768, %s18, [#allocation5], 128, 128, 8
    $region121: #{tpu_custom_call.1} parent=1 // pred_fallthru
      _
    // Predicated region
    $region122: #{tpu_custom_call.1} parent=1 // pred_check
      _
    $region123: #{tpu_custom_call.1} parent=1 // pred_check_branch
      %8242 = sbr.rel (0) target = $region125
    $region124: #{tpu_custom_call.1} parent=1 // pred_region
      %s8244 = ssub.s32 256, 256
      %8245 = vsyncadd [#allocation23], %s8244
      %s8246 = sshll.u32 [#allocation22], 4
      %s8247 = int_to_ptr.vmem [resolvable:$true] %s8246
      %8252 = dma.vmem_to_hbm [thread:$0]  %s8247, 256, %s19, [#allocation23], 128, 128, 8
    $region125: #{tpu_custom_call.1} parent=1 // pred_fallthru
      _
    // Predicated region
    $region126: #{tpu_custom_call.1} parent=1 // pred_check
      _
    $region127: #{tpu_custom_call.1} parent=1 // pred_check_branch
      %8254 = sbr.rel (0) target = $region129
    $region128: #{tpu_custom_call.1} parent=1 // pred_region
      %8255 = dma.done [#allocation5], 768
    $region129: #{tpu_custom_call.1} parent=1 // pred_fallthru
      _
    // Predicated region
    $region130: #{tpu_custom_call.1} parent=1 // pred_check
      _
    $region131: #{tpu_custom_call.1} parent=1 // pred_check_branch
      %8257 = sbr.rel (0) target = $region133
    $region132: #{tpu_custom_call.1} parent=1 // pred_region
      %8258 = dma.done [#allocation23], 256
    $region133: #{tpu_custom_call.1} parent=1 // pred_fallthru
      _
    %8259 = vsyncpa [#allocation4], 1
    %8260 = vsyncpa [#allocation7], 1
    %8261 = vsyncpa [#allocation10], 1
    %8262 = vsyncpa [#allocation13], 1
    %8263 = vsyncpa [#allocation16], 1
    %8264 = vsyncpa [#allocation19], 1
    %8265 = vsyncpa [#allocation5], 1
    %8266 = vsyncpa [#allocation23], 1

</llo_original>
